<compile_context>
chip_gen: v5e
topology: v5e:2x2
jax: 0.10.0
libtpu: 0.0.40
codegen_flags: <defaults>
</compile_context>

<pallas_src>
import functools
import math

import jax
import jax.numpy as jnp
from jax.experimental import pallas as pl
from jax.experimental.pallas import tpu as pltpu

_SQRT1_2 = 1.0 / math.sqrt(2.0)
_LN_EPS = 1e-5


# --------------------------------------------------------------------------
# In-kernel helpers (traced inside Pallas kernels)
# --------------------------------------------------------------------------
def _gelu(x):
    # exact (erf-based) GELU, matching PyTorch activation='gelu'
    return 0.5 * x * (1.0 + jax.lax.erf(x * _SQRT1_2))


def _layernorm(x, gamma, beta, eps=_LN_EPS):
    mu = jnp.mean(x, axis=-1, keepdims=True)
    var = jnp.mean(jnp.square(x - mu), axis=-1, keepdims=True)
    return (x - mu) * jax.lax.rsqrt(var + eps) * gamma + beta


def _softmax_rows(s):
    m = jnp.max(s, axis=-1, keepdims=True)
    e = jnp.exp(s - m)
    return e / jnp.sum(e, axis=-1, keepdims=True)      # exact divide (parity)


def _full_sum(v):
    # [R, C] -> [1, 1]  (lane reduce then sublane reduce; both XLU ops)
    return jnp.sum(jnp.sum(v, axis=1, keepdims=True), axis=0, keepdims=True)


def _encoder_stack(x, wA_ref, wB_ref, vec_ref, consts_ref, *, depth, num_heads,
                   emb, ff, bias):
    """Post-norm nn.TransformerEncoder (eval) on a 2-D [S, E] block.

    wA_ref:   [depth, E, 4E+F]   (Wqkv | Wo | Wff1 concatenated along lanes)
    wB_ref:   [depth, F, E]      (Wff2)
    vec_ref:  [depth, 8, Wv]     rows: bqkv, bo, bff1, bff2, ln1g, ln1b, ln2g, ln2b
    consts_ref: [3, E]           rows: (emb bias, unused here), final_g, final_b
    """
    E, F, H = emb, ff, num_heads
    Dh = E // H
    scale = 1.0 / math.sqrt(Dh)
    for li in range(depth):                    # short static unroll
        vb = vec_ref[li]                       # [8, Wv]
        # ---- fused full-width QKV projection (one MXU push)
        qkv = (jnp.dot(x, wA_ref[li, :, 0:3 * E],
                       preferred_element_type=jnp.float32) + vb[0:1, 0:3 * E])
        heads = []
        for h in range(H):                     # per-head score/softmax/PV only
            q = qkv[:, h * Dh:(h + 1) * Dh]
            k = qkv[:, E + h * Dh:E + (h + 1) * Dh]
            v = qkv[:, 2 * E + h * Dh:2 * E + (h + 1) * Dh]
            s = jax.lax.dot_general(q, k, (((1,), (1,)), ((), ())),
                                    preferred_element_type=jnp.float32) * scale
            if bias is not None:
                s = s + bias                   # +1.0 lower-triangle float bias
            p = _softmax_rows(s)
            heads.append(jnp.dot(p, v, preferred_element_type=jnp.float32))
        ctx = heads[0] if H == 1 else jnp.concatenate(heads, axis=-1)   # [S, E]
        # ---- single output projection on concatenated heads
        attn = (jnp.dot(ctx, wA_ref[li, :, 3 * E:4 * E],
                        preferred_element_type=jnp.float32) + vb[1:2, 0:E])
        x1 = _layernorm(x + attn, vb[4:5, 0:E], vb[5:6, 0:E])
        hmid = _gelu(jnp.dot(x1, wA_ref[li, :, 4 * E:4 * E + F],
                             preferred_element_type=jnp.float32) + vb[2:3, 0:F])
        hout = (jnp.dot(hmid, wB_ref[li], preferred_element_type=jnp.float32)
                + vb[3:4, 0:E])
        x = _layernorm(x1 + hout, vb[6:7, 0:E], vb[7:8, 0:E])
    # encoder's final LayerNorm (nn.TransformerEncoder norm=)
    return _layernorm(x, consts_ref[1:2, :], consts_ref[2:3, :])


# --------------------------------------------------------------------------
# Pallas kernels
# --------------------------------------------------------------------------
def _channel_attention_kernel(x_ref, kpm_ref, wqkv_ref, bqkv_ref, wo_ref,
                              vec_ref, o_ref, probs_ref, *, num_heads):
    """ChannelAttention: MHA over channels (emb = T) + residual + LayerNorm."""
    x = x_ref[0]                                  # [C, T]
    T = x.shape[-1]
    H = num_heads
    Dh = T // H
    scale = 1.0 / math.sqrt(Dh)
    bias = kpm_ref[0]                             # [1, C] additive key-padding bias

    qkv = (jnp.dot(x, wqkv_ref[...], preferred_element_type=jnp.float32)
           + bqkv_ref[...])                       # [C, 3T]
    heads = []
    p_sum = None
    for h in range(H):
        q = qkv[:, h * Dh:(h + 1) * Dh]
        k = qkv[:, T + h * Dh:T + (h + 1) * Dh]
        v = qkv[:, 2 * T + h * Dh:2 * T + (h + 1) * Dh]
        s = jax.lax.dot_general(q, k, (((1,), (1,)), ((), ())),
                                preferred_element_type=jnp.float32) * scale
        s = s + bias
        p = _softmax_rows(s)                      # exact (exported as weights)
        p_sum = p if p_sum is None else p_sum + p
        heads.append(jnp.dot(p, v, preferred_element_type=jnp.float32))
    ctx = heads[0] if H == 1 else jnp.concatenate(heads, axis=-1)       # [C, T]
    attn = (jnp.dot(ctx, wo_ref[...], preferred_element_type=jnp.float32)
            + vec_ref[0:1, :])
    o_ref[0] = _layernorm(x + attn, vec_ref[1:2, :], vec_ref[2:3, :])
    probs_ref[0] = p_sum * (1.0 / H)              # head-averaged attention weights


def _gtn_branches_kernel(p1_ref, p2_ref, pe_ref, tril_ref,
                         e1w_ref, c1_ref, wA1_ref, wB1_ref, vec1_ref,
                         e2w_ref, c2_ref, wA2_ref, wB2_ref, vec2_ref,
                         hw1_ref, hw2_ref, hb_ref, o_ref,
                         *, depth, num_heads, emb, ff):
    """Both transformer branches + gate + classifier, one batch element."""
    E, F = emb, ff

    # ---- branch 1: channel-pooled attention output -> temporal transformer
    x1 = (jnp.dot(p1_ref[0], e1w_ref[...], preferred_element_type=jnp.float32)
          + c1_ref[0:1, :])                       # [T, E]
    x1 = x1 + pe_ref[...]                         # positional encoding (or zeros)
    x1 = _encoder_stack(x1, wA1_ref, wB1_ref, vec1_ref, c1_ref,
                        depth=depth, num_heads=num_heads, emb=E, ff=F,
                        bias=tril_ref[...])       # +tril(ones) float bias

    # ---- branch 2: channel-pooled raw input -> transformer (no mask)
    x2 = (jnp.dot(p2_ref[0], e2w_ref[...], preferred_element_type=jnp.float32)
          + c2_ref[0:1, :])                       # [K, E]
    x2 = _encoder_stack(x2, wA2_ref, wB2_ref, vec2_ref, c2_ref,
                        depth=depth, num_heads=num_heads, emb=E, ff=F, bias=None)

    # ---- fused gate + classifier head
    #   clf(concat(a1*g0, a2*g1)) = g0*clf1(a1) + g1*clf2(a2)  (g is scalar/batch)
    # head weights are stored as [3, S, E] (rows: gate0, gate1, clf); each
    # contraction is an elementwise multiply + full reduction (no reshape needed).
    y1 = [_full_sum(x1 * hw1_ref[c]) for c in range(3)]      # three [1, 1]
    y2 = [_full_sum(x2 * hw2_ref[c]) for c in range(3)]
    hb = hb_ref[...]                                          # [1, 3]
    z0 = y1[0] + y2[0] + hb[:, 0:1]
    z1 = y1[1] + y2[1] + hb[:, 1:2]
    m = jnp.maximum(z0, z1)
    e0 = jnp.exp(z0 - m)
    e1 = jnp.exp(z1 - m)
    d = e0 + e1
    g0 = e0 / d                                               # exact gate softmax
    g1 = e1 / d
    logit = g0 * y1[2] + g1 * y2[2] + hb[:, 2:3]              # [1, 1]
    o_ref[0] = logit


# --------------------------------------------------------------------------
# pallas_call wrappers
# --------------------------------------------------------------------------
def _rep(shape):
    """BlockSpec for a grid-invariant (weight) array: full block, constant index."""
    n = len(shape)
    return pl.BlockSpec(shape, lambda b: (0,) * n)


def channel_attention(x_b1ct, p, num_heads):
    B, _, C, T = x_b1ct.shape
    temp = x_b1ct[:, 0]                                   # [B, C, T]
    mean = jnp.mean(temp, axis=-1)
    std = jnp.std(temp, axis=-1, ddof=1)                  # unbiased, like torch.std
    pad = (mean == 0.0) & (std == 0.0)                    # padded-channel detection
    kpm = jnp.where(pad, -1e9, 0.0).astype(jnp.float32)[:, None, :]    # [B, 1, C]

    xspec = pl.BlockSpec((1, C, T), lambda b: (b, 0, 0))
    out, probs = pl.pallas_call(
        functools.partial(_channel_attention_kernel, num_heads=num_heads),
        grid=(B,),
        in_specs=[
            xspec,
            pl.BlockSpec((1, 1, C), lambda b: (b, 0, 0)),
            _rep((T, 3 * T)), _rep((1, 3 * T)),
            _rep((T, T)), _rep((3, T)),
        ],
        out_specs=[xspec, pl.BlockSpec((1, C, C), lambda b: (b, 0, 0))],
        out_shape=[jax.ShapeDtypeStruct((B, C, T), jnp.float32),
                   jax.ShapeDtypeStruct((B, C, C), jnp.float32)],
        compiler_params=pltpu.CompilerParams(dimension_semantics=("parallel",)),
    )(temp, kpm, p["wqkv"], p["bqkv"], p["wo"], p["vec"])
    return out[:, None, :, :], probs


def gtn_branches(p1, p2, params, cfg):
    """One fused pallas_call: embeddings, both encoder stacks, gate+classifier."""
    B, T, K = p1.shape
    E = cfg["emb_size"]
    depth = cfg["depth"]
    H = cfg["num_heads"]
    F = cfg["expansion"] * E
    WV = max(3 * E, F)

    out = pl.pallas_call(
        functools.partial(_gtn_branches_kernel, depth=depth, num_heads=H,
                          emb=E, ff=F),
        grid=(B,),
        in_specs=[
            pl.BlockSpec((1, T, K), lambda b: (b, 0, 0)),     # pooled branch-1 in
            pl.BlockSpec((1, K, T), lambda b: (b, 0, 0)),     # pooled branch-2 in
            _rep((T, E)), _rep((T, T)),                        # PE table, tril bias
            _rep((K, E)), _rep((3, E)),                        # emb1_w, branch-1 consts
            _rep((depth, E, 4 * E + F)), _rep((depth, F, E)), _rep((depth, 8, WV)),
            _rep((T, E)), _rep((3, E)),                        # emb2_w, branch-2 consts
            _rep((depth, E, 4 * E + F)), _rep((depth, F, E)), _rep((depth, 8, WV)),
            _rep((3, T, E)), _rep((3, K, E)), _rep((1, 3)),    # head weights/bias
        ],
        out_specs=pl.BlockSpec((1, 1, 1), lambda b: (b, 0, 0)),
        out_shape=jax.ShapeDtypeStruct((B, 1, 1), jnp.float32),
        compiler_params=pltpu.CompilerParams(dimension_semantics=("parallel",)),
    )(p1, p2, params["pe"], params["tril"],
      params["emb1_w"], params["c1"], params["wA1"], params["wB1"], params["vec1"],
      params["emb2_w"], params["c2"], params["wA2"], params["wB2"], params["vec2"],
      params["hw1"], params["hw2"], params["hb"])
    return out[:, 0, 0]


# --------------------------------------------------------------------------
# Model glue (plain JAX, fused by XLA under jit)
# --------------------------------------------------------------------------
def adaptive_avg_pool_channels(x_b1ct, out_c):
    """AdaptiveAvgPool2d((out_c, T)): pool over channel dim, identity over time."""
    B, O, C, T = x_b1ct.shape
    pieces = []
    for i in range(out_c):
        start = (i * C) // out_c
        end = -((-(i + 1) * C) // out_c)          # ceil((i+1)*C/out_c)
        pieces.append(jnp.mean(x_b1ct[:, :, start:end, :], axis=2, keepdims=True))
    return jnp.concatenate(pieces, axis=2)         # [B, 1, out_c, T]


def gtn_forward(x_b1ct, params, cfg):
    K = cfg["channels_kernel"]

    attention_out, attention_weights = channel_attention(
        x_b1ct, params["channel_attention"], cfg["channel_num_heads"])

    # branch 1 input: pool channels of the attention output, 'b o c t -> b (o t) c'
    pooled1 = adaptive_avg_pool_channels(attention_out, K)[:, 0]      # [B, K, T]
    p1 = jnp.transpose(pooled1, (0, 2, 1))                            # [B, T, K]
    # branch 2 input: pool channels of the raw input, 'b o c t -> b (o c) t'
    p2 = adaptive_avg_pool_channels(x_b1ct, K)[:, 0]                  # [B, K, T]

    out = gtn_branches(p1, p2, params, cfg)                           # [B]
    return out, attention_weights


# --------------------------------------------------------------------------
# Parameter init (PyTorch layout) + one-time conversion to packed kernel layout
# --------------------------------------------------------------------------
def init_params(key, cfg):
    """PyTorch-layout params: weights [out, in], 1-D biases (as in GTN.__init__)."""
    T = cfg["n_time_points"]
    E = cfg["emb_size"]
    K = cfg["channels_kernel"]
    depth = cfg["depth"]
    F = cfg["expansion"] * E
    in_features = E * (K + T)

    keys = iter(jax.random.split(key, 256))

    def dense(out_f, in_f):  # xavier-uniform, PyTorch [out, in] layout
        limit = math.sqrt(6.0 / (in_f + out_f))
        return jax.random.uniform(next(keys), (out_f, in_f), jnp.float32, -limit, limit)

    zeros = lambda n: jnp.zeros((n,), jnp.float32)
    ones = lambda n: jnp.ones((n,), jnp.float32)

    def make_encoder_layer():
        return {
            "attn_in_w": dense(3 * E, E), "attn_in_b": zeros(3 * E),
            "attn_out_w": dense(E, E), "attn_out_b": zeros(E),
            "ff1_w": dense(F, E), "ff1_b": zeros(F),
            "ff2_w": dense(E, F), "ff2_b": zeros(E),
            "ln1_g": ones(E), "ln1_b": zeros(E),
            "ln2_g": ones(E), "ln2_b": zeros(E),
        }

    return {
        "channel_attention": {
            "in_w": dense(3 * T, T), "in_b": zeros(3 * T),
            "out_w": dense(T, T), "out_b": zeros(T),
            "ln_g": ones(T), "ln_b": zeros(T),
        },
        "emb1_w": dense(E, K), "emb1_b": zeros(E),
        "emb2_w": dense(E, T), "emb2_b": zeros(E),
        "tr1_layers": [make_encoder_layer() for _ in range(depth)],
        "tr1_norm_g": ones(E), "tr1_norm_b": zeros(E),
        "tr2_layers": [make_encoder_layer() for _ in range(depth)],
        "tr2_norm_g": ones(E), "tr2_norm_b": zeros(E),
        "gate_w": dense(2, in_features), "gate_b": zeros(2),
        "clf_w": dense(1, in_features), "clf_b": zeros(1),
    }


def prepare_params(params, cfg):
    """One-time conversion: transpose, depth-stack, pack slabs, PE + tril tables."""
    T = cfg["n_time_points"]
    E = cfg["emb_size"]
    K = cfg["channels_kernel"]
    F = cfg["expansion"] * E
    WV = max(3 * E, F)
    D1 = T * E

    # ---- channel attention (full-width QKV slab + small vector slab)
    ca = params["channel_attention"]
    ca_k = {
        "wqkv": jnp.transpose(ca["in_w"]),                       # [T, 3T]
        "bqkv": ca["in_b"].reshape(1, -1),                       # [1, 3T]
        "wo": jnp.transpose(ca["out_w"]),                        # [T, T]
        "vec": jnp.stack([ca["out_b"], ca["ln_g"], ca["ln_b"]], axis=0),   # [3, T]
    }

    def pad_row(v, width):
        return jnp.pad(v, (0, width - v.shape[0]))

    def branch_pack(layers, final_g, final_b, emb_w, emb_b):
        wA, wB, vec = [], [], []
        for p in layers:
            wqkv_t = jnp.transpose(p["attn_in_w"])               # [E, 3E]
            wo_t = jnp.transpose(p["attn_out_w"])                # [E, E]
            ff1_t = jnp.transpose(p["ff1_w"])                    # [E, F]
            ff2_t = jnp.transpose(p["ff2_w"])                    # [F, E]
            wA.append(jnp.concatenate([wqkv_t, wo_t, ff1_t], axis=1))   # [E, 4E+F]
            wB.append(ff2_t)
            rows = [p["attn_in_b"], p["attn_out_b"], p["ff1_b"], p["ff2_b"],
                    p["ln1_g"], p["ln1_b"], p["ln2_g"], p["ln2_b"]]
            vec.append(jnp.stack([pad_row(r, WV) for r in rows], axis=0))  # [8, WV]
        consts = jnp.stack([emb_b, final_g, final_b], axis=0)    # [3, E]
        return (jnp.stack(wA, 0), jnp.stack(wB, 0), jnp.stack(vec, 0),
                jnp.transpose(emb_w), consts)

    wA1, wB1, vec1, emb1_w, c1 = branch_pack(
        params["tr1_layers"], params["tr1_norm_g"], params["tr1_norm_b"],
        params["emb1_w"], params["emb1_b"])
    wA2, wB2, vec2, emb2_w, c2 = branch_pack(
        params["tr2_layers"], params["tr2_norm_g"], params["tr2_norm_b"],
        params["emb2_w"], params["emb2_b"])

    # ---- fused gate + classifier head: rows = (gate logit 0, gate logit 1, clf)
    hw = jnp.concatenate([params["gate_w"], params["clf_w"]], axis=0)   # [3, D1+D2]
    hw1 = hw[:, :D1].reshape(3, T, E)          # contracted against encoder_1 [T, E]
    hw2 = hw[:, D1:].reshape(3, K, E)          # contracted against encoder_2 [K, E]
    hb = jnp.concatenate([params["gate_b"], params["clf_b"]]).reshape(1, 3)

    # ---- positional encoding table (matches the PyTorch sin/cos interleave)
    if cfg["positional_encoding"]:
        pos = jnp.arange(T, dtype=jnp.float32)[:, None]
        div = jnp.exp(jnp.arange(0, E, 2, dtype=jnp.float32)
                      * (-(math.log(10000.0) / E)))[None, :]
        ang = pos @ div
        pe = jnp.ones((T, E), jnp.float32)
        pe = pe.at[:, 0::2].set(jnp.sin(ang))
        pe = pe.at[:, 1::2].set(jnp.cos(ang))
    else:
        pe = jnp.zeros((T, E), jnp.float32)

    # The original model adds tril(ones) as a *float* attn_mask (+1.0 on the
    # lower triangle), NOT a -inf causal mask; reproduce that faithfully.
    tril = jnp.tril(jnp.ones((T, T), jnp.float32))

    return {
        "channel_attention": ca_k,
        "pe": pe, "tril": tril,
        "emb1_w": emb1_w, "c1": c1, "wA1": wA1, "wB1": wB1, "vec1": vec1,
        "emb2_w": emb2_w, "c2": c2, "wA2": wA2, "wB2": wB2, "vec2": vec2,
        "hw1": hw1, "hw2": hw2, "hb": hb,
    }


# --------------------------------------------------------------------------
if __name__ == "__main__":
    # Small config consistent with GTN: heads divide emb sizes, T > K.
    cfg = dict(
        n_time_points=32,     # emb size of the channel attention
        channel_num_heads=1,
        emb_size=32,
        positional_encoding=True,
        channels_kernel=4,
        depth=2,
        num_heads=4,
        expansion=2,
    )
    B, C = 2, 8               # batch, EEG channels

    key = jax.random.PRNGKey(0)
    k_x, k_p = jax.random.split(key)
    x = jax.random.normal(k_x, (B, 1, C, cfg["n_time_points"]), jnp.float32)

    torch_layout_params = init_params(k_p, cfg)
    kparams = prepare_params(torch_layout_params, cfg)   # one-time layout conversion

    fwd = jax.jit(functools.partial(gtn_forward, cfg=cfg))
    out, attn_w = fwd(x, kparams)
    jax.block_until_ready((out, attn_w))

    assert out.shape == (B,), out.shape
    assert attn_w.shape == (B, C, C), attn_w.shape
    assert bool(jnp.all(jnp.isfinite(out))) and bool(jnp.all(jnp.isfinite(attn_w)))
    print("KERNEL_OK")
</pallas_src>

<mosaic_0001>
module attributes {stable_mosaic.version = 11 : i64} {
  func.func @_channel_attention_kernel(%arg0: i32, %arg1: memref<1x8x32xf32, #tpu.memory_space<vmem>>, %arg2: memref<1x1x8xf32, #tpu.memory_space<vmem>>, %arg3: memref<32x96xf32, #tpu.memory_space<vmem>>, %arg4: memref<1x96xf32, #tpu.memory_space<vmem>>, %arg5: memref<32x32xf32, #tpu.memory_space<vmem>>, %arg6: memref<3x32xf32, #tpu.memory_space<vmem>>, %arg7: memref<1x8x32xf32, #tpu.memory_space<vmem>>, %arg8: memref<1x8x8xf32, #tpu.memory_space<vmem>>) attributes {dimension_semantics = [#tpu.dimension_semantics<parallel>], iteration_bounds = array<i64: 2>, scalar_prefetch = 0 : i64, scratch_operands = 0 : i64, tpu.core_type = #tpu.core_type<tc>, window_params = [{transform_indices = @transform_0, window_bounds = array<i64: 1, 8, 32>}, {transform_indices = @transform_1, window_bounds = array<i64: 1, 1, 8>}, {pipeline_mode = #tpu.pipeline_mode<synchronous>, transform_indices = @transform_2, window_bounds = array<i64: 32, 96>}, {pipeline_mode = #tpu.pipeline_mode<synchronous>, transform_indices = @transform_3, window_bounds = array<i64: 1, 96>}, {pipeline_mode = #tpu.pipeline_mode<synchronous>, transform_indices = @transform_4, window_bounds = array<i64: 32, 32>}, {pipeline_mode = #tpu.pipeline_mode<synchronous>, transform_indices = @transform_5, window_bounds = array<i64: 3, 32>}, {transform_indices = @transform_6, window_bounds = array<i64: 1, 8, 32>}, {transform_indices = @transform_7, window_bounds = array<i64: 1, 8, 8>}]} {
    %c0 = arith.constant 0 : index
    %c0_0 = arith.constant 0 : index
    %c0_1 = arith.constant 0 : index
    %0 = vector.load %arg1[%c0, %c0_0, %c0_1] : memref<1x8x32xf32, #tpu.memory_space<vmem>>, vector<1x8x32xf32>
    %1 = vector.shape_cast %0 : vector<1x8x32xf32> to vector<8x32xf32>
    %c0_2 = arith.constant 0 : index
    %c0_3 = arith.constant 0 : index
    %c0_4 = arith.constant 0 : index
    %2 = vector.load %arg2[%c0_2, %c0_3, %c0_4] : memref<1x1x8xf32, #tpu.memory_space<vmem>>, vector<1x1x8xf32>
    %3 = vector.shape_cast %2 : vector<1x1x8xf32> to vector<1x8xf32>
    %c0_5 = arith.constant 0 : index
    %c0_6 = arith.constant 0 : index
    %4 = vector.load %arg3[%c0_5, %c0_6] : memref<32x96xf32, #tpu.memory_space<vmem>>, vector<32x96xf32>
    %cst = arith.constant dense<0.000000e+00> : vector<8x96xf32>
    %5 = tpu.matmul %1, %4, %cst {dimension_numbers = #tpu.dot_dimension_numbers<[1], [0], [0], [1], [0, 0, 1, 1], [], []>} : vector<8x32xf32>, vector<32x96xf32>, vector<8x96xf32> -> vector<8x96xf32>
    %c0_7 = arith.constant 0 : index
    %c0_8 = arith.constant 0 : index
    %6 = vector.load %arg4[%c0_7, %c0_8] : memref<1x96xf32, #tpu.memory_space<vmem>>, vector<1x96xf32>
    %7 = vector.broadcast %6 : vector<1x96xf32> to vector<8x96xf32>
    %8 = arith.addf %5, %7 : vector<8x96xf32>
    %9 = vector.extract_strided_slice %8 {offsets = [0, 0], sizes = [8, 32], strides = [1, 1]} : vector<8x96xf32> to vector<8x32xf32>
    %10 = vector.extract_strided_slice %8 {offsets = [0, 32], sizes = [8, 32], strides = [1, 1]} : vector<8x96xf32> to vector<8x32xf32>
    %11 = vector.extract_strided_slice %8 {offsets = [0, 64], sizes = [8, 32], strides = [1, 1]} : vector<8x96xf32> to vector<8x32xf32>
    %cst_9 = arith.constant dense<0.000000e+00> : vector<8x8xf32>
    %12 = tpu.matmul %9, %10, %cst_9 {dimension_numbers = #tpu.dot_dimension_numbers<[1], [1], [0], [0], [0, 0, 1, 0], [], []>} : vector<8x32xf32>, vector<8x32xf32>, vector<8x8xf32> -> vector<8x8xf32>
    %cst_10 = arith.constant 0.176776692 : f32
    %13 = vector.broadcast %cst_10 : f32 to vector<8x8xf32>
    %14 = arith.mulf %12, %13 : vector<8x8xf32>
    %15 = vector.broadcast %3 : vector<1x8xf32> to vector<8x8xf32>
    %16 = arith.addf %14, %15 : vector<8x8xf32>
    %cst_11 = arith.constant dense<0xFF800000> : vector<8xf32>
    %17 = vector.multi_reduction <maximumf>, %16, %cst_11 [1] : vector<8x8xf32> to vector<8xf32>
    %18 = vector.shape_cast %17 : vector<8xf32> to vector<8x1xf32>
    %19 = vector.broadcast %18 : vector<8x1xf32> to vector<8x8xf32>
    %20 = arith.subf %16, %19 : vector<8x8xf32>
    %21 = math.exp %20 : vector<8x8xf32>
    %cst_12 = arith.constant dense<0.000000e+00> : vector<8xf32>
    %22 = vector.multi_reduction <add>, %21, %cst_12 [1] : vector<8x8xf32> to vector<8xf32>
    %23 = vector.shape_cast %22 : vector<8xf32> to vector<8x1xf32>
    %24 = vector.broadcast %23 : vector<8x1xf32> to vector<8x8xf32>
    %25 = arith.divf %21, %24 : vector<8x8xf32>
    %cst_13 = arith.constant dense<0.000000e+00> : vector<8x32xf32>
    %26 = tpu.matmul %25, %11, %cst_13 {dimension_numbers = #tpu.dot_dimension_numbers<[1], [0], [0], [1], [0, 0, 1, 1], [], []>} : vector<8x8xf32>, vector<8x32xf32>, vector<8x32xf32> -> vector<8x32xf32>
    %c0_14 = arith.constant 0 : index
    %c0_15 = arith.constant 0 : index
    %27 = vector.load %arg5[%c0_14, %c0_15] : memref<32x32xf32, #tpu.memory_space<vmem>>, vector<32x32xf32>
    %cst_16 = arith.constant dense<0.000000e+00> : vector<8x32xf32>
    %28 = tpu.matmul %26, %27, %cst_16 {dimension_numbers = #tpu.dot_dimension_numbers<[1], [0], [0], [1], [0, 0, 1, 1], [], []>} : vector<8x32xf32>, vector<32x32xf32>, vector<8x32xf32> -> vector<8x32xf32>
    %c0_17 = arith.constant 0 : index
    %c0_18 = arith.constant 0 : index
    %29 = vector.load %arg6[%c0_17, %c0_18] : memref<3x32xf32, #tpu.memory_space<vmem>>, vector<1x32xf32>
    %30 = vector.broadcast %29 : vector<1x32xf32> to vector<8x32xf32>
    %31 = arith.addf %28, %30 : vector<8x32xf32>
    %32 = arith.addf %1, %31 : vector<8x32xf32>
    %c1 = arith.constant 1 : index
    %c0_19 = arith.constant 0 : index
    %33 = vector.load %arg6[%c1, %c0_19] : memref<3x32xf32, #tpu.memory_space<vmem>>, vector<1x32xf32>
    %c2 = arith.constant 2 : index
    %c0_20 = arith.constant 0 : index
    %34 = vector.load %arg6[%c2, %c0_20] : memref<3x32xf32, #tpu.memory_space<vmem>>, vector<1x32xf32>
    %cst_21 = arith.constant dense<0.000000e+00> : vector<8xf32>
    %35 = vector.multi_reduction <add>, %32, %cst_21 [1] : vector<8x32xf32> to vector<8xf32>
    %36 = vector.shape_cast %35 : vector<8xf32> to vector<8x1xf32>
    %cst_22 = arith.constant 3.200000e+01 : f32
    %37 = vector.broadcast %cst_22 : f32 to vector<8x1xf32>
    %38 = arith.divf %36, %37 : vector<8x1xf32>
    %39 = vector.broadcast %38 : vector<8x1xf32> to vector<8x32xf32>
    %40 = arith.subf %32, %39 : vector<8x32xf32>
    %41 = arith.mulf %40, %40 : vector<8x32xf32>
    %cst_23 = arith.constant dense<0.000000e+00> : vector<8xf32>
    %42 = vector.multi_reduction <add>, %41, %cst_23 [1] : vector<8x32xf32> to vector<8xf32>
    %43 = vector.shape_cast %42 : vector<8xf32> to vector<8x1xf32>
    %cst_24 = arith.constant 3.200000e+01 : f32
    %44 = vector.broadcast %cst_24 : f32 to vector<8x1xf32>
    %45 = arith.divf %43, %44 : vector<8x1xf32>
    %46 = vector.broadcast %38 : vector<8x1xf32> to vector<8x32xf32>
    %47 = arith.subf %32, %46 : vector<8x32xf32>
    %cst_25 = arith.constant 9.99999974E-6 : f32
    %48 = vector.broadcast %cst_25 : f32 to vector<8x1xf32>
    %49 = arith.addf %45, %48 : vector<8x1xf32>
    %50 = math.rsqrt %49 : vector<8x1xf32>
    %51 = vector.broadcast %50 : vector<8x1xf32> to vector<8x32xf32>
    %52 = arith.mulf %47, %51 : vector<8x32xf32>
    %53 = vector.broadcast %33 : vector<1x32xf32> to vector<8x32xf32>
    %54 = arith.mulf %52, %53 : vector<8x32xf32>
    %55 = vector.broadcast %34 : vector<1x32xf32> to vector<8x32xf32>
    %56 = arith.addf %54, %55 : vector<8x32xf32>
    %c0_26 = arith.constant 0 : index
    %c0_27 = arith.constant 0 : index
    %c0_28 = arith.constant 0 : index
    %57 = vector.load %arg7[%c0_26, %c0_27, %c0_28] : memref<1x8x32xf32, #tpu.memory_space<vmem>>, vector<1x8x32xf32>
    %58 = vector.shape_cast %57 : vector<1x8x32xf32> to vector<8x32xf32>
    %59 = vector.shape_cast %56 : vector<8x32xf32> to vector<1x8x32xf32>
    tpu.vector_store %arg7[%c0_26, %c0_27, %c0_28], %59 {strides = array<i32>} : memref<1x8x32xf32, #tpu.memory_space<vmem>>, vector<1x8x32xf32>,
    %cst_29 = arith.constant 1.000000e+00 : f32
    %60 = vector.broadcast %cst_29 : f32 to vector<8x8xf32>
    %61 = arith.mulf %25, %60 : vector<8x8xf32>
    %c0_30 = arith.constant 0 : index
    %c0_31 = arith.constant 0 : index
    %c0_32 = arith.constant 0 : index
    %62 = vector.load %arg8[%c0_30, %c0_31, %c0_32] : memref<1x8x8xf32, #tpu.memory_space<vmem>>, vector<1x8x8xf32>
    %63 = vector.shape_cast %62 : vector<1x8x8xf32> to vector<8x8xf32>
    %64 = vector.shape_cast %61 : vector<8x8xf32> to vector<1x8x8xf32>
    tpu.vector_store %arg8[%c0_30, %c0_31, %c0_32], %64 {strides = array<i32>} : memref<1x8x8xf32, #tpu.memory_space<vmem>>, vector<1x8x8xf32>,
    return
  }
  func.func @transform_0(%arg0: i32) -> (i32, i32, i32) {
    %c0_i32 = arith.constant 0 : i32
    %c0_i32_0 = arith.constant 0 : i32
    %c0_i32_1 = arith.constant 0 : i32
    return %arg0, %c0_i32, %c0_i32_0 : i32, i32, i32
  }
  func.func @transform_1(%arg0: i32) -> (i32, i32, i32) {
    %c0_i32 = arith.constant 0 : i32
    %c0_i32_0 = arith.constant 0 : i32
    %c0_i32_1 = arith.constant 0 : i32
    return %arg0, %c0_i32, %c0_i32_0 : i32, i32, i32
  }
  func.func @transform_2(%arg0: i32) -> (i32, i32) {
    %c0_i32 = arith.constant 0 : i32
    %c0_i32_0 = arith.constant 0 : i32
    %c0_i32_1 = arith.constant 0 : i32
    return %c0_i32, %c0_i32_0 : i32, i32
  }
  func.func @transform_3(%arg0: i32) -> (i32, i32) {
    %c0_i32 = arith.constant 0 : i32
    %c0_i32_0 = arith.constant 0 : i32
    %c0_i32_1 = arith.constant 0 : i32
    return %c0_i32, %c0_i32_0 : i32, i32
  }
  func.func @transform_4(%arg0: i32) -> (i32, i32) {
    %c0_i32 = arith.constant 0 : i32
    %c0_i32_0 = arith.constant 0 : i32
    %c0_i32_1 = arith.constant 0 : i32
    return %c0_i32, %c0_i32_0 : i32, i32
  }
  func.func @transform_5(%arg0: i32) -> (i32, i32) {
    %c0_i32 = arith.constant 0 : i32
    %c0_i32_0 = arith.constant 0 : i32
    %c0_i32_1 = arith.constant 0 : i32
    return %c0_i32, %c0_i32_0 : i32, i32
  }
  func.func @transform_6(%arg0: i32) -> (i32, i32, i32) {
    %c0_i32 = arith.constant 0 : i32
    %c0_i32_0 = arith.constant 0 : i32
    %c0_i32_1 = arith.constant 0 : i32
    return %arg0, %c0_i32, %c0_i32_0 : i32, i32, i32
  }
  func.func @transform_7(%arg0: i32) -> (i32, i32, i32) {
    %c0_i32 = arith.constant 0 : i32
    %c0_i32_0 = arith.constant 0 : i32
    %c0_i32_1 = arith.constant 0 : i32
    return %arg0, %c0_i32, %c0_i32_0 : i32, i32, i32
  }
}

module attributes {stable_mosaic.version = 11 : i64} {
  func.func @_gtn_branches_kernel(%arg0: i32, %arg1: memref<1x32x4xf32, #tpu.memory_space<vmem>>, %arg2: memref<1x4x32xf32, #tpu.memory_space<vmem>>, %arg3: memref<32x32xf32, #tpu.memory_space<vmem>>, %arg4: memref<32x32xf32, #tpu.memory_space<vmem>>, %arg5: memref<4x32xf32, #tpu.memory_space<vmem>>, %arg6: memref<3x32xf32, #tpu.memory_space<vmem>>, %arg7: memref<2x32x192xf32, #tpu.memory_space<vmem>>, %arg8: memref<2x64x32xf32, #tpu.memory_space<vmem>>, %arg9: memref<2x8x96xf32, #tpu.memory_space<vmem>>, %arg10: memref<32x32xf32, #tpu.memory_space<vmem>>, %arg11: memref<3x32xf32, #tpu.memory_space<vmem>>, %arg12: memref<2x32x192xf32, #tpu.memory_space<vmem>>, %arg13: memref<2x64x32xf32, #tpu.memory_space<vmem>>, %arg14: memref<2x8x96xf32, #tpu.memory_space<vmem>>, %arg15: memref<3x32x32xf32, #tpu.memory_space<vmem>>, %arg16: memref<3x4x32xf32, #tpu.memory_space<vmem>>, %arg17: memref<1x3xf32, #tpu.memory_space<vmem>>, %arg18: memref<1x1x1xf32, #tpu.memory_space<vmem>>) attributes {dimension_semantics = [#tpu.dimension_semantics<parallel>], iteration_bounds = array<i64: 2>, scalar_prefetch = 0 : i64, scratch_operands = 0 : i64, tpu.core_type = #tpu.core_type<tc>, window_params = [{transform_indices = @transform_0, window_bounds = array<i64: 1, 32, 4>}, {transform_indices = @transform_1, window_bounds = array<i64: 1, 4, 32>}, {pipeline_mode = #tpu.pipeline_mode<synchronous>, transform_indices = @transform_2, window_bounds = array<i64: 32, 32>}, {pipeline_mode = #tpu.pipeline_mode<synchronous>, transform_indices = @transform_3, window_bounds = array<i64: 32, 32>}, {pipeline_mode = #tpu.pipeline_mode<synchronous>, transform_indices = @transform_4, window_bounds = array<i64: 4, 32>}, {pipeline_mode = #tpu.pipeline_mode<synchronous>, transform_indices = @transform_5, window_bounds = array<i64: 3, 32>}, {pipeline_mode = #tpu.pipeline_mode<synchronous>, transform_indices = @transform_6, window_bounds = array<i64: 2, 32, 192>}, {pipeline_mode = #tpu.pipeline_mode<synchronous>, transform_indices = @transform_7, window_bounds = array<i64: 2, 64, 32>}, {pipeline_mode = #tpu.pipeline_mode<synchronous>, transform_indices = @transform_8, window_bounds = array<i64: 2, 8, 96>}, {pipeline_mode = #tpu.pipeline_mode<synchronous>, transform_indices = @transform_9, window_bounds = array<i64: 32, 32>}, {pipeline_mode = #tpu.pipeline_mode<synchronous>, transform_indices = @transform_10, window_bounds = array<i64: 3, 32>}, {pipeline_mode = #tpu.pipeline_mode<synchronous>, transform_indices = @transform_11, window_bounds = array<i64: 2, 32, 192>}, {pipeline_mode = #tpu.pipeline_mode<synchronous>, transform_indices = @transform_12, window_bounds = array<i64: 2, 64, 32>}, {pipeline_mode = #tpu.pipeline_mode<synchronous>, transform_indices = @transform_13, window_bounds = array<i64: 2, 8, 96>}, {pipeline_mode = #tpu.pipeline_mode<synchronous>, transform_indices = @transform_14, window_bounds = array<i64: 3, 32, 32>}, {pipeline_mode = #tpu.pipeline_mode<synchronous>, transform_indices = @transform_15, window_bounds = array<i64: 3, 4, 32>}, {pipeline_mode = #tpu.pipeline_mode<synchronous>, transform_indices = @transform_16, window_bounds = array<i64: 1, 3>}, {transform_indices = @transform_17, window_bounds = array<i64: 1, 1, 1>}]} {
    %c0 = arith.constant 0 : index
    %c0_0 = arith.constant 0 : index
    %c0_1 = arith.constant 0 : index
    %0 = vector.load %arg1[%c0, %c0_0, %c0_1] : memref<1x32x4xf32, #tpu.memory_space<vmem>>, vector<1x32x4xf32>
    %1 = vector.shape_cast %0 : vector<1x32x4xf32> to vector<32x4xf32>
    %c0_2 = arith.constant 0 : index
    %c0_3 = arith.constant 0 : index
    %2 = vector.load %arg5[%c0_2, %c0_3] : memref<4x32xf32, #tpu.memory_space<vmem>>, vector<4x32xf32>
    %cst = arith.constant dense<0.000000e+00> : vector<32x32xf32>
    %3 = tpu.matmul %1, %2, %cst {dimension_numbers = #tpu.dot_dimension_numbers<[1], [0], [0], [1], [0, 0, 1, 1], [], []>} : vector<32x4xf32>, vector<4x32xf32>, vector<32x32xf32> -> vector<32x32xf32>
    %c0_4 = arith.constant 0 : index
    %c0_5 = arith.constant 0 : index
    %4 = vector.load %arg6[%c0_4, %c0_5] : memref<3x32xf32, #tpu.memory_space<vmem>>, vector<1x32xf32>
    %5 = vector.broadcast %4 : vector<1x32xf32> to vector<32x32xf32>
    %6 = arith.addf %3, %5 : vector<32x32xf32>
    %c0_6 = arith.constant 0 : index
    %c0_7 = arith.constant 0 : index
    %7 = vector.load %arg3[%c0_6, %c0_7] : memref<32x32xf32, #tpu.memory_space<vmem>>, vector<32x32xf32>
    %8 = arith.addf %6, %7 : vector<32x32xf32>
    %c0_8 = arith.constant 0 : index
    %c0_9 = arith.constant 0 : index
    %9 = vector.load %arg4[%c0_8, %c0_9] : memref<32x32xf32, #tpu.memory_space<vmem>>, vector<32x32xf32>
    %c0_10 = arith.constant 0 : index
    %c0_11 = arith.constant 0 : index
    %c0_12 = arith.constant 0 : index
    %10 = vector.load %arg9[%c0_10, %c0_11, %c0_12] : memref<2x8x96xf32, #tpu.memory_space<vmem>>, vector<1x8x96xf32>
    %11 = vector.shape_cast %10 : vector<1x8x96xf32> to vector<8x96xf32>
    %c0_13 = arith.constant 0 : index
    %c0_14 = arith.constant 0 : index
    %c0_15 = arith.constant 0 : index
    %12 = vector.load %arg7[%c0_13, %c0_14, %c0_15] : memref<2x32x192xf32, #tpu.memory_space<vmem>>, vector<1x32x96xf32>
    %13 = vector.shape_cast %12 : vector<1x32x96xf32> to vector<32x96xf32>
    %cst_16 = arith.constant dense<0.000000e+00> : vector<32x96xf32>
    %14 = tpu.matmul %8, %13, %cst_16 {dimension_numbers = #tpu.dot_dimension_numbers<[1], [0], [0], [1], [0, 0, 1, 1], [], []>} : vector<32x32xf32>, vector<32x96xf32>, vector<32x96xf32> -> vector<32x96xf32>
    %15 = vector.extract_strided_slice %11 {offsets = [0, 0], sizes = [1, 96], strides = [1, 1]} : vector<8x96xf32> to vector<1x96xf32>
    %16 = vector.broadcast %15 : vector<1x96xf32> to vector<32x96xf32>
    %17 = arith.addf %14, %16 : vector<32x96xf32>
    %18 = vector.extract_strided_slice %17 {offsets = [0, 0], sizes = [32, 8], strides = [1, 1]} : vector<32x96xf32> to vector<32x8xf32>
    %19 = vector.extract_strided_slice %17 {offsets = [0, 32], sizes = [32, 8], strides = [1, 1]} : vector<32x96xf32> to vector<32x8xf32>
    %20 = vector.extract_strided_slice %17 {offsets = [0, 64], sizes = [32, 8], strides = [1, 1]} : vector<32x96xf32> to vector<32x8xf32>
    %cst_17 = arith.constant dense<0.000000e+00> : vector<32x32xf32>
    %21 = tpu.matmul %18, %19, %cst_17 {dimension_numbers = #tpu.dot_dimension_numbers<[1], [1], [0], [0], [0, 0, 1, 0], [], []>} : vector<32x8xf32>, vector<32x8xf32>, vector<32x32xf32> -> vector<32x32xf32>
    %cst_18 = arith.constant 0.353553385 : f32
    %22 = vector.broadcast %cst_18 : f32 to vector<32x32xf32>
    %23 = arith.mulf %21, %22 : vector<32x32xf32>
    %24 = arith.addf %23, %9 : vector<32x32xf32>
    %cst_19 = arith.constant dense<0xFF800000> : vector<32xf32>
    %25 = vector.multi_reduction <maximumf>, %24, %cst_19 [1] : vector<32x32xf32> to vector<32xf32>
    %26 = vector.shape_cast %25 : vector<32xf32> to vector<32x1xf32>
    %27 = vector.broadcast %26 : vector<32x1xf32> to vector<32x32xf32>
    %28 = arith.subf %24, %27 : vector<32x32xf32>
    %29 = math.exp %28 : vector<32x32xf32>
    %cst_20 = arith.constant dense<0.000000e+00> : vector<32xf32>
    %30 = vector.multi_reduction <add>, %29, %cst_20 [1] : vector<32x32xf32> to vector<32xf32>
    %31 = vector.shape_cast %30 : vector<32xf32> to vector<32x1xf32>
    %32 = vector.broadcast %31 : vector<32x1xf32> to vector<32x32xf32>
    %33 = arith.divf %29, %32 : vector<32x32xf32>
    %cst_21 = arith.constant dense<0.000000e+00> : vector<32x8xf32>
    %34 = tpu.matmul %33, %20, %cst_21 {dimension_numbers = #tpu.dot_dimension_numbers<[1], [0], [0], [1], [0, 0, 1, 1], [], []>} : vector<32x32xf32>, vector<32x8xf32>, vector<32x8xf32> -> vector<32x8xf32>
    %35 = vector.extract_strided_slice %17 {offsets = [0, 8], sizes = [32, 8], strides = [1, 1]} : vector<32x96xf32> to vector<32x8xf32>
    %36 = vector.extract_strided_slice %17 {offsets = [0, 40], sizes = [32, 8], strides = [1, 1]} : vector<32x96xf32> to vector<32x8xf32>
    %37 = vector.extract_strided_slice %17 {offsets = [0, 72], sizes = [32, 8], strides = [1, 1]} : vector<32x96xf32> to vector<32x8xf32>
    %cst_22 = arith.constant dense<0.000000e+00> : vector<32x32xf32>
    %38 = tpu.matmul %35, %36, %cst_22 {dimension_numbers = #tpu.dot_dimension_numbers<[1], [1], [0], [0], [0, 0, 1, 0], [], []>} : vector<32x8xf32>, vector<32x8xf32>, vector<32x32xf32> -> vector<32x32xf32>
    %cst_23 = arith.constant 0.353553385 : f32
    %39 = vector.broadcast %cst_23 : f32 to vector<32x32xf32>
    %40 = arith.mulf %38, %39 : vector<32x32xf32>
    %41 = arith.addf %40, %9 : vector<32x32xf32>
    %cst_24 = arith.constant dense<0xFF800000> : vector<32xf32>
    %42 = vector.multi_reduction <maximumf>, %41, %cst_24 [1] : vector<32x32xf32> to vector<32xf32>
    %43 = vector.shape_cast %42 : vector<32xf32> to vector<32x1xf32>
    %44 = vector.broadcast %43 : vector<32x1xf32> to vector<32x32xf32>
    %45 = arith.subf %41, %44 : vector<32x32xf32>
    %46 = math.exp %45 : vector<32x32xf32>
    %cst_25 = arith.constant dense<0.000000e+00> : vector<32xf32>
    %47 = vector.multi_reduction <add>, %46, %cst_25 [1] : vector<32x32xf32> to vector<32xf32>
    %48 = vector.shape_cast %47 : vector<32xf32> to vector<32x1xf32>
    %49 = vector.broadcast %48 : vector<32x1xf32> to vector<32x32xf32>
    %50 = arith.divf %46, %49 : vector<32x32xf32>
    %cst_26 = arith.constant dense<0.000000e+00> : vector<32x8xf32>
    %51 = tpu.matmul %50, %37, %cst_26 {dimension_numbers = #tpu.dot_dimension_numbers<[1], [0], [0], [1], [0, 0, 1, 1], [], []>} : vector<32x32xf32>, vector<32x8xf32>, vector<32x8xf32> -> vector<32x8xf32>
    %52 = vector.extract_strided_slice %17 {offsets = [0, 16], sizes = [32, 8], strides = [1, 1]} : vector<32x96xf32> to vector<32x8xf32>
    %53 = vector.extract_strided_slice %17 {offsets = [0, 48], sizes = [32, 8], strides = [1, 1]} : vector<32x96xf32> to vector<32x8xf32>
    %54 = vector.extract_strided_slice %17 {offsets = [0, 80], sizes = [32, 8], strides = [1, 1]} : vector<32x96xf32> to vector<32x8xf32>
    %cst_27 = arith.constant dense<0.000000e+00> : vector<32x32xf32>
    %55 = tpu.matmul %52, %53, %cst_27 {dimension_numbers = #tpu.dot_dimension_numbers<[1], [1], [0], [0], [0, 0, 1, 0], [], []>} : vector<32x8xf32>, vector<32x8xf32>, vector<32x32xf32> -> vector<32x32xf32>
    %cst_28 = arith.constant 0.353553385 : f32
    %56 = vector.broadcast %cst_28 : f32 to vector<32x32xf32>
    %57 = arith.mulf %55, %56 : vector<32x32xf32>
    %58 = arith.addf %57, %9 : vector<32x32xf32>
    %cst_29 = arith.constant dense<0xFF800000> : vector<32xf32>
    %59 = vector.multi_reduction <maximumf>, %58, %cst_29 [1] : vector<32x32xf32> to vector<32xf32>
    %60 = vector.shape_cast %59 : vector<32xf32> to vector<32x1xf32>
    %61 = vector.broadcast %60 : vector<32x1xf32> to vector<32x32xf32>
    %62 = arith.subf %58, %61 : vector<32x32xf32>
    %63 = math.exp %62 : vector<32x32xf32>
    %cst_30 = arith.constant dense<0.000000e+00> : vector<32xf32>
    %64 = vector.multi_reduction <add>, %63, %cst_30 [1] : vector<32x32xf32> to vector<32xf32>
    %65 = vector.shape_cast %64 : vector<32xf32> to vector<32x1xf32>
    %66 = vector.broadcast %65 : vector<32x1xf32> to vector<32x32xf32>
    %67 = arith.divf %63, %66 : vector<32x32xf32>
    %cst_31 = arith.constant dense<0.000000e+00> : vector<32x8xf32>
    %68 = tpu.matmul %67, %54, %cst_31 {dimension_numbers = #tpu.dot_dimension_numbers<[1], [0], [0], [1], [0, 0, 1, 1], [], []>} : vector<32x32xf32>, vector<32x8xf32>, vector<32x8xf32> -> vector<32x8xf32>
    %69 = vector.extract_strided_slice %17 {offsets = [0, 24], sizes = [32, 8], strides = [1, 1]} : vector<32x96xf32> to vector<32x8xf32>
    %70 = vector.extract_strided_slice %17 {offsets = [0, 56], sizes = [32, 8], strides = [1, 1]} : vector<32x96xf32> to vector<32x8xf32>
    %71 = vector.extract_strided_slice %17 {offsets = [0, 88], sizes = [32, 8], strides = [1, 1]} : vector<32x96xf32> to vector<32x8xf32>
    %cst_32 = arith.constant dense<0.000000e+00> : vector<32x32xf32>
    %72 = tpu.matmul %69, %70, %cst_32 {dimension_numbers = #tpu.dot_dimension_numbers<[1], [1], [0], [0], [0, 0, 1, 0], [], []>} : vector<32x8xf32>, vector<32x8xf32>, vector<32x32xf32> -> vector<32x32xf32>
    %cst_33 = arith.constant 0.353553385 : f32
    %73 = vector.broadcast %cst_33 : f32 to vector<32x32xf32>
    %74 = arith.mulf %72, %73 : vector<32x32xf32>
    %75 = arith.addf %74, %9 : vector<32x32xf32>
    %cst_34 = arith.constant dense<0xFF800000> : vector<32xf32>
    %76 = vector.multi_reduction <maximumf>, %75, %cst_34 [1] : vector<32x32xf32> to vector<32xf32>
    %77 = vector.shape_cast %76 : vector<32xf32> to vector<32x1xf32>
    %78 = vector.broadcast %77 : vector<32x1xf32> to vector<32x32xf32>
    %79 = arith.subf %75, %78 : vector<32x32xf32>
    %80 = math.exp %79 : vector<32x32xf32>
    %cst_35 = arith.constant dense<0.000000e+00> : vector<32xf32>
    %81 = vector.multi_reduction <add>, %80, %cst_35 [1] : vector<32x32xf32> to vector<32xf32>
    %82 = vector.shape_cast %81 : vector<32xf32> to vector<32x1xf32>
    %83 = vector.broadcast %82 : vector<32x1xf32> to vector<32x32xf32>
    %84 = arith.divf %80, %83 : vector<32x32xf32>
    %cst_36 = arith.constant dense<0.000000e+00> : vector<32x8xf32>
    %85 = tpu.matmul %84, %71, %cst_36 {dimension_numbers = #tpu.dot_dimension_numbers<[1], [0], [0], [1], [0, 0, 1, 1], [], []>} : vector<32x32xf32>, vector<32x8xf32>, vector<32x8xf32> -> vector<32x8xf32>
    %86 = tpu.concatenate %34, %51, %68, %85 in 1 : vector<32x8xf32>, vector<32x8xf32>, vector<32x8xf32>, vector<32x8xf32> -> vector<32x32xf32>
    %c0_37 = arith.constant 0 : index
    %c0_38 = arith.constant 0 : index
    %c96 = arith.constant 96 : index
    %87 = vector.load %arg7[%c0_37, %c0_38, %c96] : memref<2x32x192xf32, #tpu.memory_space<vmem>>, vector<1x32x32xf32>
    %88 = vector.shape_cast %87 : vector<1x32x32xf32> to vector<32x32xf32>
    %cst_39 = arith.constant dense<0.000000e+00> : vector<32x32xf32>
    %89 = tpu.matmul %86, %88, %cst_39 {dimension_numbers = #tpu.dot_dimension_numbers<[1], [0], [0], [1], [0, 0, 1, 1], [], []>} : vector<32x32xf32>, vector<32x32xf32>, vector<32x32xf32> -> vector<32x32xf32>
    %90 = vector.extract_strided_slice %11 {offsets = [1, 0], sizes = [1, 32], strides = [1, 1]} : vector<8x96xf32> to vector<1x32xf32>
    %91 = vector.broadcast %90 : vector<1x32xf32> to vector<32x32xf32>
    %92 = arith.addf %89, %91 : vector<32x32xf32>
    %93 = arith.addf %8, %92 : vector<32x32xf32>
    %94 = vector.extract_strided_slice %11 {offsets = [4, 0], sizes = [1, 32], strides = [1, 1]} : vector<8x96xf32> to vector<1x32xf32>
    %95 = vector.extract_strided_slice %11 {offsets = [5, 0], sizes = [1, 32], strides = [1, 1]} : vector<8x96xf32> to vector<1x32xf32>
    %cst_40 = arith.constant dense<0.000000e+00> : vector<32xf32>
    %96 = vector.multi_reduction <add>, %93, %cst_40 [1] : vector<32x32xf32> to vector<32xf32>
    %97 = vector.shape_cast %96 : vector<32xf32> to vector<32x1xf32>
    %cst_41 = arith.constant 3.200000e+01 : f32
    %98 = vector.broadcast %cst_41 : f32 to vector<32x1xf32>
    %99 = arith.divf %97, %98 : vector<32x1xf32>
    %100 = vector.broadcast %99 : vector<32x1xf32> to vector<32x32xf32>
    %101 = arith.subf %93, %100 : vector<32x32xf32>
    %102 = arith.mulf %101, %101 : vector<32x32xf32>
    %cst_42 = arith.constant dense<0.000000e+00> : vector<32xf32>
    %103 = vector.multi_reduction <add>, %102, %cst_42 [1] : vector<32x32xf32> to vector<32xf32>
    %104 = vector.shape_cast %103 : vector<32xf32> to vector<32x1xf32>
    %cst_43 = arith.constant 3.200000e+01 : f32
    %105 = vector.broadcast %cst_43 : f32 to vector<32x1xf32>
    %106 = arith.divf %104, %105 : vector<32x1xf32>
    %107 = vector.broadcast %99 : vector<32x1xf32> to vector<32x32xf32>
    %108 = arith.subf %93, %107 : vector<32x32xf32>
    %cst_44 = arith.constant 9.99999974E-6 : f32
    %109 = vector.broadcast %cst_44 : f32 to vector<32x1xf32>
    %110 = arith.addf %106, %109 : vector<32x1xf32>
    %111 = math.rsqrt %110 : vector<32x1xf32>
    %112 = vector.broadcast %111 : vector<32x1xf32> to vector<32x32xf32>
    %113 = arith.mulf %108, %112 : vector<32x32xf32>
    %114 = vector.broadcast %94 : vector<1x32xf32> to vector<32x32xf32>
    %115 = arith.mulf %113, %114 : vector<32x32xf32>
    %116 = vector.broadcast %95 : vector<1x32xf32> to vector<32x32xf32>
    %117 = arith.addf %115, %116 : vector<32x32xf32>
    %c0_45 = arith.constant 0 : index
    %c0_46 = arith.constant 0 : index
    %c128 = arith.constant 128 : index
    %118 = vector.load %arg7[%c0_45, %c0_46, %c128] : memref<2x32x192xf32, #tpu.memory_space<vmem>>, vector<1x32x64xf32>
    %119 = vector.shape_cast %118 : vector<1x32x64xf32> to vector<32x64xf32>
    %cst_47 = arith.constant dense<0.000000e+00> : vector<32x64xf32>
    %120 = tpu.matmul %117, %119, %cst_47 {dimension_numbers = #tpu.dot_dimension_numbers<[1], [0], [0], [1], [0, 0, 1, 1], [], []>} : vector<32x32xf32>, vector<32x64xf32>, vector<32x64xf32> -> vector<32x64xf32>
    %121 = vector.extract_strided_slice %11 {offsets = [2, 0], sizes = [1, 64], strides = [1, 1]} : vector<8x96xf32> to vector<1x64xf32>
    %122 = vector.broadcast %121 : vector<1x64xf32> to vector<32x64xf32>
    %123 = arith.addf %120, %122 : vector<32x64xf32>
    %cst_48 = arith.constant 5.000000e-01 : f32
    %124 = vector.broadcast %cst_48 : f32 to vector<32x64xf32>
    %125 = arith.mulf %124, %123 : vector<32x64xf32>
    %cst_49 = arith.constant 0.707106769 : f32
    %126 = vector.broadcast %cst_49 : f32 to vector<32x64xf32>
    %127 = arith.mulf %123, %126 : vector<32x64xf32>
    %128 = math.erf %127 : vector<32x64xf32>
    %cst_50 = arith.constant 1.000000e+00 : f32
    %129 = vector.broadcast %cst_50 : f32 to vector<32x64xf32>
    %130 = arith.addf %129, %128 : vector<32x64xf32>
    %131 = arith.mulf %125, %130 : vector<32x64xf32>
    %c0_51 = arith.constant 0 : index
    %c0_52 = arith.constant 0 : index
    %c0_53 = arith.constant 0 : index
    %132 = vector.load %arg8[%c0_51, %c0_52, %c0_53] : memref<2x64x32xf32, #tpu.memory_space<vmem>>, vector<1x64x32xf32>
    %133 = vector.shape_cast %132 : vector<1x64x32xf32> to vector<64x32xf32>
    %cst_54 = arith.constant dense<0.000000e+00> : vector<32x32xf32>
    %134 = tpu.matmul %131, %133, %cst_54 {dimension_numbers = #tpu.dot_dimension_numbers<[1], [0], [0], [1], [0, 0, 1, 1], [], []>} : vector<32x64xf32>, vector<64x32xf32>, vector<32x32xf32> -> vector<32x32xf32>
    %135 = vector.extract_strided_slice %11 {offsets = [3, 0], sizes = [1, 32], strides = [1, 1]} : vector<8x96xf32> to vector<1x32xf32>
    %136 = vector.broadcast %135 : vector<1x32xf32> to vector<32x32xf32>
    %137 = arith.addf %134, %136 : vector<32x32xf32>
    %138 = arith.addf %117, %137 : vector<32x32xf32>
    %139 = vector.extract_strided_slice %11 {offsets = [6, 0], sizes = [1, 32], strides = [1, 1]} : vector<8x96xf32> to vector<1x32xf32>
    %140 = vector.extract_strided_slice %11 {offsets = [7, 0], sizes = [1, 32], strides = [1, 1]} : vector<8x96xf32> to vector<1x32xf32>
    %cst_55 = arith.constant dense<0.000000e+00> : vector<32xf32>
    %141 = vector.multi_reduction <add>, %138, %cst_55 [1] : vector<32x32xf32> to vector<32xf32>
    %142 = vector.shape_cast %141 : vector<32xf32> to vector<32x1xf32>
    %cst_56 = arith.constant 3.200000e+01 : f32
    %143 = vector.broadcast %cst_56 : f32 to vector<32x1xf32>
    %144 = arith.divf %142, %143 : vector<32x1xf32>
    %145 = vector.broadcast %144 : vector<32x1xf32> to vector<32x32xf32>
    %146 = arith.subf %138, %145 : vector<32x32xf32>
    %147 = arith.mulf %146, %146 : vector<32x32xf32>
    %cst_57 = arith.constant dense<0.000000e+00> : vector<32xf32>
    %148 = vector.multi_reduction <add>, %147, %cst_57 [1] : vector<32x32xf32> to vector<32xf32>
    %149 = vector.shape_cast %148 : vector<32xf32> to vector<32x1xf32>
    %cst_58 = arith.constant 3.200000e+01 : f32
    %150 = vector.broadcast %cst_58 : f32 to vector<32x1xf32>
    %151 = arith.divf %149, %150 : vector<32x1xf32>
    %152 = vector.broadcast %144 : vector<32x1xf32> to vector<32x32xf32>
    %153 = arith.subf %138, %152 : vector<32x32xf32>
    %cst_59 = arith.constant 9.99999974E-6 : f32
    %154 = vector.broadcast %cst_59 : f32 to vector<32x1xf32>
    %155 = arith.addf %151, %154 : vector<32x1xf32>
    %156 = math.rsqrt %155 : vector<32x1xf32>
    %157 = vector.broadcast %156 : vector<32x1xf32> to vector<32x32xf32>
    %158 = arith.mulf %153, %157 : vector<32x32xf32>
    %159 = vector.broadcast %139 : vector<1x32xf32> to vector<32x32xf32>
    %160 = arith.mulf %158, %159 : vector<32x32xf32>
    %161 = vector.broadcast %140 : vector<1x32xf32> to vector<32x32xf32>
    %162 = arith.addf %160, %161 : vector<32x32xf32>
    %c1 = arith.constant 1 : index
    %c0_60 = arith.constant 0 : index
    %c0_61 = arith.constant 0 : index
    %163 = vector.load %arg9[%c1, %c0_60, %c0_61] : memref<2x8x96xf32, #tpu.memory_space<vmem>>, vector<1x8x96xf32>
    %164 = vector.shape_cast %163 : vector<1x8x96xf32> to vector<8x96xf32>
    %c1_62 = arith.constant 1 : index
    %c0_63 = arith.constant 0 : index
    %c0_64 = arith.constant 0 : index
    %165 = vector.load %arg7[%c1_62, %c0_63, %c0_64] : memref<2x32x192xf32, #tpu.memory_space<vmem>>, vector<1x32x96xf32>
    %166 = vector.shape_cast %165 : vector<1x32x96xf32> to vector<32x96xf32>
    %cst_65 = arith.constant dense<0.000000e+00> : vector<32x96xf32>
    %167 = tpu.matmul %162, %166, %cst_65 {dimension_numbers = #tpu.dot_dimension_numbers<[1], [0], [0], [1], [0, 0, 1, 1], [], []>} : vector<32x32xf32>, vector<32x96xf32>, vector<32x96xf32> -> vector<32x96xf32>
    %168 = vector.extract_strided_slice %164 {offsets = [0, 0], sizes = [1, 96], strides = [1, 1]} : vector<8x96xf32> to vector<1x96xf32>
    %169 = vector.broadcast %168 : vector<1x96xf32> to vector<32x96xf32>
    %170 = arith.addf %167, %169 : vector<32x96xf32>
    %171 = vector.extract_strided_slice %170 {offsets = [0, 0], sizes = [32, 8], strides = [1, 1]} : vector<32x96xf32> to vector<32x8xf32>
    %172 = vector.extract_strided_slice %170 {offsets = [0, 32], sizes = [32, 8], strides = [1, 1]} : vector<32x96xf32> to vector<32x8xf32>
    %173 = vector.extract_strided_slice %170 {offsets = [0, 64], sizes = [32, 8], strides = [1, 1]} : vector<32x96xf32> to vector<32x8xf32>
    %cst_66 = arith.constant dense<0.000000e+00> : vector<32x32xf32>
    %174 = tpu.matmul %171, %172, %cst_66 {dimension_numbers = #tpu.dot_dimension_numbers<[1], [1], [0], [0], [0, 0, 1, 0], [], []>} : vector<32x8xf32>, vector<32x8xf32>, vector<32x32xf32> -> vector<32x32xf32>
    %cst_67 = arith.constant 0.353553385 : f32
    %175 = vector.broadcast %cst_67 : f32 to vector<32x32xf32>
    %176 = arith.mulf %174, %175 : vector<32x32xf32>
    %177 = arith.addf %176, %9 : vector<32x32xf32>
    %cst_68 = arith.constant dense<0xFF800000> : vector<32xf32>
    %178 = vector.multi_reduction <maximumf>, %177, %cst_68 [1] : vector<32x32xf32> to vector<32xf32>
    %179 = vector.shape_cast %178 : vector<32xf32> to vector<32x1xf32>
    %180 = vector.broadcast %179 : vector<32x1xf32> to vector<32x32xf32>
    %181 = arith.subf %177, %180 : vector<32x32xf32>
    %182 = math.exp %181 : vector<32x32xf32>
    %cst_69 = arith.constant dense<0.000000e+00> : vector<32xf32>
    %183 = vector.multi_reduction <add>, %182, %cst_69 [1] : vector<32x32xf32> to vector<32xf32>
    %184 = vector.shape_cast %183 : vector<32xf32> to vector<32x1xf32>
    %185 = vector.broadcast %184 : vector<32x1xf32> to vector<32x32xf32>
    %186 = arith.divf %182, %185 : vector<32x32xf32>
    %cst_70 = arith.constant dense<0.000000e+00> : vector<32x8xf32>
    %187 = tpu.matmul %186, %173, %cst_70 {dimension_numbers = #tpu.dot_dimension_numbers<[1], [0], [0], [1], [0, 0, 1, 1], [], []>} : vector<32x32xf32>, vector<32x8xf32>, vector<32x8xf32> -> vector<32x8xf32>
    %188 = vector.extract_strided_slice %170 {offsets = [0, 8], sizes = [32, 8], strides = [1, 1]} : vector<32x96xf32> to vector<32x8xf32>
    %189 = vector.extract_strided_slice %170 {offsets = [0, 40], sizes = [32, 8], strides = [1, 1]} : vector<32x96xf32> to vector<32x8xf32>
    %190 = vector.extract_strided_slice %170 {offsets = [0, 72], sizes = [32, 8], strides = [1, 1]} : vector<32x96xf32> to vector<32x8xf32>
    %cst_71 = arith.constant dense<0.000000e+00> : vector<32x32xf32>
    %191 = tpu.matmul %188, %189, %cst_71 {dimension_numbers = #tpu.dot_dimension_numbers<[1], [1], [0], [0], [0, 0, 1, 0], [], []>} : vector<32x8xf32>, vector<32x8xf32>, vector<32x32xf32> -> vector<32x32xf32>
    %cst_72 = arith.constant 0.353553385 : f32
    %192 = vector.broadcast %cst_72 : f32 to vector<32x32xf32>
    %193 = arith.mulf %191, %192 : vector<32x32xf32>
    %194 = arith.addf %193, %9 : vector<32x32xf32>
    %cst_73 = arith.constant dense<0xFF800000> : vector<32xf32>
    %195 = vector.multi_reduction <maximumf>, %194, %cst_73 [1] : vector<32x32xf32> to vector<32xf32>
    %196 = vector.shape_cast %195 : vector<32xf32> to vector<32x1xf32>
    %197 = vector.broadcast %196 : vector<32x1xf32> to vector<32x32xf32>
    %198 = arith.subf %194, %197 : vector<32x32xf32>
    %199 = math.exp %198 : vector<32x32xf32>
    %cst_74 = arith.constant dense<0.000000e+00> : vector<32xf32>
    %200 = vector.multi_reduction <add>, %199, %cst_74 [1] : vector<32x32xf32> to vector<32xf32>
    %201 = vector.shape_cast %200 : vector<32xf32> to vector<32x1xf32>
    %202 = vector.broadcast %201 : vector<32x1xf32> to vector<32x32xf32>
    %203 = arith.divf %199, %202 : vector<32x32xf32>
    %cst_75 = arith.constant dense<0.000000e+00> : vector<32x8xf32>
    %204 = tpu.matmul %203, %190, %cst_75 {dimension_numbers = #tpu.dot_dimension_numbers<[1], [0], [0], [1], [0, 0, 1, 1], [], []>} : vector<32x32xf32>, vector<32x8xf32>, vector<32x8xf32> -> vector<32x8xf32>
    %205 = vector.extract_strided_slice %170 {offsets = [0, 16], sizes = [32, 8], strides = [1, 1]} : vector<32x96xf32> to vector<32x8xf32>
    %206 = vector.extract_strided_slice %170 {offsets = [0, 48], sizes = [32, 8], strides = [1, 1]} : vector<32x96xf32> to vector<32x8xf32>
    %207 = vector.extract_strided_slice %170 {offsets = [0, 80], sizes = [32, 8], strides = [1, 1]} : vector<32x96xf32> to vector<32x8xf32>
    %cst_76 = arith.constant dense<0.000000e+00> : vector<32x32xf32>
    %208 = tpu.matmul %205, %206, %cst_76 {dimension_numbers = #tpu.dot_dimension_numbers<[1], [1], [0], [0], [0, 0, 1, 0], [], []>} : vector<32x8xf32>, vector<32x8xf32>, vector<32x32xf32> -> vector<32x32xf32>
    %cst_77 = arith.constant 0.353553385 : f32
    %209 = vector.broadcast %cst_77 : f32 to vector<32x32xf32>
    %210 = arith.mulf %208, %209 : vector<32x32xf32>
    %211 = arith.addf %210, %9 : vector<32x32xf32>
    %cst_78 = arith.constant dense<0xFF800000> : vector<32xf32>
    %212 = vector.multi_reduction <maximumf>, %211, %cst_78 [1] : vector<32x32xf32> to vector<32xf32>
    %213 = vector.shape_cast %212 : vector<32xf32> to vector<32x1xf32>
    %214 = vector.broadcast %213 : vector<32x1xf32> to vector<32x32xf32>
    %215 = arith.subf %211, %214 : vector<32x32xf32>
    %216 = math.exp %215 : vector<32x32xf32>
    %cst_79 = arith.constant dense<0.000000e+00> : vector<32xf32>
    %217 = vector.multi_reduction <add>, %216, %cst_79 [1] : vector<32x32xf32> to vector<32xf32>
    %218 = vector.shape_cast %217 : vector<32xf32> to vector<32x1xf32>
    %219 = vector.broadcast %218 : vector<32x1xf32> to vector<32x32xf32>
    %220 = arith.divf %216, %219 : vector<32x32xf32>
    %cst_80 = arith.constant dense<0.000000e+00> : vector<32x8xf32>
    %221 = tpu.matmul %220, %207, %cst_80 {dimension_numbers = #tpu.dot_dimension_numbers<[1], [0], [0], [1], [0, 0, 1, 1], [], []>} : vector<32x32xf32>, vector<32x8xf32>, vector<32x8xf32> -> vector<32x8xf32>
    %222 = vector.extract_strided_slice %170 {offsets = [0, 24], sizes = [32, 8], strides = [1, 1]} : vector<32x96xf32> to vector<32x8xf32>
    %223 = vector.extract_strided_slice %170 {offsets = [0, 56], sizes = [32, 8], strides = [1, 1]} : vector<32x96xf32> to vector<32x8xf32>
    %224 = vector.extract_strided_slice %170 {offsets = [0, 88], sizes = [32, 8], strides = [1, 1]} : vector<32x96xf32> to vector<32x8xf32>
    %cst_81 = arith.constant dense<0.000000e+00> : vector<32x32xf32>
    %225 = tpu.matmul %222, %223, %cst_81 {dimension_numbers = #tpu.dot_dimension_numbers<[1], [1], [0], [0], [0, 0, 1, 0], [], []>} : vector<32x8xf32>, vector<32x8xf32>, vector<32x32xf32> -> vector<32x32xf32>
    %cst_82 = arith.constant 0.353553385 : f32
    %226 = vector.broadcast %cst_82 : f32 to vector<32x32xf32>
    %227 = arith.mulf %225, %226 : vector<32x32xf32>
    %228 = arith.addf %227, %9 : vector<32x32xf32>
    %cst_83 = arith.constant dense<0xFF800000> : vector<32xf32>
    %229 = vector.multi_reduction <maximumf>, %228, %cst_83 [1] : vector<32x32xf32> to vector<32xf32>
    %230 = vector.shape_cast %229 : vector<32xf32> to vector<32x1xf32>
    %231 = vector.broadcast %230 : vector<32x1xf32> to vector<32x32xf32>
    %232 = arith.subf %228, %231 : vector<32x32xf32>
    %233 = math.exp %232 : vector<32x32xf32>
    %cst_84 = arith.constant dense<0.000000e+00> : vector<32xf32>
    %234 = vector.multi_reduction <add>, %233, %cst_84 [1] : vector<32x32xf32> to vector<32xf32>
    %235 = vector.shape_cast %234 : vector<32xf32> to vector<32x1xf32>
    %236 = vector.broadcast %235 : vector<32x1xf32> to vector<32x32xf32>
    %237 = arith.divf %233, %236 : vector<32x32xf32>
    %cst_85 = arith.constant dense<0.000000e+00> : vector<32x8xf32>
    %238 = tpu.matmul %237, %224, %cst_85 {dimension_numbers = #tpu.dot_dimension_numbers<[1], [0], [0], [1], [0, 0, 1, 1], [], []>} : vector<32x32xf32>, vector<32x8xf32>, vector<32x8xf32> -> vector<32x8xf32>
    %239 = tpu.concatenate %187, %204, %221, %238 in 1 : vector<32x8xf32>, vector<32x8xf32>, vector<32x8xf32>, vector<32x8xf32> -> vector<32x32xf32>
    %c1_86 = arith.constant 1 : index
    %c0_87 = arith.constant 0 : index
    %c96_88 = arith.constant 96 : index
    %240 = vector.load %arg7[%c1_86, %c0_87, %c96_88] : memref<2x32x192xf32, #tpu.memory_space<vmem>>, vector<1x32x32xf32>
    %241 = vector.shape_cast %240 : vector<1x32x32xf32> to vector<32x32xf32>
    %cst_89 = arith.constant dense<0.000000e+00> : vector<32x32xf32>
    %242 = tpu.matmul %239, %241, %cst_89 {dimension_numbers = #tpu.dot_dimension_numbers<[1], [0], [0], [1], [0, 0, 1, 1], [], []>} : vector<32x32xf32>, vector<32x32xf32>, vector<32x32xf32> -> vector<32x32xf32>
    %243 = vector.extract_strided_slice %164 {offsets = [1, 0], sizes = [1, 32], strides = [1, 1]} : vector<8x96xf32> to vector<1x32xf32>
    %244 = vector.broadcast %243 : vector<1x32xf32> to vector<32x32xf32>
    %245 = arith.addf %242, %244 : vector<32x32xf32>
    %246 = arith.addf %162, %245 : vector<32x32xf32>
    %247 = vector.extract_strided_slice %164 {offsets = [4, 0], sizes = [1, 32], strides = [1, 1]} : vector<8x96xf32> to vector<1x32xf32>
    %248 = vector.extract_strided_slice %164 {offsets = [5, 0], sizes = [1, 32], strides = [1, 1]} : vector<8x96xf32> to vector<1x32xf32>
    %cst_90 = arith.constant dense<0.000000e+00> : vector<32xf32>
    %249 = vector.multi_reduction <add>, %246, %cst_90 [1] : vector<32x32xf32> to vector<32xf32>
    %250 = vector.shape_cast %249 : vector<32xf32> to vector<32x1xf32>
    %cst_91 = arith.constant 3.200000e+01 : f32
    %251 = vector.broadcast %cst_91 : f32 to vector<32x1xf32>
    %252 = arith.divf %250, %251 : vector<32x1xf32>
    %253 = vector.broadcast %252 : vector<32x1xf32> to vector<32x32xf32>
    %254 = arith.subf %246, %253 : vector<32x32xf32>
    %255 = arith.mulf %254, %254 : vector<32x32xf32>
    %cst_92 = arith.constant dense<0.000000e+00> : vector<32xf32>
    %256 = vector.multi_reduction <add>, %255, %cst_92 [1] : vector<32x32xf32> to vector<32xf32>
    %257 = vector.shape_cast %256 : vector<32xf32> to vector<32x1xf32>
    %cst_93 = arith.constant 3.200000e+01 : f32
    %258 = vector.broadcast %cst_93 : f32 to vector<32x1xf32>
    %259 = arith.divf %257, %258 : vector<32x1xf32>
    %260 = vector.broadcast %252 : vector<32x1xf32> to vector<32x32xf32>
    %261 = arith.subf %246, %260 : vector<32x32xf32>
    %cst_94 = arith.constant 9.99999974E-6 : f32
    %262 = vector.broadcast %cst_94 : f32 to vector<32x1xf32>
    %263 = arith.addf %259, %262 : vector<32x1xf32>
    %264 = math.rsqrt %263 : vector<32x1xf32>
    %265 = vector.broadcast %264 : vector<32x1xf32> to vector<32x32xf32>
    %266 = arith.mulf %261, %265 : vector<32x32xf32>
    %267 = vector.broadcast %247 : vector<1x32xf32> to vector<32x32xf32>
    %268 = arith.mulf %266, %267 : vector<32x32xf32>
    %269 = vector.broadcast %248 : vector<1x32xf32> to vector<32x32xf32>
    %270 = arith.addf %268, %269 : vector<32x32xf32>
    %c1_95 = arith.constant 1 : index
    %c0_96 = arith.constant 0 : index
    %c128_97 = arith.constant 128 : index
    %271 = vector.load %arg7[%c1_95, %c0_96, %c128_97] : memref<2x32x192xf32, #tpu.memory_space<vmem>>, vector<1x32x64xf32>
    %272 = vector.shape_cast %271 : vector<1x32x64xf32> to vector<32x64xf32>
    %cst_98 = arith.constant dense<0.000000e+00> : vector<32x64xf32>
    %273 = tpu.matmul %270, %272, %cst_98 {dimension_numbers = #tpu.dot_dimension_numbers<[1], [0], [0], [1], [0, 0, 1, 1], [], []>} : vector<32x32xf32>, vector<32x64xf32>, vector<32x64xf32> -> vector<32x64xf32>
    %274 = vector.extract_strided_slice %164 {offsets = [2, 0], sizes = [1, 64], strides = [1, 1]} : vector<8x96xf32> to vector<1x64xf32>
    %275 = vector.broadcast %274 : vector<1x64xf32> to vector<32x64xf32>
    %276 = arith.addf %273, %275 : vector<32x64xf32>
    %cst_99 = arith.constant 5.000000e-01 : f32
    %277 = vector.broadcast %cst_99 : f32 to vector<32x64xf32>
    %278 = arith.mulf %277, %276 : vector<32x64xf32>
    %cst_100 = arith.constant 0.707106769 : f32
    %279 = vector.broadcast %cst_100 : f32 to vector<32x64xf32>
    %280 = arith.mulf %276, %279 : vector<32x64xf32>
    %281 = math.erf %280 : vector<32x64xf32>
    %cst_101 = arith.constant 1.000000e+00 : f32
    %282 = vector.broadcast %cst_101 : f32 to vector<32x64xf32>
    %283 = arith.addf %282, %281 : vector<32x64xf32>
    %284 = arith.mulf %278, %283 : vector<32x64xf32>
    %c1_102 = arith.constant 1 : index
    %c0_103 = arith.constant 0 : index
    %c0_104 = arith.constant 0 : index
    %285 = vector.load %arg8[%c1_102, %c0_103, %c0_104] : memref<2x64x32xf32, #tpu.memory_space<vmem>>, vector<1x64x32xf32>
    %286 = vector.shape_cast %285 : vector<1x64x32xf32> to vector<64x32xf32>
    %cst_105 = arith.constant dense<0.000000e+00> : vector<32x32xf32>
    %287 = tpu.matmul %284, %286, %cst_105 {dimension_numbers = #tpu.dot_dimension_numbers<[1], [0], [0], [1], [0, 0, 1, 1], [], []>} : vector<32x64xf32>, vector<64x32xf32>, vector<32x32xf32> -> vector<32x32xf32>
    %288 = vector.extract_strided_slice %164 {offsets = [3, 0], sizes = [1, 32], strides = [1, 1]} : vector<8x96xf32> to vector<1x32xf32>
    %289 = vector.broadcast %288 : vector<1x32xf32> to vector<32x32xf32>
    %290 = arith.addf %287, %289 : vector<32x32xf32>
    %291 = arith.addf %270, %290 : vector<32x32xf32>
    %292 = vector.extract_strided_slice %164 {offsets = [6, 0], sizes = [1, 32], strides = [1, 1]} : vector<8x96xf32> to vector<1x32xf32>
    %293 = vector.extract_strided_slice %164 {offsets = [7, 0], sizes = [1, 32], strides = [1, 1]} : vector<8x96xf32> to vector<1x32xf32>
    %cst_106 = arith.constant dense<0.000000e+00> : vector<32xf32>
    %294 = vector.multi_reduction <add>, %291, %cst_106 [1] : vector<32x32xf32> to vector<32xf32>
    %295 = vector.shape_cast %294 : vector<32xf32> to vector<32x1xf32>
    %cst_107 = arith.constant 3.200000e+01 : f32
    %296 = vector.broadcast %cst_107 : f32 to vector<32x1xf32>
    %297 = arith.divf %295, %296 : vector<32x1xf32>
    %298 = vector.broadcast %297 : vector<32x1xf32> to vector<32x32xf32>
    %299 = arith.subf %291, %298 : vector<32x32xf32>
    %300 = arith.mulf %299, %299 : vector<32x32xf32>
    %cst_108 = arith.constant dense<0.000000e+00> : vector<32xf32>
    %301 = vector.multi_reduction <add>, %300, %cst_108 [1] : vector<32x32xf32> to vector<32xf32>
    %302 = vector.shape_cast %301 : vector<32xf32> to vector<32x1xf32>
    %cst_109 = arith.constant 3.200000e+01 : f32
    %303 = vector.broadcast %cst_109 : f32 to vector<32x1xf32>
    %304 = arith.divf %302, %303 : vector<32x1xf32>
    %305 = vector.broadcast %297 : vector<32x1xf32> to vector<32x32xf32>
    %306 = arith.subf %291, %305 : vector<32x32xf32>
    %cst_110 = arith.constant 9.99999974E-6 : f32
    %307 = vector.broadcast %cst_110 : f32 to vector<32x1xf32>
    %308 = arith.addf %304, %307 : vector<32x1xf32>
    %309 = math.rsqrt %308 : vector<32x1xf32>
    %310 = vector.broadcast %309 : vector<32x1xf32> to vector<32x32xf32>
    %311 = arith.mulf %306, %310 : vector<32x32xf32>
    %312 = vector.broadcast %292 : vector<1x32xf32> to vector<32x32xf32>
    %313 = arith.mulf %311, %312 : vector<32x32xf32>
    %314 = vector.broadcast %293 : vector<1x32xf32> to vector<32x32xf32>
    %315 = arith.addf %313, %314 : vector<32x32xf32>
    %c1_111 = arith.constant 1 : index
    %c0_112 = arith.constant 0 : index
    %316 = vector.load %arg6[%c1_111, %c0_112] : memref<3x32xf32, #tpu.memory_space<vmem>>, vector<1x32xf32>
    %c2 = arith.constant 2 : index
    %c0_113 = arith.constant 0 : index
    %317 = vector.load %arg6[%c2, %c0_113] : memref<3x32xf32, #tpu.memory_space<vmem>>, vector<1x32xf32>
    %cst_114 = arith.constant dense<0.000000e+00> : vector<32xf32>
    %318 = vector.multi_reduction <add>, %315, %cst_114 [1] : vector<32x32xf32> to vector<32xf32>
    %319 = vector.shape_cast %318 : vector<32xf32> to vector<32x1xf32>
    %cst_115 = arith.constant 3.200000e+01 : f32
    %320 = vector.broadcast %cst_115 : f32 to vector<32x1xf32>
    %321 = arith.divf %319, %320 : vector<32x1xf32>
    %322 = vector.broadcast %321 : vector<32x1xf32> to vector<32x32xf32>
    %323 = arith.subf %315, %322 : vector<32x32xf32>
    %324 = arith.mulf %323, %323 : vector<32x32xf32>
    %cst_116 = arith.constant dense<0.000000e+00> : vector<32xf32>
    %325 = vector.multi_reduction <add>, %324, %cst_116 [1] : vector<32x32xf32> to vector<32xf32>
    %326 = vector.shape_cast %325 : vector<32xf32> to vector<32x1xf32>
    %cst_117 = arith.constant 3.200000e+01 : f32
    %327 = vector.broadcast %cst_117 : f32 to vector<32x1xf32>
    %328 = arith.divf %326, %327 : vector<32x1xf32>
    %329 = vector.broadcast %321 : vector<32x1xf32> to vector<32x32xf32>
    %330 = arith.subf %315, %329 : vector<32x32xf32>
    %cst_118 = arith.constant 9.99999974E-6 : f32
    %331 = vector.broadcast %cst_118 : f32 to vector<32x1xf32>
    %332 = arith.addf %328, %331 : vector<32x1xf32>
    %333 = math.rsqrt %332 : vector<32x1xf32>
    %334 = vector.broadcast %333 : vector<32x1xf32> to vector<32x32xf32>
    %335 = arith.mulf %330, %334 : vector<32x32xf32>
    %336 = vector.broadcast %316 : vector<1x32xf32> to vector<32x32xf32>
    %337 = arith.mulf %335, %336 : vector<32x32xf32>
    %338 = vector.broadcast %317 : vector<1x32xf32> to vector<32x32xf32>
    %339 = arith.addf %337, %338 : vector<32x32xf32>
    %c0_119 = arith.constant 0 : index
    %c0_120 = arith.constant 0 : index
    %c0_121 = arith.constant 0 : index
    %340 = vector.load %arg2[%c0_119, %c0_120, %c0_121] : memref<1x4x32xf32, #tpu.memory_space<vmem>>, vector<1x4x32xf32>
    %341 = vector.shape_cast %340 : vector<1x4x32xf32> to vector<4x32xf32>
    %c0_122 = arith.constant 0 : index
    %c0_123 = arith.constant 0 : index
    %342 = vector.load %arg10[%c0_122, %c0_123] : memref<32x32xf32, #tpu.memory_space<vmem>>, vector<32x32xf32>
    %cst_124 = arith.constant dense<0.000000e+00> : vector<4x32xf32>
    %343 = tpu.matmul %341, %342, %cst_124 {dimension_numbers = #tpu.dot_dimension_numbers<[1], [0], [0], [1], [0, 0, 1, 1], [], []>} : vector<4x32xf32>, vector<32x32xf32>, vector<4x32xf32> -> vector<4x32xf32>
    %c0_125 = arith.constant 0 : index
    %c0_126 = arith.constant 0 : index
    %344 = vector.load %arg11[%c0_125, %c0_126] : memref<3x32xf32, #tpu.memory_space<vmem>>, vector<1x32xf32>
    %345 = vector.broadcast %344 : vector<1x32xf32> to vector<4x32xf32>
    %346 = arith.addf %343, %345 : vector<4x32xf32>
    %c0_127 = arith.constant 0 : index
    %c0_128 = arith.constant 0 : index
    %c0_129 = arith.constant 0 : index
    %347 = vector.load %arg14[%c0_127, %c0_128, %c0_129] : memref<2x8x96xf32, #tpu.memory_space<vmem>>, vector<1x8x96xf32>
    %348 = vector.shape_cast %347 : vector<1x8x96xf32> to vector<8x96xf32>
    %c0_130 = arith.constant 0 : index
    %c0_131 = arith.constant 0 : index
    %c0_132 = arith.constant 0 : index
    %349 = vector.load %arg12[%c0_130, %c0_131, %c0_132] : memref<2x32x192xf32, #tpu.memory_space<vmem>>, vector<1x32x96xf32>
    %350 = vector.shape_cast %349 : vector<1x32x96xf32> to vector<32x96xf32>
    %cst_133 = arith.constant dense<0.000000e+00> : vector<4x96xf32>
    %351 = tpu.matmul %346, %350, %cst_133 {dimension_numbers = #tpu.dot_dimension_numbers<[1], [0], [0], [1], [0, 0, 1, 1], [], []>} : vector<4x32xf32>, vector<32x96xf32>, vector<4x96xf32> -> vector<4x96xf32>
    %352 = vector.extract_strided_slice %348 {offsets = [0, 0], sizes = [1, 96], strides = [1, 1]} : vector<8x96xf32> to vector<1x96xf32>
    %353 = vector.broadcast %352 : vector<1x96xf32> to vector<4x96xf32>
    %354 = arith.addf %351, %353 : vector<4x96xf32>
    %355 = vector.extract_strided_slice %354 {offsets = [0, 0], sizes = [4, 8], strides = [1, 1]} : vector<4x96xf32> to vector<4x8xf32>
    %356 = vector.extract_strided_slice %354 {offsets = [0, 32], sizes = [4, 8], strides = [1, 1]} : vector<4x96xf32> to vector<4x8xf32>
    %357 = vector.extract_strided_slice %354 {offsets = [0, 64], sizes = [4, 8], strides = [1, 1]} : vector<4x96xf32> to vector<4x8xf32>
    %cst_134 = arith.constant dense<0.000000e+00> : vector<4x4xf32>
    %358 = tpu.matmul %355, %356, %cst_134 {dimension_numbers = #tpu.dot_dimension_numbers<[1], [1], [0], [0], [0, 0, 1, 0], [], []>} : vector<4x8xf32>, vector<4x8xf32>, vector<4x4xf32> -> vector<4x4xf32>
    %cst_135 = arith.constant 0.353553385 : f32
    %359 = vector.broadcast %cst_135 : f32 to vector<4x4xf32>
    %360 = arith.mulf %358, %359 : vector<4x4xf32>
    %cst_136 = arith.constant dense<0xFF800000> : vector<4xf32>
    %361 = vector.multi_reduction <maximumf>, %360, %cst_136 [1] : vector<4x4xf32> to vector<4xf32>
    %362 = vector.shape_cast %361 : vector<4xf32> to vector<4x1xf32>
    %363 = vector.broadcast %362 : vector<4x1xf32> to vector<4x4xf32>
    %364 = arith.subf %360, %363 : vector<4x4xf32>
    %365 = math.exp %364 : vector<4x4xf32>
    %cst_137 = arith.constant dense<0.000000e+00> : vector<4xf32>
    %366 = vector.multi_reduction <add>, %365, %cst_137 [1] : vector<4x4xf32> to vector<4xf32>
    %367 = vector.shape_cast %366 : vector<4xf32> to vector<4x1xf32>
    %368 = vector.broadcast %367 : vector<4x1xf32> to vector<4x4xf32>
    %369 = arith.divf %365, %368 : vector<4x4xf32>
    %cst_138 = arith.constant dense<0.000000e+00> : vector<4x8xf32>
    %370 = tpu.matmul %369, %357, %cst_138 {dimension_numbers = #tpu.dot_dimension_numbers<[1], [0], [0], [1], [0, 0, 1, 1], [], []>} : vector<4x4xf32>, vector<4x8xf32>, vector<4x8xf32> -> vector<4x8xf32>
    %371 = vector.extract_strided_slice %354 {offsets = [0, 8], sizes = [4, 8], strides = [1, 1]} : vector<4x96xf32> to vector<4x8xf32>
    %372 = vector.extract_strided_slice %354 {offsets = [0, 40], sizes = [4, 8], strides = [1, 1]} : vector<4x96xf32> to vector<4x8xf32>
    %373 = vector.extract_strided_slice %354 {offsets = [0, 72], sizes = [4, 8], strides = [1, 1]} : vector<4x96xf32> to vector<4x8xf32>
    %cst_139 = arith.constant dense<0.000000e+00> : vector<4x4xf32>
    %374 = tpu.matmul %371, %372, %cst_139 {dimension_numbers = #tpu.dot_dimension_numbers<[1], [1], [0], [0], [0, 0, 1, 0], [], []>} : vector<4x8xf32>, vector<4x8xf32>, vector<4x4xf32> -> vector<4x4xf32>
    %cst_140 = arith.constant 0.353553385 : f32
    %375 = vector.broadcast %cst_140 : f32 to vector<4x4xf32>
    %376 = arith.mulf %374, %375 : vector<4x4xf32>
    %cst_141 = arith.constant dense<0xFF800000> : vector<4xf32>
    %377 = vector.multi_reduction <maximumf>, %376, %cst_141 [1] : vector<4x4xf32> to vector<4xf32>
    %378 = vector.shape_cast %377 : vector<4xf32> to vector<4x1xf32>
    %379 = vector.broadcast %378 : vector<4x1xf32> to vector<4x4xf32>
    %380 = arith.subf %376, %379 : vector<4x4xf32>
    %381 = math.exp %380 : vector<4x4xf32>
    %cst_142 = arith.constant dense<0.000000e+00> : vector<4xf32>
    %382 = vector.multi_reduction <add>, %381, %cst_142 [1] : vector<4x4xf32> to vector<4xf32>
    %383 = vector.shape_cast %382 : vector<4xf32> to vector<4x1xf32>
    %384 = vector.broadcast %383 : vector<4x1xf32> to vector<4x4xf32>
    %385 = arith.divf %381, %384 : vector<4x4xf32>
    %cst_143 = arith.constant dense<0.000000e+00> : vector<4x8xf32>
    %386 = tpu.matmul %385, %373, %cst_143 {dimension_numbers = #tpu.dot_dimension_numbers<[1], [0], [0], [1], [0, 0, 1, 1], [], []>} : vector<4x4xf32>, vector<4x8xf32>, vector<4x8xf32> -> vector<4x8xf32>
    %387 = vector.extract_strided_slice %354 {offsets = [0, 16], sizes = [4, 8], strides = [1, 1]} : vector<4x96xf32> to vector<4x8xf32>
    %388 = vector.extract_strided_slice %354 {offsets = [0, 48], sizes = [4, 8], strides = [1, 1]} : vector<4x96xf32> to vector<4x8xf32>
    %389 = vector.extract_strided_slice %354 {offsets = [0, 80], sizes = [4, 8], strides = [1, 1]} : vector<4x96xf32> to vector<4x8xf32>
    %cst_144 = arith.constant dense<0.000000e+00> : vector<4x4xf32>
    %390 = tpu.matmul %387, %388, %cst_144 {dimension_numbers = #tpu.dot_dimension_numbers<[1], [1], [0], [0], [0, 0, 1, 0], [], []>} : vector<4x8xf32>, vector<4x8xf32>, vector<4x4xf32> -> vector<4x4xf32>
    %cst_145 = arith.constant 0.353553385 : f32
    %391 = vector.broadcast %cst_145 : f32 to vector<4x4xf32>
    %392 = arith.mulf %390, %391 : vector<4x4xf32>
    %cst_146 = arith.constant dense<0xFF800000> : vector<4xf32>
    %393 = vector.multi_reduction <maximumf>, %392, %cst_146 [1] : vector<4x4xf32> to vector<4xf32>
    %394 = vector.shape_cast %393 : vector<4xf32> to vector<4x1xf32>
    %395 = vector.broadcast %394 : vector<4x1xf32> to vector<4x4xf32>
    %396 = arith.subf %392, %395 : vector<4x4xf32>
    %397 = math.exp %396 : vector<4x4xf32>
    %cst_147 = arith.constant dense<0.000000e+00> : vector<4xf32>
    %398 = vector.multi_reduction <add>, %397, %cst_147 [1] : vector<4x4xf32> to vector<4xf32>
    %399 = vector.shape_cast %398 : vector<4xf32> to vector<4x1xf32>
    %400 = vector.broadcast %399 : vector<4x1xf32> to vector<4x4xf32>
    %401 = arith.divf %397, %400 : vector<4x4xf32>
    %cst_148 = arith.constant dense<0.000000e+00> : vector<4x8xf32>
    %402 = tpu.matmul %401, %389, %cst_148 {dimension_numbers = #tpu.dot_dimension_numbers<[1], [0], [0], [1], [0, 0, 1, 1], [], []>} : vector<4x4xf32>, vector<4x8xf32>, vector<4x8xf32> -> vector<4x8xf32>
    %403 = vector.extract_strided_slice %354 {offsets = [0, 24], sizes = [4, 8], strides = [1, 1]} : vector<4x96xf32> to vector<4x8xf32>
    %404 = vector.extract_strided_slice %354 {offsets = [0, 56], sizes = [4, 8], strides = [1, 1]} : vector<4x96xf32> to vector<4x8xf32>
    %405 = vector.extract_strided_slice %354 {offsets = [0, 88], sizes = [4, 8], strides = [1, 1]} : vector<4x96xf32> to vector<4x8xf32>
    %cst_149 = arith.constant dense<0.000000e+00> : vector<4x4xf32>
    %406 = tpu.matmul %403, %404, %cst_149 {dimension_numbers = #tpu.dot_dimension_numbers<[1], [1], [0], [0], [0, 0, 1, 0], [], []>} : vector<4x8xf32>, vector<4x8xf32>, vector<4x4xf32> -> vector<4x4xf32>
    %cst_150 = arith.constant 0.353553385 : f32
    %407 = vector.broadcast %cst_150 : f32 to vector<4x4xf32>
    %408 = arith.mulf %406, %407 : vector<4x4xf32>
    %cst_151 = arith.constant dense<0xFF800000> : vector<4xf32>
    %409 = vector.multi_reduction <maximumf>, %408, %cst_151 [1] : vector<4x4xf32> to vector<4xf32>
    %410 = vector.shape_cast %409 : vector<4xf32> to vector<4x1xf32>
    %411 = vector.broadcast %410 : vector<4x1xf32> to vector<4x4xf32>
    %412 = arith.subf %408, %411 : vector<4x4xf32>
    %413 = math.exp %412 : vector<4x4xf32>
    %cst_152 = arith.constant dense<0.000000e+00> : vector<4xf32>
    %414 = vector.multi_reduction <add>, %413, %cst_152 [1] : vector<4x4xf32> to vector<4xf32>
    %415 = vector.shape_cast %414 : vector<4xf32> to vector<4x1xf32>
    %416 = vector.broadcast %415 : vector<4x1xf32> to vector<4x4xf32>
    %417 = arith.divf %413, %416 : vector<4x4xf32>
    %cst_153 = arith.constant dense<0.000000e+00> : vector<4x8xf32>
    %418 = tpu.matmul %417, %405, %cst_153 {dimension_numbers = #tpu.dot_dimension_numbers<[1], [0], [0], [1], [0, 0, 1, 1], [], []>} : vector<4x4xf32>, vector<4x8xf32>, vector<4x8xf32> -> vector<4x8xf32>
    %419 = tpu.concatenate %370, %386, %402, %418 in 1 : vector<4x8xf32>, vector<4x8xf32>, vector<4x8xf32>, vector<4x8xf32> -> vector<4x32xf32>
    %c0_154 = arith.constant 0 : index
    %c0_155 = arith.constant 0 : index
    %c96_156 = arith.constant 96 : index
    %420 = vector.load %arg12[%c0_154, %c0_155, %c96_156] : memref<2x32x192xf32, #tpu.memory_space<vmem>>, vector<1x32x32xf32>
    %421 = vector.shape_cast %420 : vector<1x32x32xf32> to vector<32x32xf32>
    %cst_157 = arith.constant dense<0.000000e+00> : vector<4x32xf32>
    %422 = tpu.matmul %419, %421, %cst_157 {dimension_numbers = #tpu.dot_dimension_numbers<[1], [0], [0], [1], [0, 0, 1, 1], [], []>} : vector<4x32xf32>, vector<32x32xf32>, vector<4x32xf32> -> vector<4x32xf32>
    %423 = vector.extract_strided_slice %348 {offsets = [1, 0], sizes = [1, 32], strides = [1, 1]} : vector<8x96xf32> to vector<1x32xf32>
    %424 = vector.broadcast %423 : vector<1x32xf32> to vector<4x32xf32>
    %425 = arith.addf %422, %424 : vector<4x32xf32>
    %426 = arith.addf %346, %425 : vector<4x32xf32>
    %427 = vector.extract_strided_slice %348 {offsets = [4, 0], sizes = [1, 32], strides = [1, 1]} : vector<8x96xf32> to vector<1x32xf32>
    %428 = vector.extract_strided_slice %348 {offsets = [5, 0], sizes = [1, 32], strides = [1, 1]} : vector<8x96xf32> to vector<1x32xf32>
    %cst_158 = arith.constant dense<0.000000e+00> : vector<4xf32>
    %429 = vector.multi_reduction <add>, %426, %cst_158 [1] : vector<4x32xf32> to vector<4xf32>
    %430 = vector.shape_cast %429 : vector<4xf32> to vector<4x1xf32>
    %cst_159 = arith.constant 3.200000e+01 : f32
    %431 = vector.broadcast %cst_159 : f32 to vector<4x1xf32>
    %432 = arith.divf %430, %431 : vector<4x1xf32>
    %433 = vector.broadcast %432 : vector<4x1xf32> to vector<4x32xf32>
    %434 = arith.subf %426, %433 : vector<4x32xf32>
    %435 = arith.mulf %434, %434 : vector<4x32xf32>
    %cst_160 = arith.constant dense<0.000000e+00> : vector<4xf32>
    %436 = vector.multi_reduction <add>, %435, %cst_160 [1] : vector<4x32xf32> to vector<4xf32>
    %437 = vector.shape_cast %436 : vector<4xf32> to vector<4x1xf32>
    %cst_161 = arith.constant 3.200000e+01 : f32
    %438 = vector.broadcast %cst_161 : f32 to vector<4x1xf32>
    %439 = arith.divf %437, %438 : vector<4x1xf32>
    %440 = vector.broadcast %432 : vector<4x1xf32> to vector<4x32xf32>
    %441 = arith.subf %426, %440 : vector<4x32xf32>
    %cst_162 = arith.constant 9.99999974E-6 : f32
    %442 = vector.broadcast %cst_162 : f32 to vector<4x1xf32>
    %443 = arith.addf %439, %442 : vector<4x1xf32>
    %444 = math.rsqrt %443 : vector<4x1xf32>
    %445 = vector.broadcast %444 : vector<4x1xf32> to vector<4x32xf32>
    %446 = arith.mulf %441, %445 : vector<4x32xf32>
    %447 = vector.broadcast %427 : vector<1x32xf32> to vector<4x32xf32>
    %448 = arith.mulf %446, %447 : vector<4x32xf32>
    %449 = vector.broadcast %428 : vector<1x32xf32> to vector<4x32xf32>
    %450 = arith.addf %448, %449 : vector<4x32xf32>
    %c0_163 = arith.constant 0 : index
    %c0_164 = arith.constant 0 : index
    %c128_165 = arith.constant 128 : index
    %451 = vector.load %arg12[%c0_163, %c0_164, %c128_165] : memref<2x32x192xf32, #tpu.memory_space<vmem>>, vector<1x32x64xf32>
    %452 = vector.shape_cast %451 : vector<1x32x64xf32> to vector<32x64xf32>
    %cst_166 = arith.constant dense<0.000000e+00> : vector<4x64xf32>
    %453 = tpu.matmul %450, %452, %cst_166 {dimension_numbers = #tpu.dot_dimension_numbers<[1], [0], [0], [1], [0, 0, 1, 1], [], []>} : vector<4x32xf32>, vector<32x64xf32>, vector<4x64xf32> -> vector<4x64xf32>
    %454 = vector.extract_strided_slice %348 {offsets = [2, 0], sizes = [1, 64], strides = [1, 1]} : vector<8x96xf32> to vector<1x64xf32>
    %455 = vector.broadcast %454 : vector<1x64xf32> to vector<4x64xf32>
    %456 = arith.addf %453, %455 : vector<4x64xf32>
    %cst_167 = arith.constant 5.000000e-01 : f32
    %457 = vector.broadcast %cst_167 : f32 to vector<4x64xf32>
    %458 = arith.mulf %457, %456 : vector<4x64xf32>
    %cst_168 = arith.constant 0.707106769 : f32
    %459 = vector.broadcast %cst_168 : f32 to vector<4x64xf32>
    %460 = arith.mulf %456, %459 : vector<4x64xf32>
    %461 = math.erf %460 : vector<4x64xf32>
    %cst_169 = arith.constant 1.000000e+00 : f32
    %462 = vector.broadcast %cst_169 : f32 to vector<4x64xf32>
    %463 = arith.addf %462, %461 : vector<4x64xf32>
    %464 = arith.mulf %458, %463 : vector<4x64xf32>
    %c0_170 = arith.constant 0 : index
    %c0_171 = arith.constant 0 : index
    %c0_172 = arith.constant 0 : index
    %465 = vector.load %arg13[%c0_170, %c0_171, %c0_172] : memref<2x64x32xf32, #tpu.memory_space<vmem>>, vector<1x64x32xf32>
    %466 = vector.shape_cast %465 : vector<1x64x32xf32> to vector<64x32xf32>
    %cst_173 = arith.constant dense<0.000000e+00> : vector<4x32xf32>
    %467 = tpu.matmul %464, %466, %cst_173 {dimension_numbers = #tpu.dot_dimension_numbers<[1], [0], [0], [1], [0, 0, 1, 1], [], []>} : vector<4x64xf32>, vector<64x32xf32>, vector<4x32xf32> -> vector<4x32xf32>
    %468 = vector.extract_strided_slice %348 {offsets = [3, 0], sizes = [1, 32], strides = [1, 1]} : vector<8x96xf32> to vector<1x32xf32>
    %469 = vector.broadcast %468 : vector<1x32xf32> to vector<4x32xf32>
    %470 = arith.addf %467, %469 : vector<4x32xf32>
    %471 = arith.addf %450, %470 : vector<4x32xf32>
    %472 = vector.extract_strided_slice %348 {offsets = [6, 0], sizes = [1, 32], strides = [1, 1]} : vector<8x96xf32> to vector<1x32xf32>
    %473 = vector.extract_strided_slice %348 {offsets = [7, 0], sizes = [1, 32], strides = [1, 1]} : vector<8x96xf32> to vector<1x32xf32>
    %cst_174 = arith.constant dense<0.000000e+00> : vector<4xf32>
    %474 = vector.multi_reduction <add>, %471, %cst_174 [1] : vector<4x32xf32> to vector<4xf32>
    %475 = vector.shape_cast %474 : vector<4xf32> to vector<4x1xf32>
    %cst_175 = arith.constant 3.200000e+01 : f32
    %476 = vector.broadcast %cst_175 : f32 to vector<4x1xf32>
    %477 = arith.divf %475, %476 : vector<4x1xf32>
    %478 = vector.broadcast %477 : vector<4x1xf32> to vector<4x32xf32>
    %479 = arith.subf %471, %478 : vector<4x32xf32>
    %480 = arith.mulf %479, %479 : vector<4x32xf32>
    %cst_176 = arith.constant dense<0.000000e+00> : vector<4xf32>
    %481 = vector.multi_reduction <add>, %480, %cst_176 [1] : vector<4x32xf32> to vector<4xf32>
    %482 = vector.shape_cast %481 : vector<4xf32> to vector<4x1xf32>
    %cst_177 = arith.constant 3.200000e+01 : f32
    %483 = vector.broadcast %cst_177 : f32 to vector<4x1xf32>
    %484 = arith.divf %482, %483 : vector<4x1xf32>
    %485 = vector.broadcast %477 : vector<4x1xf32> to vector<4x32xf32>
    %486 = arith.subf %471, %485 : vector<4x32xf32>
    %cst_178 = arith.constant 9.99999974E-6 : f32
    %487 = vector.broadcast %cst_178 : f32 to vector<4x1xf32>
    %488 = arith.addf %484, %487 : vector<4x1xf32>
    %489 = math.rsqrt %488 : vector<4x1xf32>
    %490 = vector.broadcast %489 : vector<4x1xf32> to vector<4x32xf32>
    %491 = arith.mulf %486, %490 : vector<4x32xf32>
    %492 = vector.broadcast %472 : vector<1x32xf32> to vector<4x32xf32>
    %493 = arith.mulf %491, %492 : vector<4x32xf32>
    %494 = vector.broadcast %473 : vector<1x32xf32> to vector<4x32xf32>
    %495 = arith.addf %493, %494 : vector<4x32xf32>
    %c1_179 = arith.constant 1 : index
    %c0_180 = arith.constant 0 : index
    %c0_181 = arith.constant 0 : index
    %496 = vector.load %arg14[%c1_179, %c0_180, %c0_181] : memref<2x8x96xf32, #tpu.memory_space<vmem>>, vector<1x8x96xf32>
    %497 = vector.shape_cast %496 : vector<1x8x96xf32> to vector<8x96xf32>
    %c1_182 = arith.constant 1 : index
    %c0_183 = arith.constant 0 : index
    %c0_184 = arith.constant 0 : index
    %498 = vector.load %arg12[%c1_182, %c0_183, %c0_184] : memref<2x32x192xf32, #tpu.memory_space<vmem>>, vector<1x32x96xf32>
    %499 = vector.shape_cast %498 : vector<1x32x96xf32> to vector<32x96xf32>
    %cst_185 = arith.constant dense<0.000000e+00> : vector<4x96xf32>
    %500 = tpu.matmul %495, %499, %cst_185 {dimension_numbers = #tpu.dot_dimension_numbers<[1], [0], [0], [1], [0, 0, 1, 1], [], []>} : vector<4x32xf32>, vector<32x96xf32>, vector<4x96xf32> -> vector<4x96xf32>
    %501 = vector.extract_strided_slice %497 {offsets = [0, 0], sizes = [1, 96], strides = [1, 1]} : vector<8x96xf32> to vector<1x96xf32>
    %502 = vector.broadcast %501 : vector<1x96xf32> to vector<4x96xf32>
    %503 = arith.addf %500, %502 : vector<4x96xf32>
    %504 = vector.extract_strided_slice %503 {offsets = [0, 0], sizes = [4, 8], strides = [1, 1]} : vector<4x96xf32> to vector<4x8xf32>
    %505 = vector.extract_strided_slice %503 {offsets = [0, 32], sizes = [4, 8], strides = [1, 1]} : vector<4x96xf32> to vector<4x8xf32>
    %506 = vector.extract_strided_slice %503 {offsets = [0, 64], sizes = [4, 8], strides = [1, 1]} : vector<4x96xf32> to vector<4x8xf32>
    %cst_186 = arith.constant dense<0.000000e+00> : vector<4x4xf32>
    %507 = tpu.matmul %504, %505, %cst_186 {dimension_numbers = #tpu.dot_dimension_numbers<[1], [1], [0], [0], [0, 0, 1, 0], [], []>} : vector<4x8xf32>, vector<4x8xf32>, vector<4x4xf32> -> vector<4x4xf32>
    %cst_187 = arith.constant 0.353553385 : f32
    %508 = vector.broadcast %cst_187 : f32 to vector<4x4xf32>
    %509 = arith.mulf %507, %508 : vector<4x4xf32>
    %cst_188 = arith.constant dense<0xFF800000> : vector<4xf32>
    %510 = vector.multi_reduction <maximumf>, %509, %cst_188 [1] : vector<4x4xf32> to vector<4xf32>
    %511 = vector.shape_cast %510 : vector<4xf32> to vector<4x1xf32>
    %512 = vector.broadcast %511 : vector<4x1xf32> to vector<4x4xf32>
    %513 = arith.subf %509, %512 : vector<4x4xf32>
    %514 = math.exp %513 : vector<4x4xf32>
    %cst_189 = arith.constant dense<0.000000e+00> : vector<4xf32>
    %515 = vector.multi_reduction <add>, %514, %cst_189 [1] : vector<4x4xf32> to vector<4xf32>
    %516 = vector.shape_cast %515 : vector<4xf32> to vector<4x1xf32>
    %517 = vector.broadcast %516 : vector<4x1xf32> to vector<4x4xf32>
    %518 = arith.divf %514, %517 : vector<4x4xf32>
    %cst_190 = arith.constant dense<0.000000e+00> : vector<4x8xf32>
    %519 = tpu.matmul %518, %506, %cst_190 {dimension_numbers = #tpu.dot_dimension_numbers<[1], [0], [0], [1], [0, 0, 1, 1], [], []>} : vector<4x4xf32>, vector<4x8xf32>, vector<4x8xf32> -> vector<4x8xf32>
    %520 = vector.extract_strided_slice %503 {offsets = [0, 8], sizes = [4, 8], strides = [1, 1]} : vector<4x96xf32> to vector<4x8xf32>
    %521 = vector.extract_strided_slice %503 {offsets = [0, 40], sizes = [4, 8], strides = [1, 1]} : vector<4x96xf32> to vector<4x8xf32>
    %522 = vector.extract_strided_slice %503 {offsets = [0, 72], sizes = [4, 8], strides = [1, 1]} : vector<4x96xf32> to vector<4x8xf32>
    %cst_191 = arith.constant dense<0.000000e+00> : vector<4x4xf32>
    %523 = tpu.matmul %520, %521, %cst_191 {dimension_numbers = #tpu.dot_dimension_numbers<[1], [1], [0], [0], [0, 0, 1, 0], [], []>} : vector<4x8xf32>, vector<4x8xf32>, vector<4x4xf32> -> vector<4x4xf32>
    %cst_192 = arith.constant 0.353553385 : f32
    %524 = vector.broadcast %cst_192 : f32 to vector<4x4xf32>
    %525 = arith.mulf %523, %524 : vector<4x4xf32>
    %cst_193 = arith.constant dense<0xFF800000> : vector<4xf32>
    %526 = vector.multi_reduction <maximumf>, %525, %cst_193 [1] : vector<4x4xf32> to vector<4xf32>
    %527 = vector.shape_cast %526 : vector<4xf32> to vector<4x1xf32>
    %528 = vector.broadcast %527 : vector<4x1xf32> to vector<4x4xf32>
    %529 = arith.subf %525, %528 : vector<4x4xf32>
    %530 = math.exp %529 : vector<4x4xf32>
    %cst_194 = arith.constant dense<0.000000e+00> : vector<4xf32>
    %531 = vector.multi_reduction <add>, %530, %cst_194 [1] : vector<4x4xf32> to vector<4xf32>
    %532 = vector.shape_cast %531 : vector<4xf32> to vector<4x1xf32>
    %533 = vector.broadcast %532 : vector<4x1xf32> to vector<4x4xf32>
    %534 = arith.divf %530, %533 : vector<4x4xf32>
    %cst_195 = arith.constant dense<0.000000e+00> : vector<4x8xf32>
    %535 = tpu.matmul %534, %522, %cst_195 {dimension_numbers = #tpu.dot_dimension_numbers<[1], [0], [0], [1], [0, 0, 1, 1], [], []>} : vector<4x4xf32>, vector<4x8xf32>, vector<4x8xf32> -> vector<4x8xf32>
    %536 = vector.extract_strided_slice %503 {offsets = [0, 16], sizes = [4, 8], strides = [1, 1]} : vector<4x96xf32> to vector<4x8xf32>
    %537 = vector.extract_strided_slice %503 {offsets = [0, 48], sizes = [4, 8], strides = [1, 1]} : vector<4x96xf32> to vector<4x8xf32>
    %538 = vector.extract_strided_slice %503 {offsets = [0, 80], sizes = [4, 8], strides = [1, 1]} : vector<4x96xf32> to vector<4x8xf32>
    %cst_196 = arith.constant dense<0.000000e+00> : vector<4x4xf32>
    %539 = tpu.matmul %536, %537, %cst_196 {dimension_numbers = #tpu.dot_dimension_numbers<[1], [1], [0], [0], [0, 0, 1, 0], [], []>} : vector<4x8xf32>, vector<4x8xf32>, vector<4x4xf32> -> vector<4x4xf32>
    %cst_197 = arith.constant 0.353553385 : f32
    %540 = vector.broadcast %cst_197 : f32 to vector<4x4xf32>
    %541 = arith.mulf %539, %540 : vector<4x4xf32>
    %cst_198 = arith.constant dense<0xFF800000> : vector<4xf32>
    %542 = vector.multi_reduction <maximumf>, %541, %cst_198 [1] : vector<4x4xf32> to vector<4xf32>
    %543 = vector.shape_cast %542 : vector<4xf32> to vector<4x1xf32>
    %544 = vector.broadcast %543 : vector<4x1xf32> to vector<4x4xf32>
    %545 = arith.subf %541, %544 : vector<4x4xf32>
    %546 = math.exp %545 : vector<4x4xf32>
    %cst_199 = arith.constant dense<0.000000e+00> : vector<4xf32>
    %547 = vector.multi_reduction <add>, %546, %cst_199 [1] : vector<4x4xf32> to vector<4xf32>
    %548 = vector.shape_cast %547 : vector<4xf32> to vector<4x1xf32>
    %549 = vector.broadcast %548 : vector<4x1xf32> to vector<4x4xf32>
    %550 = arith.divf %546, %549 : vector<4x4xf32>
    %cst_200 = arith.constant dense<0.000000e+00> : vector<4x8xf32>
    %551 = tpu.matmul %550, %538, %cst_200 {dimension_numbers = #tpu.dot_dimension_numbers<[1], [0], [0], [1], [0, 0, 1, 1], [], []>} : vector<4x4xf32>, vector<4x8xf32>, vector<4x8xf32> -> vector<4x8xf32>
    %552 = vector.extract_strided_slice %503 {offsets = [0, 24], sizes = [4, 8], strides = [1, 1]} : vector<4x96xf32> to vector<4x8xf32>
    %553 = vector.extract_strided_slice %503 {offsets = [0, 56], sizes = [4, 8], strides = [1, 1]} : vector<4x96xf32> to vector<4x8xf32>
    %554 = vector.extract_strided_slice %503 {offsets = [0, 88], sizes = [4, 8], strides = [1, 1]} : vector<4x96xf32> to vector<4x8xf32>
    %cst_201 = arith.constant dense<0.000000e+00> : vector<4x4xf32>
    %555 = tpu.matmul %552, %553, %cst_201 {dimension_numbers = #tpu.dot_dimension_numbers<[1], [1], [0], [0], [0, 0, 1, 0], [], []>} : vector<4x8xf32>, vector<4x8xf32>, vector<4x4xf32> -> vector<4x4xf32>
    %cst_202 = arith.constant 0.353553385 : f32
    %556 = vector.broadcast %cst_202 : f32 to vector<4x4xf32>
    %557 = arith.mulf %555, %556 : vector<4x4xf32>
    %cst_203 = arith.constant dense<0xFF800000> : vector<4xf32>
    %558 = vector.multi_reduction <maximumf>, %557, %cst_203 [1] : vector<4x4xf32> to vector<4xf32>
    %559 = vector.shape_cast %558 : vector<4xf32> to vector<4x1xf32>
    %560 = vector.broadcast %559 : vector<4x1xf32> to vector<4x4xf32>
    %561 = arith.subf %557, %560 : vector<4x4xf32>
    %562 = math.exp %561 : vector<4x4xf32>
    %cst_204 = arith.constant dense<0.000000e+00> : vector<4xf32>
    %563 = vector.multi_reduction <add>, %562, %cst_204 [1] : vector<4x4xf32> to vector<4xf32>
    %564 = vector.shape_cast %563 : vector<4xf32> to vector<4x1xf32>
    %565 = vector.broadcast %564 : vector<4x1xf32> to vector<4x4xf32>
    %566 = arith.divf %562, %565 : vector<4x4xf32>
    %cst_205 = arith.constant dense<0.000000e+00> : vector<4x8xf32>
    %567 = tpu.matmul %566, %554, %cst_205 {dimension_numbers = #tpu.dot_dimension_numbers<[1], [0], [0], [1], [0, 0, 1, 1], [], []>} : vector<4x4xf32>, vector<4x8xf32>, vector<4x8xf32> -> vector<4x8xf32>
    %568 = tpu.concatenate %519, %535, %551, %567 in 1 : vector<4x8xf32>, vector<4x8xf32>, vector<4x8xf32>, vector<4x8xf32> -> vector<4x32xf32>
    %c1_206 = arith.constant 1 : index
    %c0_207 = arith.constant 0 : index
    %c96_208 = arith.constant 96 : index
    %569 = vector.load %arg12[%c1_206, %c0_207, %c96_208] : memref<2x32x192xf32, #tpu.memory_space<vmem>>, vector<1x32x32xf32>
    %570 = vector.shape_cast %569 : vector<1x32x32xf32> to vector<32x32xf32>
    %cst_209 = arith.constant dense<0.000000e+00> : vector<4x32xf32>
    %571 = tpu.matmul %568, %570, %cst_209 {dimension_numbers = #tpu.dot_dimension_numbers<[1], [0], [0], [1], [0, 0, 1, 1], [], []>} : vector<4x32xf32>, vector<32x32xf32>, vector<4x32xf32> -> vector<4x32xf32>
    %572 = vector.extract_strided_slice %497 {offsets = [1, 0], sizes = [1, 32], strides = [1, 1]} : vector<8x96xf32> to vector<1x32xf32>
    %573 = vector.broadcast %572 : vector<1x32xf32> to vector<4x32xf32>
    %574 = arith.addf %571, %573 : vector<4x32xf32>
    %575 = arith.addf %495, %574 : vector<4x32xf32>
    %576 = vector.extract_strided_slice %497 {offsets = [4, 0], sizes = [1, 32], strides = [1, 1]} : vector<8x96xf32> to vector<1x32xf32>
    %577 = vector.extract_strided_slice %497 {offsets = [5, 0], sizes = [1, 32], strides = [1, 1]} : vector<8x96xf32> to vector<1x32xf32>
    %cst_210 = arith.constant dense<0.000000e+00> : vector<4xf32>
    %578 = vector.multi_reduction <add>, %575, %cst_210 [1] : vector<4x32xf32> to vector<4xf32>
    %579 = vector.shape_cast %578 : vector<4xf32> to vector<4x1xf32>
    %cst_211 = arith.constant 3.200000e+01 : f32
    %580 = vector.broadcast %cst_211 : f32 to vector<4x1xf32>
    %581 = arith.divf %579, %580 : vector<4x1xf32>
    %582 = vector.broadcast %581 : vector<4x1xf32> to vector<4x32xf32>
    %583 = arith.subf %575, %582 : vector<4x32xf32>
    %584 = arith.mulf %583, %583 : vector<4x32xf32>
    %cst_212 = arith.constant dense<0.000000e+00> : vector<4xf32>
    %585 = vector.multi_reduction <add>, %584, %cst_212 [1] : vector<4x32xf32> to vector<4xf32>
    %586 = vector.shape_cast %585 : vector<4xf32> to vector<4x1xf32>
    %cst_213 = arith.constant 3.200000e+01 : f32
    %587 = vector.broadcast %cst_213 : f32 to vector<4x1xf32>
    %588 = arith.divf %586, %587 : vector<4x1xf32>
    %589 = vector.broadcast %581 : vector<4x1xf32> to vector<4x32xf32>
    %590 = arith.subf %575, %589 : vector<4x32xf32>
    %cst_214 = arith.constant 9.99999974E-6 : f32
    %591 = vector.broadcast %cst_214 : f32 to vector<4x1xf32>
    %592 = arith.addf %588, %591 : vector<4x1xf32>
    %593 = math.rsqrt %592 : vector<4x1xf32>
    %594 = vector.broadcast %593 : vector<4x1xf32> to vector<4x32xf32>
    %595 = arith.mulf %590, %594 : vector<4x32xf32>
    %596 = vector.broadcast %576 : vector<1x32xf32> to vector<4x32xf32>
    %597 = arith.mulf %595, %596 : vector<4x32xf32>
    %598 = vector.broadcast %577 : vector<1x32xf32> to vector<4x32xf32>
    %599 = arith.addf %597, %598 : vector<4x32xf32>
    %c1_215 = arith.constant 1 : index
    %c0_216 = arith.constant 0 : index
    %c128_217 = arith.constant 128 : index
    %600 = vector.load %arg12[%c1_215, %c0_216, %c128_217] : memref<2x32x192xf32, #tpu.memory_space<vmem>>, vector<1x32x64xf32>
    %601 = vector.shape_cast %600 : vector<1x32x64xf32> to vector<32x64xf32>
    %cst_218 = arith.constant dense<0.000000e+00> : vector<4x64xf32>
    %602 = tpu.matmul %599, %601, %cst_218 {dimension_numbers = #tpu.dot_dimension_numbers<[1], [0], [0], [1], [0, 0, 1, 1], [], []>} : vector<4x32xf32>, vector<32x64xf32>, vector<4x64xf32> -> vector<4x64xf32>
    %603 = vector.extract_strided_slice %497 {offsets = [2, 0], sizes = [1, 64], strides = [1, 1]} : vector<8x96xf32> to vector<1x64xf32>
    %604 = vector.broadcast %603 : vector<1x64xf32> to vector<4x64xf32>
    %605 = arith.addf %602, %604 : vector<4x64xf32>
    %cst_219 = arith.constant 5.000000e-01 : f32
    %606 = vector.broadcast %cst_219 : f32 to vector<4x64xf32>
    %607 = arith.mulf %606, %605 : vector<4x64xf32>
    %cst_220 = arith.constant 0.707106769 : f32
    %608 = vector.broadcast %cst_220 : f32 to vector<4x64xf32>
    %609 = arith.mulf %605, %608 : vector<4x64xf32>
    %610 = math.erf %609 : vector<4x64xf32>
    %cst_221 = arith.constant 1.000000e+00 : f32
    %611 = vector.broadcast %cst_221 : f32 to vector<4x64xf32>
    %612 = arith.addf %611, %610 : vector<4x64xf32>
    %613 = arith.mulf %607, %612 : vector<4x64xf32>
    %c1_222 = arith.constant 1 : index
    %c0_223 = arith.constant 0 : index
    %c0_224 = arith.constant 0 : index
    %614 = vector.load %arg13[%c1_222, %c0_223, %c0_224] : memref<2x64x32xf32, #tpu.memory_space<vmem>>, vector<1x64x32xf32>
    %615 = vector.shape_cast %614 : vector<1x64x32xf32> to vector<64x32xf32>
    %cst_225 = arith.constant dense<0.000000e+00> : vector<4x32xf32>
    %616 = tpu.matmul %613, %615, %cst_225 {dimension_numbers = #tpu.dot_dimension_numbers<[1], [0], [0], [1], [0, 0, 1, 1], [], []>} : vector<4x64xf32>, vector<64x32xf32>, vector<4x32xf32> -> vector<4x32xf32>
    %617 = vector.extract_strided_slice %497 {offsets = [3, 0], sizes = [1, 32], strides = [1, 1]} : vector<8x96xf32> to vector<1x32xf32>
    %618 = vector.broadcast %617 : vector<1x32xf32> to vector<4x32xf32>
    %619 = arith.addf %616, %618 : vector<4x32xf32>
    %620 = arith.addf %599, %619 : vector<4x32xf32>
    %621 = vector.extract_strided_slice %497 {offsets = [6, 0], sizes = [1, 32], strides = [1, 1]} : vector<8x96xf32> to vector<1x32xf32>
    %622 = vector.extract_strided_slice %497 {offsets = [7, 0], sizes = [1, 32], strides = [1, 1]} : vector<8x96xf32> to vector<1x32xf32>
    %cst_226 = arith.constant dense<0.000000e+00> : vector<4xf32>
    %623 = vector.multi_reduction <add>, %620, %cst_226 [1] : vector<4x32xf32> to vector<4xf32>
    %624 = vector.shape_cast %623 : vector<4xf32> to vector<4x1xf32>
    %cst_227 = arith.constant 3.200000e+01 : f32
    %625 = vector.broadcast %cst_227 : f32 to vector<4x1xf32>
    %626 = arith.divf %624, %625 : vector<4x1xf32>
    %627 = vector.broadcast %626 : vector<4x1xf32> to vector<4x32xf32>
    %628 = arith.subf %620, %627 : vector<4x32xf32>
    %629 = arith.mulf %628, %628 : vector<4x32xf32>
    %cst_228 = arith.constant dense<0.000000e+00> : vector<4xf32>
    %630 = vector.multi_reduction <add>, %629, %cst_228 [1] : vector<4x32xf32> to vector<4xf32>
    %631 = vector.shape_cast %630 : vector<4xf32> to vector<4x1xf32>
    %cst_229 = arith.constant 3.200000e+01 : f32
    %632 = vector.broadcast %cst_229 : f32 to vector<4x1xf32>
    %633 = arith.divf %631, %632 : vector<4x1xf32>
    %634 = vector.broadcast %626 : vector<4x1xf32> to vector<4x32xf32>
    %635 = arith.subf %620, %634 : vector<4x32xf32>
    %cst_230 = arith.constant 9.99999974E-6 : f32
    %636 = vector.broadcast %cst_230 : f32 to vector<4x1xf32>
    %637 = arith.addf %633, %636 : vector<4x1xf32>
    %638 = math.rsqrt %637 : vector<4x1xf32>
    %639 = vector.broadcast %638 : vector<4x1xf32> to vector<4x32xf32>
    %640 = arith.mulf %635, %639 : vector<4x32xf32>
    %641 = vector.broadcast %621 : vector<1x32xf32> to vector<4x32xf32>
    %642 = arith.mulf %640, %641 : vector<4x32xf32>
    %643 = vector.broadcast %622 : vector<1x32xf32> to vector<4x32xf32>
    %644 = arith.addf %642, %643 : vector<4x32xf32>
    %c1_231 = arith.constant 1 : index
    %c0_232 = arith.constant 0 : index
    %645 = vector.load %arg11[%c1_231, %c0_232] : memref<3x32xf32, #tpu.memory_space<vmem>>, vector<1x32xf32>
    %c2_233 = arith.constant 2 : index
    %c0_234 = arith.constant 0 : index
    %646 = vector.load %arg11[%c2_233, %c0_234] : memref<3x32xf32, #tpu.memory_space<vmem>>, vector<1x32xf32>
    %cst_235 = arith.constant dense<0.000000e+00> : vector<4xf32>
    %647 = vector.multi_reduction <add>, %644, %cst_235 [1] : vector<4x32xf32> to vector<4xf32>
    %648 = vector.shape_cast %647 : vector<4xf32> to vector<4x1xf32>
    %cst_236 = arith.constant 3.200000e+01 : f32
    %649 = vector.broadcast %cst_236 : f32 to vector<4x1xf32>
    %650 = arith.divf %648, %649 : vector<4x1xf32>
    %651 = vector.broadcast %650 : vector<4x1xf32> to vector<4x32xf32>
    %652 = arith.subf %644, %651 : vector<4x32xf32>
    %653 = arith.mulf %652, %652 : vector<4x32xf32>
    %cst_237 = arith.constant dense<0.000000e+00> : vector<4xf32>
    %654 = vector.multi_reduction <add>, %653, %cst_237 [1] : vector<4x32xf32> to vector<4xf32>
    %655 = vector.shape_cast %654 : vector<4xf32> to vector<4x1xf32>
    %cst_238 = arith.constant 3.200000e+01 : f32
    %656 = vector.broadcast %cst_238 : f32 to vector<4x1xf32>
    %657 = arith.divf %655, %656 : vector<4x1xf32>
    %658 = vector.broadcast %650 : vector<4x1xf32> to vector<4x32xf32>
    %659 = arith.subf %644, %658 : vector<4x32xf32>
    %cst_239 = arith.constant 9.99999974E-6 : f32
    %660 = vector.broadcast %cst_239 : f32 to vector<4x1xf32>
    %661 = arith.addf %657, %660 : vector<4x1xf32>
    %662 = math.rsqrt %661 : vector<4x1xf32>
    %663 = vector.broadcast %662 : vector<4x1xf32> to vector<4x32xf32>
    %664 = arith.mulf %659, %663 : vector<4x32xf32>
    %665 = vector.broadcast %645 : vector<1x32xf32> to vector<4x32xf32>
    %666 = arith.mulf %664, %665 : vector<4x32xf32>
    %667 = vector.broadcast %646 : vector<1x32xf32> to vector<4x32xf32>
    %668 = arith.addf %666, %667 : vector<4x32xf32>
    %c0_240 = arith.constant 0 : index
    %c0_241 = arith.constant 0 : index
    %c0_242 = arith.constant 0 : index
    %669 = vector.load %arg15[%c0_240, %c0_241, %c0_242] : memref<3x32x32xf32, #tpu.memory_space<vmem>>, vector<1x32x32xf32>
    %670 = vector.shape_cast %669 : vector<1x32x32xf32> to vector<32x32xf32>
    %671 = arith.mulf %339, %670 : vector<32x32xf32>
    %cst_243 = arith.constant dense<0.000000e+00> : vector<32xf32>
    %672 = vector.multi_reduction <add>, %671, %cst_243 [1] : vector<32x32xf32> to vector<32xf32>
    %673 = vector.shape_cast %672 : vector<32xf32> to vector<32x1xf32>
    %cst_244 = arith.constant dense<0.000000e+00> : vector<1xf32>
    %674 = vector.multi_reduction <add>, %673, %cst_244 [0] : vector<32x1xf32> to vector<1xf32>
    %675 = vector.shape_cast %674 : vector<1xf32> to vector<1x1xf32>
    %c1_245 = arith.constant 1 : index
    %c0_246 = arith.constant 0 : index
    %c0_247 = arith.constant 0 : index
    %676 = vector.load %arg15[%c1_245, %c0_246, %c0_247] : memref<3x32x32xf32, #tpu.memory_space<vmem>>, vector<1x32x32xf32>
    %677 = vector.shape_cast %676 : vector<1x32x32xf32> to vector<32x32xf32>
    %678 = arith.mulf %339, %677 : vector<32x32xf32>
    %cst_248 = arith.constant dense<0.000000e+00> : vector<32xf32>
    %679 = vector.multi_reduction <add>, %678, %cst_248 [1] : vector<32x32xf32> to vector<32xf32>
    %680 = vector.shape_cast %679 : vector<32xf32> to vector<32x1xf32>
    %cst_249 = arith.constant dense<0.000000e+00> : vector<1xf32>
    %681 = vector.multi_reduction <add>, %680, %cst_249 [0] : vector<32x1xf32> to vector<1xf32>
    %682 = vector.shape_cast %681 : vector<1xf32> to vector<1x1xf32>
    %c2_250 = arith.constant 2 : index
    %c0_251 = arith.constant 0 : index
    %c0_252 = arith.constant 0 : index
    %683 = vector.load %arg15[%c2_250, %c0_251, %c0_252] : memref<3x32x32xf32, #tpu.memory_space<vmem>>, vector<1x32x32xf32>
    %684 = vector.shape_cast %683 : vector<1x32x32xf32> to vector<32x32xf32>
    %685 = arith.mulf %339, %684 : vector<32x32xf32>
    %cst_253 = arith.constant dense<0.000000e+00> : vector<32xf32>
    %686 = vector.multi_reduction <add>, %685, %cst_253 [1] : vector<32x32xf32> to vector<32xf32>
    %687 = vector.shape_cast %686 : vector<32xf32> to vector<32x1xf32>
    %cst_254 = arith.constant dense<0.000000e+00> : vector<1xf32>
    %688 = vector.multi_reduction <add>, %687, %cst_254 [0] : vector<32x1xf32> to vector<1xf32>
    %689 = vector.shape_cast %688 : vector<1xf32> to vector<1x1xf32>
    %c0_255 = arith.constant 0 : index
    %c0_256 = arith.constant 0 : index
    %c0_257 = arith.constant 0 : index
    %690 = vector.load %arg16[%c0_255, %c0_256, %c0_257] : memref<3x4x32xf32, #tpu.memory_space<vmem>>, vector<1x4x32xf32>
    %691 = vector.shape_cast %690 : vector<1x4x32xf32> to vector<4x32xf32>
    %692 = arith.mulf %668, %691 : vector<4x32xf32>
    %cst_258 = arith.constant dense<0.000000e+00> : vector<4xf32>
    %693 = vector.multi_reduction <add>, %692, %cst_258 [1] : vector<4x32xf32> to vector<4xf32>
    %694 = vector.shape_cast %693 : vector<4xf32> to vector<4x1xf32>
    %cst_259 = arith.constant dense<0.000000e+00> : vector<1xf32>
    %695 = vector.multi_reduction <add>, %694, %cst_259 [0] : vector<4x1xf32> to vector<1xf32>
    %696 = vector.shape_cast %695 : vector<1xf32> to vector<1x1xf32>
    %c1_260 = arith.constant 1 : index
    %c0_261 = arith.constant 0 : index
    %c0_262 = arith.constant 0 : index
    %697 = vector.load %arg16[%c1_260, %c0_261, %c0_262] : memref<3x4x32xf32, #tpu.memory_space<vmem>>, vector<1x4x32xf32>
    %698 = vector.shape_cast %697 : vector<1x4x32xf32> to vector<4x32xf32>
    %699 = arith.mulf %668, %698 : vector<4x32xf32>
    %cst_263 = arith.constant dense<0.000000e+00> : vector<4xf32>
    %700 = vector.multi_reduction <add>, %699, %cst_263 [1] : vector<4x32xf32> to vector<4xf32>
    %701 = vector.shape_cast %700 : vector<4xf32> to vector<4x1xf32>
    %cst_264 = arith.constant dense<0.000000e+00> : vector<1xf32>
    %702 = vector.multi_reduction <add>, %701, %cst_264 [0] : vector<4x1xf32> to vector<1xf32>
    %703 = vector.shape_cast %702 : vector<1xf32> to vector<1x1xf32>
    %c2_265 = arith.constant 2 : index
    %c0_266 = arith.constant 0 : index
    %c0_267 = arith.constant 0 : index
    %704 = vector.load %arg16[%c2_265, %c0_266, %c0_267] : memref<3x4x32xf32, #tpu.memory_space<vmem>>, vector<1x4x32xf32>
    %705 = vector.shape_cast %704 : vector<1x4x32xf32> to vector<4x32xf32>
    %706 = arith.mulf %668, %705 : vector<4x32xf32>
    %cst_268 = arith.constant dense<0.000000e+00> : vector<4xf32>
    %707 = vector.multi_reduction <add>, %706, %cst_268 [1] : vector<4x32xf32> to vector<4xf32>
    %708 = vector.shape_cast %707 : vector<4xf32> to vector<4x1xf32>
    %cst_269 = arith.constant dense<0.000000e+00> : vector<1xf32>
    %709 = vector.multi_reduction <add>, %708, %cst_269 [0] : vector<4x1xf32> to vector<1xf32>
    %710 = vector.shape_cast %709 : vector<1xf32> to vector<1x1xf32>
    %c0_270 = arith.constant 0 : index
    %c0_271 = arith.constant 0 : index
    %711 = vector.load %arg17[%c0_270, %c0_271] : memref<1x3xf32, #tpu.memory_space<vmem>>, vector<1x3xf32>
    %712 = arith.addf %675, %696 : vector<1x1xf32>
    %713 = vector.extract_strided_slice %711 {offsets = [0, 0], sizes = [1, 1], strides = [1, 1]} : vector<1x3xf32> to vector<1x1xf32>
    %714 = arith.addf %712, %713 : vector<1x1xf32>
    %715 = arith.addf %682, %703 : vector<1x1xf32>
    %716 = vector.extract_strided_slice %711 {offsets = [0, 1], sizes = [1, 1], strides = [1, 1]} : vector<1x3xf32> to vector<1x1xf32>
    %717 = arith.addf %715, %716 : vector<1x1xf32>
    %718 = arith.maximumf %714, %717 : vector<1x1xf32>
    %719 = arith.subf %714, %718 : vector<1x1xf32>
    %720 = math.exp %719 : vector<1x1xf32>
    %721 = arith.subf %717, %718 : vector<1x1xf32>
    %722 = math.exp %721 : vector<1x1xf32>
    %723 = arith.addf %720, %722 : vector<1x1xf32>
    %724 = arith.divf %720, %723 : vector<1x1xf32>
    %725 = arith.divf %722, %723 : vector<1x1xf32>
    %726 = arith.mulf %724, %689 : vector<1x1xf32>
    %727 = arith.mulf %725, %710 : vector<1x1xf32>
    %728 = arith.addf %726, %727 : vector<1x1xf32>
    %729 = vector.extract_strided_slice %711 {offsets = [0, 2], sizes = [1, 1], strides = [1, 1]} : vector<1x3xf32> to vector<1x1xf32>
    %730 = arith.addf %728, %729 : vector<1x1xf32>
    %c0_272 = arith.constant 0 : index
    %c0_273 = arith.constant 0 : index
    %c0_274 = arith.constant 0 : index
    %731 = vector.load %arg18[%c0_272, %c0_273, %c0_274] : memref<1x1x1xf32, #tpu.memory_space<vmem>>, vector<1x1x1xf32>
    %732 = vector.shape_cast %731 : vector<1x1x1xf32> to vector<1x1xf32>
    %733 = vector.shape_cast %730 : vector<1x1xf32> to vector<1x1x1xf32>
    tpu.vector_store %arg18[%c0_272, %c0_273, %c0_274], %733 {strides = array<i32>} : memref<1x1x1xf32, #tpu.memory_space<vmem>>, vector<1x1x1xf32>,
    return
  }
  func.func @transform_0(%arg0: i32) -> (i32, i32, i32) {
    %c0_i32 = arith.constant 0 : i32
    %c0_i32_0 = arith.constant 0 : i32
    %c0_i32_1 = arith.constant 0 : i32
    return %arg0, %c0_i32, %c0_i32_0 : i32, i32, i32
  }
  func.func @transform_1(%arg0: i32) -> (i32, i32, i32) {
    %c0_i32 = arith.constant 0 : i32
    %c0_i32_0 = arith.constant 0 : i32
    %c0_i32_1 = arith.constant 0 : i32
    return %arg0, %c0_i32, %c0_i32_0 : i32, i32, i32
  }
  func.func @transform_2(%arg0: i32) -> (i32, i32) {
    %c0_i32 = arith.constant 0 : i32
    %c0_i32_0 = arith.constant 0 : i32
    %c0_i32_1 = arith.constant 0 : i32
    return %c0_i32, %c0_i32_0 : i32, i32
  }
  func.func @transform_3(%arg0: i32) -> (i32, i32) {
    %c0_i32 = arith.constant 0 : i32
    %c0_i32_0 = arith.constant 0 : i32
    %c0_i32_1 = arith.constant 0 : i32
    return %c0_i32, %c0_i32_0 : i32, i32
  }
  func.func @transform_4(%arg0: i32) -> (i32, i32) {
    %c0_i32 = arith.constant 0 : i32
    %c0_i32_0 = arith.constant 0 : i32
    %c0_i32_1 = arith.constant 0 : i32
    return %c0_i32, %c0_i32_0 : i32, i32
  }
  func.func @transform_5(%arg0: i32) -> (i32, i32) {
    %c0_i32 = arith.constant 0 : i32
    %c0_i32_0 = arith.constant 0 : i32
    %c0_i32_1 = arith.constant 0 : i32
    return %c0_i32, %c0_i32_0 : i32, i32
  }
  func.func @transform_6(%arg0: i32) -> (i32, i32, i32) {
    %c0_i32 = arith.constant 0 : i32
    %c0_i32_0 = arith.constant 0 : i32
    %c0_i32_1 = arith.constant 0 : i32
    %c0_i32_2 = arith.constant 0 : i32
    return %c0_i32, %c0_i32_0, %c0_i32_1 : i32, i32, i32
  }
  func.func @transform_7(%arg0: i32) -> (i32, i32, i32) {
    %c0_i32 = arith.constant 0 : i32
    %c0_i32_0 = arith.constant 0 : i32
    %c0_i32_1 = arith.constant 0 : i32
    %c0_i32_2 = arith.constant 0 : i32
    return %c0_i32, %c0_i32_0, %c0_i32_1 : i32, i32, i32
  }
  func.func @transform_8(%arg0: i32) -> (i32, i32, i32) {
    %c0_i32 = arith.constant 0 : i32
    %c0_i32_0 = arith.constant 0 : i32
    %c0_i32_1 = arith.constant 0 : i32
    %c0_i32_2 = arith.constant 0 : i32
    return %c0_i32, %c0_i32_0, %c0_i32_1 : i32, i32, i32
  }
  func.func @transform_9(%arg0: i32) -> (i32, i32) {
    %c0_i32 = arith.constant 0 : i32
    %c0_i32_0 = arith.constant 0 : i32
    %c0_i32_1 = arith.constant 0 : i32
    return %c0_i32, %c0_i32_0 : i32, i32
  }
  func.func @transform_10(%arg0: i32) -> (i32, i32) {
    %c0_i32 = arith.constant 0 : i32
    %c0_i32_0 = arith.constant 0 : i32
    %c0_i32_1 = arith.constant 0 : i32
    return %c0_i32, %c0_i32_0 : i32, i32
  }
  func.func @transform_11(%arg0: i32) -> (i32, i32, i32) {
    %c0_i32 = arith.constant 0 : i32
    %c0_i32_0 = arith.constant 0 : i32
    %c0_i32_1 = arith.constant 0 : i32
    %c0_i32_2 = arith.constant 0 : i32
    return %c0_i32, %c0_i32_0, %c0_i32_1 : i32, i32, i32
  }
  func.func @transform_12(%arg0: i32) -> (i32, i32, i32) {
    %c0_i32 = arith.constant 0 : i32
    %c0_i32_0 = arith.constant 0 : i32
    %c0_i32_1 = arith.constant 0 : i32
    %c0_i32_2 = arith.constant 0 : i32
    return %c0_i32, %c0_i32_0, %c0_i32_1 : i32, i32, i32
  }
  func.func @transform_13(%arg0: i32) -> (i32, i32, i32) {
    %c0_i32 = arith.constant 0 : i32
    %c0_i32_0 = arith.constant 0 : i32
    %c0_i32_1 = arith.constant 0 : i32
    %c0_i32_2 = arith.constant 0 : i32
    return %c0_i32, %c0_i32_0, %c0_i32_1 : i32, i32, i32
  }
  func.func @transform_14(%arg0: i32) -> (i32, i32, i32) {
    %c0_i32 = arith.constant 0 : i32
    %c0_i32_0 = arith.constant 0 : i32
    %c0_i32_1 = arith.constant 0 : i32
    %c0_i32_2 = arith.constant 0 : i32
    return %c0_i32, %c0_i32_0, %c0_i32_1 : i32, i32, i32
  }
  func.func @transform_15(%arg0: i32) -> (i32, i32, i32) {
    %c0_i32 = arith.constant 0 : i32
    %c0_i32_0 = arith.constant 0 : i32
    %c0_i32_1 = arith.constant 0 : i32
    %c0_i32_2 = arith.constant 0 : i32
    return %c0_i32, %c0_i32_0, %c0_i32_1 : i32, i32, i32
  }
  func.func @transform_16(%arg0: i32) -> (i32, i32) {
    %c0_i32 = arith.constant 0 : i32
    %c0_i32_0 = arith.constant 0 : i32
    %c0_i32_1 = arith.constant 0 : i32
    return %c0_i32, %c0_i32_0 : i32, i32
  }
  func.func @transform_17(%arg0: i32) -> (i32, i32, i32) {
    %c0_i32 = arith.constant 0 : i32
    %c0_i32_0 = arith.constant 0 : i32
    %c0_i32_1 = arith.constant 0 : i32
    return %arg0, %c0_i32, %c0_i32_0 : i32, i32, i32
  }
}

</mosaic_0001>

<llo_original>
// kernel: gtn_forward.2
$region0: #{gtn_forward.2}
  #allocation0 [shape = 'u32[]', space=smem, size = 0x4, offset = 0x4, fixed_abs, tag = 'smem constant byte address 0x4 - core index']
  #allocation1 [shape = 'u32[72,128]{1,0:T(1,128)}', space=vmem, size = 0x9000, scoped, tag = 'internal scratch']
  %s0 = inlined_call_operand.vmem [shape: f32[2,8,32], index: 0, kind: input, shape index: {}]
  %s1 = inlined_call_operand.vmem [shape: f32[2,1,8], index: 1, kind: input, shape index: {}]
  %s2 = inlined_call_operand.vmem [shape: f32[32,96], index: 2, kind: input, shape index: {}]
  %s3 = inlined_call_operand.vmem [shape: f32[1,96], index: 3, kind: input, shape index: {}]
  %s4 = inlined_call_operand.vmem [shape: f32[32,32], index: 4, kind: input, shape index: {}]
  %s5 = inlined_call_operand.vmem [shape: f32[3,32], index: 5, kind: input, shape index: {}]
  %s6 = inlined_call_operand.vmem [shape: f32[2,8,32], index: 6, kind: output, shape index: {0}]
  %s7 = inlined_call_operand.hbm [shape: f32[2,8,8], index: 7, kind: output, shape index: {1}]
  %8 = xla_tuple %s6, %s7
  %s9 = sld [smem:[#allocation0]]
  $region65: #{gtn_forward.2} parent=0
    _
  %s11 = ssub.s32 1, %s9
  %s12 = scalar_select 0, %s11, %s9
  $region1: #{gtn_forward.2} parent=0
    #allocation2 [shape = 'u8[8192]{0}', space=vmem, size = 0x2000, scoped, tag = 'output window, operand 1']
    #allocation3 [shape = 's32[2]{0}', space=sflag, size = 0x8, scoped, tag = 'scoped memory for gtn_forward.2']
    %13 = vsyncpa [#allocation3], 0
    %s14 = scalar_lea.sflag [#allocation3], 1
    %15 = vsyncpa %s14, 0
    loop: start=0, step=1, limit=4
    $region2: #{gtn_forward.2} parent=1 // loop_pre_header
      _
    $region3: #{gtn_forward.2} parent=1 // loop_header
      %s17 = sphi 0, %s21
      %p18 = scmp.ge.s32.totalorder %s17, 4
      %s27 = sphi 0, %s29
      %s30 = sphi 0, %s27
      %s31 = sphi 0, %s30
      %s47 = sphi 0, %s31
      %s53 = sphi 0, %s55
      %s56 = sphi 0, %s53
      %s57 = sphi 0, %s56
      %s73 = sphi 0, %s57
      %s77 = sphi 0, %s77
      %s79 = sphi 0, %s77
      %s80 = sphi 0, %s79
      %s94 = sphi 0, %s80
      %s98 = sphi 0, %s98
      %s100 = sphi 0, %s98
      %s101 = sphi 0, %s100
      %s115 = sphi 0, %s101
      %s119 = sphi 0, %s119
      %s121 = sphi 0, %s119
      %s122 = sphi 0, %s121
      %s136 = sphi 0, %s122
      %s140 = sphi 0, %s140
      %s142 = sphi 0, %s140
      %s143 = sphi 0, %s142
      %s157 = sphi 0, %s143
      %s163 = sphi 0, %s165
      %s166 = sphi 0, %s163
      %s167 = sphi 0, %s166
      %s183 = sphi 0, %s167
      %s189 = sphi 0, %s191
      %s192 = sphi 0, %s189
      %s193 = sphi 0, %s192
      %s209 = sphi 0, %s193
    $region4: #{gtn_forward.2} parent=1 // loop_header_branch
      %20 = sbr.rel (%p18) target = $region8
    $region5: #{gtn_forward.2} parent=1 // loop_body
      %s22 = ssub.s32 %s17, 1
      %s23 = ssub.s32 %s17, 2
      %s24 = sadd.s32 %s17, 1
      %s25 = ssub.s32 %s17, %s24
      %p26 = scmp.eq.s32.totalorder %s25, 0
      %s28 = sadd.s32 %s27, 1
      %s29 = scalar_select %p26, %s27, %s28
      %p32 = pneg %p26
      %p33 = scmp.eq.s32.totalorder %s17, 1
      %p34 = por %p32, %p33
      %p35 = scmp.ne.s32.totalorder %s27, %s30
      %p36 = scmp.eq.s32.totalorder %s17, 0
      %p37 = por %p35, %p36
      %p38 = scmp.ne.s32.totalorder %s27, %s30
      %p39 = scmp.eq.s32.totalorder %s22, 1
      %p40 = por %p38, %p39
      %p41 = scmp.ne.s32.totalorder %s30, %s31
      %p42 = scmp.eq.s32.totalorder %s22, 0
      %p43 = por %p41, %p42
      %p44 = scmp.ne.s32.totalorder %s30, %s31
      %p45 = scmp.eq.s32.totalorder %s23, 1
      %p46 = por %p44, %p45
      %p48 = scmp.ne.s32.totalorder %s31, %s47
      %p49 = scmp.eq.s32.totalorder %s23, 0
      %p50 = por %p48, %p49
      %s51 = ssub.s32 %s17, %s24
      %p52 = scmp.eq.s32.totalorder %s51, 0
      %s54 = sadd.s32 %s53, 1
      %s55 = scalar_select %p52, %s53, %s54
      %p58 = pneg %p52
      %p59 = scmp.eq.s32.totalorder %s17, 1
      %p60 = por %p58, %p59
      %p61 = scmp.ne.s32.totalorder %s53, %s56
      %p62 = scmp.eq.s32.totalorder %s17, 0
      %p63 = por %p61, %p62
      %p64 = scmp.ne.s32.totalorder %s53, %s56
      %p65 = scmp.eq.s32.totalorder %s22, 1
      %p66 = por %p64, %p65
      %p67 = scmp.ne.s32.totalorder %s56, %s57
      %p68 = scmp.eq.s32.totalorder %s22, 0
      %p69 = por %p67, %p68
      %p70 = scmp.ne.s32.totalorder %s56, %s57
      %p71 = scmp.eq.s32.totalorder %s23, 1
      %p72 = por %p70, %p71
      %p74 = scmp.ne.s32.totalorder %s57, %s73
      %p75 = scmp.eq.s32.totalorder %s23, 0
      %p76 = por %p74, %p75
      %s78 = sadd.s32 %s77, 1
      %p81 = scmp.eq.s32.totalorder %s17, 1
      %p82 = scmp.ne.s32.totalorder %s77, %s79
      %p83 = scmp.eq.s32.totalorder %s17, 0
      %p84 = por %p82, %p83
      %p85 = scmp.ne.s32.totalorder %s77, %s79
      %p86 = scmp.eq.s32.totalorder %s22, 1
      %p87 = por %p85, %p86
      %p88 = scmp.ne.s32.totalorder %s79, %s80
      %p89 = scmp.eq.s32.totalorder %s22, 0
      %p90 = por %p88, %p89
      %p91 = scmp.ne.s32.totalorder %s79, %s80
      %p92 = scmp.eq.s32.totalorder %s23, 1
      %p93 = por %p91, %p92
      %p95 = scmp.ne.s32.totalorder %s80, %s94
      %p96 = scmp.eq.s32.totalorder %s23, 0
      %p97 = por %p95, %p96
      %s99 = sadd.s32 %s98, 1
      %p102 = scmp.eq.s32.totalorder %s17, 1
      %p103 = scmp.ne.s32.totalorder %s98, %s100
      %p104 = scmp.eq.s32.totalorder %s17, 0
      %p105 = por %p103, %p104
      %p106 = scmp.ne.s32.totalorder %s98, %s100
      %p107 = scmp.eq.s32.totalorder %s22, 1
      %p108 = por %p106, %p107
      %p109 = scmp.ne.s32.totalorder %s100, %s101
      %p110 = scmp.eq.s32.totalorder %s22, 0
      %p111 = por %p109, %p110
      %p112 = scmp.ne.s32.totalorder %s100, %s101
      %p113 = scmp.eq.s32.totalorder %s23, 1
      %p114 = por %p112, %p113
      %p116 = scmp.ne.s32.totalorder %s101, %s115
      %p117 = scmp.eq.s32.totalorder %s23, 0
      %p118 = por %p116, %p117
      %s120 = sadd.s32 %s119, 1
      %p123 = scmp.eq.s32.totalorder %s17, 1
      %p124 = scmp.ne.s32.totalorder %s119, %s121
      %p125 = scmp.eq.s32.totalorder %s17, 0
      %p126 = por %p124, %p125
      %p127 = scmp.ne.s32.totalorder %s119, %s121
      %p128 = scmp.eq.s32.totalorder %s22, 1
      %p129 = por %p127, %p128
      %p130 = scmp.ne.s32.totalorder %s121, %s122
      %p131 = scmp.eq.s32.totalorder %s22, 0
      %p132 = por %p130, %p131
      %p133 = scmp.ne.s32.totalorder %s121, %s122
      %p134 = scmp.eq.s32.totalorder %s23, 1
      %p135 = por %p133, %p134
      %p137 = scmp.ne.s32.totalorder %s122, %s136
      %p138 = scmp.eq.s32.totalorder %s23, 0
      %p139 = por %p137, %p138
      %s141 = sadd.s32 %s140, 1
      %p144 = scmp.eq.s32.totalorder %s17, 1
      %p145 = scmp.ne.s32.totalorder %s140, %s142
      %p146 = scmp.eq.s32.totalorder %s17, 0
      %p147 = por %p145, %p146
      %p148 = scmp.ne.s32.totalorder %s140, %s142
      %p149 = scmp.eq.s32.totalorder %s22, 1
      %p150 = por %p148, %p149
      %p151 = scmp.ne.s32.totalorder %s142, %s143
      %p152 = scmp.eq.s32.totalorder %s22, 0
      %p153 = por %p151, %p152
      %p154 = scmp.ne.s32.totalorder %s142, %s143
      %p155 = scmp.eq.s32.totalorder %s23, 1
      %p156 = por %p154, %p155
      %p158 = scmp.ne.s32.totalorder %s143, %s157
      %p159 = scmp.eq.s32.totalorder %s23, 0
      %p160 = por %p158, %p159
      %s161 = ssub.s32 %s17, %s24
      %p162 = scmp.eq.s32.totalorder %s161, 0
      %s164 = sadd.s32 %s163, 1
      %s165 = scalar_select %p162, %s163, %s164
      %p168 = pneg %p162
      %p169 = scmp.eq.s32.totalorder %s17, 1
      %p170 = por %p168, %p169
      %p171 = scmp.ne.s32.totalorder %s163, %s166
      %p172 = scmp.eq.s32.totalorder %s17, 0
      %p173 = por %p171, %p172
      %p174 = scmp.ne.s32.totalorder %s163, %s166
      %p175 = scmp.eq.s32.totalorder %s22, 1
      %p176 = por %p174, %p175
      %p177 = scmp.ne.s32.totalorder %s166, %s167
      %p178 = scmp.eq.s32.totalorder %s22, 0
      %p179 = por %p177, %p178
      %p180 = scmp.ne.s32.totalorder %s166, %s167
      %p181 = scmp.eq.s32.totalorder %s23, 1
      %p182 = por %p180, %p181
      %p184 = scmp.ne.s32.totalorder %s167, %s183
      %p185 = scmp.eq.s32.totalorder %s23, 0
      %p186 = por %p184, %p185
      %s187 = ssub.s32 %s17, %s24
      %p188 = scmp.eq.s32.totalorder %s187, 0
      %s190 = sadd.s32 %s189, 1
      %s191 = scalar_select %p188, %s189, %s190
      %p194 = pneg %p188
      %p195 = scmp.eq.s32.totalorder %s17, 1
      %p196 = por %p194, %p195
      %p197 = scmp.ne.s32.totalorder %s189, %s192
      %p198 = scmp.eq.s32.totalorder %s17, 0
      %p199 = por %p197, %p198
      %p200 = scmp.ne.s32.totalorder %s189, %s192
      %p201 = scmp.eq.s32.totalorder %s22, 1
      %p202 = por %p200, %p201
      %p203 = scmp.ne.s32.totalorder %s192, %s193
      %p204 = scmp.eq.s32.totalorder %s22, 0
      %p205 = por %p203, %p204
      %p206 = scmp.ne.s32.totalorder %s192, %s193
      %p207 = scmp.eq.s32.totalorder %s23, 1
      %p208 = por %p206, %p207
      %p210 = scmp.ne.s32.totalorder %s193, %s209
      %p211 = scmp.eq.s32.totalorder %s23, 0
      %p212 = por %p210, %p211
      %p213 = scmp.le.s32.totalorder 1, %s17
      %p214 = scmp.lt.s32.totalorder %s17, 3
      %p215 = pnand %p213, %p214
      %p216 = pneg %p215
      // Predicated region
      $region9: #{gtn_forward.2} parent=5 // pred_check
        _
      $region10: #{gtn_forward.2} parent=5 // pred_check_branch
        %218 = sbr.rel (%p215) target = $region12
      $region11: #{gtn_forward.2} parent=5 // pred_region
        %s219 = ssub.s32 %s17, 1
        // Predicated region
        $region13: #{gtn_forward.2} parent=11 // pred_check
          %p220 = pneg %p90
        $region14: #{gtn_forward.2} parent=11 // pred_check_branch
          %222 = sbr.rel (%p220) target = $region16
        $region15: #{gtn_forward.2} parent=11 // pred_region
          _
        $region16: #{gtn_forward.2} parent=11 // pred_fallthru
          _
        // Predicated region
        $region17: #{gtn_forward.2} parent=11 // pred_check
          %p223 = pneg %p111
        $region18: #{gtn_forward.2} parent=11 // pred_check_branch
          %225 = sbr.rel (%p223) target = $region20
        $region19: #{gtn_forward.2} parent=11 // pred_region
          _
        $region20: #{gtn_forward.2} parent=11 // pred_fallthru
          _
        // Predicated region
        $region21: #{gtn_forward.2} parent=11 // pred_check
          %p226 = pneg %p132
        $region22: #{gtn_forward.2} parent=11 // pred_check_branch
          %228 = sbr.rel (%p226) target = $region24
        $region23: #{gtn_forward.2} parent=11 // pred_region
          _
        $region24: #{gtn_forward.2} parent=11 // pred_fallthru
          _
        // Predicated region
        $region25: #{gtn_forward.2} parent=11 // pred_check
          %p229 = pneg %p153
        $region26: #{gtn_forward.2} parent=11 // pred_check_branch
          %231 = sbr.rel (%p229) target = $region28
        $region27: #{gtn_forward.2} parent=11 // pred_region
          _
        $region28: #{gtn_forward.2} parent=11 // pred_fallthru
          _
      $region12: #{gtn_forward.2} parent=5 // pred_fallthru
        _
      %p232 = scmp.lt.s32.totalorder %s17, 2
      // Predicated region
      $region29: #{gtn_forward.2} parent=5 // pred_check
        %p233 = pneg %p232
      $region30: #{gtn_forward.2} parent=5 // pred_check_branch
        %235 = sbr.rel (%p233) target = $region32
      $region31: #{gtn_forward.2} parent=5 // pred_region
        // Predicated region
        $region33: #{gtn_forward.2} parent=31 // pred_check
          %p236 = pneg %p37
        $region34: #{gtn_forward.2} parent=31 // pred_check_branch
          %238 = sbr.rel (%p236) target = $region36
        $region35: #{gtn_forward.2} parent=31 // pred_region
          %p239 = scmp.lt.s32.totalorder %s17, 1
          %s240 = scalar_select %p239, %s17, 1
          %s241 = smul.addr %s240, 8
          %s242 = scalar_lea.vmem %s0, %s241
        $region36: #{gtn_forward.2} parent=31 // pred_fallthru
          _
        // Predicated region
        $region37: #{gtn_forward.2} parent=31 // pred_check
          %p243 = pneg %p63
        $region38: #{gtn_forward.2} parent=31 // pred_check_branch
          %245 = sbr.rel (%p243) target = $region40
        $region39: #{gtn_forward.2} parent=31 // pred_region
          %p246 = scmp.lt.s32.totalorder %s17, 1
          %s247 = scalar_select %p246, %s17, 1
          %s248 = scalar_lea.vmem %s1, %s247
        $region40: #{gtn_forward.2} parent=31 // pred_fallthru
          _
      $region32: #{gtn_forward.2} parent=5 // pred_fallthru
        _
      %p249 = scmp.le.s32.totalorder 1, %s17
      %p250 = scmp.lt.s32.totalorder %s17, 3
      %p251 = pnand %p249, %p250
      %p252 = pneg %p251
      // Predicated region
      $region41: #{gtn_forward.2} parent=5 // pred_check
        _
      $region42: #{gtn_forward.2} parent=5 // pred_check_branch
        %254 = sbr.rel (%p251) target = $region44
      $region43: #{gtn_forward.2} parent=5 // pred_region
        %s255 = ssub.s32 %s17, 1
        %p256 = scmp.lt.s32.totalorder %s22, 1
        %s257 = scalar_select %p256, %s22, 1
        %s258 = smul.addr %s257, 8
        %s259 = scalar_lea.vmem %s0, %s258
        %p260 = pneg %p43
        %p261 = pneg %p40
        %p262 = scmp.lt.s32.totalorder %s22, 1
        %s263 = scalar_select %p262, %s22, 1
        %s264 = scalar_lea.vmem %s1, %s263
        %p265 = pneg %p69
        %p266 = pneg %p66
        %p267 = pneg %p90
        %p268 = pneg %p87
        %p269 = pneg %p111
        %p270 = pneg %p108
        %p271 = pneg %p132
        %p272 = pneg %p129
        %p273 = pneg %p153
        %p274 = pneg %p150
        %p275 = pneg %p179
        %p276 = pneg %p176
        %p277 = scmp.lt.s32.totalorder %s22, 1
        %s278 = scalar_select %p277, %s22, 1
        %s279 = smul.addr %s278, 8
        %s280 = scalar_lea.vmem %s6, %s279
        %p281 = pneg %p205
        %p282 = pneg %p202
        %s283 = sand.u32 %s192, 1
        %s284 = scalar_lea.sflag [#allocation3], %s283
        %s285 = sand.u32 %s192, 1
        %s286 = smul.addr %s285, 8
        %s287 = scalar_lea.vmem [#allocation2], %s286
        %p288 = scmp.lt.s32.totalorder %s22, 1
        %s289 = scalar_select %p288, %s22, 1
        %s290 = smul.addr %s289, 8
        %s291 = scalar_lea.vmem %s0, %s290
        %p292 = scmp.lt.s32.totalorder %s22, 1
        %s293 = scalar_select %p292, %s22, 1
        %s294 = scalar_lea.vmem %s1, %s293
        %p295 = scmp.lt.s32.totalorder %s22, 1
        %s296 = scalar_select %p295, %s22, 1
        %s297 = smul.addr %s296, 8
        %s298 = scalar_lea.vmem %s6, %s297
        %v299 = vld [vmem:[%s291] sm:$0xff]
        %v300 = vld [vmem:[%s294] sm:$0x1]
        %v301 = vld [vmem:[%s2] sm:$0xff]
        %v302 = vld [vmem:[%s2 + $0x8] sm:$0xff]
        %v303 = vld [vmem:[%s2 + $0x10] sm:$0xff]
        %v304 = vld [vmem:[%s2 + $0x18] sm:$0xff]
        %v305 = vld [vmem:[%s3] sm:$0x1]
        %v307 = vperm.slane %v305, 0
        %vm309 = vcmask 261120
        %v311 = vsel %vm309, %v299, 0
        %313 = vmatpush.msra.mxu0 0.0
        %314 = vmatpush.msra.mxu0 0.0
        %315 = vmatpush.msra.mxu0 0.0
        %316 = vmatpush.msra.mxu0 0.0
        %317 = vmatpush.msra.mxu0 0.0
        %318 = vmatpush.msra.mxu0 0.0
        %319 = vmatpush.msra.mxu0 0.0
        %320 = vmatpush.msra.mxu0 0.0
        %321 = vmatpush.msra.mxu0 0.0
        %322 = vmatpush.msra.mxu0 0.0
        %323 = vmatpush.msra.mxu0 0.0
        %324 = vmatpush.msra.mxu0 0.0
        %325 = vmatpush.msra.mxu0 %v304
        %326 = vmatpush.msra.mxu0 %v303
        %327 = vmatpush.msra.mxu0 %v302
        %328 = vmatpush.msra.mxu0 %v301
        %329 = vmatmul.f32.gmra.mxu0 %v311
        %v330 = vpop.f32.mrf.mxu0
        %v331 = vadd.f32 %v307, %v330
        %332 = vdwg.mxu0
        %334 = vrot.lane.b32.xlu0 %v331, 96
        %v335 = vpop.permute.xlu0 %334
        %v336 = vsel %vm309, %v331, 0
        %v338 = vsel %vm309, %v335, 0
        %340 = vmatpush.xpose.msra.mxu0 0.0
        %341 = vmatpush.xpose.msra.mxu0 0.0
        %342 = vmatpush.xpose.msra.mxu0 0.0
        %343 = vmatpush.xpose.msra.mxu0 0.0
        %344 = vmatpush.xpose.msra.mxu0 0.0
        %345 = vmatpush.xpose.msra.mxu0 0.0
        %346 = vmatpush.xpose.msra.mxu0 0.0
        %347 = vmatpush.xpose.msra.mxu0 0.0
        %348 = vmatpush.xpose.msra.mxu0 0.0
        %349 = vmatpush.xpose.msra.mxu0 0.0
        %350 = vmatpush.xpose.msra.mxu0 0.0
        %351 = vmatpush.xpose.msra.mxu0 0.0
        %352 = vmatpush.xpose.msra.mxu0 0.0
        %353 = vmatpush.xpose.msra.mxu0 0.0
        %354 = vmatpush.xpose.msra.mxu0 0.0
        %355 = vmatpush.xpose.msra.mxu0 %v338
        %356 = vmatmul.f32.gmra.mxu0 %v336
        %v357 = vpop.f32.mrf.mxu0
        %v358 = vadd.f32 0.0, %v357
        %359 = vdwg.mxu0
        %v360 = vmul.f32 %v358, 0.17677669
        %v362 = vperm.slane %v300, 0
        %v364 = vadd.f32 %v360, %v362
        %vm365 = vcmask 64512
        %v366 = vsel %vm365, %v364, -inf
        %367 = vmax.xlane.f32.xlu0 %v366
        %v368 = vpop.xlane.xlu0 %367
        %v369 = vsub.f32 %v364, %v368
        %v370 = vmul.f32 %v369, 1.442695
        %v371 = vpow.pop %v370
        %v372 = vsel %vm365, %v371, 0.0
        %373 = vadd.xlane.f32.xlu0 %v372
        %v374 = vpop.xlane.xlu0 %373
        %v375 = vrcp.pop %v374
        %v376 = vmul.f32 %v374, %v375
        %v377 = vsub.f32 1.0, %v376
        %v378 = vmul.f32 %v375, %v377
        %v379 = vadd.f32 %v375, %v378
        %vm380 = vweird.f32 %v374
        %vm381 = vweird.f32 %v375
        %vm382 = vmor %vm380, %vm381
        %v383 = vsel %vm382, %v375, %v379
        %v384 = vand.u32 2147483647, %v374
        %vm385 = vcmp.eq.f32.partialorder %v384, 8.507059e+37
        %v386 = vand.u32 %v374, 2147483648
        %v387 = vor.u32 1.1754944e-38, %v386
        %v388 = vsel %vm385, %v387, %v383
        %v389 = vmul.f32 %v371, %v388
        %390 = vrot.lane.b32.xlu0 %v331, 64
        %v391 = vpop.permute.xlu0 %390
        %v394 = vsel %vm365, %v389, 0
        %396 = vmatpush.msra.mxu0 0.0
        %397 = vmatpush.msra.mxu0 0.0
        %398 = vmatpush.msra.mxu0 0.0
        %399 = vmatpush.msra.mxu0 0.0
        %400 = vmatpush.msra.mxu0 0.0
        %401 = vmatpush.msra.mxu0 0.0
        %402 = vmatpush.msra.mxu0 0.0
        %403 = vmatpush.msra.mxu0 0.0
        %404 = vmatpush.msra.mxu0 0.0
        %405 = vmatpush.msra.mxu0 0.0
        %406 = vmatpush.msra.mxu0 0.0
        %407 = vmatpush.msra.mxu0 0.0
        %408 = vmatpush.msra.mxu0 0.0
        %409 = vmatpush.msra.mxu0 0.0
        %410 = vmatpush.msra.mxu0 0.0
        %411 = vmatpush.msra.mxu0 %v391
        %412 = vmatmul.f32.gmra.mxu0 %v394
        %v413 = vpop.f32.mrf.mxu0
        %v414 = vadd.f32 0.0, %v413
        %415 = vdwg.mxu0
        %v416 = vld [vmem:[%s4] sm:$0xff]
        %v417 = vld [vmem:[%s4 + $0x8] sm:$0xff]
        %v418 = vld [vmem:[%s4 + $0x10] sm:$0xff]
        %v419 = vld [vmem:[%s4 + $0x18] sm:$0xff]
        %v420 = vld [vmem:[%s5] sm:$0x1]
        %v421 = vperm.slane %v420, 0
        %v423 = vsel %vm309, %v414, 0
        %425 = vmatpush.msra.mxu0 0.0
        %426 = vmatpush.msra.mxu0 0.0
        %427 = vmatpush.msra.mxu0 0.0
        %428 = vmatpush.msra.mxu0 0.0
        %429 = vmatpush.msra.mxu0 0.0
        %430 = vmatpush.msra.mxu0 0.0
        %431 = vmatpush.msra.mxu0 0.0
        %432 = vmatpush.msra.mxu0 0.0
        %433 = vmatpush.msra.mxu0 0.0
        %434 = vmatpush.msra.mxu0 0.0
        %435 = vmatpush.msra.mxu0 0.0
        %436 = vmatpush.msra.mxu0 0.0
        %437 = vmatpush.msra.mxu0 %v419
        %438 = vmatpush.msra.mxu0 %v418
        %439 = vmatpush.msra.mxu0 %v417
        %440 = vmatpush.msra.mxu0 %v416
        %441 = vmatmul.f32.gmra.mxu0 %v423
        %v442 = vpop.f32.mrf.mxu0
        %v443 = vadd.f32 %v421, %v442
        %444 = vdwg.mxu0
        %v445 = vadd.f32 %v299, %v443
        %v446 = vld [vmem:[%s5 + $0x1] sm:$0x1]
        %v447 = vld [vmem:[%s5 + $0x2] sm:$0x1]
        %v448 = vsel %vm309, %v445, 0.0
        %449 = vadd.xlane.f32.xlu0 %v448
        %v450 = vpop.xlane.xlu0 %449
        %v451 = vrcp.pop 32.0
        %v452 = vmul.f32 32.0, %v451
        %v453 = vsub.f32 1.0, %v452
        %v454 = vmul.f32 %v451, %v453
        %v455 = vadd.f32 %v451, %v454
        %vm456 = vweird.f32 %v451
        %v457 = vsel %vm456, %v451, %v455
        %v458 = vmul.f32 %v450, %v457
        %v459 = vsub.f32 %v445, %v458
        %v460 = vmul.f32 %v459, %v459
        %v461 = vsel %vm309, %v460, 0.0
        %462 = vadd.xlane.f32.xlu0 %v461
        %v463 = vpop.xlane.xlu0 %462
        %v464 = vmul.f32 %v463, %v457
        %v465 = vadd.f32 %v464, 1e-05
        %v466 = vrsqrt.pop %v465
        %v467 = vmul.f32 %v466, %v465
        %v468 = vmul.f32 %v467, %v466
        %v469 = vmul.f32 0.5, %v468
        %v470 = vsub.f32 1.5, %v469
        %v471 = vmul.f32 %v466, %v470
        %vm472 = vweird.f32 %v465
        %vm473 = vweird.f32 %v466
        %vm474 = vmor %vm472, %vm473
        %v475 = vsel %vm474, %v466, %v471
        %v476 = vmul.f32 %v459, %v475
        %v477 = vperm.slane %v446, 0
        %v478 = vmul.f32 %v476, %v477
        %v479 = vperm.slane %v447, 0
        %v480 = vadd.f32 %v478, %v479
        %481 = vst.msk [vmem:[%s298] sm:$0xff] %vm309, %v480
        %482 = vst.msk [vmem:[%s287] sm:$0xff] %vm365, %v389
        %p483 = scmp.lt.s32.totalorder %s22, 1
        %s484 = scalar_select %p483, %s22, 1
        %s485 = smul.addr %s484, 8
        %s486 = scalar_lea.vmem %s6, %s485
        %s487 = sand.u32 %s192, 1
        %s488 = scalar_lea.sflag [#allocation3], %s487
        %s489 = sand.u32 %s192, 1
        %s490 = smul.addr %s489, 8
        %s491 = scalar_lea.vmem [#allocation2], %s490
        // Predicated region
        $region45: #{gtn_forward.2} parent=43 // pred_check
          %p492 = pneg %p176
        $region46: #{gtn_forward.2} parent=43 // pred_check_branch
          %494 = sbr.rel (%p492) target = $region48
        $region47: #{gtn_forward.2} parent=43 // pred_region
          _
        $region48: #{gtn_forward.2} parent=43 // pred_fallthru
          _
        // Predicated region
        $region49: #{gtn_forward.2} parent=43 // pred_check
          %p495 = pneg %p202
        $region50: #{gtn_forward.2} parent=43 // pred_check_branch
          %497 = sbr.rel (%p495) target = $region52
        $region51: #{gtn_forward.2} parent=43 // pred_region
          %499 = vsyncadd %s488, 0
          %s500 = smul.addr %s22, 8
          %s501 = scalar_lea.hbm %s7, %s500
          %s503 = sshll.u32 %s491, 4
          %s504 = int_to_ptr.vmem [resolvable:$true] %s503
          %s505 = sshll.u32 %s501, 4
          %s506 = int_to_ptr.hbm [resolvable:$true] %s505
          %508 = dma.vmem_to_hbm [thread:$0]  %s504, 128, %s506, %s488
        $region52: #{gtn_forward.2} parent=43 // pred_fallthru
          _
      $region44: #{gtn_forward.2} parent=5 // pred_fallthru
        _
      %p509 = scmp.le.s32.totalorder 2, %s17
      // Predicated region
      $region53: #{gtn_forward.2} parent=5 // pred_check
        %p510 = pneg %p509
      $region54: #{gtn_forward.2} parent=5 // pred_check_branch
        %512 = sbr.rel (%p510) target = $region56
      $region55: #{gtn_forward.2} parent=5 // pred_region
        %s513 = ssub.s32 %s17, 2
        // Predicated region
        $region57: #{gtn_forward.2} parent=55 // pred_check
          %p514 = pneg %p182
        $region58: #{gtn_forward.2} parent=55 // pred_check_branch
          %516 = sbr.rel (%p514) target = $region60
        $region59: #{gtn_forward.2} parent=55 // pred_region
          %p517 = scmp.lt.s32.totalorder %s23, 1
          %s518 = scalar_select %p517, %s23, 1
          %s519 = smul.addr %s518, 8
          %s520 = scalar_lea.vmem %s6, %s519
        $region60: #{gtn_forward.2} parent=55 // pred_fallthru
          _
        // Predicated region
        $region61: #{gtn_forward.2} parent=55 // pred_check
          %p521 = pneg %p208
        $region62: #{gtn_forward.2} parent=55 // pred_check_branch
          %523 = sbr.rel (%p521) target = $region64
        $region63: #{gtn_forward.2} parent=55 // pred_region
          %s524 = sand.u32 %s193, 1
          %s525 = scalar_lea.sflag [#allocation3], %s524
          %s526 = sand.u32 %s193, 1
          %s527 = smul.addr %s526, 8
          %s528 = scalar_lea.vmem [#allocation2], %s527
          %530 = dma.done %s525, 128
        $region64: #{gtn_forward.2} parent=55 // pred_fallthru
          _
      $region56: #{gtn_forward.2} parent=5 // pred_fallthru
        _
    $region6: #{gtn_forward.2} parent=1 // loop_footer
      %s21 = sadd.s32 1, %s17
    $region7: #{gtn_forward.2} parent=1 // loop_footer_branch
      %16 = sbr.rel target = $region3
    $region8: #{gtn_forward.2} parent=1 // loop_exit
      _
    %531 = vsyncpa [#allocation3], 1
    %s532 = scalar_lea.sflag [#allocation3], 1
    %533 = vsyncpa %s532, 1

// kernel: gtn_forward.3
$region0: #{gtn_forward.3}
  #allocation0 [shape = 'u32[]', space=smem, size = 0x4, offset = 0x4, fixed_abs, tag = 'smem constant byte address 0x4 - core index']
  #allocation1 [shape = 'u32[72,128]{1,0:T(1,128)}', space=vmem, size = 0x9000, scoped, tag = 'internal scratch']
  %s0 = inlined_call_operand.vmem [shape: f32[2,32,4], index: 0, kind: input, shape index: {}]
  %s1 = inlined_call_operand.vmem [shape: f32[2,4,32], index: 1, kind: input, shape index: {}]
  %s2 = inlined_call_operand.vmem [shape: f32[32,32], index: 2, kind: input, shape index: {}]
  %s3 = inlined_call_operand.vmem [shape: f32[32,32], index: 3, kind: input, shape index: {}]
  %s4 = inlined_call_operand.vmem [shape: f32[4,32], index: 4, kind: input, shape index: {}]
  %s5 = inlined_call_operand.vmem [shape: f32[3,32], index: 5, kind: input, shape index: {}]
  %s6 = inlined_call_operand.vmem [shape: f32[2,32,192], index: 6, kind: input, shape index: {}]
  %s7 = inlined_call_operand.vmem [shape: f32[2,64,32], index: 7, kind: input, shape index: {}]
  %s8 = inlined_call_operand.vmem [shape: f32[2,8,96], index: 8, kind: input, shape index: {}]
  %s9 = inlined_call_operand.vmem [shape: f32[32,32], index: 9, kind: input, shape index: {}]
  %s10 = inlined_call_operand.vmem [shape: f32[3,32], index: 10, kind: input, shape index: {}]
  %s11 = inlined_call_operand.vmem [shape: f32[2,32,192], index: 11, kind: input, shape index: {}]
  %s12 = inlined_call_operand.vmem [shape: f32[2,64,32], index: 12, kind: input, shape index: {}]
  %s13 = inlined_call_operand.vmem [shape: f32[2,8,96], index: 13, kind: input, shape index: {}]
  %s14 = inlined_call_operand.vmem [shape: f32[3,32,32], index: 14, kind: input, shape index: {}]
  %s15 = inlined_call_operand.vmem [shape: f32[3,4,32], index: 15, kind: input, shape index: {}]
  %s16 = inlined_call_operand.vmem [shape: f32[1,3], index: 16, kind: input, shape index: {}]
  %s17 = inlined_call_operand.vmem [shape: f32[2,1,1], index: 17, kind: output, shape index: {}]
  %s18 = sld [smem:[#allocation0]]
  $region101: #{gtn_forward.3} parent=0
    _
  %s20 = ssub.s32 1, %s18
  %s21 = scalar_select 0, %s20, %s18
  loop: start=0, step=1, limit=4
  $region2: #{gtn_forward.3} parent=0 // loop_pre_header
    _
  $region3: #{gtn_forward.3} parent=0 // loop_header
    %s23 = sphi 0, %s27
    %p24 = scmp.ge.s32.totalorder %s23, 4
    %s33 = sphi 0, %s35
    %s36 = sphi 0, %s33
    %s37 = sphi 0, %s36
    %s53 = sphi 0, %s37
    %s59 = sphi 0, %s61
    %s62 = sphi 0, %s59
    %s63 = sphi 0, %s62
    %s79 = sphi 0, %s63
    %s83 = sphi 0, %s83
    %s85 = sphi 0, %s83
    %s86 = sphi 0, %s85
    %s100 = sphi 0, %s86
    %s104 = sphi 0, %s104
    %s106 = sphi 0, %s104
    %s107 = sphi 0, %s106
    %s121 = sphi 0, %s107
    %s125 = sphi 0, %s125
    %s127 = sphi 0, %s125
    %s128 = sphi 0, %s127
    %s142 = sphi 0, %s128
    %s146 = sphi 0, %s146
    %s148 = sphi 0, %s146
    %s149 = sphi 0, %s148
    %s163 = sphi 0, %s149
    %s167 = sphi 0, %s167
    %s169 = sphi 0, %s167
    %s170 = sphi 0, %s169
    %s184 = sphi 0, %s170
    %s188 = sphi 0, %s188
    %s190 = sphi 0, %s188
    %s191 = sphi 0, %s190
    %s205 = sphi 0, %s191
    %s209 = sphi 0, %s209
    %s211 = sphi 0, %s209
    %s212 = sphi 0, %s211
    %s226 = sphi 0, %s212
    %s230 = sphi 0, %s230
    %s232 = sphi 0, %s230
    %s233 = sphi 0, %s232
    %s247 = sphi 0, %s233
    %s251 = sphi 0, %s251
    %s253 = sphi 0, %s251
    %s254 = sphi 0, %s253
    %s268 = sphi 0, %s254
    %s272 = sphi 0, %s272
    %s274 = sphi 0, %s272
    %s275 = sphi 0, %s274
    %s289 = sphi 0, %s275
    %s293 = sphi 0, %s293
    %s295 = sphi 0, %s293
    %s296 = sphi 0, %s295
    %s310 = sphi 0, %s296
    %s314 = sphi 0, %s314
    %s316 = sphi 0, %s314
    %s317 = sphi 0, %s316
    %s331 = sphi 0, %s317
    %s335 = sphi 0, %s335
    %s337 = sphi 0, %s335
    %s338 = sphi 0, %s337
    %s352 = sphi 0, %s338
    %s356 = sphi 0, %s356
    %s358 = sphi 0, %s356
    %s359 = sphi 0, %s358
    %s373 = sphi 0, %s359
    %s377 = sphi 0, %s377
    %s379 = sphi 0, %s377
    %s380 = sphi 0, %s379
    %s394 = sphi 0, %s380
    %s400 = sphi 0, %s402
    %s403 = sphi 0, %s400
    %s404 = sphi 0, %s403
    %s420 = sphi 0, %s404
  $region4: #{gtn_forward.3} parent=0 // loop_header_branch
    %26 = sbr.rel (%p24) target = $region8
  $region5: #{gtn_forward.3} parent=0 // loop_body
    %s28 = ssub.s32 %s23, 1
    %s29 = ssub.s32 %s23, 2
    %s30 = sadd.s32 %s23, 1
    %s31 = ssub.s32 %s23, %s30
    %p32 = scmp.eq.s32.totalorder %s31, 0
    %s34 = sadd.s32 %s33, 1
    %s35 = scalar_select %p32, %s33, %s34
    %p38 = pneg %p32
    %p39 = scmp.eq.s32.totalorder %s23, 1
    %p40 = por %p38, %p39
    %p41 = scmp.ne.s32.totalorder %s33, %s36
    %p42 = scmp.eq.s32.totalorder %s23, 0
    %p43 = por %p41, %p42
    %p44 = scmp.ne.s32.totalorder %s33, %s36
    %p45 = scmp.eq.s32.totalorder %s28, 1
    %p46 = por %p44, %p45
    %p47 = scmp.ne.s32.totalorder %s36, %s37
    %p48 = scmp.eq.s32.totalorder %s28, 0
    %p49 = por %p47, %p48
    %p50 = scmp.ne.s32.totalorder %s36, %s37
    %p51 = scmp.eq.s32.totalorder %s29, 1
    %p52 = por %p50, %p51
    %p54 = scmp.ne.s32.totalorder %s37, %s53
    %p55 = scmp.eq.s32.totalorder %s29, 0
    %p56 = por %p54, %p55
    %s57 = ssub.s32 %s23, %s30
    %p58 = scmp.eq.s32.totalorder %s57, 0
    %s60 = sadd.s32 %s59, 1
    %s61 = scalar_select %p58, %s59, %s60
    %p64 = pneg %p58
    %p65 = scmp.eq.s32.totalorder %s23, 1
    %p66 = por %p64, %p65
    %p67 = scmp.ne.s32.totalorder %s59, %s62
    %p68 = scmp.eq.s32.totalorder %s23, 0
    %p69 = por %p67, %p68
    %p70 = scmp.ne.s32.totalorder %s59, %s62
    %p71 = scmp.eq.s32.totalorder %s28, 1
    %p72 = por %p70, %p71
    %p73 = scmp.ne.s32.totalorder %s62, %s63
    %p74 = scmp.eq.s32.totalorder %s28, 0
    %p75 = por %p73, %p74
    %p76 = scmp.ne.s32.totalorder %s62, %s63
    %p77 = scmp.eq.s32.totalorder %s29, 1
    %p78 = por %p76, %p77
    %p80 = scmp.ne.s32.totalorder %s63, %s79
    %p81 = scmp.eq.s32.totalorder %s29, 0
    %p82 = por %p80, %p81
    %s84 = sadd.s32 %s83, 1
    %p87 = scmp.eq.s32.totalorder %s23, 1
    %p88 = scmp.ne.s32.totalorder %s83, %s85
    %p89 = scmp.eq.s32.totalorder %s23, 0
    %p90 = por %p88, %p89
    %p91 = scmp.ne.s32.totalorder %s83, %s85
    %p92 = scmp.eq.s32.totalorder %s28, 1
    %p93 = por %p91, %p92
    %p94 = scmp.ne.s32.totalorder %s85, %s86
    %p95 = scmp.eq.s32.totalorder %s28, 0
    %p96 = por %p94, %p95
    %p97 = scmp.ne.s32.totalorder %s85, %s86
    %p98 = scmp.eq.s32.totalorder %s29, 1
    %p99 = por %p97, %p98
    %p101 = scmp.ne.s32.totalorder %s86, %s100
    %p102 = scmp.eq.s32.totalorder %s29, 0
    %p103 = por %p101, %p102
    %s105 = sadd.s32 %s104, 1
    %p108 = scmp.eq.s32.totalorder %s23, 1
    %p109 = scmp.ne.s32.totalorder %s104, %s106
    %p110 = scmp.eq.s32.totalorder %s23, 0
    %p111 = por %p109, %p110
    %p112 = scmp.ne.s32.totalorder %s104, %s106
    %p113 = scmp.eq.s32.totalorder %s28, 1
    %p114 = por %p112, %p113
    %p115 = scmp.ne.s32.totalorder %s106, %s107
    %p116 = scmp.eq.s32.totalorder %s28, 0
    %p117 = por %p115, %p116
    %p118 = scmp.ne.s32.totalorder %s106, %s107
    %p119 = scmp.eq.s32.totalorder %s29, 1
    %p120 = por %p118, %p119
    %p122 = scmp.ne.s32.totalorder %s107, %s121
    %p123 = scmp.eq.s32.totalorder %s29, 0
    %p124 = por %p122, %p123
    %s126 = sadd.s32 %s125, 1
    %p129 = scmp.eq.s32.totalorder %s23, 1
    %p130 = scmp.ne.s32.totalorder %s125, %s127
    %p131 = scmp.eq.s32.totalorder %s23, 0
    %p132 = por %p130, %p131
    %p133 = scmp.ne.s32.totalorder %s125, %s127
    %p134 = scmp.eq.s32.totalorder %s28, 1
    %p135 = por %p133, %p134
    %p136 = scmp.ne.s32.totalorder %s127, %s128
    %p137 = scmp.eq.s32.totalorder %s28, 0
    %p138 = por %p136, %p137
    %p139 = scmp.ne.s32.totalorder %s127, %s128
    %p140 = scmp.eq.s32.totalorder %s29, 1
    %p141 = por %p139, %p140
    %p143 = scmp.ne.s32.totalorder %s128, %s142
    %p144 = scmp.eq.s32.totalorder %s29, 0
    %p145 = por %p143, %p144
    %s147 = sadd.s32 %s146, 1
    %p150 = scmp.eq.s32.totalorder %s23, 1
    %p151 = scmp.ne.s32.totalorder %s146, %s148
    %p152 = scmp.eq.s32.totalorder %s23, 0
    %p153 = por %p151, %p152
    %p154 = scmp.ne.s32.totalorder %s146, %s148
    %p155 = scmp.eq.s32.totalorder %s28, 1
    %p156 = por %p154, %p155
    %p157 = scmp.ne.s32.totalorder %s148, %s149
    %p158 = scmp.eq.s32.totalorder %s28, 0
    %p159 = por %p157, %p158
    %p160 = scmp.ne.s32.totalorder %s148, %s149
    %p161 = scmp.eq.s32.totalorder %s29, 1
    %p162 = por %p160, %p161
    %p164 = scmp.ne.s32.totalorder %s149, %s163
    %p165 = scmp.eq.s32.totalorder %s29, 0
    %p166 = por %p164, %p165
    %s168 = sadd.s32 %s167, 1
    %p171 = scmp.eq.s32.totalorder %s23, 1
    %p172 = scmp.ne.s32.totalorder %s167, %s169
    %p173 = scmp.eq.s32.totalorder %s23, 0
    %p174 = por %p172, %p173
    %p175 = scmp.ne.s32.totalorder %s167, %s169
    %p176 = scmp.eq.s32.totalorder %s28, 1
    %p177 = por %p175, %p176
    %p178 = scmp.ne.s32.totalorder %s169, %s170
    %p179 = scmp.eq.s32.totalorder %s28, 0
    %p180 = por %p178, %p179
    %p181 = scmp.ne.s32.totalorder %s169, %s170
    %p182 = scmp.eq.s32.totalorder %s29, 1
    %p183 = por %p181, %p182
    %p185 = scmp.ne.s32.totalorder %s170, %s184
    %p186 = scmp.eq.s32.totalorder %s29, 0
    %p187 = por %p185, %p186
    %s189 = sadd.s32 %s188, 1
    %p192 = scmp.eq.s32.totalorder %s23, 1
    %p193 = scmp.ne.s32.totalorder %s188, %s190
    %p194 = scmp.eq.s32.totalorder %s23, 0
    %p195 = por %p193, %p194
    %p196 = scmp.ne.s32.totalorder %s188, %s190
    %p197 = scmp.eq.s32.totalorder %s28, 1
    %p198 = por %p196, %p197
    %p199 = scmp.ne.s32.totalorder %s190, %s191
    %p200 = scmp.eq.s32.totalorder %s28, 0
    %p201 = por %p199, %p200
    %p202 = scmp.ne.s32.totalorder %s190, %s191
    %p203 = scmp.eq.s32.totalorder %s29, 1
    %p204 = por %p202, %p203
    %p206 = scmp.ne.s32.totalorder %s191, %s205
    %p207 = scmp.eq.s32.totalorder %s29, 0
    %p208 = por %p206, %p207
    %s210 = sadd.s32 %s209, 1
    %p213 = scmp.eq.s32.totalorder %s23, 1
    %p214 = scmp.ne.s32.totalorder %s209, %s211
    %p215 = scmp.eq.s32.totalorder %s23, 0
    %p216 = por %p214, %p215
    %p217 = scmp.ne.s32.totalorder %s209, %s211
    %p218 = scmp.eq.s32.totalorder %s28, 1
    %p219 = por %p217, %p218
    %p220 = scmp.ne.s32.totalorder %s211, %s212
    %p221 = scmp.eq.s32.totalorder %s28, 0
    %p222 = por %p220, %p221
    %p223 = scmp.ne.s32.totalorder %s211, %s212
    %p224 = scmp.eq.s32.totalorder %s29, 1
    %p225 = por %p223, %p224
    %p227 = scmp.ne.s32.totalorder %s212, %s226
    %p228 = scmp.eq.s32.totalorder %s29, 0
    %p229 = por %p227, %p228
    %s231 = sadd.s32 %s230, 1
    %p234 = scmp.eq.s32.totalorder %s23, 1
    %p235 = scmp.ne.s32.totalorder %s230, %s232
    %p236 = scmp.eq.s32.totalorder %s23, 0
    %p237 = por %p235, %p236
    %p238 = scmp.ne.s32.totalorder %s230, %s232
    %p239 = scmp.eq.s32.totalorder %s28, 1
    %p240 = por %p238, %p239
    %p241 = scmp.ne.s32.totalorder %s232, %s233
    %p242 = scmp.eq.s32.totalorder %s28, 0
    %p243 = por %p241, %p242
    %p244 = scmp.ne.s32.totalorder %s232, %s233
    %p245 = scmp.eq.s32.totalorder %s29, 1
    %p246 = por %p244, %p245
    %p248 = scmp.ne.s32.totalorder %s233, %s247
    %p249 = scmp.eq.s32.totalorder %s29, 0
    %p250 = por %p248, %p249
    %s252 = sadd.s32 %s251, 1
    %p255 = scmp.eq.s32.totalorder %s23, 1
    %p256 = scmp.ne.s32.totalorder %s251, %s253
    %p257 = scmp.eq.s32.totalorder %s23, 0
    %p258 = por %p256, %p257
    %p259 = scmp.ne.s32.totalorder %s251, %s253
    %p260 = scmp.eq.s32.totalorder %s28, 1
    %p261 = por %p259, %p260
    %p262 = scmp.ne.s32.totalorder %s253, %s254
    %p263 = scmp.eq.s32.totalorder %s28, 0
    %p264 = por %p262, %p263
    %p265 = scmp.ne.s32.totalorder %s253, %s254
    %p266 = scmp.eq.s32.totalorder %s29, 1
    %p267 = por %p265, %p266
    %p269 = scmp.ne.s32.totalorder %s254, %s268
    %p270 = scmp.eq.s32.totalorder %s29, 0
    %p271 = por %p269, %p270
    %s273 = sadd.s32 %s272, 1
    %p276 = scmp.eq.s32.totalorder %s23, 1
    %p277 = scmp.ne.s32.totalorder %s272, %s274
    %p278 = scmp.eq.s32.totalorder %s23, 0
    %p279 = por %p277, %p278
    %p280 = scmp.ne.s32.totalorder %s272, %s274
    %p281 = scmp.eq.s32.totalorder %s28, 1
    %p282 = por %p280, %p281
    %p283 = scmp.ne.s32.totalorder %s274, %s275
    %p284 = scmp.eq.s32.totalorder %s28, 0
    %p285 = por %p283, %p284
    %p286 = scmp.ne.s32.totalorder %s274, %s275
    %p287 = scmp.eq.s32.totalorder %s29, 1
    %p288 = por %p286, %p287
    %p290 = scmp.ne.s32.totalorder %s275, %s289
    %p291 = scmp.eq.s32.totalorder %s29, 0
    %p292 = por %p290, %p291
    %s294 = sadd.s32 %s293, 1
    %p297 = scmp.eq.s32.totalorder %s23, 1
    %p298 = scmp.ne.s32.totalorder %s293, %s295
    %p299 = scmp.eq.s32.totalorder %s23, 0
    %p300 = por %p298, %p299
    %p301 = scmp.ne.s32.totalorder %s293, %s295
    %p302 = scmp.eq.s32.totalorder %s28, 1
    %p303 = por %p301, %p302
    %p304 = scmp.ne.s32.totalorder %s295, %s296
    %p305 = scmp.eq.s32.totalorder %s28, 0
    %p306 = por %p304, %p305
    %p307 = scmp.ne.s32.totalorder %s295, %s296
    %p308 = scmp.eq.s32.totalorder %s29, 1
    %p309 = por %p307, %p308
    %p311 = scmp.ne.s32.totalorder %s296, %s310
    %p312 = scmp.eq.s32.totalorder %s29, 0
    %p313 = por %p311, %p312
    %s315 = sadd.s32 %s314, 1
    %p318 = scmp.eq.s32.totalorder %s23, 1
    %p319 = scmp.ne.s32.totalorder %s314, %s316
    %p320 = scmp.eq.s32.totalorder %s23, 0
    %p321 = por %p319, %p320
    %p322 = scmp.ne.s32.totalorder %s314, %s316
    %p323 = scmp.eq.s32.totalorder %s28, 1
    %p324 = por %p322, %p323
    %p325 = scmp.ne.s32.totalorder %s316, %s317
    %p326 = scmp.eq.s32.totalorder %s28, 0
    %p327 = por %p325, %p326
    %p328 = scmp.ne.s32.totalorder %s316, %s317
    %p329 = scmp.eq.s32.totalorder %s29, 1
    %p330 = por %p328, %p329
    %p332 = scmp.ne.s32.totalorder %s317, %s331
    %p333 = scmp.eq.s32.totalorder %s29, 0
    %p334 = por %p332, %p333
    %s336 = sadd.s32 %s335, 1
    %p339 = scmp.eq.s32.totalorder %s23, 1
    %p340 = scmp.ne.s32.totalorder %s335, %s337
    %p341 = scmp.eq.s32.totalorder %s23, 0
    %p342 = por %p340, %p341
    %p343 = scmp.ne.s32.totalorder %s335, %s337
    %p344 = scmp.eq.s32.totalorder %s28, 1
    %p345 = por %p343, %p344
    %p346 = scmp.ne.s32.totalorder %s337, %s338
    %p347 = scmp.eq.s32.totalorder %s28, 0
    %p348 = por %p346, %p347
    %p349 = scmp.ne.s32.totalorder %s337, %s338
    %p350 = scmp.eq.s32.totalorder %s29, 1
    %p351 = por %p349, %p350
    %p353 = scmp.ne.s32.totalorder %s338, %s352
    %p354 = scmp.eq.s32.totalorder %s29, 0
    %p355 = por %p353, %p354
    %s357 = sadd.s32 %s356, 1
    %p360 = scmp.eq.s32.totalorder %s23, 1
    %p361 = scmp.ne.s32.totalorder %s356, %s358
    %p362 = scmp.eq.s32.totalorder %s23, 0
    %p363 = por %p361, %p362
    %p364 = scmp.ne.s32.totalorder %s356, %s358
    %p365 = scmp.eq.s32.totalorder %s28, 1
    %p366 = por %p364, %p365
    %p367 = scmp.ne.s32.totalorder %s358, %s359
    %p368 = scmp.eq.s32.totalorder %s28, 0
    %p369 = por %p367, %p368
    %p370 = scmp.ne.s32.totalorder %s358, %s359
    %p371 = scmp.eq.s32.totalorder %s29, 1
    %p372 = por %p370, %p371
    %p374 = scmp.ne.s32.totalorder %s359, %s373
    %p375 = scmp.eq.s32.totalorder %s29, 0
    %p376 = por %p374, %p375
    %s378 = sadd.s32 %s377, 1
    %p381 = scmp.eq.s32.totalorder %s23, 1
    %p382 = scmp.ne.s32.totalorder %s377, %s379
    %p383 = scmp.eq.s32.totalorder %s23, 0
    %p384 = por %p382, %p383
    %p385 = scmp.ne.s32.totalorder %s377, %s379
    %p386 = scmp.eq.s32.totalorder %s28, 1
    %p387 = por %p385, %p386
    %p388 = scmp.ne.s32.totalorder %s379, %s380
    %p389 = scmp.eq.s32.totalorder %s28, 0
    %p390 = por %p388, %p389
    %p391 = scmp.ne.s32.totalorder %s379, %s380
    %p392 = scmp.eq.s32.totalorder %s29, 1
    %p393 = por %p391, %p392
    %p395 = scmp.ne.s32.totalorder %s380, %s394
    %p396 = scmp.eq.s32.totalorder %s29, 0
    %p397 = por %p395, %p396
    %s398 = ssub.s32 %s23, %s30
    %p399 = scmp.eq.s32.totalorder %s398, 0
    %s401 = sadd.s32 %s400, 1
    %s402 = scalar_select %p399, %s400, %s401
    %p405 = pneg %p399
    %p406 = scmp.eq.s32.totalorder %s23, 1
    %p407 = por %p405, %p406
    %p408 = scmp.ne.s32.totalorder %s400, %s403
    %p409 = scmp.eq.s32.totalorder %s23, 0
    %p410 = por %p408, %p409
    %p411 = scmp.ne.s32.totalorder %s400, %s403
    %p412 = scmp.eq.s32.totalorder %s28, 1
    %p413 = por %p411, %p412
    %p414 = scmp.ne.s32.totalorder %s403, %s404
    %p415 = scmp.eq.s32.totalorder %s28, 0
    %p416 = por %p414, %p415
    %p417 = scmp.ne.s32.totalorder %s403, %s404
    %p418 = scmp.eq.s32.totalorder %s29, 1
    %p419 = por %p417, %p418
    %p421 = scmp.ne.s32.totalorder %s404, %s420
    %p422 = scmp.eq.s32.totalorder %s29, 0
    %p423 = por %p421, %p422
    %p424 = scmp.le.s32.totalorder 1, %s23
    %p425 = scmp.lt.s32.totalorder %s23, 3
    %p426 = pnand %p424, %p425
    %p427 = pneg %p426
    // Predicated region
    $region9: #{gtn_forward.3} parent=5 // pred_check
      _
    $region10: #{gtn_forward.3} parent=5 // pred_check_branch
      %429 = sbr.rel (%p426) target = $region12
    $region11: #{gtn_forward.3} parent=5 // pred_region
      %s430 = ssub.s32 %s23, 1
      // Predicated region
      $region13: #{gtn_forward.3} parent=11 // pred_check
        %p431 = pneg %p96
      $region14: #{gtn_forward.3} parent=11 // pred_check_branch
        %433 = sbr.rel (%p431) target = $region16
      $region15: #{gtn_forward.3} parent=11 // pred_region
        _
      $region16: #{gtn_forward.3} parent=11 // pred_fallthru
        _
      // Predicated region
      $region17: #{gtn_forward.3} parent=11 // pred_check
        %p434 = pneg %p117
      $region18: #{gtn_forward.3} parent=11 // pred_check_branch
        %436 = sbr.rel (%p434) target = $region20
      $region19: #{gtn_forward.3} parent=11 // pred_region
        _
      $region20: #{gtn_forward.3} parent=11 // pred_fallthru
        _
      // Predicated region
      $region21: #{gtn_forward.3} parent=11 // pred_check
        %p437 = pneg %p138
      $region22: #{gtn_forward.3} parent=11 // pred_check_branch
        %439 = sbr.rel (%p437) target = $region24
      $region23: #{gtn_forward.3} parent=11 // pred_region
        _
      $region24: #{gtn_forward.3} parent=11 // pred_fallthru
        _
      // Predicated region
      $region25: #{gtn_forward.3} parent=11 // pred_check
        %p440 = pneg %p159
      $region26: #{gtn_forward.3} parent=11 // pred_check_branch
        %442 = sbr.rel (%p440) target = $region28
      $region27: #{gtn_forward.3} parent=11 // pred_region
        _
      $region28: #{gtn_forward.3} parent=11 // pred_fallthru
        _
      // Predicated region
      $region29: #{gtn_forward.3} parent=11 // pred_check
        %p443 = pneg %p180
      $region30: #{gtn_forward.3} parent=11 // pred_check_branch
        %445 = sbr.rel (%p443) target = $region32
      $region31: #{gtn_forward.3} parent=11 // pred_region
        _
      $region32: #{gtn_forward.3} parent=11 // pred_fallthru
        _
      // Predicated region
      $region33: #{gtn_forward.3} parent=11 // pred_check
        %p446 = pneg %p201
      $region34: #{gtn_forward.3} parent=11 // pred_check_branch
        %448 = sbr.rel (%p446) target = $region36
      $region35: #{gtn_forward.3} parent=11 // pred_region
        _
      $region36: #{gtn_forward.3} parent=11 // pred_fallthru
        _
      // Predicated region
      $region37: #{gtn_forward.3} parent=11 // pred_check
        %p449 = pneg %p222
      $region38: #{gtn_forward.3} parent=11 // pred_check_branch
        %451 = sbr.rel (%p449) target = $region40
      $region39: #{gtn_forward.3} parent=11 // pred_region
        _
      $region40: #{gtn_forward.3} parent=11 // pred_fallthru
        _
      // Predicated region
      $region41: #{gtn_forward.3} parent=11 // pred_check
        %p452 = pneg %p243
      $region42: #{gtn_forward.3} parent=11 // pred_check_branch
        %454 = sbr.rel (%p452) target = $region44
      $region43: #{gtn_forward.3} parent=11 // pred_region
        _
      $region44: #{gtn_forward.3} parent=11 // pred_fallthru
        _
      // Predicated region
      $region45: #{gtn_forward.3} parent=11 // pred_check
        %p455 = pneg %p264
      $region46: #{gtn_forward.3} parent=11 // pred_check_branch
        %457 = sbr.rel (%p455) target = $region48
      $region47: #{gtn_forward.3} parent=11 // pred_region
        _
      $region48: #{gtn_forward.3} parent=11 // pred_fallthru
        _
      // Predicated region
      $region49: #{gtn_forward.3} parent=11 // pred_check
        %p458 = pneg %p285
      $region50: #{gtn_forward.3} parent=11 // pred_check_branch
        %460 = sbr.rel (%p458) target = $region52
      $region51: #{gtn_forward.3} parent=11 // pred_region
        _
      $region52: #{gtn_forward.3} parent=11 // pred_fallthru
        _
      // Predicated region
      $region53: #{gtn_forward.3} parent=11 // pred_check
        %p461 = pneg %p306
      $region54: #{gtn_forward.3} parent=11 // pred_check_branch
        %463 = sbr.rel (%p461) target = $region56
      $region55: #{gtn_forward.3} parent=11 // pred_region
        _
      $region56: #{gtn_forward.3} parent=11 // pred_fallthru
        _
      // Predicated region
      $region57: #{gtn_forward.3} parent=11 // pred_check
        %p464 = pneg %p327
      $region58: #{gtn_forward.3} parent=11 // pred_check_branch
        %466 = sbr.rel (%p464) target = $region60
      $region59: #{gtn_forward.3} parent=11 // pred_region
        _
      $region60: #{gtn_forward.3} parent=11 // pred_fallthru
        _
      // Predicated region
      $region61: #{gtn_forward.3} parent=11 // pred_check
        %p467 = pneg %p348
      $region62: #{gtn_forward.3} parent=11 // pred_check_branch
        %469 = sbr.rel (%p467) target = $region64
      $region63: #{gtn_forward.3} parent=11 // pred_region
        _
      $region64: #{gtn_forward.3} parent=11 // pred_fallthru
        _
      // Predicated region
      $region65: #{gtn_forward.3} parent=11 // pred_check
        %p470 = pneg %p369
      $region66: #{gtn_forward.3} parent=11 // pred_check_branch
        %472 = sbr.rel (%p470) target = $region68
      $region67: #{gtn_forward.3} parent=11 // pred_region
        _
      $region68: #{gtn_forward.3} parent=11 // pred_fallthru
        _
      // Predicated region
      $region69: #{gtn_forward.3} parent=11 // pred_check
        %p473 = pneg %p390
      $region70: #{gtn_forward.3} parent=11 // pred_check_branch
        %475 = sbr.rel (%p473) target = $region72
      $region71: #{gtn_forward.3} parent=11 // pred_region
        _
      $region72: #{gtn_forward.3} parent=11 // pred_fallthru
        _
    $region12: #{gtn_forward.3} parent=5 // pred_fallthru
      _
    %p476 = scmp.lt.s32.totalorder %s23, 2
    // Predicated region
    $region73: #{gtn_forward.3} parent=5 // pred_check
      %p477 = pneg %p476
    $region74: #{gtn_forward.3} parent=5 // pred_check_branch
      %479 = sbr.rel (%p477) target = $region76
    $region75: #{gtn_forward.3} parent=5 // pred_region
      // Predicated region
      $region77: #{gtn_forward.3} parent=75 // pred_check
        %p480 = pneg %p43
      $region78: #{gtn_forward.3} parent=75 // pred_check_branch
        %482 = sbr.rel (%p480) target = $region80
      $region79: #{gtn_forward.3} parent=75 // pred_region
        %p483 = scmp.lt.s32.totalorder %s23, 1
        %s484 = scalar_select %p483, %s23, 1
        %s485 = smul.addr %s484, 4
        %s486 = smul.addr %s485, 8
        %s487 = scalar_lea.vmem %s0, %s486
      $region80: #{gtn_forward.3} parent=75 // pred_fallthru
        _
      // Predicated region
      $region81: #{gtn_forward.3} parent=75 // pred_check
        %p488 = pneg %p69
      $region82: #{gtn_forward.3} parent=75 // pred_check_branch
        %490 = sbr.rel (%p488) target = $region84
      $region83: #{gtn_forward.3} parent=75 // pred_region
        %p491 = scmp.lt.s32.totalorder %s23, 1
        %s492 = scalar_select %p491, %s23, 1
        %s493 = smul.addr %s492, 4
        %s494 = scalar_lea.vmem %s1, %s493
      $region84: #{gtn_forward.3} parent=75 // pred_fallthru
        _
    $region76: #{gtn_forward.3} parent=5 // pred_fallthru
      _
    %p495 = scmp.le.s32.totalorder 1, %s23
    %p496 = scmp.lt.s32.totalorder %s23, 3
    %p497 = pnand %p495, %p496
    %p498 = pneg %p497
    // Predicated region
    $region85: #{gtn_forward.3} parent=5 // pred_check
      _
    $region86: #{gtn_forward.3} parent=5 // pred_check_branch
      %500 = sbr.rel (%p497) target = $region88
    $region87: #{gtn_forward.3} parent=5 // pred_region
      %s501 = ssub.s32 %s23, 1
      %p502 = scmp.lt.s32.totalorder %s28, 1
      %s503 = scalar_select %p502, %s28, 1
      %s504 = smul.addr %s503, 4
      %s505 = smul.addr %s504, 8
      %s506 = scalar_lea.vmem %s0, %s505
      %p507 = pneg %p49
      %p508 = pneg %p46
      %p509 = scmp.lt.s32.totalorder %s28, 1
      %s510 = scalar_select %p509, %s28, 1
      %s511 = smul.addr %s510, 4
      %s512 = scalar_lea.vmem %s1, %s511
      %p513 = pneg %p75
      %p514 = pneg %p72
      %p515 = pneg %p96
      %p516 = pneg %p93
      %p517 = pneg %p117
      %p518 = pneg %p114
      %p519 = pneg %p138
      %p520 = pneg %p135
      %p521 = pneg %p159
      %p522 = pneg %p156
      %p523 = pneg %p180
      %p524 = pneg %p177
      %p525 = pneg %p201
      %p526 = pneg %p198
      %p527 = pneg %p222
      %p528 = pneg %p219
      %p529 = pneg %p243
      %p530 = pneg %p240
      %p531 = pneg %p264
      %p532 = pneg %p261
      %p533 = pneg %p285
      %p534 = pneg %p282
      %p535 = pneg %p306
      %p536 = pneg %p303
      %p537 = pneg %p327
      %p538 = pneg %p324
      %p539 = pneg %p348
      %p540 = pneg %p345
      %p541 = pneg %p369
      %p542 = pneg %p366
      %p543 = pneg %p390
      %p544 = pneg %p387
      %p545 = pneg %p416
      %p546 = pneg %p413
      %p547 = scmp.lt.s32.totalorder %s28, 1
      %s548 = scalar_select %p547, %s28, 1
      %s549 = scalar_lea.vmem %s17, %s548
      %p550 = scmp.lt.s32.totalorder %s28, 1
      %s551 = scalar_select %p550, %s28, 1
      %s552 = smul.addr %s551, 4
      %s553 = smul.addr %s552, 8
      %s554 = scalar_lea.vmem %s0, %s553
      %p555 = scmp.lt.s32.totalorder %s28, 1
      %s556 = scalar_select %p555, %s28, 1
      %s557 = smul.addr %s556, 4
      %s558 = scalar_lea.vmem %s1, %s557
      %p559 = scmp.lt.s32.totalorder %s28, 1
      %s560 = scalar_select %p559, %s28, 1
      %s561 = scalar_lea.vmem %s17, %s560
      %v562 = vld [vmem:[%s554] sm:$0xff]
      %v563 = vld [vmem:[%s554 + $0x8] sm:$0xff]
      %v564 = vld [vmem:[%s554 + $0x10] sm:$0xff]
      %v565 = vld [vmem:[%s554 + $0x18] sm:$0xff]
      %v566 = vld [vmem:[%s4] sm:$0xf]
      %v567 = vld [vmem:[%s5] sm:$0x1]
      %v568 = vperm.slane %v567, 0
      %vm569 = vcmask 31744
      %v571 = vsel %vm569, %v562, 0
      %v574 = vsel %vm569, %v563, 0
      %v577 = vsel %vm569, %v564, 0
      %v580 = vsel %vm569, %v565, 0
      %vm582 = vcmask 1043456
      %v584 = vsel %vm582, %v566, 0
      %586 = vmatpush.msra.mxu0 0.0
      %587 = vmatpush.msra.mxu0 0.0
      %588 = vmatpush.msra.mxu0 0.0
      %589 = vmatpush.msra.mxu0 0.0
      %590 = vmatpush.msra.mxu0 0.0
      %591 = vmatpush.msra.mxu0 0.0
      %592 = vmatpush.msra.mxu0 0.0
      %593 = vmatpush.msra.mxu0 0.0
      %594 = vmatpush.msra.mxu0 0.0
      %595 = vmatpush.msra.mxu0 0.0
      %596 = vmatpush.msra.mxu0 0.0
      %597 = vmatpush.msra.mxu0 0.0
      %598 = vmatpush.msra.mxu0 0.0
      %599 = vmatpush.msra.mxu0 0.0
      %600 = vmatpush.msra.mxu0 0.0
      %601 = vmatpush.msra.mxu0 %v584
      %602 = vmatmul.f32.gmra.mxu0 %v571
      %v603 = vpop.f32.mrf.mxu0
      %v604 = vadd.f32 %v568, %v603
      %605 = vmatmul.f32.gmra.mxu0 %v574
      %v606 = vpop.f32.mrf.mxu0
      %v607 = vadd.f32 %v568, %v606
      %608 = vmatmul.f32.gmra.mxu0 %v577
      %v609 = vpop.f32.mrf.mxu0
      %v610 = vadd.f32 %v568, %v609
      %611 = vmatmul.f32.gmra.mxu0 %v580
      %v612 = vpop.f32.mrf.mxu0
      %v613 = vadd.f32 %v568, %v612
      %614 = vdwg.mxu0
      %v615 = vld [vmem:[%s2] sm:$0xff]
      %v616 = vld [vmem:[%s2 + $0x8] sm:$0xff]
      %v617 = vld [vmem:[%s2 + $0x10] sm:$0xff]
      %v618 = vld [vmem:[%s2 + $0x18] sm:$0xff]
      %v619 = vadd.f32 %v604, %v615
      %v620 = vadd.f32 %v607, %v616
      %v621 = vadd.f32 %v610, %v617
      %v622 = vadd.f32 %v613, %v618
      %v623 = vld [vmem:[%s3] sm:$0xff]
      %v624 = vld [vmem:[%s3 + $0x8] sm:$0xff]
      %v625 = vld [vmem:[%s3 + $0x10] sm:$0xff]
      %v626 = vld [vmem:[%s3 + $0x18] sm:$0xff]
      %v627 = vld [vmem:[%s8] sm:$0xff]
      %v628 = vld [vmem:[%s6] sm:$0xff]
      %v629 = vld [vmem:[%s6 + $0x10] sm:$0xff]
      %v630 = vld [vmem:[%s6 + $0x20] sm:$0xff]
      %v631 = vld [vmem:[%s6 + $0x30] sm:$0xff]
      %v632 = vperm.slane %v627, 0
      %vm633 = vcmask 261120
      %v635 = vsel %vm633, %v619, 0
      %v638 = vsel %vm633, %v620, 0
      %v641 = vsel %vm633, %v621, 0
      %v644 = vsel %vm633, %v622, 0
      %646 = vmatpush.msra.mxu0 0.0
      %647 = vmatpush.msra.mxu0 0.0
      %648 = vmatpush.msra.mxu0 0.0
      %649 = vmatpush.msra.mxu0 0.0
      %650 = vmatpush.msra.mxu0 0.0
      %651 = vmatpush.msra.mxu0 0.0
      %652 = vmatpush.msra.mxu0 0.0
      %653 = vmatpush.msra.mxu0 0.0
      %654 = vmatpush.msra.mxu0 0.0
      %655 = vmatpush.msra.mxu0 0.0
      %656 = vmatpush.msra.mxu0 0.0
      %657 = vmatpush.msra.mxu0 0.0
      %658 = vmatpush.msra.mxu0 %v631
      %659 = vmatpush.msra.mxu0 %v630
      %660 = vmatpush.msra.mxu0 %v629
      %661 = vmatpush.msra.mxu0 %v628
      %662 = vmatmul.f32.gmra.mxu0 %v635
      %v663 = vpop.f32.mrf.mxu0
      %v664 = vadd.f32 %v632, %v663
      %665 = vmatmul.f32.gmra.mxu0 %v638
      %v666 = vpop.f32.mrf.mxu0
      %v667 = vadd.f32 %v632, %v666
      %668 = vmatmul.f32.gmra.mxu0 %v641
      %v669 = vpop.f32.mrf.mxu0
      %v670 = vadd.f32 %v632, %v669
      %671 = vmatmul.f32.gmra.mxu0 %v644
      %v672 = vpop.f32.mrf.mxu0
      %v673 = vadd.f32 %v632, %v672
      %674 = vdwg.mxu0
      %679 = vrot.lane.b32.xlu0 %v664, 96
      %v680 = vpop.permute.xlu0 %679
      %681 = vrot.lane.b32.xlu0 %v667, 96
      %v682 = vpop.permute.xlu0 %681
      %683 = vrot.lane.b32.xlu0 %v670, 96
      %v684 = vpop.permute.xlu0 %683
      %685 = vrot.lane.b32.xlu0 %v673, 96
      %v686 = vpop.permute.xlu0 %685
      %vm687 = vcmask 64512
      %v688 = vsel %vm687, %v664, 0
      %v690 = vsel %vm687, %v667, 0
      %v692 = vsel %vm687, %v670, 0
      %v694 = vsel %vm687, %v673, 0
      %v696 = vsel %vm687, %v680, 0
      %v698 = vsel %vm687, %v682, 0
      %v700 = vsel %vm687, %v684, 0
      %v702 = vsel %vm687, %v686, 0
      %704 = vmatpush.xpose.msra.mxu0 0.0
      %705 = vmatpush.xpose.msra.mxu0 0.0
      %706 = vmatpush.xpose.msra.mxu0 0.0
      %707 = vmatpush.xpose.msra.mxu0 0.0
      %708 = vmatpush.xpose.msra.mxu0 0.0
      %709 = vmatpush.xpose.msra.mxu0 0.0
      %710 = vmatpush.xpose.msra.mxu0 0.0
      %711 = vmatpush.xpose.msra.mxu0 0.0
      %712 = vmatpush.xpose.msra.mxu0 0.0
      %713 = vmatpush.xpose.msra.mxu0 0.0
      %714 = vmatpush.xpose.msra.mxu0 0.0
      %715 = vmatpush.xpose.msra.mxu0 0.0
      %716 = vmatpush.xpose.msra.mxu0 %v702
      %717 = vmatpush.xpose.msra.mxu0 %v700
      %718 = vmatpush.xpose.msra.mxu0 %v698
      %719 = vmatpush.xpose.msra.mxu0 %v696
      %720 = vmatmul.f32.gmra.mxu0 %v688
      %v721 = vpop.f32.mrf.mxu0
      %v722 = vadd.f32 0.0, %v721
      %723 = vmatmul.f32.gmra.mxu0 %v690
      %v724 = vpop.f32.mrf.mxu0
      %v725 = vadd.f32 0.0, %v724
      %726 = vmatmul.f32.gmra.mxu0 %v692
      %v727 = vpop.f32.mrf.mxu0
      %v728 = vadd.f32 0.0, %v727
      %729 = vmatmul.f32.gmra.mxu0 %v694
      %v730 = vpop.f32.mrf.mxu0
      %v731 = vadd.f32 0.0, %v730
      %732 = vdwg.mxu0
      %v733 = vmul.f32 %v722, 0.35355338
      %v734 = vmul.f32 %v725, 0.35355338
      %v735 = vmul.f32 %v728, 0.35355338
      %v736 = vmul.f32 %v731, 0.35355338
      %v737 = vadd.f32 %v733, %v623
      %v738 = vadd.f32 %v734, %v624
      %v739 = vadd.f32 %v735, %v625
      %v740 = vadd.f32 %v736, %v626
      %v741 = vsel %vm633, %v737, -inf
      %742 = vmax.xlane.f32.xlu0 %v741
      %v743 = vpop.xlane.xlu0 %742
      %v744 = vsel %vm633, %v738, -inf
      %745 = vmax.xlane.f32.xlu0 %v744
      %v746 = vpop.xlane.xlu0 %745
      %v747 = vsel %vm633, %v739, -inf
      %748 = vmax.xlane.f32.xlu0 %v747
      %v749 = vpop.xlane.xlu0 %748
      %v750 = vsel %vm633, %v740, -inf
      %751 = vmax.xlane.f32.xlu0 %v750
      %v752 = vpop.xlane.xlu0 %751
      %v753 = vsub.f32 %v737, %v743
      %v754 = vsub.f32 %v738, %v746
      %v755 = vsub.f32 %v739, %v749
      %v756 = vsub.f32 %v740, %v752
      %v757 = vmul.f32 %v753, 1.442695
      %v758 = vpow.pop %v757
      %v759 = vmul.f32 %v754, 1.442695
      %v760 = vpow.pop %v759
      %v761 = vmul.f32 %v755, 1.442695
      %v762 = vpow.pop %v761
      %v763 = vmul.f32 %v756, 1.442695
      %v764 = vpow.pop %v763
      %v765 = vsel %vm633, %v758, 0.0
      %766 = vadd.xlane.f32.xlu0 %v765
      %v767 = vpop.xlane.xlu0 %766
      %v768 = vsel %vm633, %v760, 0.0
      %769 = vadd.xlane.f32.xlu0 %v768
      %v770 = vpop.xlane.xlu0 %769
      %v771 = vsel %vm633, %v762, 0.0
      %772 = vadd.xlane.f32.xlu0 %v771
      %v773 = vpop.xlane.xlu0 %772
      %v774 = vsel %vm633, %v764, 0.0
      %775 = vadd.xlane.f32.xlu0 %v774
      %v776 = vpop.xlane.xlu0 %775
      %v777 = vrcp.pop %v767
      %v778 = vmul.f32 %v767, %v777
      %v779 = vsub.f32 1.0, %v778
      %v780 = vmul.f32 %v777, %v779
      %v781 = vadd.f32 %v777, %v780
      %vm782 = vweird.f32 %v767
      %vm783 = vweird.f32 %v777
      %vm784 = vmor %vm782, %vm783
      %v785 = vsel %vm784, %v777, %v781
      %v786 = vand.u32 2147483647, %v767
      %vm787 = vcmp.eq.f32.partialorder %v786, 8.507059e+37
      %v788 = vand.u32 %v767, 2147483648
      %v789 = vor.u32 1.1754944e-38, %v788
      %v790 = vsel %vm787, %v789, %v785
      %v791 = vmul.f32 %v758, %v790
      %v792 = vrcp.pop %v770
      %v793 = vmul.f32 %v770, %v792
      %v794 = vsub.f32 1.0, %v793
      %v795 = vmul.f32 %v792, %v794
      %v796 = vadd.f32 %v792, %v795
      %vm797 = vweird.f32 %v770
      %vm798 = vweird.f32 %v792
      %vm799 = vmor %vm797, %vm798
      %v800 = vsel %vm799, %v792, %v796
      %v801 = vand.u32 2147483647, %v770
      %vm802 = vcmp.eq.f32.partialorder %v801, 8.507059e+37
      %v803 = vand.u32 %v770, 2147483648
      %v804 = vor.u32 1.1754944e-38, %v803
      %v805 = vsel %vm802, %v804, %v800
      %v806 = vmul.f32 %v760, %v805
      %v807 = vrcp.pop %v773
      %v808 = vmul.f32 %v773, %v807
      %v809 = vsub.f32 1.0, %v808
      %v810 = vmul.f32 %v807, %v809
      %v811 = vadd.f32 %v807, %v810
      %vm812 = vweird.f32 %v773
      %vm813 = vweird.f32 %v807
      %vm814 = vmor %vm812, %vm813
      %v815 = vsel %vm814, %v807, %v811
      %v816 = vand.u32 2147483647, %v773
      %vm817 = vcmp.eq.f32.partialorder %v816, 8.507059e+37
      %v818 = vand.u32 %v773, 2147483648
      %v819 = vor.u32 1.1754944e-38, %v818
      %v820 = vsel %vm817, %v819, %v815
      %v821 = vmul.f32 %v762, %v820
      %v822 = vrcp.pop %v776
      %v823 = vmul.f32 %v776, %v822
      %v824 = vsub.f32 1.0, %v823
      %v825 = vmul.f32 %v822, %v824
      %v826 = vadd.f32 %v822, %v825
      %vm827 = vweird.f32 %v776
      %vm828 = vweird.f32 %v822
      %vm829 = vmor %vm827, %vm828
      %v830 = vsel %vm829, %v822, %v826
      %v831 = vand.u32 2147483647, %v776
      %vm832 = vcmp.eq.f32.partialorder %v831, 8.507059e+37
      %v833 = vand.u32 %v776, 2147483648
      %v834 = vor.u32 1.1754944e-38, %v833
      %v835 = vsel %vm832, %v834, %v830
      %v836 = vmul.f32 %v764, %v835
      %837 = vrot.lane.b32.xlu0 %v664, 64
      %v838 = vpop.permute.xlu0 %837
      %839 = vrot.lane.b32.xlu0 %v667, 64
      %v840 = vpop.permute.xlu0 %839
      %841 = vrot.lane.b32.xlu0 %v670, 64
      %v842 = vpop.permute.xlu0 %841
      %843 = vrot.lane.b32.xlu0 %v673, 64
      %v844 = vpop.permute.xlu0 %843
      %v850 = vsel %vm633, %v791, 0
      %v853 = vsel %vm633, %v806, 0
      %v856 = vsel %vm633, %v821, 0
      %v859 = vsel %vm633, %v836, 0
      %861 = vmatpush.msra.mxu0 0.0
      %862 = vmatpush.msra.mxu0 0.0
      %863 = vmatpush.msra.mxu0 0.0
      %864 = vmatpush.msra.mxu0 0.0
      %865 = vmatpush.msra.mxu0 0.0
      %866 = vmatpush.msra.mxu0 0.0
      %867 = vmatpush.msra.mxu0 0.0
      %868 = vmatpush.msra.mxu0 0.0
      %869 = vmatpush.msra.mxu0 0.0
      %870 = vmatpush.msra.mxu0 0.0
      %871 = vmatpush.msra.mxu0 0.0
      %872 = vmatpush.msra.mxu0 0.0
      %873 = vmatpush.msra.mxu0 %v844
      %874 = vmatpush.msra.mxu0 %v842
      %875 = vmatpush.msra.mxu0 %v840
      %876 = vmatpush.msra.mxu0 %v838
      %877 = vmatmul.f32.gmra.mxu0 %v850
      %v878 = vpop.f32.mrf.mxu0
      %v879 = vadd.f32 0.0, %v878
      %880 = vmatmul.f32.gmra.mxu0 %v853
      %v881 = vpop.f32.mrf.mxu0
      %v882 = vadd.f32 0.0, %v881
      %883 = vmatmul.f32.gmra.mxu0 %v856
      %v884 = vpop.f32.mrf.mxu0
      %v885 = vadd.f32 0.0, %v884
      %886 = vmatmul.f32.gmra.mxu0 %v859
      %v887 = vpop.f32.mrf.mxu0
      %v888 = vadd.f32 0.0, %v887
      %889 = vdwg.mxu0
      %890 = vrot.lane.b32.xlu0 %v664, 120
      %v891 = vpop.permute.xlu0 %890
      %892 = vrot.lane.b32.xlu0 %v667, 120
      %v893 = vpop.permute.xlu0 %892
      %894 = vrot.lane.b32.xlu0 %v670, 120
      %v895 = vpop.permute.xlu0 %894
      %896 = vrot.lane.b32.xlu0 %v673, 120
      %v897 = vpop.permute.xlu0 %896
      %898 = vrot.lane.b32.xlu0 %v664, 88
      %v899 = vpop.permute.xlu0 %898
      %900 = vrot.lane.b32.xlu0 %v667, 88
      %v901 = vpop.permute.xlu0 %900
      %902 = vrot.lane.b32.xlu0 %v670, 88
      %v903 = vpop.permute.xlu0 %902
      %904 = vrot.lane.b32.xlu0 %v673, 88
      %v905 = vpop.permute.xlu0 %904
      %v906 = vsel %vm687, %v891, 0
      %v908 = vsel %vm687, %v893, 0
      %v910 = vsel %vm687, %v895, 0
      %v912 = vsel %vm687, %v897, 0
      %v914 = vsel %vm687, %v899, 0
      %v916 = vsel %vm687, %v901, 0
      %v918 = vsel %vm687, %v903, 0
      %v920 = vsel %vm687, %v905, 0
      %922 = vmatpush.xpose.msra.mxu0 0.0
      %923 = vmatpush.xpose.msra.mxu0 0.0
      %924 = vmatpush.xpose.msra.mxu0 0.0
      %925 = vmatpush.xpose.msra.mxu0 0.0
      %926 = vmatpush.xpose.msra.mxu0 0.0
      %927 = vmatpush.xpose.msra.mxu0 0.0
      %928 = vmatpush.xpose.msra.mxu0 0.0
      %929 = vmatpush.xpose.msra.mxu0 0.0
      %930 = vmatpush.xpose.msra.mxu0 0.0
      %931 = vmatpush.xpose.msra.mxu0 0.0
      %932 = vmatpush.xpose.msra.mxu0 0.0
      %933 = vmatpush.xpose.msra.mxu0 0.0
      %934 = vmatpush.xpose.msra.mxu0 %v920
      %935 = vmatpush.xpose.msra.mxu0 %v918
      %936 = vmatpush.xpose.msra.mxu0 %v916
      %937 = vmatpush.xpose.msra.mxu0 %v914
      %938 = vmatmul.f32.gmra.mxu0 %v906
      %v939 = vpop.f32.mrf.mxu0
      %v940 = vadd.f32 0.0, %v939
      %941 = vmatmul.f32.gmra.mxu0 %v908
      %v942 = vpop.f32.mrf.mxu0
      %v943 = vadd.f32 0.0, %v942
      %944 = vmatmul.f32.gmra.mxu0 %v910
      %v945 = vpop.f32.mrf.mxu0
      %v946 = vadd.f32 0.0, %v945
      %947 = vmatmul.f32.gmra.mxu0 %v912
      %v948 = vpop.f32.mrf.mxu0
      %v949 = vadd.f32 0.0, %v948
      %950 = vdwg.mxu0
      %v951 = vmul.f32 %v940, 0.35355338
      %v952 = vmul.f32 %v943, 0.35355338
      %v953 = vmul.f32 %v946, 0.35355338
      %v954 = vmul.f32 %v949, 0.35355338
      %v955 = vadd.f32 %v951, %v623
      %v956 = vadd.f32 %v952, %v624
      %v957 = vadd.f32 %v953, %v625
      %v958 = vadd.f32 %v954, %v626
      %v959 = vsel %vm633, %v955, -inf
      %960 = vmax.xlane.f32.xlu0 %v959
      %v961 = vpop.xlane.xlu0 %960
      %v962 = vsel %vm633, %v956, -inf
      %963 = vmax.xlane.f32.xlu0 %v962
      %v964 = vpop.xlane.xlu0 %963
      %v965 = vsel %vm633, %v957, -inf
      %966 = vmax.xlane.f32.xlu0 %v965
      %v967 = vpop.xlane.xlu0 %966
      %v968 = vsel %vm633, %v958, -inf
      %969 = vmax.xlane.f32.xlu0 %v968
      %v970 = vpop.xlane.xlu0 %969
      %v971 = vsub.f32 %v955, %v961
      %v972 = vsub.f32 %v956, %v964
      %v973 = vsub.f32 %v957, %v967
      %v974 = vsub.f32 %v958, %v970
      %v975 = vmul.f32 %v971, 1.442695
      %v976 = vpow.pop %v975
      %v977 = vmul.f32 %v972, 1.442695
      %v978 = vpow.pop %v977
      %v979 = vmul.f32 %v973, 1.442695
      %v980 = vpow.pop %v979
      %v981 = vmul.f32 %v974, 1.442695
      %v982 = vpow.pop %v981
      %v983 = vsel %vm633, %v976, 0.0
      %984 = vadd.xlane.f32.xlu0 %v983
      %v985 = vpop.xlane.xlu0 %984
      %v986 = vsel %vm633, %v978, 0.0
      %987 = vadd.xlane.f32.xlu0 %v986
      %v988 = vpop.xlane.xlu0 %987
      %v989 = vsel %vm633, %v980, 0.0
      %990 = vadd.xlane.f32.xlu0 %v989
      %v991 = vpop.xlane.xlu0 %990
      %v992 = vsel %vm633, %v982, 0.0
      %993 = vadd.xlane.f32.xlu0 %v992
      %v994 = vpop.xlane.xlu0 %993
      %v995 = vrcp.pop %v985
      %v996 = vmul.f32 %v985, %v995
      %v997 = vsub.f32 1.0, %v996
      %v998 = vmul.f32 %v995, %v997
      %v999 = vadd.f32 %v995, %v998
      %vm1000 = vweird.f32 %v985
      %vm1001 = vweird.f32 %v995
      %vm1002 = vmor %vm1000, %vm1001
      %v1003 = vsel %vm1002, %v995, %v999
      %v1004 = vand.u32 2147483647, %v985
      %vm1005 = vcmp.eq.f32.partialorder %v1004, 8.507059e+37
      %v1006 = vand.u32 %v985, 2147483648
      %v1007 = vor.u32 1.1754944e-38, %v1006
      %v1008 = vsel %vm1005, %v1007, %v1003
      %v1009 = vmul.f32 %v976, %v1008
      %v1010 = vrcp.pop %v988
      %v1011 = vmul.f32 %v988, %v1010
      %v1012 = vsub.f32 1.0, %v1011
      %v1013 = vmul.f32 %v1010, %v1012
      %v1014 = vadd.f32 %v1010, %v1013
      %vm1015 = vweird.f32 %v988
      %vm1016 = vweird.f32 %v1010
      %vm1017 = vmor %vm1015, %vm1016
      %v1018 = vsel %vm1017, %v1010, %v1014
      %v1019 = vand.u32 2147483647, %v988
      %vm1020 = vcmp.eq.f32.partialorder %v1019, 8.507059e+37
      %v1021 = vand.u32 %v988, 2147483648
      %v1022 = vor.u32 1.1754944e-38, %v1021
      %v1023 = vsel %vm1020, %v1022, %v1018
      %v1024 = vmul.f32 %v978, %v1023
      %v1025 = vrcp.pop %v991
      %v1026 = vmul.f32 %v991, %v1025
      %v1027 = vsub.f32 1.0, %v1026
      %v1028 = vmul.f32 %v1025, %v1027
      %v1029 = vadd.f32 %v1025, %v1028
      %vm1030 = vweird.f32 %v991
      %vm1031 = vweird.f32 %v1025
      %vm1032 = vmor %vm1030, %vm1031
      %v1033 = vsel %vm1032, %v1025, %v1029
      %v1034 = vand.u32 2147483647, %v991
      %vm1035 = vcmp.eq.f32.partialorder %v1034, 8.507059e+37
      %v1036 = vand.u32 %v991, 2147483648
      %v1037 = vor.u32 1.1754944e-38, %v1036
      %v1038 = vsel %vm1035, %v1037, %v1033
      %v1039 = vmul.f32 %v980, %v1038
      %v1040 = vrcp.pop %v994
      %v1041 = vmul.f32 %v994, %v1040
      %v1042 = vsub.f32 1.0, %v1041
      %v1043 = vmul.f32 %v1040, %v1042
      %v1044 = vadd.f32 %v1040, %v1043
      %vm1045 = vweird.f32 %v994
      %vm1046 = vweird.f32 %v1040
      %vm1047 = vmor %vm1045, %vm1046
      %v1048 = vsel %vm1047, %v1040, %v1044
      %v1049 = vand.u32 2147483647, %v994
      %vm1050 = vcmp.eq.f32.partialorder %v1049, 8.507059e+37
      %v1051 = vand.u32 %v994, 2147483648
      %v1052 = vor.u32 1.1754944e-38, %v1051
      %v1053 = vsel %vm1050, %v1052, %v1048
      %v1054 = vmul.f32 %v982, %v1053
      %1055 = vrot.lane.b32.xlu0 %v664, 56
      %v1056 = vpop.permute.xlu0 %1055
      %1057 = vrot.lane.b32.xlu0 %v667, 56
      %v1058 = vpop.permute.xlu0 %1057
      %1059 = vrot.lane.b32.xlu0 %v670, 56
      %v1060 = vpop.permute.xlu0 %1059
      %1061 = vrot.lane.b32.xlu0 %v673, 56
      %v1062 = vpop.permute.xlu0 %1061
      %v1068 = vsel %vm633, %v1009, 0
      %v1071 = vsel %vm633, %v1024, 0
      %v1074 = vsel %vm633, %v1039, 0
      %v1077 = vsel %vm633, %v1054, 0
      %1079 = vmatpush.msra.mxu0 0.0
      %1080 = vmatpush.msra.mxu0 0.0
      %1081 = vmatpush.msra.mxu0 0.0
      %1082 = vmatpush.msra.mxu0 0.0
      %1083 = vmatpush.msra.mxu0 0.0
      %1084 = vmatpush.msra.mxu0 0.0
      %1085 = vmatpush.msra.mxu0 0.0
      %1086 = vmatpush.msra.mxu0 0.0
      %1087 = vmatpush.msra.mxu0 0.0
      %1088 = vmatpush.msra.mxu0 0.0
      %1089 = vmatpush.msra.mxu0 0.0
      %1090 = vmatpush.msra.mxu0 0.0
      %1091 = vmatpush.msra.mxu0 %v1062
      %1092 = vmatpush.msra.mxu0 %v1060
      %1093 = vmatpush.msra.mxu0 %v1058
      %1094 = vmatpush.msra.mxu0 %v1056
      %1095 = vmatmul.f32.gmra.mxu0 %v1068
      %v1096 = vpop.f32.mrf.mxu0
      %v1097 = vadd.f32 0.0, %v1096
      %1098 = vmatmul.f32.gmra.mxu0 %v1071
      %v1099 = vpop.f32.mrf.mxu0
      %v1100 = vadd.f32 0.0, %v1099
      %1101 = vmatmul.f32.gmra.mxu0 %v1074
      %v1102 = vpop.f32.mrf.mxu0
      %v1103 = vadd.f32 0.0, %v1102
      %1104 = vmatmul.f32.gmra.mxu0 %v1077
      %v1105 = vpop.f32.mrf.mxu0
      %v1106 = vadd.f32 0.0, %v1105
      %1107 = vdwg.mxu0
      %1108 = vrot.lane.b32.xlu0 %v664, 112
      %v1109 = vpop.permute.xlu0 %1108
      %1110 = vrot.lane.b32.xlu0 %v667, 112
      %v1111 = vpop.permute.xlu0 %1110
      %1112 = vrot.lane.b32.xlu0 %v670, 112
      %v1113 = vpop.permute.xlu0 %1112
      %1114 = vrot.lane.b32.xlu0 %v673, 112
      %v1115 = vpop.permute.xlu0 %1114
      %1116 = vrot.lane.b32.xlu0 %v664, 80
      %v1117 = vpop.permute.xlu0 %1116
      %1118 = vrot.lane.b32.xlu0 %v667, 80
      %v1119 = vpop.permute.xlu0 %1118
      %1120 = vrot.lane.b32.xlu0 %v670, 80
      %v1121 = vpop.permute.xlu0 %1120
      %1122 = vrot.lane.b32.xlu0 %v673, 80
      %v1123 = vpop.permute.xlu0 %1122
      %v1124 = vsel %vm687, %v1109, 0
      %v1126 = vsel %vm687, %v1111, 0
      %v1128 = vsel %vm687, %v1113, 0
      %v1130 = vsel %vm687, %v1115, 0
      %v1132 = vsel %vm687, %v1117, 0
      %v1134 = vsel %vm687, %v1119, 0
      %v1136 = vsel %vm687, %v1121, 0
      %v1138 = vsel %vm687, %v1123, 0
      %1140 = vmatpush.xpose.msra.mxu0 0.0
      %1141 = vmatpush.xpose.msra.mxu0 0.0
      %1142 = vmatpush.xpose.msra.mxu0 0.0
      %1143 = vmatpush.xpose.msra.mxu0 0.0
      %1144 = vmatpush.xpose.msra.mxu0 0.0
      %1145 = vmatpush.xpose.msra.mxu0 0.0
      %1146 = vmatpush.xpose.msra.mxu0 0.0
      %1147 = vmatpush.xpose.msra.mxu0 0.0
      %1148 = vmatpush.xpose.msra.mxu0 0.0
      %1149 = vmatpush.xpose.msra.mxu0 0.0
      %1150 = vmatpush.xpose.msra.mxu0 0.0
      %1151 = vmatpush.xpose.msra.mxu0 0.0
      %1152 = vmatpush.xpose.msra.mxu0 %v1138
      %1153 = vmatpush.xpose.msra.mxu0 %v1136
      %1154 = vmatpush.xpose.msra.mxu0 %v1134
      %1155 = vmatpush.xpose.msra.mxu0 %v1132
      %1156 = vmatmul.f32.gmra.mxu0 %v1124
      %v1157 = vpop.f32.mrf.mxu0
      %v1158 = vadd.f32 0.0, %v1157
      %1159 = vmatmul.f32.gmra.mxu0 %v1126
      %v1160 = vpop.f32.mrf.mxu0
      %v1161 = vadd.f32 0.0, %v1160
      %1162 = vmatmul.f32.gmra.mxu0 %v1128
      %v1163 = vpop.f32.mrf.mxu0
      %v1164 = vadd.f32 0.0, %v1163
      %1165 = vmatmul.f32.gmra.mxu0 %v1130
      %v1166 = vpop.f32.mrf.mxu0
      %v1167 = vadd.f32 0.0, %v1166
      %1168 = vdwg.mxu0
      %v1169 = vmul.f32 %v1158, 0.35355338
      %v1170 = vmul.f32 %v1161, 0.35355338
      %v1171 = vmul.f32 %v1164, 0.35355338
      %v1172 = vmul.f32 %v1167, 0.35355338
      %v1173 = vadd.f32 %v1169, %v623
      %v1174 = vadd.f32 %v1170, %v624
      %v1175 = vadd.f32 %v1171, %v625
      %v1176 = vadd.f32 %v1172, %v626
      %v1177 = vsel %vm633, %v1173, -inf
      %1178 = vmax.xlane.f32.xlu0 %v1177
      %v1179 = vpop.xlane.xlu0 %1178
      %v1180 = vsel %vm633, %v1174, -inf
      %1181 = vmax.xlane.f32.xlu0 %v1180
      %v1182 = vpop.xlane.xlu0 %1181
      %v1183 = vsel %vm633, %v1175, -inf
      %1184 = vmax.xlane.f32.xlu0 %v1183
      %v1185 = vpop.xlane.xlu0 %1184
      %v1186 = vsel %vm633, %v1176, -inf
      %1187 = vmax.xlane.f32.xlu0 %v1186
      %v1188 = vpop.xlane.xlu0 %1187
      %v1189 = vsub.f32 %v1173, %v1179
      %v1190 = vsub.f32 %v1174, %v1182
      %v1191 = vsub.f32 %v1175, %v1185
      %v1192 = vsub.f32 %v1176, %v1188
      %v1193 = vmul.f32 %v1189, 1.442695
      %v1194 = vpow.pop %v1193
      %v1195 = vmul.f32 %v1190, 1.442695
      %v1196 = vpow.pop %v1195
      %v1197 = vmul.f32 %v1191, 1.442695
      %v1198 = vpow.pop %v1197
      %v1199 = vmul.f32 %v1192, 1.442695
      %v1200 = vpow.pop %v1199
      %v1201 = vsel %vm633, %v1194, 0.0
      %1202 = vadd.xlane.f32.xlu0 %v1201
      %v1203 = vpop.xlane.xlu0 %1202
      %v1204 = vsel %vm633, %v1196, 0.0
      %1205 = vadd.xlane.f32.xlu0 %v1204
      %v1206 = vpop.xlane.xlu0 %1205
      %v1207 = vsel %vm633, %v1198, 0.0
      %1208 = vadd.xlane.f32.xlu0 %v1207
      %v1209 = vpop.xlane.xlu0 %1208
      %v1210 = vsel %vm633, %v1200, 0.0
      %1211 = vadd.xlane.f32.xlu0 %v1210
      %v1212 = vpop.xlane.xlu0 %1211
      %v1213 = vrcp.pop %v1203
      %v1214 = vmul.f32 %v1203, %v1213
      %v1215 = vsub.f32 1.0, %v1214
      %v1216 = vmul.f32 %v1213, %v1215
      %v1217 = vadd.f32 %v1213, %v1216
      %vm1218 = vweird.f32 %v1203
      %vm1219 = vweird.f32 %v1213
      %vm1220 = vmor %vm1218, %vm1219
      %v1221 = vsel %vm1220, %v1213, %v1217
      %v1222 = vand.u32 2147483647, %v1203
      %vm1223 = vcmp.eq.f32.partialorder %v1222, 8.507059e+37
      %v1224 = vand.u32 %v1203, 2147483648
      %v1225 = vor.u32 1.1754944e-38, %v1224
      %v1226 = vsel %vm1223, %v1225, %v1221
      %v1227 = vmul.f32 %v1194, %v1226
      %v1228 = vrcp.pop %v1206
      %v1229 = vmul.f32 %v1206, %v1228
      %v1230 = vsub.f32 1.0, %v1229
      %v1231 = vmul.f32 %v1228, %v1230
      %v1232 = vadd.f32 %v1228, %v1231
      %vm1233 = vweird.f32 %v1206
      %vm1234 = vweird.f32 %v1228
      %vm1235 = vmor %vm1233, %vm1234
      %v1236 = vsel %vm1235, %v1228, %v1232
      %v1237 = vand.u32 2147483647, %v1206
      %vm1238 = vcmp.eq.f32.partialorder %v1237, 8.507059e+37
      %v1239 = vand.u32 %v1206, 2147483648
      %v1240 = vor.u32 1.1754944e-38, %v1239
      %v1241 = vsel %vm1238, %v1240, %v1236
      %v1242 = vmul.f32 %v1196, %v1241
      %v1243 = vrcp.pop %v1209
      %v1244 = vmul.f32 %v1209, %v1243
      %v1245 = vsub.f32 1.0, %v1244
      %v1246 = vmul.f32 %v1243, %v1245
      %v1247 = vadd.f32 %v1243, %v1246
      %vm1248 = vweird.f32 %v1209
      %vm1249 = vweird.f32 %v1243
      %vm1250 = vmor %vm1248, %vm1249
      %v1251 = vsel %vm1250, %v1243, %v1247
      %v1252 = vand.u32 2147483647, %v1209
      %vm1253 = vcmp.eq.f32.partialorder %v1252, 8.507059e+37
      %v1254 = vand.u32 %v1209, 2147483648
      %v1255 = vor.u32 1.1754944e-38, %v1254
      %v1256 = vsel %vm1253, %v1255, %v1251
      %v1257 = vmul.f32 %v1198, %v1256
      %v1258 = vrcp.pop %v1212
      %v1259 = vmul.f32 %v1212, %v1258
      %v1260 = vsub.f32 1.0, %v1259
      %v1261 = vmul.f32 %v1258, %v1260
      %v1262 = vadd.f32 %v1258, %v1261
      %vm1263 = vweird.f32 %v1212
      %vm1264 = vweird.f32 %v1258
      %vm1265 = vmor %vm1263, %vm1264
      %v1266 = vsel %vm1265, %v1258, %v1262
      %v1267 = vand.u32 2147483647, %v1212
      %vm1268 = vcmp.eq.f32.partialorder %v1267, 8.507059e+37
      %v1269 = vand.u32 %v1212, 2147483648
      %v1270 = vor.u32 1.1754944e-38, %v1269
      %v1271 = vsel %vm1268, %v1270, %v1266
      %v1272 = vmul.f32 %v1200, %v1271
      %1273 = vrot.lane.b32.xlu0 %v664, 48
      %v1274 = vpop.permute.xlu0 %1273
      %1275 = vrot.lane.b32.xlu0 %v667, 48
      %v1276 = vpop.permute.xlu0 %1275
      %1277 = vrot.lane.b32.xlu0 %v670, 48
      %v1278 = vpop.permute.xlu0 %1277
      %1279 = vrot.lane.b32.xlu0 %v673, 48
      %v1280 = vpop.permute.xlu0 %1279
      %v1286 = vsel %vm633, %v1227, 0
      %v1289 = vsel %vm633, %v1242, 0
      %v1292 = vsel %vm633, %v1257, 0
      %v1295 = vsel %vm633, %v1272, 0
      %1297 = vmatpush.msra.mxu0 0.0
      %1298 = vmatpush.msra.mxu0 0.0
      %1299 = vmatpush.msra.mxu0 0.0
      %1300 = vmatpush.msra.mxu0 0.0
      %1301 = vmatpush.msra.mxu0 0.0
      %1302 = vmatpush.msra.mxu0 0.0
      %1303 = vmatpush.msra.mxu0 0.0
      %1304 = vmatpush.msra.mxu0 0.0
      %1305 = vmatpush.msra.mxu0 0.0
      %1306 = vmatpush.msra.mxu0 0.0
      %1307 = vmatpush.msra.mxu0 0.0
      %1308 = vmatpush.msra.mxu0 0.0
      %1309 = vmatpush.msra.mxu0 %v1280
      %1310 = vmatpush.msra.mxu0 %v1278
      %1311 = vmatpush.msra.mxu0 %v1276
      %1312 = vmatpush.msra.mxu0 %v1274
      %1313 = vmatmul.f32.gmra.mxu0 %v1286
      %v1314 = vpop.f32.mrf.mxu0
      %v1315 = vadd.f32 0.0, %v1314
      %1316 = vmatmul.f32.gmra.mxu0 %v1289
      %v1317 = vpop.f32.mrf.mxu0
      %v1318 = vadd.f32 0.0, %v1317
      %1319 = vmatmul.f32.gmra.mxu0 %v1292
      %v1320 = vpop.f32.mrf.mxu0
      %v1321 = vadd.f32 0.0, %v1320
      %1322 = vmatmul.f32.gmra.mxu0 %v1295
      %v1323 = vpop.f32.mrf.mxu0
      %v1324 = vadd.f32 0.0, %v1323
      %1325 = vdwg.mxu0
      %1326 = vrot.lane.b32.xlu0 %v664, 104
      %v1327 = vpop.permute.xlu0 %1326
      %1328 = vrot.lane.b32.xlu0 %v667, 104
      %v1329 = vpop.permute.xlu0 %1328
      %1330 = vrot.lane.b32.xlu0 %v670, 104
      %v1331 = vpop.permute.xlu0 %1330
      %1332 = vrot.lane.b32.xlu0 %v673, 104
      %v1333 = vpop.permute.xlu0 %1332
      %1334 = vrot.lane.b32.xlu0 %v664, 72
      %v1335 = vpop.permute.xlu0 %1334
      %1336 = vrot.lane.b32.xlu0 %v667, 72
      %v1337 = vpop.permute.xlu0 %1336
      %1338 = vrot.lane.b32.xlu0 %v670, 72
      %v1339 = vpop.permute.xlu0 %1338
      %1340 = vrot.lane.b32.xlu0 %v673, 72
      %v1341 = vpop.permute.xlu0 %1340
      %v1342 = vsel %vm687, %v1327, 0
      %v1344 = vsel %vm687, %v1329, 0
      %v1346 = vsel %vm687, %v1331, 0
      %v1348 = vsel %vm687, %v1333, 0
      %v1350 = vsel %vm687, %v1335, 0
      %v1352 = vsel %vm687, %v1337, 0
      %v1354 = vsel %vm687, %v1339, 0
      %v1356 = vsel %vm687, %v1341, 0
      %1358 = vmatpush.xpose.msra.mxu0 0.0
      %1359 = vmatpush.xpose.msra.mxu0 0.0
      %1360 = vmatpush.xpose.msra.mxu0 0.0
      %1361 = vmatpush.xpose.msra.mxu0 0.0
      %1362 = vmatpush.xpose.msra.mxu0 0.0
      %1363 = vmatpush.xpose.msra.mxu0 0.0
      %1364 = vmatpush.xpose.msra.mxu0 0.0
      %1365 = vmatpush.xpose.msra.mxu0 0.0
      %1366 = vmatpush.xpose.msra.mxu0 0.0
      %1367 = vmatpush.xpose.msra.mxu0 0.0
      %1368 = vmatpush.xpose.msra.mxu0 0.0
      %1369 = vmatpush.xpose.msra.mxu0 0.0
      %1370 = vmatpush.xpose.msra.mxu0 %v1356
      %1371 = vmatpush.xpose.msra.mxu0 %v1354
      %1372 = vmatpush.xpose.msra.mxu0 %v1352
      %1373 = vmatpush.xpose.msra.mxu0 %v1350
      %1374 = vmatmul.f32.gmra.mxu0 %v1342
      %v1375 = vpop.f32.mrf.mxu0
      %v1376 = vadd.f32 0.0, %v1375
      %1377 = vmatmul.f32.gmra.mxu0 %v1344
      %v1378 = vpop.f32.mrf.mxu0
      %v1379 = vadd.f32 0.0, %v1378
      %1380 = vmatmul.f32.gmra.mxu0 %v1346
      %v1381 = vpop.f32.mrf.mxu0
      %v1382 = vadd.f32 0.0, %v1381
      %1383 = vmatmul.f32.gmra.mxu0 %v1348
      %v1384 = vpop.f32.mrf.mxu0
      %v1385 = vadd.f32 0.0, %v1384
      %1386 = vdwg.mxu0
      %v1387 = vmul.f32 %v1376, 0.35355338
      %v1388 = vmul.f32 %v1379, 0.35355338
      %v1389 = vmul.f32 %v1382, 0.35355338
      %v1390 = vmul.f32 %v1385, 0.35355338
      %v1391 = vadd.f32 %v1387, %v623
      %v1392 = vadd.f32 %v1388, %v624
      %v1393 = vadd.f32 %v1389, %v625
      %v1394 = vadd.f32 %v1390, %v626
      %v1395 = vsel %vm633, %v1391, -inf
      %1396 = vmax.xlane.f32.xlu0 %v1395
      %v1397 = vpop.xlane.xlu0 %1396
      %v1398 = vsel %vm633, %v1392, -inf
      %1399 = vmax.xlane.f32.xlu0 %v1398
      %v1400 = vpop.xlane.xlu0 %1399
      %v1401 = vsel %vm633, %v1393, -inf
      %1402 = vmax.xlane.f32.xlu0 %v1401
      %v1403 = vpop.xlane.xlu0 %1402
      %v1404 = vsel %vm633, %v1394, -inf
      %1405 = vmax.xlane.f32.xlu0 %v1404
      %v1406 = vpop.xlane.xlu0 %1405
      %v1407 = vsub.f32 %v1391, %v1397
      %v1408 = vsub.f32 %v1392, %v1400
      %v1409 = vsub.f32 %v1393, %v1403
      %v1410 = vsub.f32 %v1394, %v1406
      %v1411 = vmul.f32 %v1407, 1.442695
      %v1412 = vpow.pop %v1411
      %v1413 = vmul.f32 %v1408, 1.442695
      %v1414 = vpow.pop %v1413
      %v1415 = vmul.f32 %v1409, 1.442695
      %v1416 = vpow.pop %v1415
      %v1417 = vmul.f32 %v1410, 1.442695
      %v1418 = vpow.pop %v1417
      %v1419 = vsel %vm633, %v1412, 0.0
      %1420 = vadd.xlane.f32.xlu0 %v1419
      %v1421 = vpop.xlane.xlu0 %1420
      %v1422 = vsel %vm633, %v1414, 0.0
      %1423 = vadd.xlane.f32.xlu0 %v1422
      %v1424 = vpop.xlane.xlu0 %1423
      %v1425 = vsel %vm633, %v1416, 0.0
      %1426 = vadd.xlane.f32.xlu0 %v1425
      %v1427 = vpop.xlane.xlu0 %1426
      %v1428 = vsel %vm633, %v1418, 0.0
      %1429 = vadd.xlane.f32.xlu0 %v1428
      %v1430 = vpop.xlane.xlu0 %1429
      %v1431 = vrcp.pop %v1421
      %v1432 = vmul.f32 %v1421, %v1431
      %v1433 = vsub.f32 1.0, %v1432
      %v1434 = vmul.f32 %v1431, %v1433
      %v1435 = vadd.f32 %v1431, %v1434
      %vm1436 = vweird.f32 %v1421
      %vm1437 = vweird.f32 %v1431
      %vm1438 = vmor %vm1436, %vm1437
      %v1439 = vsel %vm1438, %v1431, %v1435
      %v1440 = vand.u32 2147483647, %v1421
      %vm1441 = vcmp.eq.f32.partialorder %v1440, 8.507059e+37
      %v1442 = vand.u32 %v1421, 2147483648
      %v1443 = vor.u32 1.1754944e-38, %v1442
      %v1444 = vsel %vm1441, %v1443, %v1439
      %v1445 = vmul.f32 %v1412, %v1444
      %v1446 = vrcp.pop %v1424
      %v1447 = vmul.f32 %v1424, %v1446
      %v1448 = vsub.f32 1.0, %v1447
      %v1449 = vmul.f32 %v1446, %v1448
      %v1450 = vadd.f32 %v1446, %v1449
      %vm1451 = vweird.f32 %v1424
      %vm1452 = vweird.f32 %v1446
      %vm1453 = vmor %vm1451, %vm1452
      %v1454 = vsel %vm1453, %v1446, %v1450
      %v1455 = vand.u32 2147483647, %v1424
      %vm1456 = vcmp.eq.f32.partialorder %v1455, 8.507059e+37
      %v1457 = vand.u32 %v1424, 2147483648
      %v1458 = vor.u32 1.1754944e-38, %v1457
      %v1459 = vsel %vm1456, %v1458, %v1454
      %v1460 = vmul.f32 %v1414, %v1459
      %v1461 = vrcp.pop %v1427
      %v1462 = vmul.f32 %v1427, %v1461
      %v1463 = vsub.f32 1.0, %v1462
      %v1464 = vmul.f32 %v1461, %v1463
      %v1465 = vadd.f32 %v1461, %v1464
      %vm1466 = vweird.f32 %v1427
      %vm1467 = vweird.f32 %v1461
      %vm1468 = vmor %vm1466, %vm1467
      %v1469 = vsel %vm1468, %v1461, %v1465
      %v1470 = vand.u32 2147483647, %v1427
      %vm1471 = vcmp.eq.f32.partialorder %v1470, 8.507059e+37
      %v1472 = vand.u32 %v1427, 2147483648
      %v1473 = vor.u32 1.1754944e-38, %v1472
      %v1474 = vsel %vm1471, %v1473, %v1469
      %v1475 = vmul.f32 %v1416, %v1474
      %v1476 = vrcp.pop %v1430
      %v1477 = vmul.f32 %v1430, %v1476
      %v1478 = vsub.f32 1.0, %v1477
      %v1479 = vmul.f32 %v1476, %v1478
      %v1480 = vadd.f32 %v1476, %v1479
      %vm1481 = vweird.f32 %v1430
      %vm1482 = vweird.f32 %v1476
      %vm1483 = vmor %vm1481, %vm1482
      %v1484 = vsel %vm1483, %v1476, %v1480
      %v1485 = vand.u32 2147483647, %v1430
      %vm1486 = vcmp.eq.f32.partialorder %v1485, 8.507059e+37
      %v1487 = vand.u32 %v1430, 2147483648
      %v1488 = vor.u32 1.1754944e-38, %v1487
      %v1489 = vsel %vm1486, %v1488, %v1484
      %v1490 = vmul.f32 %v1418, %v1489
      %1491 = vrot.lane.b32.xlu0 %v664, 40
      %v1492 = vpop.permute.xlu0 %1491
      %1493 = vrot.lane.b32.xlu0 %v667, 40
      %v1494 = vpop.permute.xlu0 %1493
      %1495 = vrot.lane.b32.xlu0 %v670, 40
      %v1496 = vpop.permute.xlu0 %1495
      %1497 = vrot.lane.b32.xlu0 %v673, 40
      %v1498 = vpop.permute.xlu0 %1497
      %v1504 = vsel %vm633, %v1445, 0
      %v1507 = vsel %vm633, %v1460, 0
      %v1510 = vsel %vm633, %v1475, 0
      %v1513 = vsel %vm633, %v1490, 0
      %1515 = vmatpush.msra.mxu0 0.0
      %1516 = vmatpush.msra.mxu0 0.0
      %1517 = vmatpush.msra.mxu0 0.0
      %1518 = vmatpush.msra.mxu0 0.0
      %1519 = vmatpush.msra.mxu0 0.0
      %1520 = vmatpush.msra.mxu0 0.0
      %1521 = vmatpush.msra.mxu0 0.0
      %1522 = vmatpush.msra.mxu0 0.0
      %1523 = vmatpush.msra.mxu0 0.0
      %1524 = vmatpush.msra.mxu0 0.0
      %1525 = vmatpush.msra.mxu0 0.0
      %1526 = vmatpush.msra.mxu0 0.0
      %1527 = vmatpush.msra.mxu0 %v1498
      %1528 = vmatpush.msra.mxu0 %v1496
      %1529 = vmatpush.msra.mxu0 %v1494
      %1530 = vmatpush.msra.mxu0 %v1492
      %1531 = vmatmul.f32.gmra.mxu0 %v1504
      %v1532 = vpop.f32.mrf.mxu0
      %v1533 = vadd.f32 0.0, %v1532
      %1534 = vmatmul.f32.gmra.mxu0 %v1507
      %v1535 = vpop.f32.mrf.mxu0
      %v1536 = vadd.f32 0.0, %v1535
      %1537 = vmatmul.f32.gmra.mxu0 %v1510
      %v1538 = vpop.f32.mrf.mxu0
      %v1539 = vadd.f32 0.0, %v1538
      %1540 = vmatmul.f32.gmra.mxu0 %v1513
      %v1541 = vpop.f32.mrf.mxu0
      %v1542 = vadd.f32 0.0, %v1541
      %1543 = vdwg.mxu0
      %1548 = vrot.lane.b32.xlu0 %v1097, 8
      %v1549 = vpop.permute.xlu0 %1548
      %1550 = vrot.lane.b32.xlu0 %v1100, 8
      %v1551 = vpop.permute.xlu0 %1550
      %1552 = vrot.lane.b32.xlu0 %v1103, 8
      %v1553 = vpop.permute.xlu0 %1552
      %1554 = vrot.lane.b32.xlu0 %v1106, 8
      %v1555 = vpop.permute.xlu0 %1554
      %1564 = vrot.lane.b32.xlu0 %v1315, 16
      %v1565 = vpop.permute.xlu0 %1564
      %1566 = vrot.lane.b32.xlu0 %v1318, 16
      %v1567 = vpop.permute.xlu0 %1566
      %1568 = vrot.lane.b32.xlu0 %v1321, 16
      %v1569 = vpop.permute.xlu0 %1568
      %1570 = vrot.lane.b32.xlu0 %v1324, 16
      %v1571 = vpop.permute.xlu0 %1570
      %1580 = vrot.lane.b32.xlu0 %v1533, 24
      %v1581 = vpop.permute.xlu0 %1580
      %1582 = vrot.lane.b32.xlu0 %v1536, 24
      %v1583 = vpop.permute.xlu0 %1582
      %1584 = vrot.lane.b32.xlu0 %v1539, 24
      %v1585 = vpop.permute.xlu0 %1584
      %1586 = vrot.lane.b32.xlu0 %v1542, 24
      %v1587 = vpop.permute.xlu0 %1586
      %v1592 = vsel %vm687, %v879, %v1549
      %v1593 = vsel %vm687, %v882, %v1551
      %v1594 = vsel %vm687, %v885, %v1553
      %v1595 = vsel %vm687, %v888, %v1555
      %vm1596 = vcmask 130048
      %v1597 = vsel %vm1596, %v1592, %v1565
      %v1598 = vsel %vm1596, %v1593, %v1567
      %v1599 = vsel %vm1596, %v1594, %v1569
      %v1600 = vsel %vm1596, %v1595, %v1571
      %vm1601 = vcmask 195584
      %v1602 = vsel %vm1601, %v1597, %v1581
      %v1603 = vsel %vm1601, %v1598, %v1583
      %v1604 = vsel %vm1601, %v1599, %v1585
      %v1605 = vsel %vm1601, %v1600, %v1587
      %v1606 = vperm.slane %v627, 1
      %1611 = vrot.lane.b32.xlu0 %v628, 32
      %v1612 = vpop.permute.xlu0 %1611
      %1613 = vrot.lane.b32.xlu0 %v629, 32
      %v1614 = vpop.permute.xlu0 %1613
      %1615 = vrot.lane.b32.xlu0 %v630, 32
      %v1616 = vpop.permute.xlu0 %1615
      %1617 = vrot.lane.b32.xlu0 %v631, 32
      %v1618 = vpop.permute.xlu0 %1617
      %v1624 = vsel %vm633, %v1602, 0
      %v1627 = vsel %vm633, %v1603, 0
      %v1630 = vsel %vm633, %v1604, 0
      %v1633 = vsel %vm633, %v1605, 0
      %1635 = vmatpush.msra.mxu0 0.0
      %1636 = vmatpush.msra.mxu0 0.0
      %1637 = vmatpush.msra.mxu0 0.0
      %1638 = vmatpush.msra.mxu0 0.0
      %1639 = vmatpush.msra.mxu0 0.0
      %1640 = vmatpush.msra.mxu0 0.0
      %1641 = vmatpush.msra.mxu0 0.0
      %1642 = vmatpush.msra.mxu0 0.0
      %1643 = vmatpush.msra.mxu0 0.0
      %1644 = vmatpush.msra.mxu0 0.0
      %1645 = vmatpush.msra.mxu0 0.0
      %1646 = vmatpush.msra.mxu0 0.0
      %1647 = vmatpush.msra.mxu0 %v1618
      %1648 = vmatpush.msra.mxu0 %v1616
      %1649 = vmatpush.msra.mxu0 %v1614
      %1650 = vmatpush.msra.mxu0 %v1612
      %1651 = vmatmul.f32.gmra.mxu0 %v1624
      %v1652 = vpop.f32.mrf.mxu0
      %v1653 = vadd.f32 %v1606, %v1652
      %1654 = vmatmul.f32.gmra.mxu0 %v1627
      %v1655 = vpop.f32.mrf.mxu0
      %v1656 = vadd.f32 %v1606, %v1655
      %1657 = vmatmul.f32.gmra.mxu0 %v1630
      %v1658 = vpop.f32.mrf.mxu0
      %v1659 = vadd.f32 %v1606, %v1658
      %1660 = vmatmul.f32.gmra.mxu0 %v1633
      %v1661 = vpop.f32.mrf.mxu0
      %v1662 = vadd.f32 %v1606, %v1661
      %1663 = vdwg.mxu0
      %v1664 = vadd.f32 %v619, %v1653
      %v1665 = vadd.f32 %v620, %v1656
      %v1666 = vadd.f32 %v621, %v1659
      %v1667 = vadd.f32 %v622, %v1662
      %v1668 = vsel %vm633, %v1664, 0.0
      %1669 = vadd.xlane.f32.xlu0 %v1668
      %v1670 = vpop.xlane.xlu0 %1669
      %v1671 = vsel %vm633, %v1665, 0.0
      %1672 = vadd.xlane.f32.xlu0 %v1671
      %v1673 = vpop.xlane.xlu0 %1672
      %v1674 = vsel %vm633, %v1666, 0.0
      %1675 = vadd.xlane.f32.xlu0 %v1674
      %v1676 = vpop.xlane.xlu0 %1675
      %v1677 = vsel %vm633, %v1667, 0.0
      %1678 = vadd.xlane.f32.xlu0 %v1677
      %v1679 = vpop.xlane.xlu0 %1678
      %v1680 = vrcp.pop 32.0
      %v1681 = vmul.f32 32.0, %v1680
      %v1682 = vsub.f32 1.0, %v1681
      %v1683 = vmul.f32 %v1680, %v1682
      %v1684 = vadd.f32 %v1680, %v1683
      %vm1685 = vweird.f32 %v1680
      %v1686 = vsel %vm1685, %v1680, %v1684
      %v1687 = vmul.f32 %v1670, %v1686
      %v1688 = vmul.f32 %v1673, %v1686
      %v1689 = vmul.f32 %v1676, %v1686
      %v1690 = vmul.f32 %v1679, %v1686
      %v1691 = vsub.f32 %v1664, %v1687
      %v1692 = vsub.f32 %v1665, %v1688
      %v1693 = vsub.f32 %v1666, %v1689
      %v1694 = vsub.f32 %v1667, %v1690
      %v1695 = vmul.f32 %v1691, %v1691
      %v1696 = vmul.f32 %v1692, %v1692
      %v1697 = vmul.f32 %v1693, %v1693
      %v1698 = vmul.f32 %v1694, %v1694
      %v1699 = vsel %vm633, %v1695, 0.0
      %1700 = vadd.xlane.f32.xlu0 %v1699
      %v1701 = vpop.xlane.xlu0 %1700
      %v1702 = vsel %vm633, %v1696, 0.0
      %1703 = vadd.xlane.f32.xlu0 %v1702
      %v1704 = vpop.xlane.xlu0 %1703
      %v1705 = vsel %vm633, %v1697, 0.0
      %1706 = vadd.xlane.f32.xlu0 %v1705
      %v1707 = vpop.xlane.xlu0 %1706
      %v1708 = vsel %vm633, %v1698, 0.0
      %1709 = vadd.xlane.f32.xlu0 %v1708
      %v1710 = vpop.xlane.xlu0 %1709
      %v1711 = vmul.f32 %v1701, %v1686
      %v1712 = vmul.f32 %v1704, %v1686
      %v1713 = vmul.f32 %v1707, %v1686
      %v1714 = vmul.f32 %v1710, %v1686
      %v1715 = vadd.f32 %v1711, 1e-05
      %v1716 = vadd.f32 %v1712, 1e-05
      %v1717 = vadd.f32 %v1713, 1e-05
      %v1718 = vadd.f32 %v1714, 1e-05
      %v1719 = vrsqrt.pop %v1715
      %v1720 = vmul.f32 %v1719, %v1715
      %v1721 = vmul.f32 %v1720, %v1719
      %v1722 = vmul.f32 0.5, %v1721
      %v1723 = vsub.f32 1.5, %v1722
      %v1724 = vmul.f32 %v1719, %v1723
      %vm1725 = vweird.f32 %v1715
      %vm1726 = vweird.f32 %v1719
      %vm1727 = vmor %vm1725, %vm1726
      %v1728 = vsel %vm1727, %v1719, %v1724
      %v1729 = vrsqrt.pop %v1716
      %v1730 = vmul.f32 %v1729, %v1716
      %v1731 = vmul.f32 %v1730, %v1729
      %v1732 = vmul.f32 0.5, %v1731
      %v1733 = vsub.f32 1.5, %v1732
      %v1734 = vmul.f32 %v1729, %v1733
      %vm1735 = vweird.f32 %v1716
      %vm1736 = vweird.f32 %v1729
      %vm1737 = vmor %vm1735, %vm1736
      %v1738 = vsel %vm1737, %v1729, %v1734
      %v1739 = vrsqrt.pop %v1717
      %v1740 = vmul.f32 %v1739, %v1717
      %v1741 = vmul.f32 %v1740, %v1739
      %v1742 = vmul.f32 0.5, %v1741
      %v1743 = vsub.f32 1.5, %v1742
      %v1744 = vmul.f32 %v1739, %v1743
      %vm1745 = vweird.f32 %v1717
      %vm1746 = vweird.f32 %v1739
      %vm1747 = vmor %vm1745, %vm1746
      %v1748 = vsel %vm1747, %v1739, %v1744
      %v1749 = vrsqrt.pop %v1718
      %v1750 = vmul.f32 %v1749, %v1718
      %v1751 = vmul.f32 %v1750, %v1749
      %v1752 = vmul.f32 0.5, %v1751
      %v1753 = vsub.f32 1.5, %v1752
      %v1754 = vmul.f32 %v1749, %v1753
      %vm1755 = vweird.f32 %v1718
      %vm1756 = vweird.f32 %v1749
      %vm1757 = vmor %vm1755, %vm1756
      %v1758 = vsel %vm1757, %v1749, %v1754
      %v1759 = vmul.f32 %v1691, %v1728
      %v1760 = vmul.f32 %v1692, %v1738
      %v1761 = vmul.f32 %v1693, %v1748
      %v1762 = vmul.f32 %v1694, %v1758
      %v1763 = vperm.slane %v627, 4
      %v1764 = vmul.f32 %v1759, %v1763
      %v1765 = vmul.f32 %v1760, %v1763
      %v1766 = vmul.f32 %v1761, %v1763
      %v1767 = vmul.f32 %v1762, %v1763
      %v1768 = vperm.slane %v627, 5
      %v1769 = vadd.f32 %v1764, %v1768
      %v1770 = vadd.f32 %v1765, %v1768
      %v1771 = vadd.f32 %v1766, %v1768
      %v1772 = vadd.f32 %v1767, %v1768
      %v1773 = vld [vmem:[%s6 + $0x8] sm:$0xff]
      %v1774 = vld [vmem:[%s6 + $0x18] sm:$0xff]
      %v1775 = vld [vmem:[%s6 + $0x28] sm:$0xff]
      %v1776 = vld [vmem:[%s6 + $0x38] sm:$0xff]
      %v1777 = vperm.slane %v627, 2
      %v1779 = vsel %vm633, %v1769, 0
      %v1782 = vsel %vm633, %v1770, 0
      %v1785 = vsel %vm633, %v1771, 0
      %v1788 = vsel %vm633, %v1772, 0
      %1790 = vmatpush.msra.mxu0 0.0
      %1791 = vmatpush.msra.mxu0 0.0
      %1792 = vmatpush.msra.mxu0 0.0
      %1793 = vmatpush.msra.mxu0 0.0
      %1794 = vmatpush.msra.mxu0 0.0
      %1795 = vmatpush.msra.mxu0 0.0
      %1796 = vmatpush.msra.mxu0 0.0
      %1797 = vmatpush.msra.mxu0 0.0
      %1798 = vmatpush.msra.mxu0 0.0
      %1799 = vmatpush.msra.mxu0 0.0
      %1800 = vmatpush.msra.mxu0 0.0
      %1801 = vmatpush.msra.mxu0 0.0
      %1802 = vmatpush.msra.mxu0 %v1776
      %1803 = vmatpush.msra.mxu0 %v1775
      %1804 = vmatpush.msra.mxu0 %v1774
      %1805 = vmatpush.msra.mxu0 %v1773
      %1806 = vmatmul.f32.gmra.mxu0 %v1779
      %v1807 = vpop.f32.mrf.mxu0
      %v1808 = vadd.f32 %v1777, %v1807
      %1809 = vmatmul.f32.gmra.mxu0 %v1782
      %v1810 = vpop.f32.mrf.mxu0
      %v1811 = vadd.f32 %v1777, %v1810
      %1812 = vmatmul.f32.gmra.mxu0 %v1785
      %v1813 = vpop.f32.mrf.mxu0
      %v1814 = vadd.f32 %v1777, %v1813
      %1815 = vmatmul.f32.gmra.mxu0 %v1788
      %v1816 = vpop.f32.mrf.mxu0
      %v1817 = vadd.f32 %v1777, %v1816
      %1818 = vdwg.mxu0
      %v1819 = vmul.f32 %v1808, 0.5
      %v1820 = vmul.f32 %v1811, 0.5
      %v1821 = vmul.f32 %v1814, 0.5
      %v1822 = vmul.f32 %v1817, 0.5
      %v1823 = vmul.f32 %v1808, 0.70710677
      %v1824 = vmul.f32 %v1811, 0.70710677
      %v1825 = vmul.f32 %v1814, 0.70710677
      %v1826 = vmul.f32 %v1817, 0.70710677
      %v1827 = vmul.f32 %v1823, %v1823
      %v1828 = vmin.f32 16.0, %v1827
      %v1829 = vmul.f32 %v1828, 2.1237322e-06
      %v1830 = vadd.f32 %v1829, 0.00028619796
      %v1831 = vmul.f32 %v1828, %v1830
      %v1832 = vadd.f32 %v1831, 0.0036580483
      %v1833 = vmul.f32 %v1828, %v1832
      %v1834 = vadd.f32 %v1833, 0.05243302
      %v1835 = vmul.f32 %v1828, %v1834
      %v1836 = vadd.f32 %v1835, 0.18741608
      %v1837 = vmul.f32 %v1828, %v1836
      %v1838 = vadd.f32 %v1837, 1.1283791
      %v1839 = vmul.f32 %v1823, %v1838
      %v1840 = vmul.f32 %v1828, 3.8918573e-05
      %v1841 = vadd.f32 %v1840, 0.001143296
      %v1842 = vmul.f32 %v1828, %v1841
      %v1843 = vadd.f32 %v1842, 0.014752088
      %v1844 = vmul.f32 %v1828, %v1843
      %v1845 = vadd.f32 %v1844, 0.112945676
      %v1846 = vmul.f32 %v1828, %v1845
      %v1847 = vadd.f32 %v1846, 0.4994258
      %v1848 = vmul.f32 %v1828, %v1847
      %v1849 = vadd.f32 %v1848, 1.0
      %v1850 = vrcp.pop %v1849
      %v1851 = vmul.f32 %v1849, %v1850
      %v1852 = vsub.f32 1.0, %v1851
      %v1853 = vmul.f32 %v1850, %v1852
      %v1854 = vadd.f32 %v1850, %v1853
      %vm1855 = vweird.f32 %v1849
      %vm1856 = vweird.f32 %v1850
      %vm1857 = vmor %vm1855, %vm1856
      %v1858 = vsel %vm1857, %v1850, %v1854
      %v1859 = vand.u32 2147483647, %v1849
      %vm1860 = vcmp.eq.f32.partialorder %v1859, 8.507059e+37
      %v1861 = vand.u32 %v1849, 2147483648
      %v1862 = vor.u32 1.1754944e-38, %v1861
      %v1863 = vsel %vm1860, %v1862, %v1858
      %v1864 = vmul.f32 %v1839, %v1863
      %v1865 = vmin.f32 %v1864, 1.0
      %v1866 = vmax.f32 %v1865, -1.0
      %v1867 = vmul.f32 %v1824, %v1824
      %v1868 = vmin.f32 16.0, %v1867
      %v1869 = vmul.f32 %v1868, 2.1237322e-06
      %v1870 = vadd.f32 %v1869, 0.00028619796
      %v1871 = vmul.f32 %v1868, %v1870
      %v1872 = vadd.f32 %v1871, 0.0036580483
      %v1873 = vmul.f32 %v1868, %v1872
      %v1874 = vadd.f32 %v1873, 0.05243302
      %v1875 = vmul.f32 %v1868, %v1874
      %v1876 = vadd.f32 %v1875, 0.18741608
      %v1877 = vmul.f32 %v1868, %v1876
      %v1878 = vadd.f32 %v1877, 1.1283791
      %v1879 = vmul.f32 %v1824, %v1878
      %v1880 = vmul.f32 %v1868, 3.8918573e-05
      %v1881 = vadd.f32 %v1880, 0.001143296
      %v1882 = vmul.f32 %v1868, %v1881
      %v1883 = vadd.f32 %v1882, 0.014752088
      %v1884 = vmul.f32 %v1868, %v1883
      %v1885 = vadd.f32 %v1884, 0.112945676
      %v1886 = vmul.f32 %v1868, %v1885
      %v1887 = vadd.f32 %v1886, 0.4994258
      %v1888 = vmul.f32 %v1868, %v1887
      %v1889 = vadd.f32 %v1888, 1.0
      %v1890 = vrcp.pop %v1889
      %v1891 = vmul.f32 %v1889, %v1890
      %v1892 = vsub.f32 1.0, %v1891
      %v1893 = vmul.f32 %v1890, %v1892
      %v1894 = vadd.f32 %v1890, %v1893
      %vm1895 = vweird.f32 %v1889
      %vm1896 = vweird.f32 %v1890
      %vm1897 = vmor %vm1895, %vm1896
      %v1898 = vsel %vm1897, %v1890, %v1894
      %v1899 = vand.u32 2147483647, %v1889
      %vm1900 = vcmp.eq.f32.partialorder %v1899, 8.507059e+37
      %v1901 = vand.u32 %v1889, 2147483648
      %v1902 = vor.u32 1.1754944e-38, %v1901
      %v1903 = vsel %vm1900, %v1902, %v1898
      %v1904 = vmul.f32 %v1879, %v1903
      %v1905 = vmin.f32 %v1904, 1.0
      %v1906 = vmax.f32 %v1905, -1.0
      %v1907 = vmul.f32 %v1825, %v1825
      %v1908 = vmin.f32 16.0, %v1907
      %v1909 = vmul.f32 %v1908, 2.1237322e-06
      %v1910 = vadd.f32 %v1909, 0.00028619796
      %v1911 = vmul.f32 %v1908, %v1910
      %v1912 = vadd.f32 %v1911, 0.0036580483
      %v1913 = vmul.f32 %v1908, %v1912
      %v1914 = vadd.f32 %v1913, 0.05243302
      %v1915 = vmul.f32 %v1908, %v1914
      %v1916 = vadd.f32 %v1915, 0.18741608
      %v1917 = vmul.f32 %v1908, %v1916
      %v1918 = vadd.f32 %v1917, 1.1283791
      %v1919 = vmul.f32 %v1825, %v1918
      %v1920 = vmul.f32 %v1908, 3.8918573e-05
      %v1921 = vadd.f32 %v1920, 0.001143296
      %v1922 = vmul.f32 %v1908, %v1921
      %v1923 = vadd.f32 %v1922, 0.014752088
      %v1924 = vmul.f32 %v1908, %v1923
      %v1925 = vadd.f32 %v1924, 0.112945676
      %v1926 = vmul.f32 %v1908, %v1925
      %v1927 = vadd.f32 %v1926, 0.4994258
      %v1928 = vmul.f32 %v1908, %v1927
      %v1929 = vadd.f32 %v1928, 1.0
      %v1930 = vrcp.pop %v1929
      %v1931 = vmul.f32 %v1929, %v1930
      %v1932 = vsub.f32 1.0, %v1931
      %v1933 = vmul.f32 %v1930, %v1932
      %v1934 = vadd.f32 %v1930, %v1933
      %vm1935 = vweird.f32 %v1929
      %vm1936 = vweird.f32 %v1930
      %vm1937 = vmor %vm1935, %vm1936
      %v1938 = vsel %vm1937, %v1930, %v1934
      %v1939 = vand.u32 2147483647, %v1929
      %vm1940 = vcmp.eq.f32.partialorder %v1939, 8.507059e+37
      %v1941 = vand.u32 %v1929, 2147483648
      %v1942 = vor.u32 1.1754944e-38, %v1941
      %v1943 = vsel %vm1940, %v1942, %v1938
      %v1944 = vmul.f32 %v1919, %v1943
      %v1945 = vmin.f32 %v1944, 1.0
      %v1946 = vmax.f32 %v1945, -1.0
      %v1947 = vmul.f32 %v1826, %v1826
      %v1948 = vmin.f32 16.0, %v1947
      %v1949 = vmul.f32 %v1948, 2.1237322e-06
      %v1950 = vadd.f32 %v1949, 0.00028619796
      %v1951 = vmul.f32 %v1948, %v1950
      %v1952 = vadd.f32 %v1951, 0.0036580483
      %v1953 = vmul.f32 %v1948, %v1952
      %v1954 = vadd.f32 %v1953, 0.05243302
      %v1955 = vmul.f32 %v1948, %v1954
      %v1956 = vadd.f32 %v1955, 0.18741608
      %v1957 = vmul.f32 %v1948, %v1956
      %v1958 = vadd.f32 %v1957, 1.1283791
      %v1959 = vmul.f32 %v1826, %v1958
      %v1960 = vmul.f32 %v1948, 3.8918573e-05
      %v1961 = vadd.f32 %v1960, 0.001143296
      %v1962 = vmul.f32 %v1948, %v1961
      %v1963 = vadd.f32 %v1962, 0.014752088
      %v1964 = vmul.f32 %v1948, %v1963
      %v1965 = vadd.f32 %v1964, 0.112945676
      %v1966 = vmul.f32 %v1948, %v1965
      %v1967 = vadd.f32 %v1966, 0.4994258
      %v1968 = vmul.f32 %v1948, %v1967
      %v1969 = vadd.f32 %v1968, 1.0
      %v1970 = vrcp.pop %v1969
      %v1971 = vmul.f32 %v1969, %v1970
      %v1972 = vsub.f32 1.0, %v1971
      %v1973 = vmul.f32 %v1970, %v1972
      %v1974 = vadd.f32 %v1970, %v1973
      %vm1975 = vweird.f32 %v1969
      %vm1976 = vweird.f32 %v1970
      %vm1977 = vmor %vm1975, %vm1976
      %v1978 = vsel %vm1977, %v1970, %v1974
      %v1979 = vand.u32 2147483647, %v1969
      %vm1980 = vcmp.eq.f32.partialorder %v1979, 8.507059e+37
      %v1981 = vand.u32 %v1969, 2147483648
      %v1982 = vor.u32 1.1754944e-38, %v1981
      %v1983 = vsel %vm1980, %v1982, %v1978
      %v1984 = vmul.f32 %v1959, %v1983
      %v1985 = vmin.f32 %v1984, 1.0
      %v1986 = vmax.f32 %v1985, -1.0
      %v1987 = vadd.f32 %v1866, 1.0
      %v1988 = vadd.f32 %v1906, 1.0
      %v1989 = vadd.f32 %v1946, 1.0
      %v1990 = vadd.f32 %v1986, 1.0
      %v1991 = vmul.f32 %v1819, %v1987
      %v1992 = vmul.f32 %v1820, %v1988
      %v1993 = vmul.f32 %v1821, %v1989
      %v1994 = vmul.f32 %v1822, %v1990
      %v1995 = vld [vmem:[%s7] sm:$0xff]
      %v1996 = vld [vmem:[%s7 + $0x8] sm:$0xff]
      %v1997 = vld [vmem:[%s7 + $0x10] sm:$0xff]
      %v1998 = vld [vmem:[%s7 + $0x18] sm:$0xff]
      %v1999 = vld [vmem:[%s7 + $0x20] sm:$0xff]
      %v2000 = vld [vmem:[%s7 + $0x28] sm:$0xff]
      %v2001 = vld [vmem:[%s7 + $0x30] sm:$0xff]
      %v2002 = vld [vmem:[%s7 + $0x38] sm:$0xff]
      %v2003 = vperm.slane %v627, 3
      %vm2004 = vcmask 523264
      %v2006 = vsel %vm2004, %v1991, 0
      %v2009 = vsel %vm2004, %v1992, 0
      %v2012 = vsel %vm2004, %v1993, 0
      %v2015 = vsel %vm2004, %v1994, 0
      %2017 = vmatpush.msra.mxu0 0.0
      %2018 = vmatpush.msra.mxu0 0.0
      %2019 = vmatpush.msra.mxu0 0.0
      %2020 = vmatpush.msra.mxu0 0.0
      %2021 = vmatpush.msra.mxu0 0.0
      %2022 = vmatpush.msra.mxu0 0.0
      %2023 = vmatpush.msra.mxu0 0.0
      %2024 = vmatpush.msra.mxu0 0.0
      %2025 = vmatpush.msra.mxu0 %v2002
      %2026 = vmatpush.msra.mxu0 %v2001
      %2027 = vmatpush.msra.mxu0 %v2000
      %2028 = vmatpush.msra.mxu0 %v1999
      %2029 = vmatpush.msra.mxu0 %v1998
      %2030 = vmatpush.msra.mxu0 %v1997
      %2031 = vmatpush.msra.mxu0 %v1996
      %2032 = vmatpush.msra.mxu0 %v1995
      %2033 = vmatmul.f32.gmra.mxu0 %v2006
      %v2034 = vpop.f32.mrf.mxu0
      %v2035 = vadd.f32 %v2003, %v2034
      %2036 = vmatmul.f32.gmra.mxu0 %v2009
      %v2037 = vpop.f32.mrf.mxu0
      %v2038 = vadd.f32 %v2003, %v2037
      %2039 = vmatmul.f32.gmra.mxu0 %v2012
      %v2040 = vpop.f32.mrf.mxu0
      %v2041 = vadd.f32 %v2003, %v2040
      %2042 = vmatmul.f32.gmra.mxu0 %v2015
      %v2043 = vpop.f32.mrf.mxu0
      %v2044 = vadd.f32 %v2003, %v2043
      %2045 = vdwg.mxu0
      %v2046 = vadd.f32 %v1769, %v2035
      %v2047 = vadd.f32 %v1770, %v2038
      %v2048 = vadd.f32 %v1771, %v2041
      %v2049 = vadd.f32 %v1772, %v2044
      %v2050 = vsel %vm633, %v2046, 0.0
      %2051 = vadd.xlane.f32.xlu0 %v2050
      %v2052 = vpop.xlane.xlu0 %2051
      %v2053 = vsel %vm633, %v2047, 0.0
      %2054 = vadd.xlane.f32.xlu0 %v2053
      %v2055 = vpop.xlane.xlu0 %2054
      %v2056 = vsel %vm633, %v2048, 0.0
      %2057 = vadd.xlane.f32.xlu0 %v2056
      %v2058 = vpop.xlane.xlu0 %2057
      %v2059 = vsel %vm633, %v2049, 0.0
      %2060 = vadd.xlane.f32.xlu0 %v2059
      %v2061 = vpop.xlane.xlu0 %2060
      %v2062 = vmul.f32 %v2052, %v1686
      %v2063 = vmul.f32 %v2055, %v1686
      %v2064 = vmul.f32 %v2058, %v1686
      %v2065 = vmul.f32 %v2061, %v1686
      %v2066 = vsub.f32 %v2046, %v2062
      %v2067 = vsub.f32 %v2047, %v2063
      %v2068 = vsub.f32 %v2048, %v2064
      %v2069 = vsub.f32 %v2049, %v2065
      %v2070 = vmul.f32 %v2066, %v2066
      %v2071 = vmul.f32 %v2067, %v2067
      %v2072 = vmul.f32 %v2068, %v2068
      %v2073 = vmul.f32 %v2069, %v2069
      %v2074 = vsel %vm633, %v2070, 0.0
      %2075 = vadd.xlane.f32.xlu0 %v2074
      %v2076 = vpop.xlane.xlu0 %2075
      %v2077 = vsel %vm633, %v2071, 0.0
      %2078 = vadd.xlane.f32.xlu0 %v2077
      %v2079 = vpop.xlane.xlu0 %2078
      %v2080 = vsel %vm633, %v2072, 0.0
      %2081 = vadd.xlane.f32.xlu0 %v2080
      %v2082 = vpop.xlane.xlu0 %2081
      %v2083 = vsel %vm633, %v2073, 0.0
      %2084 = vadd.xlane.f32.xlu0 %v2083
      %v2085 = vpop.xlane.xlu0 %2084
      %v2086 = vmul.f32 %v2076, %v1686
      %v2087 = vmul.f32 %v2079, %v1686
      %v2088 = vmul.f32 %v2082, %v1686
      %v2089 = vmul.f32 %v2085, %v1686
      %v2090 = vadd.f32 %v2086, 1e-05
      %v2091 = vadd.f32 %v2087, 1e-05
      %v2092 = vadd.f32 %v2088, 1e-05
      %v2093 = vadd.f32 %v2089, 1e-05
      %v2094 = vrsqrt.pop %v2090
      %v2095 = vmul.f32 %v2094, %v2090
      %v2096 = vmul.f32 %v2095, %v2094
      %v2097 = vmul.f32 0.5, %v2096
      %v2098 = vsub.f32 1.5, %v2097
      %v2099 = vmul.f32 %v2094, %v2098
      %vm2100 = vweird.f32 %v2090
      %vm2101 = vweird.f32 %v2094
      %vm2102 = vmor %vm2100, %vm2101
      %v2103 = vsel %vm2102, %v2094, %v2099
      %v2104 = vrsqrt.pop %v2091
      %v2105 = vmul.f32 %v2104, %v2091
      %v2106 = vmul.f32 %v2105, %v2104
      %v2107 = vmul.f32 0.5, %v2106
      %v2108 = vsub.f32 1.5, %v2107
      %v2109 = vmul.f32 %v2104, %v2108
      %vm2110 = vweird.f32 %v2091
      %vm2111 = vweird.f32 %v2104
      %vm2112 = vmor %vm2110, %vm2111
      %v2113 = vsel %vm2112, %v2104, %v2109
      %v2114 = vrsqrt.pop %v2092
      %v2115 = vmul.f32 %v2114, %v2092
      %v2116 = vmul.f32 %v2115, %v2114
      %v2117 = vmul.f32 0.5, %v2116
      %v2118 = vsub.f32 1.5, %v2117
      %v2119 = vmul.f32 %v2114, %v2118
      %vm2120 = vweird.f32 %v2092
      %vm2121 = vweird.f32 %v2114
      %vm2122 = vmor %vm2120, %vm2121
      %v2123 = vsel %vm2122, %v2114, %v2119
      %v2124 = vrsqrt.pop %v2093
      %v2125 = vmul.f32 %v2124, %v2093
      %v2126 = vmul.f32 %v2125, %v2124
      %v2127 = vmul.f32 0.5, %v2126
      %v2128 = vsub.f32 1.5, %v2127
      %v2129 = vmul.f32 %v2124, %v2128
      %vm2130 = vweird.f32 %v2093
      %vm2131 = vweird.f32 %v2124
      %vm2132 = vmor %vm2130, %vm2131
      %v2133 = vsel %vm2132, %v2124, %v2129
      %v2134 = vmul.f32 %v2066, %v2103
      %v2135 = vmul.f32 %v2067, %v2113
      %v2136 = vmul.f32 %v2068, %v2123
      %v2137 = vmul.f32 %v2069, %v2133
      %v2138 = vperm.slane %v627, 6
      %v2139 = vmul.f32 %v2134, %v2138
      %v2140 = vmul.f32 %v2135, %v2138
      %v2141 = vmul.f32 %v2136, %v2138
      %v2142 = vmul.f32 %v2137, %v2138
      %v2143 = vperm.slane %v627, 7
      %v2144 = vadd.f32 %v2139, %v2143
      %v2145 = vadd.f32 %v2140, %v2143
      %v2146 = vadd.f32 %v2141, %v2143
      %v2147 = vadd.f32 %v2142, %v2143
      %s2148 = scalar_lea.vmem %s8, 8
      %v2149 = vld [vmem:[%s2148] sm:$0xff]
      %s2150 = scalar_lea.vmem %s6, 64
      %v2151 = vld [vmem:[%s2150] sm:$0xff]
      %v2152 = vld [vmem:[%s2150 + $0x10] sm:$0xff]
      %v2153 = vld [vmem:[%s2150 + $0x20] sm:$0xff]
      %v2154 = vld [vmem:[%s2150 + $0x30] sm:$0xff]
      %v2155 = vperm.slane %v2149, 0
      %v2157 = vsel %vm633, %v2144, 0
      %v2160 = vsel %vm633, %v2145, 0
      %v2163 = vsel %vm633, %v2146, 0
      %v2166 = vsel %vm633, %v2147, 0
      %2168 = vmatpush.msra.mxu0 0.0
      %2169 = vmatpush.msra.mxu0 0.0
      %2170 = vmatpush.msra.mxu0 0.0
      %2171 = vmatpush.msra.mxu0 0.0
      %2172 = vmatpush.msra.mxu0 0.0
      %2173 = vmatpush.msra.mxu0 0.0
      %2174 = vmatpush.msra.mxu0 0.0
      %2175 = vmatpush.msra.mxu0 0.0
      %2176 = vmatpush.msra.mxu0 0.0
      %2177 = vmatpush.msra.mxu0 0.0
      %2178 = vmatpush.msra.mxu0 0.0
      %2179 = vmatpush.msra.mxu0 0.0
      %2180 = vmatpush.msra.mxu0 %v2154
      %2181 = vmatpush.msra.mxu0 %v2153
      %2182 = vmatpush.msra.mxu0 %v2152
      %2183 = vmatpush.msra.mxu0 %v2151
      %2184 = vmatmul.f32.gmra.mxu0 %v2157
      %v2185 = vpop.f32.mrf.mxu0
      %v2186 = vadd.f32 %v2155, %v2185
      %2187 = vmatmul.f32.gmra.mxu0 %v2160
      %v2188 = vpop.f32.mrf.mxu0
      %v2189 = vadd.f32 %v2155, %v2188
      %2190 = vmatmul.f32.gmra.mxu0 %v2163
      %v2191 = vpop.f32.mrf.mxu0
      %v2192 = vadd.f32 %v2155, %v2191
      %2193 = vmatmul.f32.gmra.mxu0 %v2166
      %v2194 = vpop.f32.mrf.mxu0
      %v2195 = vadd.f32 %v2155, %v2194
      %2196 = vdwg.mxu0
      %2201 = vrot.lane.b32.xlu0 %v2186, 96
      %v2202 = vpop.permute.xlu0 %2201
      %2203 = vrot.lane.b32.xlu0 %v2189, 96
      %v2204 = vpop.permute.xlu0 %2203
      %2205 = vrot.lane.b32.xlu0 %v2192, 96
      %v2206 = vpop.permute.xlu0 %2205
      %2207 = vrot.lane.b32.xlu0 %v2195, 96
      %v2208 = vpop.permute.xlu0 %2207
      %v2209 = vsel %vm687, %v2186, 0
      %v2211 = vsel %vm687, %v2189, 0
      %v2213 = vsel %vm687, %v2192, 0
      %v2215 = vsel %vm687, %v2195, 0
      %v2217 = vsel %vm687, %v2202, 0
      %v2219 = vsel %vm687, %v2204, 0
      %v2221 = vsel %vm687, %v2206, 0
      %v2223 = vsel %vm687, %v2208, 0
      %2225 = vmatpush.xpose.msra.mxu0 0.0
      %2226 = vmatpush.xpose.msra.mxu0 0.0
      %2227 = vmatpush.xpose.msra.mxu0 0.0
      %2228 = vmatpush.xpose.msra.mxu0 0.0
      %2229 = vmatpush.xpose.msra.mxu0 0.0
      %2230 = vmatpush.xpose.msra.mxu0 0.0
      %2231 = vmatpush.xpose.msra.mxu0 0.0
      %2232 = vmatpush.xpose.msra.mxu0 0.0
      %2233 = vmatpush.xpose.msra.mxu0 0.0
      %2234 = vmatpush.xpose.msra.mxu0 0.0
      %2235 = vmatpush.xpose.msra.mxu0 0.0
      %2236 = vmatpush.xpose.msra.mxu0 0.0
      %2237 = vmatpush.xpose.msra.mxu0 %v2223
      %2238 = vmatpush.xpose.msra.mxu0 %v2221
      %2239 = vmatpush.xpose.msra.mxu0 %v2219
      %2240 = vmatpush.xpose.msra.mxu0 %v2217
      %2241 = vmatmul.f32.gmra.mxu0 %v2209
      %v2242 = vpop.f32.mrf.mxu0
      %v2243 = vadd.f32 0.0, %v2242
      %2244 = vmatmul.f32.gmra.mxu0 %v2211
      %v2245 = vpop.f32.mrf.mxu0
      %v2246 = vadd.f32 0.0, %v2245
      %2247 = vmatmul.f32.gmra.mxu0 %v2213
      %v2248 = vpop.f32.mrf.mxu0
      %v2249 = vadd.f32 0.0, %v2248
      %2250 = vmatmul.f32.gmra.mxu0 %v2215
      %v2251 = vpop.f32.mrf.mxu0
      %v2252 = vadd.f32 0.0, %v2251
      %2253 = vdwg.mxu0
      %v2254 = vmul.f32 %v2243, 0.35355338
      %v2255 = vmul.f32 %v2246, 0.35355338
      %v2256 = vmul.f32 %v2249, 0.35355338
      %v2257 = vmul.f32 %v2252, 0.35355338
      %v2258 = vadd.f32 %v2254, %v623
      %v2259 = vadd.f32 %v2255, %v624
      %v2260 = vadd.f32 %v2256, %v625
      %v2261 = vadd.f32 %v2257, %v626
      %v2262 = vsel %vm633, %v2258, -inf
      %2263 = vmax.xlane.f32.xlu0 %v2262
      %v2264 = vpop.xlane.xlu0 %2263
      %v2265 = vsel %vm633, %v2259, -inf
      %2266 = vmax.xlane.f32.xlu0 %v2265
      %v2267 = vpop.xlane.xlu0 %2266
      %v2268 = vsel %vm633, %v2260, -inf
      %2269 = vmax.xlane.f32.xlu0 %v2268
      %v2270 = vpop.xlane.xlu0 %2269
      %v2271 = vsel %vm633, %v2261, -inf
      %2272 = vmax.xlane.f32.xlu0 %v2271
      %v2273 = vpop.xlane.xlu0 %2272
      %v2274 = vsub.f32 %v2258, %v2264
      %v2275 = vsub.f32 %v2259, %v2267
      %v2276 = vsub.f32 %v2260, %v2270
      %v2277 = vsub.f32 %v2261, %v2273
      %v2278 = vmul.f32 %v2274, 1.442695
      %v2279 = vpow.pop %v2278
      %v2280 = vmul.f32 %v2275, 1.442695
      %v2281 = vpow.pop %v2280
      %v2282 = vmul.f32 %v2276, 1.442695
      %v2283 = vpow.pop %v2282
      %v2284 = vmul.f32 %v2277, 1.442695
      %v2285 = vpow.pop %v2284
      %v2286 = vsel %vm633, %v2279, 0.0
      %2287 = vadd.xlane.f32.xlu0 %v2286
      %v2288 = vpop.xlane.xlu0 %2287
      %v2289 = vsel %vm633, %v2281, 0.0
      %2290 = vadd.xlane.f32.xlu0 %v2289
      %v2291 = vpop.xlane.xlu0 %2290
      %v2292 = vsel %vm633, %v2283, 0.0
      %2293 = vadd.xlane.f32.xlu0 %v2292
      %v2294 = vpop.xlane.xlu0 %2293
      %v2295 = vsel %vm633, %v2285, 0.0
      %2296 = vadd.xlane.f32.xlu0 %v2295
      %v2297 = vpop.xlane.xlu0 %2296
      %v2298 = vrcp.pop %v2288
      %v2299 = vmul.f32 %v2288, %v2298
      %v2300 = vsub.f32 1.0, %v2299
      %v2301 = vmul.f32 %v2298, %v2300
      %v2302 = vadd.f32 %v2298, %v2301
      %vm2303 = vweird.f32 %v2288
      %vm2304 = vweird.f32 %v2298
      %vm2305 = vmor %vm2303, %vm2304
      %v2306 = vsel %vm2305, %v2298, %v2302
      %v2307 = vand.u32 2147483647, %v2288
      %vm2308 = vcmp.eq.f32.partialorder %v2307, 8.507059e+37
      %v2309 = vand.u32 %v2288, 2147483648
      %v2310 = vor.u32 1.1754944e-38, %v2309
      %v2311 = vsel %vm2308, %v2310, %v2306
      %v2312 = vmul.f32 %v2279, %v2311
      %v2313 = vrcp.pop %v2291
      %v2314 = vmul.f32 %v2291, %v2313
      %v2315 = vsub.f32 1.0, %v2314
      %v2316 = vmul.f32 %v2313, %v2315
      %v2317 = vadd.f32 %v2313, %v2316
      %vm2318 = vweird.f32 %v2291
      %vm2319 = vweird.f32 %v2313
      %vm2320 = vmor %vm2318, %vm2319
      %v2321 = vsel %vm2320, %v2313, %v2317
      %v2322 = vand.u32 2147483647, %v2291
      %vm2323 = vcmp.eq.f32.partialorder %v2322, 8.507059e+37
      %v2324 = vand.u32 %v2291, 2147483648
      %v2325 = vor.u32 1.1754944e-38, %v2324
      %v2326 = vsel %vm2323, %v2325, %v2321
      %v2327 = vmul.f32 %v2281, %v2326
      %v2328 = vrcp.pop %v2294
      %v2329 = vmul.f32 %v2294, %v2328
      %v2330 = vsub.f32 1.0, %v2329
      %v2331 = vmul.f32 %v2328, %v2330
      %v2332 = vadd.f32 %v2328, %v2331
      %vm2333 = vweird.f32 %v2294
      %vm2334 = vweird.f32 %v2328
      %vm2335 = vmor %vm2333, %vm2334
      %v2336 = vsel %vm2335, %v2328, %v2332
      %v2337 = vand.u32 2147483647, %v2294
      %vm2338 = vcmp.eq.f32.partialorder %v2337, 8.507059e+37
      %v2339 = vand.u32 %v2294, 2147483648
      %v2340 = vor.u32 1.1754944e-38, %v2339
      %v2341 = vsel %vm2338, %v2340, %v2336
      %v2342 = vmul.f32 %v2283, %v2341
      %v2343 = vrcp.pop %v2297
      %v2344 = vmul.f32 %v2297, %v2343
      %v2345 = vsub.f32 1.0, %v2344
      %v2346 = vmul.f32 %v2343, %v2345
      %v2347 = vadd.f32 %v2343, %v2346
      %vm2348 = vweird.f32 %v2297
      %vm2349 = vweird.f32 %v2343
      %vm2350 = vmor %vm2348, %vm2349
      %v2351 = vsel %vm2350, %v2343, %v2347
      %v2352 = vand.u32 2147483647, %v2297
      %vm2353 = vcmp.eq.f32.partialorder %v2352, 8.507059e+37
      %v2354 = vand.u32 %v2297, 2147483648
      %v2355 = vor.u32 1.1754944e-38, %v2354
      %v2356 = vsel %vm2353, %v2355, %v2351
      %v2357 = vmul.f32 %v2285, %v2356
      %2358 = vrot.lane.b32.xlu0 %v2186, 64
      %v2359 = vpop.permute.xlu0 %2358
      %2360 = vrot.lane.b32.xlu0 %v2189, 64
      %v2361 = vpop.permute.xlu0 %2360
      %2362 = vrot.lane.b32.xlu0 %v2192, 64
      %v2363 = vpop.permute.xlu0 %2362
      %2364 = vrot.lane.b32.xlu0 %v2195, 64
      %v2365 = vpop.permute.xlu0 %2364
      %v2371 = vsel %vm633, %v2312, 0
      %v2374 = vsel %vm633, %v2327, 0
      %v2377 = vsel %vm633, %v2342, 0
      %v2380 = vsel %vm633, %v2357, 0
      %2382 = vmatpush.msra.mxu0 0.0
      %2383 = vmatpush.msra.mxu0 0.0
      %2384 = vmatpush.msra.mxu0 0.0
      %2385 = vmatpush.msra.mxu0 0.0
      %2386 = vmatpush.msra.mxu0 0.0
      %2387 = vmatpush.msra.mxu0 0.0
      %2388 = vmatpush.msra.mxu0 0.0
      %2389 = vmatpush.msra.mxu0 0.0
      %2390 = vmatpush.msra.mxu0 0.0
      %2391 = vmatpush.msra.mxu0 0.0
      %2392 = vmatpush.msra.mxu0 0.0
      %2393 = vmatpush.msra.mxu0 0.0
      %2394 = vmatpush.msra.mxu0 %v2365
      %2395 = vmatpush.msra.mxu0 %v2363
      %2396 = vmatpush.msra.mxu0 %v2361
      %2397 = vmatpush.msra.mxu0 %v2359
      %2398 = vmatmul.f32.gmra.mxu0 %v2371
      %v2399 = vpop.f32.mrf.mxu0
      %v2400 = vadd.f32 0.0, %v2399
      %2401 = vmatmul.f32.gmra.mxu0 %v2374
      %v2402 = vpop.f32.mrf.mxu0
      %v2403 = vadd.f32 0.0, %v2402
      %2404 = vmatmul.f32.gmra.mxu0 %v2377
      %v2405 = vpop.f32.mrf.mxu0
      %v2406 = vadd.f32 0.0, %v2405
      %2407 = vmatmul.f32.gmra.mxu0 %v2380
      %v2408 = vpop.f32.mrf.mxu0
      %v2409 = vadd.f32 0.0, %v2408
      %2410 = vdwg.mxu0
      %2411 = vrot.lane.b32.xlu0 %v2186, 120
      %v2412 = vpop.permute.xlu0 %2411
      %2413 = vrot.lane.b32.xlu0 %v2189, 120
      %v2414 = vpop.permute.xlu0 %2413
      %2415 = vrot.lane.b32.xlu0 %v2192, 120
      %v2416 = vpop.permute.xlu0 %2415
      %2417 = vrot.lane.b32.xlu0 %v2195, 120
      %v2418 = vpop.permute.xlu0 %2417
      %2419 = vrot.lane.b32.xlu0 %v2186, 88
      %v2420 = vpop.permute.xlu0 %2419
      %2421 = vrot.lane.b32.xlu0 %v2189, 88
      %v2422 = vpop.permute.xlu0 %2421
      %2423 = vrot.lane.b32.xlu0 %v2192, 88
      %v2424 = vpop.permute.xlu0 %2423
      %2425 = vrot.lane.b32.xlu0 %v2195, 88
      %v2426 = vpop.permute.xlu0 %2425
      %v2427 = vsel %vm687, %v2412, 0
      %v2429 = vsel %vm687, %v2414, 0
      %v2431 = vsel %vm687, %v2416, 0
      %v2433 = vsel %vm687, %v2418, 0
      %v2435 = vsel %vm687, %v2420, 0
      %v2437 = vsel %vm687, %v2422, 0
      %v2439 = vsel %vm687, %v2424, 0
      %v2441 = vsel %vm687, %v2426, 0
      %2443 = vmatpush.xpose.msra.mxu0 0.0
      %2444 = vmatpush.xpose.msra.mxu0 0.0
      %2445 = vmatpush.xpose.msra.mxu0 0.0
      %2446 = vmatpush.xpose.msra.mxu0 0.0
      %2447 = vmatpush.xpose.msra.mxu0 0.0
      %2448 = vmatpush.xpose.msra.mxu0 0.0
      %2449 = vmatpush.xpose.msra.mxu0 0.0
      %2450 = vmatpush.xpose.msra.mxu0 0.0
      %2451 = vmatpush.xpose.msra.mxu0 0.0
      %2452 = vmatpush.xpose.msra.mxu0 0.0
      %2453 = vmatpush.xpose.msra.mxu0 0.0
      %2454 = vmatpush.xpose.msra.mxu0 0.0
      %2455 = vmatpush.xpose.msra.mxu0 %v2441
      %2456 = vmatpush.xpose.msra.mxu0 %v2439
      %2457 = vmatpush.xpose.msra.mxu0 %v2437
      %2458 = vmatpush.xpose.msra.mxu0 %v2435
      %2459 = vmatmul.f32.gmra.mxu0 %v2427
      %v2460 = vpop.f32.mrf.mxu0
      %v2461 = vadd.f32 0.0, %v2460
      %2462 = vmatmul.f32.gmra.mxu0 %v2429
      %v2463 = vpop.f32.mrf.mxu0
      %v2464 = vadd.f32 0.0, %v2463
      %2465 = vmatmul.f32.gmra.mxu0 %v2431
      %v2466 = vpop.f32.mrf.mxu0
      %v2467 = vadd.f32 0.0, %v2466
      %2468 = vmatmul.f32.gmra.mxu0 %v2433
      %v2469 = vpop.f32.mrf.mxu0
      %v2470 = vadd.f32 0.0, %v2469
      %2471 = vdwg.mxu0
      %v2472 = vmul.f32 %v2461, 0.35355338
      %v2473 = vmul.f32 %v2464, 0.35355338
      %v2474 = vmul.f32 %v2467, 0.35355338
      %v2475 = vmul.f32 %v2470, 0.35355338
      %v2476 = vadd.f32 %v2472, %v623
      %v2477 = vadd.f32 %v2473, %v624
      %v2478 = vadd.f32 %v2474, %v625
      %v2479 = vadd.f32 %v2475, %v626
      %v2480 = vsel %vm633, %v2476, -inf
      %2481 = vmax.xlane.f32.xlu0 %v2480
      %v2482 = vpop.xlane.xlu0 %2481
      %v2483 = vsel %vm633, %v2477, -inf
      %2484 = vmax.xlane.f32.xlu0 %v2483
      %v2485 = vpop.xlane.xlu0 %2484
      %v2486 = vsel %vm633, %v2478, -inf
      %2487 = vmax.xlane.f32.xlu0 %v2486
      %v2488 = vpop.xlane.xlu0 %2487
      %v2489 = vsel %vm633, %v2479, -inf
      %2490 = vmax.xlane.f32.xlu0 %v2489
      %v2491 = vpop.xlane.xlu0 %2490
      %v2492 = vsub.f32 %v2476, %v2482
      %v2493 = vsub.f32 %v2477, %v2485
      %v2494 = vsub.f32 %v2478, %v2488
      %v2495 = vsub.f32 %v2479, %v2491
      %v2496 = vmul.f32 %v2492, 1.442695
      %v2497 = vpow.pop %v2496
      %v2498 = vmul.f32 %v2493, 1.442695
      %v2499 = vpow.pop %v2498
      %v2500 = vmul.f32 %v2494, 1.442695
      %v2501 = vpow.pop %v2500
      %v2502 = vmul.f32 %v2495, 1.442695
      %v2503 = vpow.pop %v2502
      %v2504 = vsel %vm633, %v2497, 0.0
      %2505 = vadd.xlane.f32.xlu0 %v2504
      %v2506 = vpop.xlane.xlu0 %2505
      %v2507 = vsel %vm633, %v2499, 0.0
      %2508 = vadd.xlane.f32.xlu0 %v2507
      %v2509 = vpop.xlane.xlu0 %2508
      %v2510 = vsel %vm633, %v2501, 0.0
      %2511 = vadd.xlane.f32.xlu0 %v2510
      %v2512 = vpop.xlane.xlu0 %2511
      %v2513 = vsel %vm633, %v2503, 0.0
      %2514 = vadd.xlane.f32.xlu0 %v2513
      %v2515 = vpop.xlane.xlu0 %2514
      %v2516 = vrcp.pop %v2506
      %v2517 = vmul.f32 %v2506, %v2516
      %v2518 = vsub.f32 1.0, %v2517
      %v2519 = vmul.f32 %v2516, %v2518
      %v2520 = vadd.f32 %v2516, %v2519
      %vm2521 = vweird.f32 %v2506
      %vm2522 = vweird.f32 %v2516
      %vm2523 = vmor %vm2521, %vm2522
      %v2524 = vsel %vm2523, %v2516, %v2520
      %v2525 = vand.u32 2147483647, %v2506
      %vm2526 = vcmp.eq.f32.partialorder %v2525, 8.507059e+37
      %v2527 = vand.u32 %v2506, 2147483648
      %v2528 = vor.u32 1.1754944e-38, %v2527
      %v2529 = vsel %vm2526, %v2528, %v2524
      %v2530 = vmul.f32 %v2497, %v2529
      %v2531 = vrcp.pop %v2509
      %v2532 = vmul.f32 %v2509, %v2531
      %v2533 = vsub.f32 1.0, %v2532
      %v2534 = vmul.f32 %v2531, %v2533
      %v2535 = vadd.f32 %v2531, %v2534
      %vm2536 = vweird.f32 %v2509
      %vm2537 = vweird.f32 %v2531
      %vm2538 = vmor %vm2536, %vm2537
      %v2539 = vsel %vm2538, %v2531, %v2535
      %v2540 = vand.u32 2147483647, %v2509
      %vm2541 = vcmp.eq.f32.partialorder %v2540, 8.507059e+37
      %v2542 = vand.u32 %v2509, 2147483648
      %v2543 = vor.u32 1.1754944e-38, %v2542
      %v2544 = vsel %vm2541, %v2543, %v2539
      %v2545 = vmul.f32 %v2499, %v2544
      %v2546 = vrcp.pop %v2512
      %v2547 = vmul.f32 %v2512, %v2546
      %v2548 = vsub.f32 1.0, %v2547
      %v2549 = vmul.f32 %v2546, %v2548
      %v2550 = vadd.f32 %v2546, %v2549
      %vm2551 = vweird.f32 %v2512
      %vm2552 = vweird.f32 %v2546
      %vm2553 = vmor %vm2551, %vm2552
      %v2554 = vsel %vm2553, %v2546, %v2550
      %v2555 = vand.u32 2147483647, %v2512
      %vm2556 = vcmp.eq.f32.partialorder %v2555, 8.507059e+37
      %v2557 = vand.u32 %v2512, 2147483648
      %v2558 = vor.u32 1.1754944e-38, %v2557
      %v2559 = vsel %vm2556, %v2558, %v2554
      %v2560 = vmul.f32 %v2501, %v2559
      %v2561 = vrcp.pop %v2515
      %v2562 = vmul.f32 %v2515, %v2561
      %v2563 = vsub.f32 1.0, %v2562
      %v2564 = vmul.f32 %v2561, %v2563
      %v2565 = vadd.f32 %v2561, %v2564
      %vm2566 = vweird.f32 %v2515
      %vm2567 = vweird.f32 %v2561
      %vm2568 = vmor %vm2566, %vm2567
      %v2569 = vsel %vm2568, %v2561, %v2565
      %v2570 = vand.u32 2147483647, %v2515
      %vm2571 = vcmp.eq.f32.partialorder %v2570, 8.507059e+37
      %v2572 = vand.u32 %v2515, 2147483648
      %v2573 = vor.u32 1.1754944e-38, %v2572
      %v2574 = vsel %vm2571, %v2573, %v2569
      %v2575 = vmul.f32 %v2503, %v2574
      %2576 = vrot.lane.b32.xlu0 %v2186, 56
      %v2577 = vpop.permute.xlu0 %2576
      %2578 = vrot.lane.b32.xlu0 %v2189, 56
      %v2579 = vpop.permute.xlu0 %2578
      %2580 = vrot.lane.b32.xlu0 %v2192, 56
      %v2581 = vpop.permute.xlu0 %2580
      %2582 = vrot.lane.b32.xlu0 %v2195, 56
      %v2583 = vpop.permute.xlu0 %2582
      %v2589 = vsel %vm633, %v2530, 0
      %v2592 = vsel %vm633, %v2545, 0
      %v2595 = vsel %vm633, %v2560, 0
      %v2598 = vsel %vm633, %v2575, 0
      %2600 = vmatpush.msra.mxu0 0.0
      %2601 = vmatpush.msra.mxu0 0.0
      %2602 = vmatpush.msra.mxu0 0.0
      %2603 = vmatpush.msra.mxu0 0.0
      %2604 = vmatpush.msra.mxu0 0.0
      %2605 = vmatpush.msra.mxu0 0.0
      %2606 = vmatpush.msra.mxu0 0.0
      %2607 = vmatpush.msra.mxu0 0.0
      %2608 = vmatpush.msra.mxu0 0.0
      %2609 = vmatpush.msra.mxu0 0.0
      %2610 = vmatpush.msra.mxu0 0.0
      %2611 = vmatpush.msra.mxu0 0.0
      %2612 = vmatpush.msra.mxu0 %v2583
      %2613 = vmatpush.msra.mxu0 %v2581
      %2614 = vmatpush.msra.mxu0 %v2579
      %2615 = vmatpush.msra.mxu0 %v2577
      %2616 = vmatmul.f32.gmra.mxu0 %v2589
      %v2617 = vpop.f32.mrf.mxu0
      %v2618 = vadd.f32 0.0, %v2617
      %2619 = vmatmul.f32.gmra.mxu0 %v2592
      %v2620 = vpop.f32.mrf.mxu0
      %v2621 = vadd.f32 0.0, %v2620
      %2622 = vmatmul.f32.gmra.mxu0 %v2595
      %v2623 = vpop.f32.mrf.mxu0
      %v2624 = vadd.f32 0.0, %v2623
      %2625 = vmatmul.f32.gmra.mxu0 %v2598
      %v2626 = vpop.f32.mrf.mxu0
      %v2627 = vadd.f32 0.0, %v2626
      %2628 = vdwg.mxu0
      %2629 = vrot.lane.b32.xlu0 %v2186, 112
      %v2630 = vpop.permute.xlu0 %2629
      %2631 = vrot.lane.b32.xlu0 %v2189, 112
      %v2632 = vpop.permute.xlu0 %2631
      %2633 = vrot.lane.b32.xlu0 %v2192, 112
      %v2634 = vpop.permute.xlu0 %2633
      %2635 = vrot.lane.b32.xlu0 %v2195, 112
      %v2636 = vpop.permute.xlu0 %2635
      %2637 = vrot.lane.b32.xlu0 %v2186, 80
      %v2638 = vpop.permute.xlu0 %2637
      %2639 = vrot.lane.b32.xlu0 %v2189, 80
      %v2640 = vpop.permute.xlu0 %2639
      %2641 = vrot.lane.b32.xlu0 %v2192, 80
      %v2642 = vpop.permute.xlu0 %2641
      %2643 = vrot.lane.b32.xlu0 %v2195, 80
      %v2644 = vpop.permute.xlu0 %2643
      %v2645 = vsel %vm687, %v2630, 0
      %v2647 = vsel %vm687, %v2632, 0
      %v2649 = vsel %vm687, %v2634, 0
      %v2651 = vsel %vm687, %v2636, 0
      %v2653 = vsel %vm687, %v2638, 0
      %v2655 = vsel %vm687, %v2640, 0
      %v2657 = vsel %vm687, %v2642, 0
      %v2659 = vsel %vm687, %v2644, 0
      %2661 = vmatpush.xpose.msra.mxu0 0.0
      %2662 = vmatpush.xpose.msra.mxu0 0.0
      %2663 = vmatpush.xpose.msra.mxu0 0.0
      %2664 = vmatpush.xpose.msra.mxu0 0.0
      %2665 = vmatpush.xpose.msra.mxu0 0.0
      %2666 = vmatpush.xpose.msra.mxu0 0.0
      %2667 = vmatpush.xpose.msra.mxu0 0.0
      %2668 = vmatpush.xpose.msra.mxu0 0.0
      %2669 = vmatpush.xpose.msra.mxu0 0.0
      %2670 = vmatpush.xpose.msra.mxu0 0.0
      %2671 = vmatpush.xpose.msra.mxu0 0.0
      %2672 = vmatpush.xpose.msra.mxu0 0.0
      %2673 = vmatpush.xpose.msra.mxu0 %v2659
      %2674 = vmatpush.xpose.msra.mxu0 %v2657
      %2675 = vmatpush.xpose.msra.mxu0 %v2655
      %2676 = vmatpush.xpose.msra.mxu0 %v2653
      %2677 = vmatmul.f32.gmra.mxu0 %v2645
      %v2678 = vpop.f32.mrf.mxu0
      %v2679 = vadd.f32 0.0, %v2678
      %2680 = vmatmul.f32.gmra.mxu0 %v2647
      %v2681 = vpop.f32.mrf.mxu0
      %v2682 = vadd.f32 0.0, %v2681
      %2683 = vmatmul.f32.gmra.mxu0 %v2649
      %v2684 = vpop.f32.mrf.mxu0
      %v2685 = vadd.f32 0.0, %v2684
      %2686 = vmatmul.f32.gmra.mxu0 %v2651
      %v2687 = vpop.f32.mrf.mxu0
      %v2688 = vadd.f32 0.0, %v2687
      %2689 = vdwg.mxu0
      %v2690 = vmul.f32 %v2679, 0.35355338
      %v2691 = vmul.f32 %v2682, 0.35355338
      %v2692 = vmul.f32 %v2685, 0.35355338
      %v2693 = vmul.f32 %v2688, 0.35355338
      %v2694 = vadd.f32 %v2690, %v623
      %v2695 = vadd.f32 %v2691, %v624
      %v2696 = vadd.f32 %v2692, %v625
      %v2697 = vadd.f32 %v2693, %v626
      %v2698 = vsel %vm633, %v2694, -inf
      %2699 = vmax.xlane.f32.xlu0 %v2698
      %v2700 = vpop.xlane.xlu0 %2699
      %v2701 = vsel %vm633, %v2695, -inf
      %2702 = vmax.xlane.f32.xlu0 %v2701
      %v2703 = vpop.xlane.xlu0 %2702
      %v2704 = vsel %vm633, %v2696, -inf
      %2705 = vmax.xlane.f32.xlu0 %v2704
      %v2706 = vpop.xlane.xlu0 %2705
      %v2707 = vsel %vm633, %v2697, -inf
      %2708 = vmax.xlane.f32.xlu0 %v2707
      %v2709 = vpop.xlane.xlu0 %2708
      %v2710 = vsub.f32 %v2694, %v2700
      %v2711 = vsub.f32 %v2695, %v2703
      %v2712 = vsub.f32 %v2696, %v2706
      %v2713 = vsub.f32 %v2697, %v2709
      %v2714 = vmul.f32 %v2710, 1.442695
      %v2715 = vpow.pop %v2714
      %v2716 = vmul.f32 %v2711, 1.442695
      %v2717 = vpow.pop %v2716
      %v2718 = vmul.f32 %v2712, 1.442695
      %v2719 = vpow.pop %v2718
      %v2720 = vmul.f32 %v2713, 1.442695
      %v2721 = vpow.pop %v2720
      %v2722 = vsel %vm633, %v2715, 0.0
      %2723 = vadd.xlane.f32.xlu0 %v2722
      %v2724 = vpop.xlane.xlu0 %2723
      %v2725 = vsel %vm633, %v2717, 0.0
      %2726 = vadd.xlane.f32.xlu0 %v2725
      %v2727 = vpop.xlane.xlu0 %2726
      %v2728 = vsel %vm633, %v2719, 0.0
      %2729 = vadd.xlane.f32.xlu0 %v2728
      %v2730 = vpop.xlane.xlu0 %2729
      %v2731 = vsel %vm633, %v2721, 0.0
      %2732 = vadd.xlane.f32.xlu0 %v2731
      %v2733 = vpop.xlane.xlu0 %2732
      %v2734 = vrcp.pop %v2724
      %v2735 = vmul.f32 %v2724, %v2734
      %v2736 = vsub.f32 1.0, %v2735
      %v2737 = vmul.f32 %v2734, %v2736
      %v2738 = vadd.f32 %v2734, %v2737
      %vm2739 = vweird.f32 %v2724
      %vm2740 = vweird.f32 %v2734
      %vm2741 = vmor %vm2739, %vm2740
      %v2742 = vsel %vm2741, %v2734, %v2738
      %v2743 = vand.u32 2147483647, %v2724
      %vm2744 = vcmp.eq.f32.partialorder %v2743, 8.507059e+37
      %v2745 = vand.u32 %v2724, 2147483648
      %v2746 = vor.u32 1.1754944e-38, %v2745
      %v2747 = vsel %vm2744, %v2746, %v2742
      %v2748 = vmul.f32 %v2715, %v2747
      %v2749 = vrcp.pop %v2727
      %v2750 = vmul.f32 %v2727, %v2749
      %v2751 = vsub.f32 1.0, %v2750
      %v2752 = vmul.f32 %v2749, %v2751
      %v2753 = vadd.f32 %v2749, %v2752
      %vm2754 = vweird.f32 %v2727
      %vm2755 = vweird.f32 %v2749
      %vm2756 = vmor %vm2754, %vm2755
      %v2757 = vsel %vm2756, %v2749, %v2753
      %v2758 = vand.u32 2147483647, %v2727
      %vm2759 = vcmp.eq.f32.partialorder %v2758, 8.507059e+37
      %v2760 = vand.u32 %v2727, 2147483648
      %v2761 = vor.u32 1.1754944e-38, %v2760
      %v2762 = vsel %vm2759, %v2761, %v2757
      %v2763 = vmul.f32 %v2717, %v2762
      %v2764 = vrcp.pop %v2730
      %v2765 = vmul.f32 %v2730, %v2764
      %v2766 = vsub.f32 1.0, %v2765
      %v2767 = vmul.f32 %v2764, %v2766
      %v2768 = vadd.f32 %v2764, %v2767
      %vm2769 = vweird.f32 %v2730
      %vm2770 = vweird.f32 %v2764
      %vm2771 = vmor %vm2769, %vm2770
      %v2772 = vsel %vm2771, %v2764, %v2768
      %v2773 = vand.u32 2147483647, %v2730
      %vm2774 = vcmp.eq.f32.partialorder %v2773, 8.507059e+37
      %v2775 = vand.u32 %v2730, 2147483648
      %v2776 = vor.u32 1.1754944e-38, %v2775
      %v2777 = vsel %vm2774, %v2776, %v2772
      %v2778 = vmul.f32 %v2719, %v2777
      %v2779 = vrcp.pop %v2733
      %v2780 = vmul.f32 %v2733, %v2779
      %v2781 = vsub.f32 1.0, %v2780
      %v2782 = vmul.f32 %v2779, %v2781
      %v2783 = vadd.f32 %v2779, %v2782
      %vm2784 = vweird.f32 %v2733
      %vm2785 = vweird.f32 %v2779
      %vm2786 = vmor %vm2784, %vm2785
      %v2787 = vsel %vm2786, %v2779, %v2783
      %v2788 = vand.u32 2147483647, %v2733
      %vm2789 = vcmp.eq.f32.partialorder %v2788, 8.507059e+37
      %v2790 = vand.u32 %v2733, 2147483648
      %v2791 = vor.u32 1.1754944e-38, %v2790
      %v2792 = vsel %vm2789, %v2791, %v2787
      %v2793 = vmul.f32 %v2721, %v2792
      %2794 = vrot.lane.b32.xlu0 %v2186, 48
      %v2795 = vpop.permute.xlu0 %2794
      %2796 = vrot.lane.b32.xlu0 %v2189, 48
      %v2797 = vpop.permute.xlu0 %2796
      %2798 = vrot.lane.b32.xlu0 %v2192, 48
      %v2799 = vpop.permute.xlu0 %2798
      %2800 = vrot.lane.b32.xlu0 %v2195, 48
      %v2801 = vpop.permute.xlu0 %2800
      %v2807 = vsel %vm633, %v2748, 0
      %v2810 = vsel %vm633, %v2763, 0
      %v2813 = vsel %vm633, %v2778, 0
      %v2816 = vsel %vm633, %v2793, 0
      %2818 = vmatpush.msra.mxu0 0.0
      %2819 = vmatpush.msra.mxu0 0.0
      %2820 = vmatpush.msra.mxu0 0.0
      %2821 = vmatpush.msra.mxu0 0.0
      %2822 = vmatpush.msra.mxu0 0.0
      %2823 = vmatpush.msra.mxu0 0.0
      %2824 = vmatpush.msra.mxu0 0.0
      %2825 = vmatpush.msra.mxu0 0.0
      %2826 = vmatpush.msra.mxu0 0.0
      %2827 = vmatpush.msra.mxu0 0.0
      %2828 = vmatpush.msra.mxu0 0.0
      %2829 = vmatpush.msra.mxu0 0.0
      %2830 = vmatpush.msra.mxu0 %v2801
      %2831 = vmatpush.msra.mxu0 %v2799
      %2832 = vmatpush.msra.mxu0 %v2797
      %2833 = vmatpush.msra.mxu0 %v2795
      %2834 = vmatmul.f32.gmra.mxu0 %v2807
      %v2835 = vpop.f32.mrf.mxu0
      %v2836 = vadd.f32 0.0, %v2835
      %2837 = vmatmul.f32.gmra.mxu0 %v2810
      %v2838 = vpop.f32.mrf.mxu0
      %v2839 = vadd.f32 0.0, %v2838
      %2840 = vmatmul.f32.gmra.mxu0 %v2813
      %v2841 = vpop.f32.mrf.mxu0
      %v2842 = vadd.f32 0.0, %v2841
      %2843 = vmatmul.f32.gmra.mxu0 %v2816
      %v2844 = vpop.f32.mrf.mxu0
      %v2845 = vadd.f32 0.0, %v2844
      %2846 = vdwg.mxu0
      %2847 = vrot.lane.b32.xlu0 %v2186, 104
      %v2848 = vpop.permute.xlu0 %2847
      %2849 = vrot.lane.b32.xlu0 %v2189, 104
      %v2850 = vpop.permute.xlu0 %2849
      %2851 = vrot.lane.b32.xlu0 %v2192, 104
      %v2852 = vpop.permute.xlu0 %2851
      %2853 = vrot.lane.b32.xlu0 %v2195, 104
      %v2854 = vpop.permute.xlu0 %2853
      %2855 = vrot.lane.b32.xlu0 %v2186, 72
      %v2856 = vpop.permute.xlu0 %2855
      %2857 = vrot.lane.b32.xlu0 %v2189, 72
      %v2858 = vpop.permute.xlu0 %2857
      %2859 = vrot.lane.b32.xlu0 %v2192, 72
      %v2860 = vpop.permute.xlu0 %2859
      %2861 = vrot.lane.b32.xlu0 %v2195, 72
      %v2862 = vpop.permute.xlu0 %2861
      %v2863 = vsel %vm687, %v2848, 0
      %v2865 = vsel %vm687, %v2850, 0
      %v2867 = vsel %vm687, %v2852, 0
      %v2869 = vsel %vm687, %v2854, 0
      %v2871 = vsel %vm687, %v2856, 0
      %v2873 = vsel %vm687, %v2858, 0
      %v2875 = vsel %vm687, %v2860, 0
      %v2877 = vsel %vm687, %v2862, 0
      %2879 = vmatpush.xpose.msra.mxu0 0.0
      %2880 = vmatpush.xpose.msra.mxu0 0.0
      %2881 = vmatpush.xpose.msra.mxu0 0.0
      %2882 = vmatpush.xpose.msra.mxu0 0.0
      %2883 = vmatpush.xpose.msra.mxu0 0.0
      %2884 = vmatpush.xpose.msra.mxu0 0.0
      %2885 = vmatpush.xpose.msra.mxu0 0.0
      %2886 = vmatpush.xpose.msra.mxu0 0.0
      %2887 = vmatpush.xpose.msra.mxu0 0.0
      %2888 = vmatpush.xpose.msra.mxu0 0.0
      %2889 = vmatpush.xpose.msra.mxu0 0.0
      %2890 = vmatpush.xpose.msra.mxu0 0.0
      %2891 = vmatpush.xpose.msra.mxu0 %v2877
      %2892 = vmatpush.xpose.msra.mxu0 %v2875
      %2893 = vmatpush.xpose.msra.mxu0 %v2873
      %2894 = vmatpush.xpose.msra.mxu0 %v2871
      %2895 = vmatmul.f32.gmra.mxu0 %v2863
      %v2896 = vpop.f32.mrf.mxu0
      %v2897 = vadd.f32 0.0, %v2896
      %2898 = vmatmul.f32.gmra.mxu0 %v2865
      %v2899 = vpop.f32.mrf.mxu0
      %v2900 = vadd.f32 0.0, %v2899
      %2901 = vmatmul.f32.gmra.mxu0 %v2867
      %v2902 = vpop.f32.mrf.mxu0
      %v2903 = vadd.f32 0.0, %v2902
      %2904 = vmatmul.f32.gmra.mxu0 %v2869
      %v2905 = vpop.f32.mrf.mxu0
      %v2906 = vadd.f32 0.0, %v2905
      %2907 = vdwg.mxu0
      %v2908 = vmul.f32 %v2897, 0.35355338
      %v2909 = vmul.f32 %v2900, 0.35355338
      %v2910 = vmul.f32 %v2903, 0.35355338
      %v2911 = vmul.f32 %v2906, 0.35355338
      %v2912 = vadd.f32 %v2908, %v623
      %v2913 = vadd.f32 %v2909, %v624
      %v2914 = vadd.f32 %v2910, %v625
      %v2915 = vadd.f32 %v2911, %v626
      %v2916 = vsel %vm633, %v2912, -inf
      %2917 = vmax.xlane.f32.xlu0 %v2916
      %v2918 = vpop.xlane.xlu0 %2917
      %v2919 = vsel %vm633, %v2913, -inf
      %2920 = vmax.xlane.f32.xlu0 %v2919
      %v2921 = vpop.xlane.xlu0 %2920
      %v2922 = vsel %vm633, %v2914, -inf
      %2923 = vmax.xlane.f32.xlu0 %v2922
      %v2924 = vpop.xlane.xlu0 %2923
      %v2925 = vsel %vm633, %v2915, -inf
      %2926 = vmax.xlane.f32.xlu0 %v2925
      %v2927 = vpop.xlane.xlu0 %2926
      %v2928 = vsub.f32 %v2912, %v2918
      %v2929 = vsub.f32 %v2913, %v2921
      %v2930 = vsub.f32 %v2914, %v2924
      %v2931 = vsub.f32 %v2915, %v2927
      %v2932 = vmul.f32 %v2928, 1.442695
      %v2933 = vpow.pop %v2932
      %v2934 = vmul.f32 %v2929, 1.442695
      %v2935 = vpow.pop %v2934
      %v2936 = vmul.f32 %v2930, 1.442695
      %v2937 = vpow.pop %v2936
      %v2938 = vmul.f32 %v2931, 1.442695
      %v2939 = vpow.pop %v2938
      %v2940 = vsel %vm633, %v2933, 0.0
      %2941 = vadd.xlane.f32.xlu0 %v2940
      %v2942 = vpop.xlane.xlu0 %2941
      %v2943 = vsel %vm633, %v2935, 0.0
      %2944 = vadd.xlane.f32.xlu0 %v2943
      %v2945 = vpop.xlane.xlu0 %2944
      %v2946 = vsel %vm633, %v2937, 0.0
      %2947 = vadd.xlane.f32.xlu0 %v2946
      %v2948 = vpop.xlane.xlu0 %2947
      %v2949 = vsel %vm633, %v2939, 0.0
      %2950 = vadd.xlane.f32.xlu0 %v2949
      %v2951 = vpop.xlane.xlu0 %2950
      %v2952 = vrcp.pop %v2942
      %v2953 = vmul.f32 %v2942, %v2952
      %v2954 = vsub.f32 1.0, %v2953
      %v2955 = vmul.f32 %v2952, %v2954
      %v2956 = vadd.f32 %v2952, %v2955
      %vm2957 = vweird.f32 %v2942
      %vm2958 = vweird.f32 %v2952
      %vm2959 = vmor %vm2957, %vm2958
      %v2960 = vsel %vm2959, %v2952, %v2956
      %v2961 = vand.u32 2147483647, %v2942
      %vm2962 = vcmp.eq.f32.partialorder %v2961, 8.507059e+37
      %v2963 = vand.u32 %v2942, 2147483648
      %v2964 = vor.u32 1.1754944e-38, %v2963
      %v2965 = vsel %vm2962, %v2964, %v2960
      %v2966 = vmul.f32 %v2933, %v2965
      %v2967 = vrcp.pop %v2945
      %v2968 = vmul.f32 %v2945, %v2967
      %v2969 = vsub.f32 1.0, %v2968
      %v2970 = vmul.f32 %v2967, %v2969
      %v2971 = vadd.f32 %v2967, %v2970
      %vm2972 = vweird.f32 %v2945
      %vm2973 = vweird.f32 %v2967
      %vm2974 = vmor %vm2972, %vm2973
      %v2975 = vsel %vm2974, %v2967, %v2971
      %v2976 = vand.u32 2147483647, %v2945
      %vm2977 = vcmp.eq.f32.partialorder %v2976, 8.507059e+37
      %v2978 = vand.u32 %v2945, 2147483648
      %v2979 = vor.u32 1.1754944e-38, %v2978
      %v2980 = vsel %vm2977, %v2979, %v2975
      %v2981 = vmul.f32 %v2935, %v2980
      %v2982 = vrcp.pop %v2948
      %v2983 = vmul.f32 %v2948, %v2982
      %v2984 = vsub.f32 1.0, %v2983
      %v2985 = vmul.f32 %v2982, %v2984
      %v2986 = vadd.f32 %v2982, %v2985
      %vm2987 = vweird.f32 %v2948
      %vm2988 = vweird.f32 %v2982
      %vm2989 = vmor %vm2987, %vm2988
      %v2990 = vsel %vm2989, %v2982, %v2986
      %v2991 = vand.u32 2147483647, %v2948
      %vm2992 = vcmp.eq.f32.partialorder %v2991, 8.507059e+37
      %v2993 = vand.u32 %v2948, 2147483648
      %v2994 = vor.u32 1.1754944e-38, %v2993
      %v2995 = vsel %vm2992, %v2994, %v2990
      %v2996 = vmul.f32 %v2937, %v2995
      %v2997 = vrcp.pop %v2951
      %v2998 = vmul.f32 %v2951, %v2997
      %v2999 = vsub.f32 1.0, %v2998
      %v3000 = vmul.f32 %v2997, %v2999
      %v3001 = vadd.f32 %v2997, %v3000
      %vm3002 = vweird.f32 %v2951
      %vm3003 = vweird.f32 %v2997
      %vm3004 = vmor %vm3002, %vm3003
      %v3005 = vsel %vm3004, %v2997, %v3001
      %v3006 = vand.u32 2147483647, %v2951
      %vm3007 = vcmp.eq.f32.partialorder %v3006, 8.507059e+37
      %v3008 = vand.u32 %v2951, 2147483648
      %v3009 = vor.u32 1.1754944e-38, %v3008
      %v3010 = vsel %vm3007, %v3009, %v3005
      %v3011 = vmul.f32 %v2939, %v3010
      %3012 = vrot.lane.b32.xlu0 %v2186, 40
      %v3013 = vpop.permute.xlu0 %3012
      %3014 = vrot.lane.b32.xlu0 %v2189, 40
      %v3015 = vpop.permute.xlu0 %3014
      %3016 = vrot.lane.b32.xlu0 %v2192, 40
      %v3017 = vpop.permute.xlu0 %3016
      %3018 = vrot.lane.b32.xlu0 %v2195, 40
      %v3019 = vpop.permute.xlu0 %3018
      %v3025 = vsel %vm633, %v2966, 0
      %v3028 = vsel %vm633, %v2981, 0
      %v3031 = vsel %vm633, %v2996, 0
      %v3034 = vsel %vm633, %v3011, 0
      %3036 = vmatpush.msra.mxu0 0.0
      %3037 = vmatpush.msra.mxu0 0.0
      %3038 = vmatpush.msra.mxu0 0.0
      %3039 = vmatpush.msra.mxu0 0.0
      %3040 = vmatpush.msra.mxu0 0.0
      %3041 = vmatpush.msra.mxu0 0.0
      %3042 = vmatpush.msra.mxu0 0.0
      %3043 = vmatpush.msra.mxu0 0.0
      %3044 = vmatpush.msra.mxu0 0.0
      %3045 = vmatpush.msra.mxu0 0.0
      %3046 = vmatpush.msra.mxu0 0.0
      %3047 = vmatpush.msra.mxu0 0.0
      %3048 = vmatpush.msra.mxu0 %v3019
      %3049 = vmatpush.msra.mxu0 %v3017
      %3050 = vmatpush.msra.mxu0 %v3015
      %3051 = vmatpush.msra.mxu0 %v3013
      %3052 = vmatmul.f32.gmra.mxu0 %v3025
      %v3053 = vpop.f32.mrf.mxu0
      %v3054 = vadd.f32 0.0, %v3053
      %3055 = vmatmul.f32.gmra.mxu0 %v3028
      %v3056 = vpop.f32.mrf.mxu0
      %v3057 = vadd.f32 0.0, %v3056
      %3058 = vmatmul.f32.gmra.mxu0 %v3031
      %v3059 = vpop.f32.mrf.mxu0
      %v3060 = vadd.f32 0.0, %v3059
      %3061 = vmatmul.f32.gmra.mxu0 %v3034
      %v3062 = vpop.f32.mrf.mxu0
      %v3063 = vadd.f32 0.0, %v3062
      %3064 = vdwg.mxu0
      %3069 = vrot.lane.b32.xlu0 %v2618, 8
      %v3070 = vpop.permute.xlu0 %3069
      %3071 = vrot.lane.b32.xlu0 %v2621, 8
      %v3072 = vpop.permute.xlu0 %3071
      %3073 = vrot.lane.b32.xlu0 %v2624, 8
      %v3074 = vpop.permute.xlu0 %3073
      %3075 = vrot.lane.b32.xlu0 %v2627, 8
      %v3076 = vpop.permute.xlu0 %3075
      %3085 = vrot.lane.b32.xlu0 %v2836, 16
      %v3086 = vpop.permute.xlu0 %3085
      %3087 = vrot.lane.b32.xlu0 %v2839, 16
      %v3088 = vpop.permute.xlu0 %3087
      %3089 = vrot.lane.b32.xlu0 %v2842, 16
      %v3090 = vpop.permute.xlu0 %3089
      %3091 = vrot.lane.b32.xlu0 %v2845, 16
      %v3092 = vpop.permute.xlu0 %3091
      %3101 = vrot.lane.b32.xlu0 %v3054, 24
      %v3102 = vpop.permute.xlu0 %3101
      %3103 = vrot.lane.b32.xlu0 %v3057, 24
      %v3104 = vpop.permute.xlu0 %3103
      %3105 = vrot.lane.b32.xlu0 %v3060, 24
      %v3106 = vpop.permute.xlu0 %3105
      %3107 = vrot.lane.b32.xlu0 %v3063, 24
      %v3108 = vpop.permute.xlu0 %3107
      %v3113 = vsel %vm687, %v2400, %v3070
      %v3114 = vsel %vm687, %v2403, %v3072
      %v3115 = vsel %vm687, %v2406, %v3074
      %v3116 = vsel %vm687, %v2409, %v3076
      %v3117 = vsel %vm1596, %v3113, %v3086
      %v3118 = vsel %vm1596, %v3114, %v3088
      %v3119 = vsel %vm1596, %v3115, %v3090
      %v3120 = vsel %vm1596, %v3116, %v3092
      %v3121 = vsel %vm1601, %v3117, %v3102
      %v3122 = vsel %vm1601, %v3118, %v3104
      %v3123 = vsel %vm1601, %v3119, %v3106
      %v3124 = vsel %vm1601, %v3120, %v3108
      %v3125 = vperm.slane %v2149, 1
      %3130 = vrot.lane.b32.xlu0 %v2151, 32
      %v3131 = vpop.permute.xlu0 %3130
      %3132 = vrot.lane.b32.xlu0 %v2152, 32
      %v3133 = vpop.permute.xlu0 %3132
      %3134 = vrot.lane.b32.xlu0 %v2153, 32
      %v3135 = vpop.permute.xlu0 %3134
      %3136 = vrot.lane.b32.xlu0 %v2154, 32
      %v3137 = vpop.permute.xlu0 %3136
      %v3143 = vsel %vm633, %v3121, 0
      %v3146 = vsel %vm633, %v3122, 0
      %v3149 = vsel %vm633, %v3123, 0
      %v3152 = vsel %vm633, %v3124, 0
      %3154 = vmatpush.msra.mxu0 0.0
      %3155 = vmatpush.msra.mxu0 0.0
      %3156 = vmatpush.msra.mxu0 0.0
      %3157 = vmatpush.msra.mxu0 0.0
      %3158 = vmatpush.msra.mxu0 0.0
      %3159 = vmatpush.msra.mxu0 0.0
      %3160 = vmatpush.msra.mxu0 0.0
      %3161 = vmatpush.msra.mxu0 0.0
      %3162 = vmatpush.msra.mxu0 0.0
      %3163 = vmatpush.msra.mxu0 0.0
      %3164 = vmatpush.msra.mxu0 0.0
      %3165 = vmatpush.msra.mxu0 0.0
      %3166 = vmatpush.msra.mxu0 %v3137
      %3167 = vmatpush.msra.mxu0 %v3135
      %3168 = vmatpush.msra.mxu0 %v3133
      %3169 = vmatpush.msra.mxu0 %v3131
      %3170 = vmatmul.f32.gmra.mxu0 %v3143
      %v3171 = vpop.f32.mrf.mxu0
      %v3172 = vadd.f32 %v3125, %v3171
      %3173 = vmatmul.f32.gmra.mxu0 %v3146
      %v3174 = vpop.f32.mrf.mxu0
      %v3175 = vadd.f32 %v3125, %v3174
      %3176 = vmatmul.f32.gmra.mxu0 %v3149
      %v3177 = vpop.f32.mrf.mxu0
      %v3178 = vadd.f32 %v3125, %v3177
      %3179 = vmatmul.f32.gmra.mxu0 %v3152
      %v3180 = vpop.f32.mrf.mxu0
      %v3181 = vadd.f32 %v3125, %v3180
      %3182 = vdwg.mxu0
      %v3183 = vadd.f32 %v2144, %v3172
      %v3184 = vadd.f32 %v2145, %v3175
      %v3185 = vadd.f32 %v2146, %v3178
      %v3186 = vadd.f32 %v2147, %v3181
      %v3187 = vsel %vm633, %v3183, 0.0
      %3188 = vadd.xlane.f32.xlu0 %v3187
      %v3189 = vpop.xlane.xlu0 %3188
      %v3190 = vsel %vm633, %v3184, 0.0
      %3191 = vadd.xlane.f32.xlu0 %v3190
      %v3192 = vpop.xlane.xlu0 %3191
      %v3193 = vsel %vm633, %v3185, 0.0
      %3194 = vadd.xlane.f32.xlu0 %v3193
      %v3195 = vpop.xlane.xlu0 %3194
      %v3196 = vsel %vm633, %v3186, 0.0
      %3197 = vadd.xlane.f32.xlu0 %v3196
      %v3198 = vpop.xlane.xlu0 %3197
      %v3199 = vmul.f32 %v3189, %v1686
      %v3200 = vmul.f32 %v3192, %v1686
      %v3201 = vmul.f32 %v3195, %v1686
      %v3202 = vmul.f32 %v3198, %v1686
      %v3203 = vsub.f32 %v3183, %v3199
      %v3204 = vsub.f32 %v3184, %v3200
      %v3205 = vsub.f32 %v3185, %v3201
      %v3206 = vsub.f32 %v3186, %v3202
      %v3207 = vmul.f32 %v3203, %v3203
      %v3208 = vmul.f32 %v3204, %v3204
      %v3209 = vmul.f32 %v3205, %v3205
      %v3210 = vmul.f32 %v3206, %v3206
      %v3211 = vsel %vm633, %v3207, 0.0
      %3212 = vadd.xlane.f32.xlu0 %v3211
      %v3213 = vpop.xlane.xlu0 %3212
      %v3214 = vsel %vm633, %v3208, 0.0
      %3215 = vadd.xlane.f32.xlu0 %v3214
      %v3216 = vpop.xlane.xlu0 %3215
      %v3217 = vsel %vm633, %v3209, 0.0
      %3218 = vadd.xlane.f32.xlu0 %v3217
      %v3219 = vpop.xlane.xlu0 %3218
      %v3220 = vsel %vm633, %v3210, 0.0
      %3221 = vadd.xlane.f32.xlu0 %v3220
      %v3222 = vpop.xlane.xlu0 %3221
      %v3223 = vmul.f32 %v3213, %v1686
      %v3224 = vmul.f32 %v3216, %v1686
      %v3225 = vmul.f32 %v3219, %v1686
      %v3226 = vmul.f32 %v3222, %v1686
      %v3227 = vadd.f32 %v3223, 1e-05
      %v3228 = vadd.f32 %v3224, 1e-05
      %v3229 = vadd.f32 %v3225, 1e-05
      %v3230 = vadd.f32 %v3226, 1e-05
      %v3231 = vrsqrt.pop %v3227
      %v3232 = vmul.f32 %v3231, %v3227
      %v3233 = vmul.f32 %v3232, %v3231
      %v3234 = vmul.f32 0.5, %v3233
      %v3235 = vsub.f32 1.5, %v3234
      %v3236 = vmul.f32 %v3231, %v3235
      %vm3237 = vweird.f32 %v3227
      %vm3238 = vweird.f32 %v3231
      %vm3239 = vmor %vm3237, %vm3238
      %v3240 = vsel %vm3239, %v3231, %v3236
      %v3241 = vrsqrt.pop %v3228
      %v3242 = vmul.f32 %v3241, %v3228
      %v3243 = vmul.f32 %v3242, %v3241
      %v3244 = vmul.f32 0.5, %v3243
      %v3245 = vsub.f32 1.5, %v3244
      %v3246 = vmul.f32 %v3241, %v3245
      %vm3247 = vweird.f32 %v3228
      %vm3248 = vweird.f32 %v3241
      %vm3249 = vmor %vm3247, %vm3248
      %v3250 = vsel %vm3249, %v3241, %v3246
      %v3251 = vrsqrt.pop %v3229
      %v3252 = vmul.f32 %v3251, %v3229
      %v3253 = vmul.f32 %v3252, %v3251
      %v3254 = vmul.f32 0.5, %v3253
      %v3255 = vsub.f32 1.5, %v3254
      %v3256 = vmul.f32 %v3251, %v3255
      %vm3257 = vweird.f32 %v3229
      %vm3258 = vweird.f32 %v3251
      %vm3259 = vmor %vm3257, %vm3258
      %v3260 = vsel %vm3259, %v3251, %v3256
      %v3261 = vrsqrt.pop %v3230
      %v3262 = vmul.f32 %v3261, %v3230
      %v3263 = vmul.f32 %v3262, %v3261
      %v3264 = vmul.f32 0.5, %v3263
      %v3265 = vsub.f32 1.5, %v3264
      %v3266 = vmul.f32 %v3261, %v3265
      %vm3267 = vweird.f32 %v3230
      %vm3268 = vweird.f32 %v3261
      %vm3269 = vmor %vm3267, %vm3268
      %v3270 = vsel %vm3269, %v3261, %v3266
      %v3271 = vmul.f32 %v3203, %v3240
      %v3272 = vmul.f32 %v3204, %v3250
      %v3273 = vmul.f32 %v3205, %v3260
      %v3274 = vmul.f32 %v3206, %v3270
      %v3275 = vperm.slane %v2149, 4
      %v3276 = vmul.f32 %v3271, %v3275
      %v3277 = vmul.f32 %v3272, %v3275
      %v3278 = vmul.f32 %v3273, %v3275
      %v3279 = vmul.f32 %v3274, %v3275
      %v3280 = vperm.slane %v2149, 5
      %v3281 = vadd.f32 %v3276, %v3280
      %v3282 = vadd.f32 %v3277, %v3280
      %v3283 = vadd.f32 %v3278, %v3280
      %v3284 = vadd.f32 %v3279, %v3280
      %v3285 = vld [vmem:[%s2150 + $0x8] sm:$0xff]
      %v3286 = vld [vmem:[%s2150 + $0x18] sm:$0xff]
      %v3287 = vld [vmem:[%s2150 + $0x28] sm:$0xff]
      %v3288 = vld [vmem:[%s2150 + $0x38] sm:$0xff]
      %v3289 = vperm.slane %v2149, 2
      %v3291 = vsel %vm633, %v3281, 0
      %v3294 = vsel %vm633, %v3282, 0
      %v3297 = vsel %vm633, %v3283, 0
      %v3300 = vsel %vm633, %v3284, 0
      %3302 = vmatpush.msra.mxu0 0.0
      %3303 = vmatpush.msra.mxu0 0.0
      %3304 = vmatpush.msra.mxu0 0.0
      %3305 = vmatpush.msra.mxu0 0.0
      %3306 = vmatpush.msra.mxu0 0.0
      %3307 = vmatpush.msra.mxu0 0.0
      %3308 = vmatpush.msra.mxu0 0.0
      %3309 = vmatpush.msra.mxu0 0.0
      %3310 = vmatpush.msra.mxu0 0.0
      %3311 = vmatpush.msra.mxu0 0.0
      %3312 = vmatpush.msra.mxu0 0.0
      %3313 = vmatpush.msra.mxu0 0.0
      %3314 = vmatpush.msra.mxu0 %v3288
      %3315 = vmatpush.msra.mxu0 %v3287
      %3316 = vmatpush.msra.mxu0 %v3286
      %3317 = vmatpush.msra.mxu0 %v3285
      %3318 = vmatmul.f32.gmra.mxu0 %v3291
      %v3319 = vpop.f32.mrf.mxu0
      %v3320 = vadd.f32 %v3289, %v3319
      %3321 = vmatmul.f32.gmra.mxu0 %v3294
      %v3322 = vpop.f32.mrf.mxu0
      %v3323 = vadd.f32 %v3289, %v3322
      %3324 = vmatmul.f32.gmra.mxu0 %v3297
      %v3325 = vpop.f32.mrf.mxu0
      %v3326 = vadd.f32 %v3289, %v3325
      %3327 = vmatmul.f32.gmra.mxu0 %v3300
      %v3328 = vpop.f32.mrf.mxu0
      %v3329 = vadd.f32 %v3289, %v3328
      %3330 = vdwg.mxu0
      %v3331 = vmul.f32 %v3320, 0.5
      %v3332 = vmul.f32 %v3323, 0.5
      %v3333 = vmul.f32 %v3326, 0.5
      %v3334 = vmul.f32 %v3329, 0.5
      %v3335 = vmul.f32 %v3320, 0.70710677
      %v3336 = vmul.f32 %v3323, 0.70710677
      %v3337 = vmul.f32 %v3326, 0.70710677
      %v3338 = vmul.f32 %v3329, 0.70710677
      %v3339 = vmul.f32 %v3335, %v3335
      %v3340 = vmin.f32 16.0, %v3339
      %v3341 = vmul.f32 %v3340, 2.1237322e-06
      %v3342 = vadd.f32 %v3341, 0.00028619796
      %v3343 = vmul.f32 %v3340, %v3342
      %v3344 = vadd.f32 %v3343, 0.0036580483
      %v3345 = vmul.f32 %v3340, %v3344
      %v3346 = vadd.f32 %v3345, 0.05243302
      %v3347 = vmul.f32 %v3340, %v3346
      %v3348 = vadd.f32 %v3347, 0.18741608
      %v3349 = vmul.f32 %v3340, %v3348
      %v3350 = vadd.f32 %v3349, 1.1283791
      %v3351 = vmul.f32 %v3335, %v3350
      %v3352 = vmul.f32 %v3340, 3.8918573e-05
      %v3353 = vadd.f32 %v3352, 0.001143296
      %v3354 = vmul.f32 %v3340, %v3353
      %v3355 = vadd.f32 %v3354, 0.014752088
      %v3356 = vmul.f32 %v3340, %v3355
      %v3357 = vadd.f32 %v3356, 0.112945676
      %v3358 = vmul.f32 %v3340, %v3357
      %v3359 = vadd.f32 %v3358, 0.4994258
      %v3360 = vmul.f32 %v3340, %v3359
      %v3361 = vadd.f32 %v3360, 1.0
      %v3362 = vrcp.pop %v3361
      %v3363 = vmul.f32 %v3361, %v3362
      %v3364 = vsub.f32 1.0, %v3363
      %v3365 = vmul.f32 %v3362, %v3364
      %v3366 = vadd.f32 %v3362, %v3365
      %vm3367 = vweird.f32 %v3361
      %vm3368 = vweird.f32 %v3362
      %vm3369 = vmor %vm3367, %vm3368
      %v3370 = vsel %vm3369, %v3362, %v3366
      %v3371 = vand.u32 2147483647, %v3361
      %vm3372 = vcmp.eq.f32.partialorder %v3371, 8.507059e+37
      %v3373 = vand.u32 %v3361, 2147483648
      %v3374 = vor.u32 1.1754944e-38, %v3373
      %v3375 = vsel %vm3372, %v3374, %v3370
      %v3376 = vmul.f32 %v3351, %v3375
      %v3377 = vmin.f32 %v3376, 1.0
      %v3378 = vmax.f32 %v3377, -1.0
      %v3379 = vmul.f32 %v3336, %v3336
      %v3380 = vmin.f32 16.0, %v3379
      %v3381 = vmul.f32 %v3380, 2.1237322e-06
      %v3382 = vadd.f32 %v3381, 0.00028619796
      %v3383 = vmul.f32 %v3380, %v3382
      %v3384 = vadd.f32 %v3383, 0.0036580483
      %v3385 = vmul.f32 %v3380, %v3384
      %v3386 = vadd.f32 %v3385, 0.05243302
      %v3387 = vmul.f32 %v3380, %v3386
      %v3388 = vadd.f32 %v3387, 0.18741608
      %v3389 = vmul.f32 %v3380, %v3388
      %v3390 = vadd.f32 %v3389, 1.1283791
      %v3391 = vmul.f32 %v3336, %v3390
      %v3392 = vmul.f32 %v3380, 3.8918573e-05
      %v3393 = vadd.f32 %v3392, 0.001143296
      %v3394 = vmul.f32 %v3380, %v3393
      %v3395 = vadd.f32 %v3394, 0.014752088
      %v3396 = vmul.f32 %v3380, %v3395
      %v3397 = vadd.f32 %v3396, 0.112945676
      %v3398 = vmul.f32 %v3380, %v3397
      %v3399 = vadd.f32 %v3398, 0.4994258
      %v3400 = vmul.f32 %v3380, %v3399
      %v3401 = vadd.f32 %v3400, 1.0
      %v3402 = vrcp.pop %v3401
      %v3403 = vmul.f32 %v3401, %v3402
      %v3404 = vsub.f32 1.0, %v3403
      %v3405 = vmul.f32 %v3402, %v3404
      %v3406 = vadd.f32 %v3402, %v3405
      %vm3407 = vweird.f32 %v3401
      %vm3408 = vweird.f32 %v3402
      %vm3409 = vmor %vm3407, %vm3408
      %v3410 = vsel %vm3409, %v3402, %v3406
      %v3411 = vand.u32 2147483647, %v3401
      %vm3412 = vcmp.eq.f32.partialorder %v3411, 8.507059e+37
      %v3413 = vand.u32 %v3401, 2147483648
      %v3414 = vor.u32 1.1754944e-38, %v3413
      %v3415 = vsel %vm3412, %v3414, %v3410
      %v3416 = vmul.f32 %v3391, %v3415
      %v3417 = vmin.f32 %v3416, 1.0
      %v3418 = vmax.f32 %v3417, -1.0
      %v3419 = vmul.f32 %v3337, %v3337
      %v3420 = vmin.f32 16.0, %v3419
      %v3421 = vmul.f32 %v3420, 2.1237322e-06
      %v3422 = vadd.f32 %v3421, 0.00028619796
      %v3423 = vmul.f32 %v3420, %v3422
      %v3424 = vadd.f32 %v3423, 0.0036580483
      %v3425 = vmul.f32 %v3420, %v3424
      %v3426 = vadd.f32 %v3425, 0.05243302
      %v3427 = vmul.f32 %v3420, %v3426
      %v3428 = vadd.f32 %v3427, 0.18741608
      %v3429 = vmul.f32 %v3420, %v3428
      %v3430 = vadd.f32 %v3429, 1.1283791
      %v3431 = vmul.f32 %v3337, %v3430
      %v3432 = vmul.f32 %v3420, 3.8918573e-05
      %v3433 = vadd.f32 %v3432, 0.001143296
      %v3434 = vmul.f32 %v3420, %v3433
      %v3435 = vadd.f32 %v3434, 0.014752088
      %v3436 = vmul.f32 %v3420, %v3435
      %v3437 = vadd.f32 %v3436, 0.112945676
      %v3438 = vmul.f32 %v3420, %v3437
      %v3439 = vadd.f32 %v3438, 0.4994258
      %v3440 = vmul.f32 %v3420, %v3439
      %v3441 = vadd.f32 %v3440, 1.0
      %v3442 = vrcp.pop %v3441
      %v3443 = vmul.f32 %v3441, %v3442
      %v3444 = vsub.f32 1.0, %v3443
      %v3445 = vmul.f32 %v3442, %v3444
      %v3446 = vadd.f32 %v3442, %v3445
      %vm3447 = vweird.f32 %v3441
      %vm3448 = vweird.f32 %v3442
      %vm3449 = vmor %vm3447, %vm3448
      %v3450 = vsel %vm3449, %v3442, %v3446
      %v3451 = vand.u32 2147483647, %v3441
      %vm3452 = vcmp.eq.f32.partialorder %v3451, 8.507059e+37
      %v3453 = vand.u32 %v3441, 2147483648
      %v3454 = vor.u32 1.1754944e-38, %v3453
      %v3455 = vsel %vm3452, %v3454, %v3450
      %v3456 = vmul.f32 %v3431, %v3455
      %v3457 = vmin.f32 %v3456, 1.0
      %v3458 = vmax.f32 %v3457, -1.0
      %v3459 = vmul.f32 %v3338, %v3338
      %v3460 = vmin.f32 16.0, %v3459
      %v3461 = vmul.f32 %v3460, 2.1237322e-06
      %v3462 = vadd.f32 %v3461, 0.00028619796
      %v3463 = vmul.f32 %v3460, %v3462
      %v3464 = vadd.f32 %v3463, 0.0036580483
      %v3465 = vmul.f32 %v3460, %v3464
      %v3466 = vadd.f32 %v3465, 0.05243302
      %v3467 = vmul.f32 %v3460, %v3466
      %v3468 = vadd.f32 %v3467, 0.18741608
      %v3469 = vmul.f32 %v3460, %v3468
      %v3470 = vadd.f32 %v3469, 1.1283791
      %v3471 = vmul.f32 %v3338, %v3470
      %v3472 = vmul.f32 %v3460, 3.8918573e-05
      %v3473 = vadd.f32 %v3472, 0.001143296
      %v3474 = vmul.f32 %v3460, %v3473
      %v3475 = vadd.f32 %v3474, 0.014752088
      %v3476 = vmul.f32 %v3460, %v3475
      %v3477 = vadd.f32 %v3476, 0.112945676
      %v3478 = vmul.f32 %v3460, %v3477
      %v3479 = vadd.f32 %v3478, 0.4994258
      %v3480 = vmul.f32 %v3460, %v3479
      %v3481 = vadd.f32 %v3480, 1.0
      %v3482 = vrcp.pop %v3481
      %v3483 = vmul.f32 %v3481, %v3482
      %v3484 = vsub.f32 1.0, %v3483
      %v3485 = vmul.f32 %v3482, %v3484
      %v3486 = vadd.f32 %v3482, %v3485
      %vm3487 = vweird.f32 %v3481
      %vm3488 = vweird.f32 %v3482
      %vm3489 = vmor %vm3487, %vm3488
      %v3490 = vsel %vm3489, %v3482, %v3486
      %v3491 = vand.u32 2147483647, %v3481
      %vm3492 = vcmp.eq.f32.partialorder %v3491, 8.507059e+37
      %v3493 = vand.u32 %v3481, 2147483648
      %v3494 = vor.u32 1.1754944e-38, %v3493
      %v3495 = vsel %vm3492, %v3494, %v3490
      %v3496 = vmul.f32 %v3471, %v3495
      %v3497 = vmin.f32 %v3496, 1.0
      %v3498 = vmax.f32 %v3497, -1.0
      %v3499 = vadd.f32 %v3378, 1.0
      %v3500 = vadd.f32 %v3418, 1.0
      %v3501 = vadd.f32 %v3458, 1.0
      %v3502 = vadd.f32 %v3498, 1.0
      %v3503 = vmul.f32 %v3331, %v3499
      %v3504 = vmul.f32 %v3332, %v3500
      %v3505 = vmul.f32 %v3333, %v3501
      %v3506 = vmul.f32 %v3334, %v3502
      %s3507 = scalar_lea.vmem %s7, 64
      %v3508 = vld [vmem:[%s3507] sm:$0xff]
      %v3509 = vld [vmem:[%s3507 + $0x8] sm:$0xff]
      %v3510 = vld [vmem:[%s3507 + $0x10] sm:$0xff]
      %v3511 = vld [vmem:[%s3507 + $0x18] sm:$0xff]
      %v3512 = vld [vmem:[%s3507 + $0x20] sm:$0xff]
      %v3513 = vld [vmem:[%s3507 + $0x28] sm:$0xff]
      %v3514 = vld [vmem:[%s3507 + $0x30] sm:$0xff]
      %v3515 = vld [vmem:[%s3507 + $0x38] sm:$0xff]
      %v3516 = vperm.slane %v2149, 3
      %v3518 = vsel %vm2004, %v3503, 0
      %v3521 = vsel %vm2004, %v3504, 0
      %v3524 = vsel %vm2004, %v3505, 0
      %v3527 = vsel %vm2004, %v3506, 0
      %3529 = vmatpush.msra.mxu0 0.0
      %3530 = vmatpush.msra.mxu0 0.0
      %3531 = vmatpush.msra.mxu0 0.0
      %3532 = vmatpush.msra.mxu0 0.0
      %3533 = vmatpush.msra.mxu0 0.0
      %3534 = vmatpush.msra.mxu0 0.0
      %3535 = vmatpush.msra.mxu0 0.0
      %3536 = vmatpush.msra.mxu0 0.0
      %3537 = vmatpush.msra.mxu0 %v3515
      %3538 = vmatpush.msra.mxu0 %v3514
      %3539 = vmatpush.msra.mxu0 %v3513
      %3540 = vmatpush.msra.mxu0 %v3512
      %3541 = vmatpush.msra.mxu0 %v3511
      %3542 = vmatpush.msra.mxu0 %v3510
      %3543 = vmatpush.msra.mxu0 %v3509
      %3544 = vmatpush.msra.mxu0 %v3508
      %3545 = vmatmul.f32.gmra.mxu0 %v3518
      %v3546 = vpop.f32.mrf.mxu0
      %v3547 = vadd.f32 %v3516, %v3546
      %3548 = vmatmul.f32.gmra.mxu0 %v3521
      %v3549 = vpop.f32.mrf.mxu0
      %v3550 = vadd.f32 %v3516, %v3549
      %3551 = vmatmul.f32.gmra.mxu0 %v3524
      %v3552 = vpop.f32.mrf.mxu0
      %v3553 = vadd.f32 %v3516, %v3552
      %3554 = vmatmul.f32.gmra.mxu0 %v3527
      %v3555 = vpop.f32.mrf.mxu0
      %v3556 = vadd.f32 %v3516, %v3555
      %3557 = vdwg.mxu0
      %v3558 = vadd.f32 %v3281, %v3547
      %v3559 = vadd.f32 %v3282, %v3550
      %v3560 = vadd.f32 %v3283, %v3553
      %v3561 = vadd.f32 %v3284, %v3556
      %v3562 = vsel %vm633, %v3558, 0.0
      %3563 = vadd.xlane.f32.xlu0 %v3562
      %v3564 = vpop.xlane.xlu0 %3563
      %v3565 = vsel %vm633, %v3559, 0.0
      %3566 = vadd.xlane.f32.xlu0 %v3565
      %v3567 = vpop.xlane.xlu0 %3566
      %v3568 = vsel %vm633, %v3560, 0.0
      %3569 = vadd.xlane.f32.xlu0 %v3568
      %v3570 = vpop.xlane.xlu0 %3569
      %v3571 = vsel %vm633, %v3561, 0.0
      %3572 = vadd.xlane.f32.xlu0 %v3571
      %v3573 = vpop.xlane.xlu0 %3572
      %v3574 = vmul.f32 %v3564, %v1686
      %v3575 = vmul.f32 %v3567, %v1686
      %v3576 = vmul.f32 %v3570, %v1686
      %v3577 = vmul.f32 %v3573, %v1686
      %v3578 = vsub.f32 %v3558, %v3574
      %v3579 = vsub.f32 %v3559, %v3575
      %v3580 = vsub.f32 %v3560, %v3576
      %v3581 = vsub.f32 %v3561, %v3577
      %v3582 = vmul.f32 %v3578, %v3578
      %v3583 = vmul.f32 %v3579, %v3579
      %v3584 = vmul.f32 %v3580, %v3580
      %v3585 = vmul.f32 %v3581, %v3581
      %v3586 = vsel %vm633, %v3582, 0.0
      %3587 = vadd.xlane.f32.xlu0 %v3586
      %v3588 = vpop.xlane.xlu0 %3587
      %v3589 = vsel %vm633, %v3583, 0.0
      %3590 = vadd.xlane.f32.xlu0 %v3589
      %v3591 = vpop.xlane.xlu0 %3590
      %v3592 = vsel %vm633, %v3584, 0.0
      %3593 = vadd.xlane.f32.xlu0 %v3592
      %v3594 = vpop.xlane.xlu0 %3593
      %v3595 = vsel %vm633, %v3585, 0.0
      %3596 = vadd.xlane.f32.xlu0 %v3595
      %v3597 = vpop.xlane.xlu0 %3596
      %v3598 = vmul.f32 %v3588, %v1686
      %v3599 = vmul.f32 %v3591, %v1686
      %v3600 = vmul.f32 %v3594, %v1686
      %v3601 = vmul.f32 %v3597, %v1686
      %v3602 = vadd.f32 %v3598, 1e-05
      %v3603 = vadd.f32 %v3599, 1e-05
      %v3604 = vadd.f32 %v3600, 1e-05
      %v3605 = vadd.f32 %v3601, 1e-05
      %v3606 = vrsqrt.pop %v3602
      %v3607 = vmul.f32 %v3606, %v3602
      %v3608 = vmul.f32 %v3607, %v3606
      %v3609 = vmul.f32 0.5, %v3608
      %v3610 = vsub.f32 1.5, %v3609
      %v3611 = vmul.f32 %v3606, %v3610
      %vm3612 = vweird.f32 %v3602
      %vm3613 = vweird.f32 %v3606
      %vm3614 = vmor %vm3612, %vm3613
      %v3615 = vsel %vm3614, %v3606, %v3611
      %v3616 = vrsqrt.pop %v3603
      %v3617 = vmul.f32 %v3616, %v3603
      %v3618 = vmul.f32 %v3617, %v3616
      %v3619 = vmul.f32 0.5, %v3618
      %v3620 = vsub.f32 1.5, %v3619
      %v3621 = vmul.f32 %v3616, %v3620
      %vm3622 = vweird.f32 %v3603
      %vm3623 = vweird.f32 %v3616
      %vm3624 = vmor %vm3622, %vm3623
      %v3625 = vsel %vm3624, %v3616, %v3621
      %v3626 = vrsqrt.pop %v3604
      %v3627 = vmul.f32 %v3626, %v3604
      %v3628 = vmul.f32 %v3627, %v3626
      %v3629 = vmul.f32 0.5, %v3628
      %v3630 = vsub.f32 1.5, %v3629
      %v3631 = vmul.f32 %v3626, %v3630
      %vm3632 = vweird.f32 %v3604
      %vm3633 = vweird.f32 %v3626
      %vm3634 = vmor %vm3632, %vm3633
      %v3635 = vsel %vm3634, %v3626, %v3631
      %v3636 = vrsqrt.pop %v3605
      %v3637 = vmul.f32 %v3636, %v3605
      %v3638 = vmul.f32 %v3637, %v3636
      %v3639 = vmul.f32 0.5, %v3638
      %v3640 = vsub.f32 1.5, %v3639
      %v3641 = vmul.f32 %v3636, %v3640
      %vm3642 = vweird.f32 %v3605
      %vm3643 = vweird.f32 %v3636
      %vm3644 = vmor %vm3642, %vm3643
      %v3645 = vsel %vm3644, %v3636, %v3641
      %v3646 = vmul.f32 %v3578, %v3615
      %v3647 = vmul.f32 %v3579, %v3625
      %v3648 = vmul.f32 %v3580, %v3635
      %v3649 = vmul.f32 %v3581, %v3645
      %v3650 = vperm.slane %v2149, 6
      %v3651 = vmul.f32 %v3646, %v3650
      %v3652 = vmul.f32 %v3647, %v3650
      %v3653 = vmul.f32 %v3648, %v3650
      %v3654 = vmul.f32 %v3649, %v3650
      %v3655 = vperm.slane %v2149, 7
      %v3656 = vadd.f32 %v3651, %v3655
      %v3657 = vadd.f32 %v3652, %v3655
      %v3658 = vadd.f32 %v3653, %v3655
      %v3659 = vadd.f32 %v3654, %v3655
      %v3660 = vld [vmem:[%s5 + $0x1] sm:$0x1]
      %v3661 = vld [vmem:[%s5 + $0x2] sm:$0x1]
      %v3662 = vsel %vm633, %v3656, 0.0
      %3663 = vadd.xlane.f32.xlu0 %v3662
      %v3664 = vpop.xlane.xlu0 %3663
      %v3665 = vsel %vm633, %v3657, 0.0
      %3666 = vadd.xlane.f32.xlu0 %v3665
      %v3667 = vpop.xlane.xlu0 %3666
      %v3668 = vsel %vm633, %v3658, 0.0
      %3669 = vadd.xlane.f32.xlu0 %v3668
      %v3670 = vpop.xlane.xlu0 %3669
      %v3671 = vsel %vm633, %v3659, 0.0
      %3672 = vadd.xlane.f32.xlu0 %v3671
      %v3673 = vpop.xlane.xlu0 %3672
      %v3674 = vmul.f32 %v3664, %v1686
      %v3675 = vmul.f32 %v3667, %v1686
      %v3676 = vmul.f32 %v3670, %v1686
      %v3677 = vmul.f32 %v3673, %v1686
      %v3678 = vsub.f32 %v3656, %v3674
      %v3679 = vsub.f32 %v3657, %v3675
      %v3680 = vsub.f32 %v3658, %v3676
      %v3681 = vsub.f32 %v3659, %v3677
      %v3682 = vmul.f32 %v3678, %v3678
      %v3683 = vmul.f32 %v3679, %v3679
      %v3684 = vmul.f32 %v3680, %v3680
      %v3685 = vmul.f32 %v3681, %v3681
      %v3686 = vsel %vm633, %v3682, 0.0
      %3687 = vadd.xlane.f32.xlu0 %v3686
      %v3688 = vpop.xlane.xlu0 %3687
      %v3689 = vsel %vm633, %v3683, 0.0
      %3690 = vadd.xlane.f32.xlu0 %v3689
      %v3691 = vpop.xlane.xlu0 %3690
      %v3692 = vsel %vm633, %v3684, 0.0
      %3693 = vadd.xlane.f32.xlu0 %v3692
      %v3694 = vpop.xlane.xlu0 %3693
      %v3695 = vsel %vm633, %v3685, 0.0
      %3696 = vadd.xlane.f32.xlu0 %v3695
      %v3697 = vpop.xlane.xlu0 %3696
      %v3698 = vmul.f32 %v3688, %v1686
      %v3699 = vmul.f32 %v3691, %v1686
      %v3700 = vmul.f32 %v3694, %v1686
      %v3701 = vmul.f32 %v3697, %v1686
      %v3702 = vadd.f32 %v3698, 1e-05
      %v3703 = vadd.f32 %v3699, 1e-05
      %v3704 = vadd.f32 %v3700, 1e-05
      %v3705 = vadd.f32 %v3701, 1e-05
      %v3706 = vrsqrt.pop %v3702
      %v3707 = vmul.f32 %v3706, %v3702
      %v3708 = vmul.f32 %v3707, %v3706
      %v3709 = vmul.f32 0.5, %v3708
      %v3710 = vsub.f32 1.5, %v3709
      %v3711 = vmul.f32 %v3706, %v3710
      %vm3712 = vweird.f32 %v3702
      %vm3713 = vweird.f32 %v3706
      %vm3714 = vmor %vm3712, %vm3713
      %v3715 = vsel %vm3714, %v3706, %v3711
      %v3716 = vrsqrt.pop %v3703
      %v3717 = vmul.f32 %v3716, %v3703
      %v3718 = vmul.f32 %v3717, %v3716
      %v3719 = vmul.f32 0.5, %v3718
      %v3720 = vsub.f32 1.5, %v3719
      %v3721 = vmul.f32 %v3716, %v3720
      %vm3722 = vweird.f32 %v3703
      %vm3723 = vweird.f32 %v3716
      %vm3724 = vmor %vm3722, %vm3723
      %v3725 = vsel %vm3724, %v3716, %v3721
      %v3726 = vrsqrt.pop %v3704
      %v3727 = vmul.f32 %v3726, %v3704
      %v3728 = vmul.f32 %v3727, %v3726
      %v3729 = vmul.f32 0.5, %v3728
      %v3730 = vsub.f32 1.5, %v3729
      %v3731 = vmul.f32 %v3726, %v3730
      %vm3732 = vweird.f32 %v3704
      %vm3733 = vweird.f32 %v3726
      %vm3734 = vmor %vm3732, %vm3733
      %v3735 = vsel %vm3734, %v3726, %v3731
      %v3736 = vrsqrt.pop %v3705
      %v3737 = vmul.f32 %v3736, %v3705
      %v3738 = vmul.f32 %v3737, %v3736
      %v3739 = vmul.f32 0.5, %v3738
      %v3740 = vsub.f32 1.5, %v3739
      %v3741 = vmul.f32 %v3736, %v3740
      %vm3742 = vweird.f32 %v3705
      %vm3743 = vweird.f32 %v3736
      %vm3744 = vmor %vm3742, %vm3743
      %v3745 = vsel %vm3744, %v3736, %v3741
      %v3746 = vmul.f32 %v3678, %v3715
      %v3747 = vmul.f32 %v3679, %v3725
      %v3748 = vmul.f32 %v3680, %v3735
      %v3749 = vmul.f32 %v3681, %v3745
      %v3750 = vperm.slane %v3660, 0
      %v3751 = vmul.f32 %v3746, %v3750
      %v3752 = vmul.f32 %v3747, %v3750
      %v3753 = vmul.f32 %v3748, %v3750
      %v3754 = vmul.f32 %v3749, %v3750
      %v3755 = vperm.slane %v3661, 0
      %v3756 = vadd.f32 %v3751, %v3755
      %v3757 = vadd.f32 %v3752, %v3755
      %v3758 = vadd.f32 %v3753, %v3755
      %v3759 = vadd.f32 %v3754, %v3755
      %v3760 = vld [vmem:[%s558] sm:$0xf]
      %v3761 = vld [vmem:[%s9] sm:$0xff]
      %v3762 = vld [vmem:[%s9 + $0x8] sm:$0xff]
      %v3763 = vld [vmem:[%s9 + $0x10] sm:$0xff]
      %v3764 = vld [vmem:[%s9 + $0x18] sm:$0xff]
      %v3765 = vld [vmem:[%s10] sm:$0x1]
      %v3766 = vperm.slane %v3765, 0
      %v3768 = vsel %vm633, %v3760, 0
      %3770 = vmatpush.msra.mxu0 0.0
      %3771 = vmatpush.msra.mxu0 0.0
      %3772 = vmatpush.msra.mxu0 0.0
      %3773 = vmatpush.msra.mxu0 0.0
      %3774 = vmatpush.msra.mxu0 0.0
      %3775 = vmatpush.msra.mxu0 0.0
      %3776 = vmatpush.msra.mxu0 0.0
      %3777 = vmatpush.msra.mxu0 0.0
      %3778 = vmatpush.msra.mxu0 0.0
      %3779 = vmatpush.msra.mxu0 0.0
      %3780 = vmatpush.msra.mxu0 0.0
      %3781 = vmatpush.msra.mxu0 0.0
      %3782 = vmatpush.msra.mxu0 %v3764
      %3783 = vmatpush.msra.mxu0 %v3763
      %3784 = vmatpush.msra.mxu0 %v3762
      %3785 = vmatpush.msra.mxu0 %v3761
      %3786 = vmatmul.f32.gmra.mxu0 %v3768
      %v3787 = vpop.f32.mrf.mxu0
      %v3788 = vadd.f32 %v3766, %v3787
      %3789 = vdwg.mxu0
      %v3790 = vld [vmem:[%s13] sm:$0xff]
      %v3791 = vld [vmem:[%s11] sm:$0xff]
      %v3792 = vld [vmem:[%s11 + $0x10] sm:$0xff]
      %v3793 = vld [vmem:[%s11 + $0x20] sm:$0xff]
      %v3794 = vld [vmem:[%s11 + $0x30] sm:$0xff]
      %v3795 = vperm.slane %v3790, 0
      %v3797 = vsel %vm633, %v3788, 0
      %3799 = vmatpush.msra.mxu0 0.0
      %3800 = vmatpush.msra.mxu0 0.0
      %3801 = vmatpush.msra.mxu0 0.0
      %3802 = vmatpush.msra.mxu0 0.0
      %3803 = vmatpush.msra.mxu0 0.0
      %3804 = vmatpush.msra.mxu0 0.0
      %3805 = vmatpush.msra.mxu0 0.0
      %3806 = vmatpush.msra.mxu0 0.0
      %3807 = vmatpush.msra.mxu0 0.0
      %3808 = vmatpush.msra.mxu0 0.0
      %3809 = vmatpush.msra.mxu0 0.0
      %3810 = vmatpush.msra.mxu0 0.0
      %3811 = vmatpush.msra.mxu0 %v3794
      %3812 = vmatpush.msra.mxu0 %v3793
      %3813 = vmatpush.msra.mxu0 %v3792
      %3814 = vmatpush.msra.mxu0 %v3791
      %3815 = vmatmul.f32.gmra.mxu0 %v3797
      %v3816 = vpop.f32.mrf.mxu0
      %v3817 = vadd.f32 %v3795, %v3816
      %3818 = vdwg.mxu0
      %3820 = vrot.lane.b32.xlu0 %v3817, 96
      %v3821 = vpop.permute.xlu0 %3820
      %v3822 = vsel %vm687, %v3817, 0
      %v3824 = vsel %vm687, %v3821, 0
      %3826 = vmatpush.xpose.msra.mxu0 0.0
      %3827 = vmatpush.xpose.msra.mxu0 0.0
      %3828 = vmatpush.xpose.msra.mxu0 0.0
      %3829 = vmatpush.xpose.msra.mxu0 0.0
      %3830 = vmatpush.xpose.msra.mxu0 0.0
      %3831 = vmatpush.xpose.msra.mxu0 0.0
      %3832 = vmatpush.xpose.msra.mxu0 0.0
      %3833 = vmatpush.xpose.msra.mxu0 0.0
      %3834 = vmatpush.xpose.msra.mxu0 0.0
      %3835 = vmatpush.xpose.msra.mxu0 0.0
      %3836 = vmatpush.xpose.msra.mxu0 0.0
      %3837 = vmatpush.xpose.msra.mxu0 0.0
      %3838 = vmatpush.xpose.msra.mxu0 0.0
      %3839 = vmatpush.xpose.msra.mxu0 0.0
      %3840 = vmatpush.xpose.msra.mxu0 0.0
      %3841 = vmatpush.xpose.msra.mxu0 %v3824
      %3842 = vmatmul.f32.gmra.mxu0 %v3822
      %v3843 = vpop.f32.mrf.mxu0
      %v3844 = vadd.f32 0.0, %v3843
      %3845 = vdwg.mxu0
      %v3846 = vmul.f32 %v3844, 0.35355338
      %vm3847 = vcmask 27648
      %v3848 = vsel %vm3847, %v3846, -inf
      %3849 = vmax.xlane.f32.xlu0 %v3848
      %v3850 = vpop.xlane.xlu0 %3849
      %v3851 = vsub.f32 %v3846, %v3850
      %v3852 = vmul.f32 %v3851, 1.442695
      %v3853 = vpow.pop %v3852
      %v3854 = vsel %vm3847, %v3853, 0.0
      %3855 = vadd.xlane.f32.xlu0 %v3854
      %v3856 = vpop.xlane.xlu0 %3855
      %v3857 = vrcp.pop %v3856
      %v3858 = vmul.f32 %v3856, %v3857
      %v3859 = vsub.f32 1.0, %v3858
      %v3860 = vmul.f32 %v3857, %v3859
      %v3861 = vadd.f32 %v3857, %v3860
      %vm3862 = vweird.f32 %v3856
      %vm3863 = vweird.f32 %v3857
      %vm3864 = vmor %vm3862, %vm3863
      %v3865 = vsel %vm3864, %v3857, %v3861
      %v3866 = vand.u32 2147483647, %v3856
      %vm3867 = vcmp.eq.f32.partialorder %v3866, 8.507059e+37
      %v3868 = vand.u32 %v3856, 2147483648
      %v3869 = vor.u32 1.1754944e-38, %v3868
      %v3870 = vsel %vm3867, %v3869, %v3865
      %v3871 = vmul.f32 %v3853, %v3870
      %3872 = vrot.lane.b32.xlu0 %v3817, 64
      %v3873 = vpop.permute.xlu0 %3872
      %v3875 = vsel %vm569, %v3871, 0
      %v3877 = vsel %vm582, %v3873, 0
      %3879 = vmatpush.msra.mxu0 0.0
      %3880 = vmatpush.msra.mxu0 0.0
      %3881 = vmatpush.msra.mxu0 0.0
      %3882 = vmatpush.msra.mxu0 0.0
      %3883 = vmatpush.msra.mxu0 0.0
      %3884 = vmatpush.msra.mxu0 0.0
      %3885 = vmatpush.msra.mxu0 0.0
      %3886 = vmatpush.msra.mxu0 0.0
      %3887 = vmatpush.msra.mxu0 0.0
      %3888 = vmatpush.msra.mxu0 0.0
      %3889 = vmatpush.msra.mxu0 0.0
      %3890 = vmatpush.msra.mxu0 0.0
      %3891 = vmatpush.msra.mxu0 0.0
      %3892 = vmatpush.msra.mxu0 0.0
      %3893 = vmatpush.msra.mxu0 0.0
      %3894 = vmatpush.msra.mxu0 %v3877
      %3895 = vmatmul.f32.gmra.mxu0 %v3875
      %v3896 = vpop.f32.mrf.mxu0
      %v3897 = vadd.f32 0.0, %v3896
      %3898 = vdwg.mxu0
      %3899 = vrot.lane.b32.xlu0 %v3817, 120
      %v3900 = vpop.permute.xlu0 %3899
      %3901 = vrot.lane.b32.xlu0 %v3817, 88
      %v3902 = vpop.permute.xlu0 %3901
      %v3903 = vsel %vm687, %v3900, 0
      %v3905 = vsel %vm687, %v3902, 0
      %3907 = vmatpush.xpose.msra.mxu0 0.0
      %3908 = vmatpush.xpose.msra.mxu0 0.0
      %3909 = vmatpush.xpose.msra.mxu0 0.0
      %3910 = vmatpush.xpose.msra.mxu0 0.0
      %3911 = vmatpush.xpose.msra.mxu0 0.0
      %3912 = vmatpush.xpose.msra.mxu0 0.0
      %3913 = vmatpush.xpose.msra.mxu0 0.0
      %3914 = vmatpush.xpose.msra.mxu0 0.0
      %3915 = vmatpush.xpose.msra.mxu0 0.0
      %3916 = vmatpush.xpose.msra.mxu0 0.0
      %3917 = vmatpush.xpose.msra.mxu0 0.0
      %3918 = vmatpush.xpose.msra.mxu0 0.0
      %3919 = vmatpush.xpose.msra.mxu0 0.0
      %3920 = vmatpush.xpose.msra.mxu0 0.0
      %3921 = vmatpush.xpose.msra.mxu0 0.0
      %3922 = vmatpush.xpose.msra.mxu0 %v3905
      %3923 = vmatmul.f32.gmra.mxu0 %v3903
      %v3924 = vpop.f32.mrf.mxu0
      %v3925 = vadd.f32 0.0, %v3924
      %3926 = vdwg.mxu0
      %v3927 = vmul.f32 %v3925, 0.35355338
      %v3928 = vsel %vm3847, %v3927, -inf
      %3929 = vmax.xlane.f32.xlu0 %v3928
      %v3930 = vpop.xlane.xlu0 %3929
      %v3931 = vsub.f32 %v3927, %v3930
      %v3932 = vmul.f32 %v3931, 1.442695
      %v3933 = vpow.pop %v3932
      %v3934 = vsel %vm3847, %v3933, 0.0
      %3935 = vadd.xlane.f32.xlu0 %v3934
      %v3936 = vpop.xlane.xlu0 %3935
      %v3937 = vrcp.pop %v3936
      %v3938 = vmul.f32 %v3936, %v3937
      %v3939 = vsub.f32 1.0, %v3938
      %v3940 = vmul.f32 %v3937, %v3939
      %v3941 = vadd.f32 %v3937, %v3940
      %vm3942 = vweird.f32 %v3936
      %vm3943 = vweird.f32 %v3937
      %vm3944 = vmor %vm3942, %vm3943
      %v3945 = vsel %vm3944, %v3937, %v3941
      %v3946 = vand.u32 2147483647, %v3936
      %vm3947 = vcmp.eq.f32.partialorder %v3946, 8.507059e+37
      %v3948 = vand.u32 %v3936, 2147483648
      %v3949 = vor.u32 1.1754944e-38, %v3948
      %v3950 = vsel %vm3947, %v3949, %v3945
      %v3951 = vmul.f32 %v3933, %v3950
      %3952 = vrot.lane.b32.xlu0 %v3817, 56
      %v3953 = vpop.permute.xlu0 %3952
      %v3955 = vsel %vm569, %v3951, 0
      %v3957 = vsel %vm582, %v3953, 0
      %3959 = vmatpush.msra.mxu0 0.0
      %3960 = vmatpush.msra.mxu0 0.0
      %3961 = vmatpush.msra.mxu0 0.0
      %3962 = vmatpush.msra.mxu0 0.0
      %3963 = vmatpush.msra.mxu0 0.0
      %3964 = vmatpush.msra.mxu0 0.0
      %3965 = vmatpush.msra.mxu0 0.0
      %3966 = vmatpush.msra.mxu0 0.0
      %3967 = vmatpush.msra.mxu0 0.0
      %3968 = vmatpush.msra.mxu0 0.0
      %3969 = vmatpush.msra.mxu0 0.0
      %3970 = vmatpush.msra.mxu0 0.0
      %3971 = vmatpush.msra.mxu0 0.0
      %3972 = vmatpush.msra.mxu0 0.0
      %3973 = vmatpush.msra.mxu0 0.0
      %3974 = vmatpush.msra.mxu0 %v3957
      %3975 = vmatmul.f32.gmra.mxu0 %v3955
      %v3976 = vpop.f32.mrf.mxu0
      %v3977 = vadd.f32 0.0, %v3976
      %3978 = vdwg.mxu0
      %3979 = vrot.lane.b32.xlu0 %v3817, 112
      %v3980 = vpop.permute.xlu0 %3979
      %3981 = vrot.lane.b32.xlu0 %v3817, 80
      %v3982 = vpop.permute.xlu0 %3981
      %v3983 = vsel %vm687, %v3980, 0
      %v3985 = vsel %vm687, %v3982, 0
      %3987 = vmatpush.xpose.msra.mxu0 0.0
      %3988 = vmatpush.xpose.msra.mxu0 0.0
      %3989 = vmatpush.xpose.msra.mxu0 0.0
      %3990 = vmatpush.xpose.msra.mxu0 0.0
      %3991 = vmatpush.xpose.msra.mxu0 0.0
      %3992 = vmatpush.xpose.msra.mxu0 0.0
      %3993 = vmatpush.xpose.msra.mxu0 0.0
      %3994 = vmatpush.xpose.msra.mxu0 0.0
      %3995 = vmatpush.xpose.msra.mxu0 0.0
      %3996 = vmatpush.xpose.msra.mxu0 0.0
      %3997 = vmatpush.xpose.msra.mxu0 0.0
      %3998 = vmatpush.xpose.msra.mxu0 0.0
      %3999 = vmatpush.xpose.msra.mxu0 0.0
      %4000 = vmatpush.xpose.msra.mxu0 0.0
      %4001 = vmatpush.xpose.msra.mxu0 0.0
      %4002 = vmatpush.xpose.msra.mxu0 %v3985
      %4003 = vmatmul.f32.gmra.mxu0 %v3983
      %v4004 = vpop.f32.mrf.mxu0
      %v4005 = vadd.f32 0.0, %v4004
      %4006 = vdwg.mxu0
      %v4007 = vmul.f32 %v4005, 0.35355338
      %v4008 = vsel %vm3847, %v4007, -inf
      %4009 = vmax.xlane.f32.xlu0 %v4008
      %v4010 = vpop.xlane.xlu0 %4009
      %v4011 = vsub.f32 %v4007, %v4010
      %v4012 = vmul.f32 %v4011, 1.442695
      %v4013 = vpow.pop %v4012
      %v4014 = vsel %vm3847, %v4013, 0.0
      %4015 = vadd.xlane.f32.xlu0 %v4014
      %v4016 = vpop.xlane.xlu0 %4015
      %v4017 = vrcp.pop %v4016
      %v4018 = vmul.f32 %v4016, %v4017
      %v4019 = vsub.f32 1.0, %v4018
      %v4020 = vmul.f32 %v4017, %v4019
      %v4021 = vadd.f32 %v4017, %v4020
      %vm4022 = vweird.f32 %v4016
      %vm4023 = vweird.f32 %v4017
      %vm4024 = vmor %vm4022, %vm4023
      %v4025 = vsel %vm4024, %v4017, %v4021
      %v4026 = vand.u32 2147483647, %v4016
      %vm4027 = vcmp.eq.f32.partialorder %v4026, 8.507059e+37
      %v4028 = vand.u32 %v4016, 2147483648
      %v4029 = vor.u32 1.1754944e-38, %v4028
      %v4030 = vsel %vm4027, %v4029, %v4025
      %v4031 = vmul.f32 %v4013, %v4030
      %4032 = vrot.lane.b32.xlu0 %v3817, 48
      %v4033 = vpop.permute.xlu0 %4032
      %v4035 = vsel %vm569, %v4031, 0
      %v4037 = vsel %vm582, %v4033, 0
      %4039 = vmatpush.msra.mxu0 0.0
      %4040 = vmatpush.msra.mxu0 0.0
      %4041 = vmatpush.msra.mxu0 0.0
      %4042 = vmatpush.msra.mxu0 0.0
      %4043 = vmatpush.msra.mxu0 0.0
      %4044 = vmatpush.msra.mxu0 0.0
      %4045 = vmatpush.msra.mxu0 0.0
      %4046 = vmatpush.msra.mxu0 0.0
      %4047 = vmatpush.msra.mxu0 0.0
      %4048 = vmatpush.msra.mxu0 0.0
      %4049 = vmatpush.msra.mxu0 0.0
      %4050 = vmatpush.msra.mxu0 0.0
      %4051 = vmatpush.msra.mxu0 0.0
      %4052 = vmatpush.msra.mxu0 0.0
      %4053 = vmatpush.msra.mxu0 0.0
      %4054 = vmatpush.msra.mxu0 %v4037
      %4055 = vmatmul.f32.gmra.mxu0 %v4035
      %v4056 = vpop.f32.mrf.mxu0
      %v4057 = vadd.f32 0.0, %v4056
      %4058 = vdwg.mxu0
      %4059 = vrot.lane.b32.xlu0 %v3817, 104
      %v4060 = vpop.permute.xlu0 %4059
      %4061 = vrot.lane.b32.xlu0 %v3817, 72
      %v4062 = vpop.permute.xlu0 %4061
      %v4063 = vsel %vm687, %v4060, 0
      %v4065 = vsel %vm687, %v4062, 0
      %4067 = vmatpush.xpose.msra.mxu0 0.0
      %4068 = vmatpush.xpose.msra.mxu0 0.0
      %4069 = vmatpush.xpose.msra.mxu0 0.0
      %4070 = vmatpush.xpose.msra.mxu0 0.0
      %4071 = vmatpush.xpose.msra.mxu0 0.0
      %4072 = vmatpush.xpose.msra.mxu0 0.0
      %4073 = vmatpush.xpose.msra.mxu0 0.0
      %4074 = vmatpush.xpose.msra.mxu0 0.0
      %4075 = vmatpush.xpose.msra.mxu0 0.0
      %4076 = vmatpush.xpose.msra.mxu0 0.0
      %4077 = vmatpush.xpose.msra.mxu0 0.0
      %4078 = vmatpush.xpose.msra.mxu0 0.0
      %4079 = vmatpush.xpose.msra.mxu0 0.0
      %4080 = vmatpush.xpose.msra.mxu0 0.0
      %4081 = vmatpush.xpose.msra.mxu0 0.0
      %4082 = vmatpush.xpose.msra.mxu0 %v4065
      %4083 = vmatmul.f32.gmra.mxu0 %v4063
      %v4084 = vpop.f32.mrf.mxu0
      %v4085 = vadd.f32 0.0, %v4084
      %4086 = vdwg.mxu0
      %v4087 = vmul.f32 %v4085, 0.35355338
      %v4088 = vsel %vm3847, %v4087, -inf
      %4089 = vmax.xlane.f32.xlu0 %v4088
      %v4090 = vpop.xlane.xlu0 %4089
      %v4091 = vsub.f32 %v4087, %v4090
      %v4092 = vmul.f32 %v4091, 1.442695
      %v4093 = vpow.pop %v4092
      %v4094 = vsel %vm3847, %v4093, 0.0
      %4095 = vadd.xlane.f32.xlu0 %v4094
      %v4096 = vpop.xlane.xlu0 %4095
      %v4097 = vrcp.pop %v4096
      %v4098 = vmul.f32 %v4096, %v4097
      %v4099 = vsub.f32 1.0, %v4098
      %v4100 = vmul.f32 %v4097, %v4099
      %v4101 = vadd.f32 %v4097, %v4100
      %vm4102 = vweird.f32 %v4096
      %vm4103 = vweird.f32 %v4097
      %vm4104 = vmor %vm4102, %vm4103
      %v4105 = vsel %vm4104, %v4097, %v4101
      %v4106 = vand.u32 2147483647, %v4096
      %vm4107 = vcmp.eq.f32.partialorder %v4106, 8.507059e+37
      %v4108 = vand.u32 %v4096, 2147483648
      %v4109 = vor.u32 1.1754944e-38, %v4108
      %v4110 = vsel %vm4107, %v4109, %v4105
      %v4111 = vmul.f32 %v4093, %v4110
      %4112 = vrot.lane.b32.xlu0 %v3817, 40
      %v4113 = vpop.permute.xlu0 %4112
      %v4115 = vsel %vm569, %v4111, 0
      %v4117 = vsel %vm582, %v4113, 0
      %4119 = vmatpush.msra.mxu0 0.0
      %4120 = vmatpush.msra.mxu0 0.0
      %4121 = vmatpush.msra.mxu0 0.0
      %4122 = vmatpush.msra.mxu0 0.0
      %4123 = vmatpush.msra.mxu0 0.0
      %4124 = vmatpush.msra.mxu0 0.0
      %4125 = vmatpush.msra.mxu0 0.0
      %4126 = vmatpush.msra.mxu0 0.0
      %4127 = vmatpush.msra.mxu0 0.0
      %4128 = vmatpush.msra.mxu0 0.0
      %4129 = vmatpush.msra.mxu0 0.0
      %4130 = vmatpush.msra.mxu0 0.0
      %4131 = vmatpush.msra.mxu0 0.0
      %4132 = vmatpush.msra.mxu0 0.0
      %4133 = vmatpush.msra.mxu0 0.0
      %4134 = vmatpush.msra.mxu0 %v4117
      %4135 = vmatmul.f32.gmra.mxu0 %v4115
      %v4136 = vpop.f32.mrf.mxu0
      %v4137 = vadd.f32 0.0, %v4136
      %4138 = vdwg.mxu0
      %4140 = vrot.lane.b32.xlu0 %v3977, 8
      %v4141 = vpop.permute.xlu0 %4140
      %4144 = vrot.lane.b32.xlu0 %v4057, 16
      %v4145 = vpop.permute.xlu0 %4144
      %4148 = vrot.lane.b32.xlu0 %v4137, 24
      %v4149 = vpop.permute.xlu0 %4148
      %v4151 = vsel %vm687, %v3897, %v4141
      %v4152 = vsel %vm1596, %v4151, %v4145
      %v4153 = vsel %vm1601, %v4152, %v4149
      %v4154 = vperm.slane %v3790, 1
      %4159 = vrot.lane.b32.xlu0 %v3791, 32
      %v4160 = vpop.permute.xlu0 %4159
      %4161 = vrot.lane.b32.xlu0 %v3792, 32
      %v4162 = vpop.permute.xlu0 %4161
      %4163 = vrot.lane.b32.xlu0 %v3793, 32
      %v4164 = vpop.permute.xlu0 %4163
      %4165 = vrot.lane.b32.xlu0 %v3794, 32
      %v4166 = vpop.permute.xlu0 %4165
      %v4172 = vsel %vm633, %v4153, 0
      %4174 = vmatpush.msra.mxu0 0.0
      %4175 = vmatpush.msra.mxu0 0.0
      %4176 = vmatpush.msra.mxu0 0.0
      %4177 = vmatpush.msra.mxu0 0.0
      %4178 = vmatpush.msra.mxu0 0.0
      %4179 = vmatpush.msra.mxu0 0.0
      %4180 = vmatpush.msra.mxu0 0.0
      %4181 = vmatpush.msra.mxu0 0.0
      %4182 = vmatpush.msra.mxu0 0.0
      %4183 = vmatpush.msra.mxu0 0.0
      %4184 = vmatpush.msra.mxu0 0.0
      %4185 = vmatpush.msra.mxu0 0.0
      %4186 = vmatpush.msra.mxu0 %v4166
      %4187 = vmatpush.msra.mxu0 %v4164
      %4188 = vmatpush.msra.mxu0 %v4162
      %4189 = vmatpush.msra.mxu0 %v4160
      %4190 = vmatmul.f32.gmra.mxu0 %v4172
      %v4191 = vpop.f32.mrf.mxu0
      %v4192 = vadd.f32 %v4154, %v4191
      %4193 = vdwg.mxu0
      %v4194 = vadd.f32 %v3788, %v4192
      %vm4195 = vcmask 257024
      %v4196 = vsel %vm4195, %v4194, 0.0
      %4197 = vadd.xlane.f32.xlu0 %v4196
      %v4198 = vpop.xlane.xlu0 %4197
      %v4199 = vmul.f32 %v4198, %v1686
      %v4200 = vsub.f32 %v4194, %v4199
      %v4201 = vmul.f32 %v4200, %v4200
      %v4202 = vsel %vm4195, %v4201, 0.0
      %4203 = vadd.xlane.f32.xlu0 %v4202
      %v4204 = vpop.xlane.xlu0 %4203
      %v4205 = vmul.f32 %v4204, %v1686
      %v4206 = vadd.f32 %v4205, 1e-05
      %v4207 = vrsqrt.pop %v4206
      %v4208 = vmul.f32 %v4207, %v4206
      %v4209 = vmul.f32 %v4208, %v4207
      %v4210 = vmul.f32 0.5, %v4209
      %v4211 = vsub.f32 1.5, %v4210
      %v4212 = vmul.f32 %v4207, %v4211
      %vm4213 = vweird.f32 %v4206
      %vm4214 = vweird.f32 %v4207
      %vm4215 = vmor %vm4213, %vm4214
      %v4216 = vsel %vm4215, %v4207, %v4212
      %v4217 = vmul.f32 %v4200, %v4216
      %v4218 = vperm.slane %v3790, 4
      %v4219 = vmul.f32 %v4217, %v4218
      %v4220 = vperm.slane %v3790, 5
      %v4221 = vadd.f32 %v4219, %v4220
      %v4222 = vld [vmem:[%s11 + $0x8] sm:$0xff]
      %v4223 = vld [vmem:[%s11 + $0x18] sm:$0xff]
      %v4224 = vld [vmem:[%s11 + $0x28] sm:$0xff]
      %v4225 = vld [vmem:[%s11 + $0x38] sm:$0xff]
      %v4226 = vperm.slane %v3790, 2
      %v4228 = vsel %vm633, %v4221, 0
      %4230 = vmatpush.msra.mxu0 0.0
      %4231 = vmatpush.msra.mxu0 0.0
      %4232 = vmatpush.msra.mxu0 0.0
      %4233 = vmatpush.msra.mxu0 0.0
      %4234 = vmatpush.msra.mxu0 0.0
      %4235 = vmatpush.msra.mxu0 0.0
      %4236 = vmatpush.msra.mxu0 0.0
      %4237 = vmatpush.msra.mxu0 0.0
      %4238 = vmatpush.msra.mxu0 0.0
      %4239 = vmatpush.msra.mxu0 0.0
      %4240 = vmatpush.msra.mxu0 0.0
      %4241 = vmatpush.msra.mxu0 0.0
      %4242 = vmatpush.msra.mxu0 %v4225
      %4243 = vmatpush.msra.mxu0 %v4224
      %4244 = vmatpush.msra.mxu0 %v4223
      %4245 = vmatpush.msra.mxu0 %v4222
      %4246 = vmatmul.f32.gmra.mxu0 %v4228
      %v4247 = vpop.f32.mrf.mxu0
      %v4248 = vadd.f32 %v4226, %v4247
      %4249 = vdwg.mxu0
      %v4250 = vmul.f32 %v4248, 0.5
      %v4251 = vmul.f32 %v4248, 0.70710677
      %v4252 = vmul.f32 %v4251, %v4251
      %v4253 = vmin.f32 16.0, %v4252
      %v4254 = vmul.f32 %v4253, 2.1237322e-06
      %v4255 = vadd.f32 %v4254, 0.00028619796
      %v4256 = vmul.f32 %v4253, %v4255
      %v4257 = vadd.f32 %v4256, 0.0036580483
      %v4258 = vmul.f32 %v4253, %v4257
      %v4259 = vadd.f32 %v4258, 0.05243302
      %v4260 = vmul.f32 %v4253, %v4259
      %v4261 = vadd.f32 %v4260, 0.18741608
      %v4262 = vmul.f32 %v4253, %v4261
      %v4263 = vadd.f32 %v4262, 1.1283791
      %v4264 = vmul.f32 %v4251, %v4263
      %v4265 = vmul.f32 %v4253, 3.8918573e-05
      %v4266 = vadd.f32 %v4265, 0.001143296
      %v4267 = vmul.f32 %v4253, %v4266
      %v4268 = vadd.f32 %v4267, 0.014752088
      %v4269 = vmul.f32 %v4253, %v4268
      %v4270 = vadd.f32 %v4269, 0.112945676
      %v4271 = vmul.f32 %v4253, %v4270
      %v4272 = vadd.f32 %v4271, 0.4994258
      %v4273 = vmul.f32 %v4253, %v4272
      %v4274 = vadd.f32 %v4273, 1.0
      %v4275 = vrcp.pop %v4274
      %v4276 = vmul.f32 %v4274, %v4275
      %v4277 = vsub.f32 1.0, %v4276
      %v4278 = vmul.f32 %v4275, %v4277
      %v4279 = vadd.f32 %v4275, %v4278
      %vm4280 = vweird.f32 %v4274
      %vm4281 = vweird.f32 %v4275
      %vm4282 = vmor %vm4280, %vm4281
      %v4283 = vsel %vm4282, %v4275, %v4279
      %v4284 = vand.u32 2147483647, %v4274
      %vm4285 = vcmp.eq.f32.partialorder %v4284, 8.507059e+37
      %v4286 = vand.u32 %v4274, 2147483648
      %v4287 = vor.u32 1.1754944e-38, %v4286
      %v4288 = vsel %vm4285, %v4287, %v4283
      %v4289 = vmul.f32 %v4264, %v4288
      %v4290 = vmin.f32 %v4289, 1.0
      %v4291 = vmax.f32 %v4290, -1.0
      %v4292 = vadd.f32 %v4291, 1.0
      %v4293 = vmul.f32 %v4250, %v4292
      %v4294 = vld [vmem:[%s12] sm:$0xff]
      %v4295 = vld [vmem:[%s12 + $0x8] sm:$0xff]
      %v4296 = vld [vmem:[%s12 + $0x10] sm:$0xff]
      %v4297 = vld [vmem:[%s12 + $0x18] sm:$0xff]
      %v4298 = vld [vmem:[%s12 + $0x20] sm:$0xff]
      %v4299 = vld [vmem:[%s12 + $0x28] sm:$0xff]
      %v4300 = vld [vmem:[%s12 + $0x30] sm:$0xff]
      %v4301 = vld [vmem:[%s12 + $0x38] sm:$0xff]
      %v4302 = vperm.slane %v3790, 3
      %v4304 = vsel %vm2004, %v4293, 0
      %4306 = vmatpush.msra.mxu0 0.0
      %4307 = vmatpush.msra.mxu0 0.0
      %4308 = vmatpush.msra.mxu0 0.0
      %4309 = vmatpush.msra.mxu0 0.0
      %4310 = vmatpush.msra.mxu0 0.0
      %4311 = vmatpush.msra.mxu0 0.0
      %4312 = vmatpush.msra.mxu0 0.0
      %4313 = vmatpush.msra.mxu0 0.0
      %4314 = vmatpush.msra.mxu0 %v4301
      %4315 = vmatpush.msra.mxu0 %v4300
      %4316 = vmatpush.msra.mxu0 %v4299
      %4317 = vmatpush.msra.mxu0 %v4298
      %4318 = vmatpush.msra.mxu0 %v4297
      %4319 = vmatpush.msra.mxu0 %v4296
      %4320 = vmatpush.msra.mxu0 %v4295
      %4321 = vmatpush.msra.mxu0 %v4294
      %4322 = vmatmul.f32.gmra.mxu0 %v4304
      %v4323 = vpop.f32.mrf.mxu0
      %v4324 = vadd.f32 %v4302, %v4323
      %4325 = vdwg.mxu0
      %v4326 = vadd.f32 %v4221, %v4324
      %v4327 = vsel %vm4195, %v4326, 0.0
      %4328 = vadd.xlane.f32.xlu0 %v4327
      %v4329 = vpop.xlane.xlu0 %4328
      %v4330 = vmul.f32 %v4329, %v1686
      %v4331 = vsub.f32 %v4326, %v4330
      %v4332 = vmul.f32 %v4331, %v4331
      %v4333 = vsel %vm4195, %v4332, 0.0
      %4334 = vadd.xlane.f32.xlu0 %v4333
      %v4335 = vpop.xlane.xlu0 %4334
      %v4336 = vmul.f32 %v4335, %v1686
      %v4337 = vadd.f32 %v4336, 1e-05
      %v4338 = vrsqrt.pop %v4337
      %v4339 = vmul.f32 %v4338, %v4337
      %v4340 = vmul.f32 %v4339, %v4338
      %v4341 = vmul.f32 0.5, %v4340
      %v4342 = vsub.f32 1.5, %v4341
      %v4343 = vmul.f32 %v4338, %v4342
      %vm4344 = vweird.f32 %v4337
      %vm4345 = vweird.f32 %v4338
      %vm4346 = vmor %vm4344, %vm4345
      %v4347 = vsel %vm4346, %v4338, %v4343
      %v4348 = vmul.f32 %v4331, %v4347
      %v4349 = vperm.slane %v3790, 6
      %v4350 = vmul.f32 %v4348, %v4349
      %v4351 = vperm.slane %v3790, 7
      %v4352 = vadd.f32 %v4350, %v4351
      %s4353 = scalar_lea.vmem %s13, 8
      %v4354 = vld [vmem:[%s4353] sm:$0xff]
      %s4355 = scalar_lea.vmem %s11, 64
      %v4356 = vld [vmem:[%s4355] sm:$0xff]
      %v4357 = vld [vmem:[%s4355 + $0x10] sm:$0xff]
      %v4358 = vld [vmem:[%s4355 + $0x20] sm:$0xff]
      %v4359 = vld [vmem:[%s4355 + $0x30] sm:$0xff]
      %v4360 = vperm.slane %v4354, 0
      %v4362 = vsel %vm633, %v4352, 0
      %4364 = vmatpush.msra.mxu0 0.0
      %4365 = vmatpush.msra.mxu0 0.0
      %4366 = vmatpush.msra.mxu0 0.0
      %4367 = vmatpush.msra.mxu0 0.0
      %4368 = vmatpush.msra.mxu0 0.0
      %4369 = vmatpush.msra.mxu0 0.0
      %4370 = vmatpush.msra.mxu0 0.0
      %4371 = vmatpush.msra.mxu0 0.0
      %4372 = vmatpush.msra.mxu0 0.0
      %4373 = vmatpush.msra.mxu0 0.0
      %4374 = vmatpush.msra.mxu0 0.0
      %4375 = vmatpush.msra.mxu0 0.0
      %4376 = vmatpush.msra.mxu0 %v4359
      %4377 = vmatpush.msra.mxu0 %v4358
      %4378 = vmatpush.msra.mxu0 %v4357
      %4379 = vmatpush.msra.mxu0 %v4356
      %4380 = vmatmul.f32.gmra.mxu0 %v4362
      %v4381 = vpop.f32.mrf.mxu0
      %v4382 = vadd.f32 %v4360, %v4381
      %4383 = vdwg.mxu0
      %4385 = vrot.lane.b32.xlu0 %v4382, 96
      %v4386 = vpop.permute.xlu0 %4385
      %v4387 = vsel %vm687, %v4382, 0
      %v4389 = vsel %vm687, %v4386, 0
      %4391 = vmatpush.xpose.msra.mxu0 0.0
      %4392 = vmatpush.xpose.msra.mxu0 0.0
      %4393 = vmatpush.xpose.msra.mxu0 0.0
      %4394 = vmatpush.xpose.msra.mxu0 0.0
      %4395 = vmatpush.xpose.msra.mxu0 0.0
      %4396 = vmatpush.xpose.msra.mxu0 0.0
      %4397 = vmatpush.xpose.msra.mxu0 0.0
      %4398 = vmatpush.xpose.msra.mxu0 0.0
      %4399 = vmatpush.xpose.msra.mxu0 0.0
      %4400 = vmatpush.xpose.msra.mxu0 0.0
      %4401 = vmatpush.xpose.msra.mxu0 0.0
      %4402 = vmatpush.xpose.msra.mxu0 0.0
      %4403 = vmatpush.xpose.msra.mxu0 0.0
      %4404 = vmatpush.xpose.msra.mxu0 0.0
      %4405 = vmatpush.xpose.msra.mxu0 0.0
      %4406 = vmatpush.xpose.msra.mxu0 %v4389
      %4407 = vmatmul.f32.gmra.mxu0 %v4387
      %v4408 = vpop.f32.mrf.mxu0
      %v4409 = vadd.f32 0.0, %v4408
      %4410 = vdwg.mxu0
      %v4411 = vmul.f32 %v4409, 0.35355338
      %v4412 = vsel %vm3847, %v4411, -inf
      %4413 = vmax.xlane.f32.xlu0 %v4412
      %v4414 = vpop.xlane.xlu0 %4413
      %v4415 = vsub.f32 %v4411, %v4414
      %v4416 = vmul.f32 %v4415, 1.442695
      %v4417 = vpow.pop %v4416
      %v4418 = vsel %vm3847, %v4417, 0.0
      %4419 = vadd.xlane.f32.xlu0 %v4418
      %v4420 = vpop.xlane.xlu0 %4419
      %v4421 = vrcp.pop %v4420
      %v4422 = vmul.f32 %v4420, %v4421
      %v4423 = vsub.f32 1.0, %v4422
      %v4424 = vmul.f32 %v4421, %v4423
      %v4425 = vadd.f32 %v4421, %v4424
      %vm4426 = vweird.f32 %v4420
      %vm4427 = vweird.f32 %v4421
      %vm4428 = vmor %vm4426, %vm4427
      %v4429 = vsel %vm4428, %v4421, %v4425
      %v4430 = vand.u32 2147483647, %v4420
      %vm4431 = vcmp.eq.f32.partialorder %v4430, 8.507059e+37
      %v4432 = vand.u32 %v4420, 2147483648
      %v4433 = vor.u32 1.1754944e-38, %v4432
      %v4434 = vsel %vm4431, %v4433, %v4429
      %v4435 = vmul.f32 %v4417, %v4434
      %4436 = vrot.lane.b32.xlu0 %v4382, 64
      %v4437 = vpop.permute.xlu0 %4436
      %v4439 = vsel %vm569, %v4435, 0
      %v4441 = vsel %vm582, %v4437, 0
      %4443 = vmatpush.msra.mxu0 0.0
      %4444 = vmatpush.msra.mxu0 0.0
      %4445 = vmatpush.msra.mxu0 0.0
      %4446 = vmatpush.msra.mxu0 0.0
      %4447 = vmatpush.msra.mxu0 0.0
      %4448 = vmatpush.msra.mxu0 0.0
      %4449 = vmatpush.msra.mxu0 0.0
      %4450 = vmatpush.msra.mxu0 0.0
      %4451 = vmatpush.msra.mxu0 0.0
      %4452 = vmatpush.msra.mxu0 0.0
      %4453 = vmatpush.msra.mxu0 0.0
      %4454 = vmatpush.msra.mxu0 0.0
      %4455 = vmatpush.msra.mxu0 0.0
      %4456 = vmatpush.msra.mxu0 0.0
      %4457 = vmatpush.msra.mxu0 0.0
      %4458 = vmatpush.msra.mxu0 %v4441
      %4459 = vmatmul.f32.gmra.mxu0 %v4439
      %v4460 = vpop.f32.mrf.mxu0
      %v4461 = vadd.f32 0.0, %v4460
      %4462 = vdwg.mxu0
      %4463 = vrot.lane.b32.xlu0 %v4382, 120
      %v4464 = vpop.permute.xlu0 %4463
      %4465 = vrot.lane.b32.xlu0 %v4382, 88
      %v4466 = vpop.permute.xlu0 %4465
      %v4467 = vsel %vm687, %v4464, 0
      %v4469 = vsel %vm687, %v4466, 0
      %4471 = vmatpush.xpose.msra.mxu0 0.0
      %4472 = vmatpush.xpose.msra.mxu0 0.0
      %4473 = vmatpush.xpose.msra.mxu0 0.0
      %4474 = vmatpush.xpose.msra.mxu0 0.0
      %4475 = vmatpush.xpose.msra.mxu0 0.0
      %4476 = vmatpush.xpose.msra.mxu0 0.0
      %4477 = vmatpush.xpose.msra.mxu0 0.0
      %4478 = vmatpush.xpose.msra.mxu0 0.0
      %4479 = vmatpush.xpose.msra.mxu0 0.0
      %4480 = vmatpush.xpose.msra.mxu0 0.0
      %4481 = vmatpush.xpose.msra.mxu0 0.0
      %4482 = vmatpush.xpose.msra.mxu0 0.0
      %4483 = vmatpush.xpose.msra.mxu0 0.0
      %4484 = vmatpush.xpose.msra.mxu0 0.0
      %4485 = vmatpush.xpose.msra.mxu0 0.0
      %4486 = vmatpush.xpose.msra.mxu0 %v4469
      %4487 = vmatmul.f32.gmra.mxu0 %v4467
      %v4488 = vpop.f32.mrf.mxu0
      %v4489 = vadd.f32 0.0, %v4488
      %4490 = vdwg.mxu0
      %v4491 = vmul.f32 %v4489, 0.35355338
      %v4492 = vsel %vm3847, %v4491, -inf
      %4493 = vmax.xlane.f32.xlu0 %v4492
      %v4494 = vpop.xlane.xlu0 %4493
      %v4495 = vsub.f32 %v4491, %v4494
      %v4496 = vmul.f32 %v4495, 1.442695
      %v4497 = vpow.pop %v4496
      %v4498 = vsel %vm3847, %v4497, 0.0
      %4499 = vadd.xlane.f32.xlu0 %v4498
      %v4500 = vpop.xlane.xlu0 %4499
      %v4501 = vrcp.pop %v4500
      %v4502 = vmul.f32 %v4500, %v4501
      %v4503 = vsub.f32 1.0, %v4502
      %v4504 = vmul.f32 %v4501, %v4503
      %v4505 = vadd.f32 %v4501, %v4504
      %vm4506 = vweird.f32 %v4500
      %vm4507 = vweird.f32 %v4501
      %vm4508 = vmor %vm4506, %vm4507
      %v4509 = vsel %vm4508, %v4501, %v4505
      %v4510 = vand.u32 2147483647, %v4500
      %vm4511 = vcmp.eq.f32.partialorder %v4510, 8.507059e+37
      %v4512 = vand.u32 %v4500, 2147483648
      %v4513 = vor.u32 1.1754944e-38, %v4512
      %v4514 = vsel %vm4511, %v4513, %v4509
      %v4515 = vmul.f32 %v4497, %v4514
      %4516 = vrot.lane.b32.xlu0 %v4382, 56
      %v4517 = vpop.permute.xlu0 %4516
      %v4519 = vsel %vm569, %v4515, 0
      %v4521 = vsel %vm582, %v4517, 0
      %4523 = vmatpush.msra.mxu0 0.0
      %4524 = vmatpush.msra.mxu0 0.0
      %4525 = vmatpush.msra.mxu0 0.0
      %4526 = vmatpush.msra.mxu0 0.0
      %4527 = vmatpush.msra.mxu0 0.0
      %4528 = vmatpush.msra.mxu0 0.0
      %4529 = vmatpush.msra.mxu0 0.0
      %4530 = vmatpush.msra.mxu0 0.0
      %4531 = vmatpush.msra.mxu0 0.0
      %4532 = vmatpush.msra.mxu0 0.0
      %4533 = vmatpush.msra.mxu0 0.0
      %4534 = vmatpush.msra.mxu0 0.0
      %4535 = vmatpush.msra.mxu0 0.0
      %4536 = vmatpush.msra.mxu0 0.0
      %4537 = vmatpush.msra.mxu0 0.0
      %4538 = vmatpush.msra.mxu0 %v4521
      %4539 = vmatmul.f32.gmra.mxu0 %v4519
      %v4540 = vpop.f32.mrf.mxu0
      %v4541 = vadd.f32 0.0, %v4540
      %4542 = vdwg.mxu0
      %4543 = vrot.lane.b32.xlu0 %v4382, 112
      %v4544 = vpop.permute.xlu0 %4543
      %4545 = vrot.lane.b32.xlu0 %v4382, 80
      %v4546 = vpop.permute.xlu0 %4545
      %v4547 = vsel %vm687, %v4544, 0
      %v4549 = vsel %vm687, %v4546, 0
      %4551 = vmatpush.xpose.msra.mxu0 0.0
      %4552 = vmatpush.xpose.msra.mxu0 0.0
      %4553 = vmatpush.xpose.msra.mxu0 0.0
      %4554 = vmatpush.xpose.msra.mxu0 0.0
      %4555 = vmatpush.xpose.msra.mxu0 0.0
      %4556 = vmatpush.xpose.msra.mxu0 0.0
      %4557 = vmatpush.xpose.msra.mxu0 0.0
      %4558 = vmatpush.xpose.msra.mxu0 0.0
      %4559 = vmatpush.xpose.msra.mxu0 0.0
      %4560 = vmatpush.xpose.msra.mxu0 0.0
      %4561 = vmatpush.xpose.msra.mxu0 0.0
      %4562 = vmatpush.xpose.msra.mxu0 0.0
      %4563 = vmatpush.xpose.msra.mxu0 0.0
      %4564 = vmatpush.xpose.msra.mxu0 0.0
      %4565 = vmatpush.xpose.msra.mxu0 0.0
      %4566 = vmatpush.xpose.msra.mxu0 %v4549
      %4567 = vmatmul.f32.gmra.mxu0 %v4547
      %v4568 = vpop.f32.mrf.mxu0
      %v4569 = vadd.f32 0.0, %v4568
      %4570 = vdwg.mxu0
      %v4571 = vmul.f32 %v4569, 0.35355338
      %v4572 = vsel %vm3847, %v4571, -inf
      %4573 = vmax.xlane.f32.xlu0 %v4572
      %v4574 = vpop.xlane.xlu0 %4573
      %v4575 = vsub.f32 %v4571, %v4574
      %v4576 = vmul.f32 %v4575, 1.442695
      %v4577 = vpow.pop %v4576
      %v4578 = vsel %vm3847, %v4577, 0.0
      %4579 = vadd.xlane.f32.xlu0 %v4578
      %v4580 = vpop.xlane.xlu0 %4579
      %v4581 = vrcp.pop %v4580
      %v4582 = vmul.f32 %v4580, %v4581
      %v4583 = vsub.f32 1.0, %v4582
      %v4584 = vmul.f32 %v4581, %v4583
      %v4585 = vadd.f32 %v4581, %v4584
      %vm4586 = vweird.f32 %v4580
      %vm4587 = vweird.f32 %v4581
      %vm4588 = vmor %vm4586, %vm4587
      %v4589 = vsel %vm4588, %v4581, %v4585
      %v4590 = vand.u32 2147483647, %v4580
      %vm4591 = vcmp.eq.f32.partialorder %v4590, 8.507059e+37
      %v4592 = vand.u32 %v4580, 2147483648
      %v4593 = vor.u32 1.1754944e-38, %v4592
      %v4594 = vsel %vm4591, %v4593, %v4589
      %v4595 = vmul.f32 %v4577, %v4594
      %4596 = vrot.lane.b32.xlu0 %v4382, 48
      %v4597 = vpop.permute.xlu0 %4596
      %v4599 = vsel %vm569, %v4595, 0
      %v4601 = vsel %vm582, %v4597, 0
      %4603 = vmatpush.msra.mxu0 0.0
      %4604 = vmatpush.msra.mxu0 0.0
      %4605 = vmatpush.msra.mxu0 0.0
      %4606 = vmatpush.msra.mxu0 0.0
      %4607 = vmatpush.msra.mxu0 0.0
      %4608 = vmatpush.msra.mxu0 0.0
      %4609 = vmatpush.msra.mxu0 0.0
      %4610 = vmatpush.msra.mxu0 0.0
      %4611 = vmatpush.msra.mxu0 0.0
      %4612 = vmatpush.msra.mxu0 0.0
      %4613 = vmatpush.msra.mxu0 0.0
      %4614 = vmatpush.msra.mxu0 0.0
      %4615 = vmatpush.msra.mxu0 0.0
      %4616 = vmatpush.msra.mxu0 0.0
      %4617 = vmatpush.msra.mxu0 0.0
      %4618 = vmatpush.msra.mxu0 %v4601
      %4619 = vmatmul.f32.gmra.mxu0 %v4599
      %v4620 = vpop.f32.mrf.mxu0
      %v4621 = vadd.f32 0.0, %v4620
      %4622 = vdwg.mxu0
      %4623 = vrot.lane.b32.xlu0 %v4382, 104
      %v4624 = vpop.permute.xlu0 %4623
      %4625 = vrot.lane.b32.xlu0 %v4382, 72
      %v4626 = vpop.permute.xlu0 %4625
      %v4627 = vsel %vm687, %v4624, 0
      %v4629 = vsel %vm687, %v4626, 0
      %4631 = vmatpush.xpose.msra.mxu0 0.0
      %4632 = vmatpush.xpose.msra.mxu0 0.0
      %4633 = vmatpush.xpose.msra.mxu0 0.0
      %4634 = vmatpush.xpose.msra.mxu0 0.0
      %4635 = vmatpush.xpose.msra.mxu0 0.0
      %4636 = vmatpush.xpose.msra.mxu0 0.0
      %4637 = vmatpush.xpose.msra.mxu0 0.0
      %4638 = vmatpush.xpose.msra.mxu0 0.0
      %4639 = vmatpush.xpose.msra.mxu0 0.0
      %4640 = vmatpush.xpose.msra.mxu0 0.0
      %4641 = vmatpush.xpose.msra.mxu0 0.0
      %4642 = vmatpush.xpose.msra.mxu0 0.0
      %4643 = vmatpush.xpose.msra.mxu0 0.0
      %4644 = vmatpush.xpose.msra.mxu0 0.0
      %4645 = vmatpush.xpose.msra.mxu0 0.0
      %4646 = vmatpush.xpose.msra.mxu0 %v4629
      %4647 = vmatmul.f32.gmra.mxu0 %v4627
      %v4648 = vpop.f32.mrf.mxu0
      %v4649 = vadd.f32 0.0, %v4648
      %4650 = vdwg.mxu0
      %v4651 = vmul.f32 %v4649, 0.35355338
      %v4652 = vsel %vm3847, %v4651, -inf
      %4653 = vmax.xlane.f32.xlu0 %v4652
      %v4654 = vpop.xlane.xlu0 %4653
      %v4655 = vsub.f32 %v4651, %v4654
      %v4656 = vmul.f32 %v4655, 1.442695
      %v4657 = vpow.pop %v4656
      %v4658 = vsel %vm3847, %v4657, 0.0
      %4659 = vadd.xlane.f32.xlu0 %v4658
      %v4660 = vpop.xlane.xlu0 %4659
      %v4661 = vrcp.pop %v4660
      %v4662 = vmul.f32 %v4660, %v4661
      %v4663 = vsub.f32 1.0, %v4662
      %v4664 = vmul.f32 %v4661, %v4663
      %v4665 = vadd.f32 %v4661, %v4664
      %vm4666 = vweird.f32 %v4660
      %vm4667 = vweird.f32 %v4661
      %vm4668 = vmor %vm4666, %vm4667
      %v4669 = vsel %vm4668, %v4661, %v4665
      %v4670 = vand.u32 2147483647, %v4660
      %vm4671 = vcmp.eq.f32.partialorder %v4670, 8.507059e+37
      %v4672 = vand.u32 %v4660, 2147483648
      %v4673 = vor.u32 1.1754944e-38, %v4672
      %v4674 = vsel %vm4671, %v4673, %v4669
      %v4675 = vmul.f32 %v4657, %v4674
      %4676 = vrot.lane.b32.xlu0 %v4382, 40
      %v4677 = vpop.permute.xlu0 %4676
      %v4679 = vsel %vm569, %v4675, 0
      %v4681 = vsel %vm582, %v4677, 0
      %4683 = vmatpush.msra.mxu0 0.0
      %4684 = vmatpush.msra.mxu0 0.0
      %4685 = vmatpush.msra.mxu0 0.0
      %4686 = vmatpush.msra.mxu0 0.0
      %4687 = vmatpush.msra.mxu0 0.0
      %4688 = vmatpush.msra.mxu0 0.0
      %4689 = vmatpush.msra.mxu0 0.0
      %4690 = vmatpush.msra.mxu0 0.0
      %4691 = vmatpush.msra.mxu0 0.0
      %4692 = vmatpush.msra.mxu0 0.0
      %4693 = vmatpush.msra.mxu0 0.0
      %4694 = vmatpush.msra.mxu0 0.0
      %4695 = vmatpush.msra.mxu0 0.0
      %4696 = vmatpush.msra.mxu0 0.0
      %4697 = vmatpush.msra.mxu0 0.0
      %4698 = vmatpush.msra.mxu0 %v4681
      %4699 = vmatmul.f32.gmra.mxu0 %v4679
      %v4700 = vpop.f32.mrf.mxu0
      %v4701 = vadd.f32 0.0, %v4700
      %4702 = vdwg.mxu0
      %4704 = vrot.lane.b32.xlu0 %v4541, 8
      %v4705 = vpop.permute.xlu0 %4704
      %4708 = vrot.lane.b32.xlu0 %v4621, 16
      %v4709 = vpop.permute.xlu0 %4708
      %4712 = vrot.lane.b32.xlu0 %v4701, 24
      %v4713 = vpop.permute.xlu0 %4712
      %v4715 = vsel %vm687, %v4461, %v4705
      %v4716 = vsel %vm1596, %v4715, %v4709
      %v4717 = vsel %vm1601, %v4716, %v4713
      %v4718 = vperm.slane %v4354, 1
      %4723 = vrot.lane.b32.xlu0 %v4356, 32
      %v4724 = vpop.permute.xlu0 %4723
      %4725 = vrot.lane.b32.xlu0 %v4357, 32
      %v4726 = vpop.permute.xlu0 %4725
      %4727 = vrot.lane.b32.xlu0 %v4358, 32
      %v4728 = vpop.permute.xlu0 %4727
      %4729 = vrot.lane.b32.xlu0 %v4359, 32
      %v4730 = vpop.permute.xlu0 %4729
      %v4736 = vsel %vm633, %v4717, 0
      %4738 = vmatpush.msra.mxu0 0.0
      %4739 = vmatpush.msra.mxu0 0.0
      %4740 = vmatpush.msra.mxu0 0.0
      %4741 = vmatpush.msra.mxu0 0.0
      %4742 = vmatpush.msra.mxu0 0.0
      %4743 = vmatpush.msra.mxu0 0.0
      %4744 = vmatpush.msra.mxu0 0.0
      %4745 = vmatpush.msra.mxu0 0.0
      %4746 = vmatpush.msra.mxu0 0.0
      %4747 = vmatpush.msra.mxu0 0.0
      %4748 = vmatpush.msra.mxu0 0.0
      %4749 = vmatpush.msra.mxu0 0.0
      %4750 = vmatpush.msra.mxu0 %v4730
      %4751 = vmatpush.msra.mxu0 %v4728
      %4752 = vmatpush.msra.mxu0 %v4726
      %4753 = vmatpush.msra.mxu0 %v4724
      %4754 = vmatmul.f32.gmra.mxu0 %v4736
      %v4755 = vpop.f32.mrf.mxu0
      %v4756 = vadd.f32 %v4718, %v4755
      %4757 = vdwg.mxu0
      %v4758 = vadd.f32 %v4352, %v4756
      %v4759 = vsel %vm4195, %v4758, 0.0
      %4760 = vadd.xlane.f32.xlu0 %v4759
      %v4761 = vpop.xlane.xlu0 %4760
      %v4762 = vmul.f32 %v4761, %v1686
      %v4763 = vsub.f32 %v4758, %v4762
      %v4764 = vmul.f32 %v4763, %v4763
      %v4765 = vsel %vm4195, %v4764, 0.0
      %4766 = vadd.xlane.f32.xlu0 %v4765
      %v4767 = vpop.xlane.xlu0 %4766
      %v4768 = vmul.f32 %v4767, %v1686
      %v4769 = vadd.f32 %v4768, 1e-05
      %v4770 = vrsqrt.pop %v4769
      %v4771 = vmul.f32 %v4770, %v4769
      %v4772 = vmul.f32 %v4771, %v4770
      %v4773 = vmul.f32 0.5, %v4772
      %v4774 = vsub.f32 1.5, %v4773
      %v4775 = vmul.f32 %v4770, %v4774
      %vm4776 = vweird.f32 %v4769
      %vm4777 = vweird.f32 %v4770
      %vm4778 = vmor %vm4776, %vm4777
      %v4779 = vsel %vm4778, %v4770, %v4775
      %v4780 = vmul.f32 %v4763, %v4779
      %v4781 = vperm.slane %v4354, 4
      %v4782 = vmul.f32 %v4780, %v4781
      %v4783 = vperm.slane %v4354, 5
      %v4784 = vadd.f32 %v4782, %v4783
      %v4785 = vld [vmem:[%s4355 + $0x8] sm:$0xff]
      %v4786 = vld [vmem:[%s4355 + $0x18] sm:$0xff]
      %v4787 = vld [vmem:[%s4355 + $0x28] sm:$0xff]
      %v4788 = vld [vmem:[%s4355 + $0x38] sm:$0xff]
      %v4789 = vperm.slane %v4354, 2
      %v4791 = vsel %vm633, %v4784, 0
      %4793 = vmatpush.msra.mxu0 0.0
      %4794 = vmatpush.msra.mxu0 0.0
      %4795 = vmatpush.msra.mxu0 0.0
      %4796 = vmatpush.msra.mxu0 0.0
      %4797 = vmatpush.msra.mxu0 0.0
      %4798 = vmatpush.msra.mxu0 0.0
      %4799 = vmatpush.msra.mxu0 0.0
      %4800 = vmatpush.msra.mxu0 0.0
      %4801 = vmatpush.msra.mxu0 0.0
      %4802 = vmatpush.msra.mxu0 0.0
      %4803 = vmatpush.msra.mxu0 0.0
      %4804 = vmatpush.msra.mxu0 0.0
      %4805 = vmatpush.msra.mxu0 %v4788
      %4806 = vmatpush.msra.mxu0 %v4787
      %4807 = vmatpush.msra.mxu0 %v4786
      %4808 = vmatpush.msra.mxu0 %v4785
      %4809 = vmatmul.f32.gmra.mxu0 %v4791
      %v4810 = vpop.f32.mrf.mxu0
      %v4811 = vadd.f32 %v4789, %v4810
      %4812 = vdwg.mxu0
      %v4813 = vmul.f32 %v4811, 0.5
      %v4814 = vmul.f32 %v4811, 0.70710677
      %v4815 = vmul.f32 %v4814, %v4814
      %v4816 = vmin.f32 16.0, %v4815
      %v4817 = vmul.f32 %v4816, 2.1237322e-06
      %v4818 = vadd.f32 %v4817, 0.00028619796
      %v4819 = vmul.f32 %v4816, %v4818
      %v4820 = vadd.f32 %v4819, 0.0036580483
      %v4821 = vmul.f32 %v4816, %v4820
      %v4822 = vadd.f32 %v4821, 0.05243302
      %v4823 = vmul.f32 %v4816, %v4822
      %v4824 = vadd.f32 %v4823, 0.18741608
      %v4825 = vmul.f32 %v4816, %v4824
      %v4826 = vadd.f32 %v4825, 1.1283791
      %v4827 = vmul.f32 %v4814, %v4826
      %v4828 = vmul.f32 %v4816, 3.8918573e-05
      %v4829 = vadd.f32 %v4828, 0.001143296
      %v4830 = vmul.f32 %v4816, %v4829
      %v4831 = vadd.f32 %v4830, 0.014752088
      %v4832 = vmul.f32 %v4816, %v4831
      %v4833 = vadd.f32 %v4832, 0.112945676
      %v4834 = vmul.f32 %v4816, %v4833
      %v4835 = vadd.f32 %v4834, 0.4994258
      %v4836 = vmul.f32 %v4816, %v4835
      %v4837 = vadd.f32 %v4836, 1.0
      %v4838 = vrcp.pop %v4837
      %v4839 = vmul.f32 %v4837, %v4838
      %v4840 = vsub.f32 1.0, %v4839
      %v4841 = vmul.f32 %v4838, %v4840
      %v4842 = vadd.f32 %v4838, %v4841
      %vm4843 = vweird.f32 %v4837
      %vm4844 = vweird.f32 %v4838
      %vm4845 = vmor %vm4843, %vm4844
      %v4846 = vsel %vm4845, %v4838, %v4842
      %v4847 = vand.u32 2147483647, %v4837
      %vm4848 = vcmp.eq.f32.partialorder %v4847, 8.507059e+37
      %v4849 = vand.u32 %v4837, 2147483648
      %v4850 = vor.u32 1.1754944e-38, %v4849
      %v4851 = vsel %vm4848, %v4850, %v4846
      %v4852 = vmul.f32 %v4827, %v4851
      %v4853 = vmin.f32 %v4852, 1.0
      %v4854 = vmax.f32 %v4853, -1.0
      %v4855 = vadd.f32 %v4854, 1.0
      %v4856 = vmul.f32 %v4813, %v4855
      %s4857 = scalar_lea.vmem %s12, 64
      %v4858 = vld [vmem:[%s4857] sm:$0xff]
      %v4859 = vld [vmem:[%s4857 + $0x8] sm:$0xff]
      %v4860 = vld [vmem:[%s4857 + $0x10] sm:$0xff]
      %v4861 = vld [vmem:[%s4857 + $0x18] sm:$0xff]
      %v4862 = vld [vmem:[%s4857 + $0x20] sm:$0xff]
      %v4863 = vld [vmem:[%s4857 + $0x28] sm:$0xff]
      %v4864 = vld [vmem:[%s4857 + $0x30] sm:$0xff]
      %v4865 = vld [vmem:[%s4857 + $0x38] sm:$0xff]
      %v4866 = vperm.slane %v4354, 3
      %v4868 = vsel %vm2004, %v4856, 0
      %4870 = vmatpush.msra.mxu0 0.0
      %4871 = vmatpush.msra.mxu0 0.0
      %4872 = vmatpush.msra.mxu0 0.0
      %4873 = vmatpush.msra.mxu0 0.0
      %4874 = vmatpush.msra.mxu0 0.0
      %4875 = vmatpush.msra.mxu0 0.0
      %4876 = vmatpush.msra.mxu0 0.0
      %4877 = vmatpush.msra.mxu0 0.0
      %4878 = vmatpush.msra.mxu0 %v4865
      %4879 = vmatpush.msra.mxu0 %v4864
      %4880 = vmatpush.msra.mxu0 %v4863
      %4881 = vmatpush.msra.mxu0 %v4862
      %4882 = vmatpush.msra.mxu0 %v4861
      %4883 = vmatpush.msra.mxu0 %v4860
      %4884 = vmatpush.msra.mxu0 %v4859
      %4885 = vmatpush.msra.mxu0 %v4858
      %4886 = vmatmul.f32.gmra.mxu0 %v4868
      %v4887 = vpop.f32.mrf.mxu0
      %v4888 = vadd.f32 %v4866, %v4887
      %4889 = vdwg.mxu0
      %v4890 = vadd.f32 %v4784, %v4888
      %v4891 = vsel %vm4195, %v4890, 0.0
      %4892 = vadd.xlane.f32.xlu0 %v4891
      %v4893 = vpop.xlane.xlu0 %4892
      %v4894 = vmul.f32 %v4893, %v1686
      %v4895 = vsub.f32 %v4890, %v4894
      %v4896 = vmul.f32 %v4895, %v4895
      %v4897 = vsel %vm4195, %v4896, 0.0
      %4898 = vadd.xlane.f32.xlu0 %v4897
      %v4899 = vpop.xlane.xlu0 %4898
      %v4900 = vmul.f32 %v4899, %v1686
      %v4901 = vadd.f32 %v4900, 1e-05
      %v4902 = vrsqrt.pop %v4901
      %v4903 = vmul.f32 %v4902, %v4901
      %v4904 = vmul.f32 %v4903, %v4902
      %v4905 = vmul.f32 0.5, %v4904
      %v4906 = vsub.f32 1.5, %v4905
      %v4907 = vmul.f32 %v4902, %v4906
      %vm4908 = vweird.f32 %v4901
      %vm4909 = vweird.f32 %v4902
      %vm4910 = vmor %vm4908, %vm4909
      %v4911 = vsel %vm4910, %v4902, %v4907
      %v4912 = vmul.f32 %v4895, %v4911
      %v4913 = vperm.slane %v4354, 6
      %v4914 = vmul.f32 %v4912, %v4913
      %v4915 = vperm.slane %v4354, 7
      %v4916 = vadd.f32 %v4914, %v4915
      %v4917 = vld [vmem:[%s10 + $0x1] sm:$0x1]
      %v4918 = vld [vmem:[%s10 + $0x2] sm:$0x1]
      %v4919 = vsel %vm4195, %v4916, 0.0
      %4920 = vadd.xlane.f32.xlu0 %v4919
      %v4921 = vpop.xlane.xlu0 %4920
      %v4922 = vmul.f32 %v4921, %v1686
      %v4923 = vsub.f32 %v4916, %v4922
      %v4924 = vmul.f32 %v4923, %v4923
      %v4925 = vsel %vm4195, %v4924, 0.0
      %4926 = vadd.xlane.f32.xlu0 %v4925
      %v4927 = vpop.xlane.xlu0 %4926
      %v4928 = vmul.f32 %v4927, %v1686
      %v4929 = vadd.f32 %v4928, 1e-05
      %v4930 = vrsqrt.pop %v4929
      %v4931 = vmul.f32 %v4930, %v4929
      %v4932 = vmul.f32 %v4931, %v4930
      %v4933 = vmul.f32 0.5, %v4932
      %v4934 = vsub.f32 1.5, %v4933
      %v4935 = vmul.f32 %v4930, %v4934
      %vm4936 = vweird.f32 %v4929
      %vm4937 = vweird.f32 %v4930
      %vm4938 = vmor %vm4936, %vm4937
      %v4939 = vsel %vm4938, %v4930, %v4935
      %v4940 = vmul.f32 %v4923, %v4939
      %v4941 = vperm.slane %v4917, 0
      %v4942 = vmul.f32 %v4940, %v4941
      %v4943 = vperm.slane %v4918, 0
      %v4944 = vadd.f32 %v4942, %v4943
      %v4945 = vld [vmem:[%s14] sm:$0xff]
      %v4946 = vld [vmem:[%s14 + $0x8] sm:$0xff]
      %v4947 = vld [vmem:[%s14 + $0x10] sm:$0xff]
      %v4948 = vld [vmem:[%s14 + $0x18] sm:$0xff]
      %v4949 = vmul.f32 %v3756, %v4945
      %v4950 = vmul.f32 %v3757, %v4946
      %v4951 = vmul.f32 %v3758, %v4947
      %v4952 = vmul.f32 %v3759, %v4948
      %v4953 = vsel %vm633, %v4949, 0.0
      %4954 = vadd.xlane.f32.xlu0 %v4953
      %v4955 = vpop.xlane.xlu0 %4954
      %v4956 = vsel %vm633, %v4950, 0.0
      %4957 = vadd.xlane.f32.xlu0 %v4956
      %v4958 = vpop.xlane.xlu0 %4957
      %v4959 = vsel %vm633, %v4951, 0.0
      %4960 = vadd.xlane.f32.xlu0 %v4959
      %v4961 = vpop.xlane.xlu0 %4960
      %v4962 = vsel %vm633, %v4952, 0.0
      %4963 = vadd.xlane.f32.xlu0 %v4962
      %v4964 = vpop.xlane.xlu0 %4963
      %v4965 = vadd.f32 %v4955, %v4958
      %v4966 = vadd.f32 %v4965, %v4961
      %v4967 = vadd.f32 %v4966, %v4964
      %v4968 = vrot.slane %v4967, 4
      %v4969 = vadd.f32 %v4967, %v4968
      %v4970 = vrot.slane %v4969, 2
      %v4971 = vadd.f32 %v4969, %v4970
      %v4972 = vrot.slane %v4971, 1
      %v4973 = vadd.f32 %v4971, %v4972
      %s4974 = scalar_lea.vmem %s14, 32
      %v4975 = vld [vmem:[%s4974] sm:$0xff]
      %v4976 = vld [vmem:[%s4974 + $0x8] sm:$0xff]
      %v4977 = vld [vmem:[%s4974 + $0x10] sm:$0xff]
      %v4978 = vld [vmem:[%s4974 + $0x18] sm:$0xff]
      %v4979 = vmul.f32 %v3756, %v4975
      %v4980 = vmul.f32 %v3757, %v4976
      %v4981 = vmul.f32 %v3758, %v4977
      %v4982 = vmul.f32 %v3759, %v4978
      %v4983 = vsel %vm633, %v4979, 0.0
      %4984 = vadd.xlane.f32.xlu0 %v4983
      %v4985 = vpop.xlane.xlu0 %4984
      %v4986 = vsel %vm633, %v4980, 0.0
      %4987 = vadd.xlane.f32.xlu0 %v4986
      %v4988 = vpop.xlane.xlu0 %4987
      %v4989 = vsel %vm633, %v4981, 0.0
      %4990 = vadd.xlane.f32.xlu0 %v4989
      %v4991 = vpop.xlane.xlu0 %4990
      %v4992 = vsel %vm633, %v4982, 0.0
      %4993 = vadd.xlane.f32.xlu0 %v4992
      %v4994 = vpop.xlane.xlu0 %4993
      %v4995 = vadd.f32 %v4985, %v4988
      %v4996 = vadd.f32 %v4995, %v4991
      %v4997 = vadd.f32 %v4996, %v4994
      %v4998 = vrot.slane %v4997, 4
      %v4999 = vadd.f32 %v4997, %v4998
      %v5000 = vrot.slane %v4999, 2
      %v5001 = vadd.f32 %v4999, %v5000
      %v5002 = vrot.slane %v5001, 1
      %v5003 = vadd.f32 %v5001, %v5002
      %s5004 = scalar_lea.vmem %s14, 64
      %v5005 = vld [vmem:[%s5004] sm:$0xff]
      %v5006 = vld [vmem:[%s5004 + $0x8] sm:$0xff]
      %v5007 = vld [vmem:[%s5004 + $0x10] sm:$0xff]
      %v5008 = vld [vmem:[%s5004 + $0x18] sm:$0xff]
      %v5009 = vmul.f32 %v3756, %v5005
      %v5010 = vmul.f32 %v3757, %v5006
      %v5011 = vmul.f32 %v3758, %v5007
      %v5012 = vmul.f32 %v3759, %v5008
      %v5013 = vsel %vm633, %v5009, 0.0
      %5014 = vadd.xlane.f32.xlu0 %v5013
      %v5015 = vpop.xlane.xlu0 %5014
      %v5016 = vsel %vm633, %v5010, 0.0
      %5017 = vadd.xlane.f32.xlu0 %v5016
      %v5018 = vpop.xlane.xlu0 %5017
      %v5019 = vsel %vm633, %v5011, 0.0
      %5020 = vadd.xlane.f32.xlu0 %v5019
      %v5021 = vpop.xlane.xlu0 %5020
      %v5022 = vsel %vm633, %v5012, 0.0
      %5023 = vadd.xlane.f32.xlu0 %v5022
      %v5024 = vpop.xlane.xlu0 %5023
      %v5025 = vadd.f32 %v5015, %v5018
      %v5026 = vadd.f32 %v5025, %v5021
      %v5027 = vadd.f32 %v5026, %v5024
      %v5028 = vrot.slane %v5027, 4
      %v5029 = vadd.f32 %v5027, %v5028
      %v5030 = vrot.slane %v5029, 2
      %v5031 = vadd.f32 %v5029, %v5030
      %v5032 = vrot.slane %v5031, 1
      %v5033 = vadd.f32 %v5031, %v5032
      %v5034 = vld [vmem:[%s15] sm:$0xf]
      %v5035 = vmul.f32 %v4944, %v5034
      %v5036 = vsel %vm4195, %v5035, 0.0
      %5037 = vadd.xlane.f32.xlu0 %v5036
      %v5038 = vpop.xlane.xlu0 %5037
      %v5039 = vsel %vm582, %v5038, 0.0
      %v5040 = vrot.slane %v5039, 4
      %v5041 = vadd.f32 %v5039, %v5040
      %v5042 = vrot.slane %v5041, 2
      %v5043 = vadd.f32 %v5041, %v5042
      %v5044 = vrot.slane %v5043, 1
      %v5045 = vadd.f32 %v5043, %v5044
      %s5046 = scalar_lea.vmem %s15, 4
      %v5047 = vld [vmem:[%s5046] sm:$0xf]
      %v5048 = vmul.f32 %v4944, %v5047
      %v5049 = vsel %vm4195, %v5048, 0.0
      %5050 = vadd.xlane.f32.xlu0 %v5049
      %v5051 = vpop.xlane.xlu0 %5050
      %v5052 = vsel %vm582, %v5051, 0.0
      %v5053 = vrot.slane %v5052, 4
      %v5054 = vadd.f32 %v5052, %v5053
      %v5055 = vrot.slane %v5054, 2
      %v5056 = vadd.f32 %v5054, %v5055
      %v5057 = vrot.slane %v5056, 1
      %v5058 = vadd.f32 %v5056, %v5057
      %s5059 = scalar_lea.vmem %s15, 8
      %v5060 = vld [vmem:[%s5059] sm:$0xf]
      %v5061 = vmul.f32 %v4944, %v5060
      %v5062 = vsel %vm4195, %v5061, 0.0
      %5063 = vadd.xlane.f32.xlu0 %v5062
      %v5064 = vpop.xlane.xlu0 %5063
      %v5065 = vsel %vm582, %v5064, 0.0
      %v5066 = vrot.slane %v5065, 4
      %v5067 = vadd.f32 %v5065, %v5066
      %v5068 = vrot.slane %v5067, 2
      %v5069 = vadd.f32 %v5067, %v5068
      %v5070 = vrot.slane %v5069, 1
      %v5071 = vadd.f32 %v5069, %v5070
      %v5072 = vld [vmem:[%s16] sm:$0x1]
      %v5073 = vadd.f32 %v4973, %v5045
      %v5074 = vadd.f32 %v5073, %v5072
      %v5075 = vadd.f32 %v5003, %v5058
      %v5076 = vadd.f32 %v5075, %v5072
      %5078 = vrot.lane.b32.xlu0 %v5076, 127
      %v5079 = vpop.permute.xlu0 %5078
      %v5081 = vmax.f32 %v5074, %v5079
      %v5082 = vsub.f32 %v5074, %v5081
      %v5083 = vmul.f32 %v5082, 1.442695
      %v5084 = vpow.pop %v5083
      %5086 = vrot.lane.b32.xlu0 %v5081, 1
      %v5087 = vpop.permute.xlu0 %5086
      %v5089 = vsub.f32 %v5076, %v5087
      %v5090 = vmul.f32 %v5089, 1.442695
      %v5091 = vpow.pop %v5090
      %5093 = vrot.lane.b32.xlu0 %v5091, 127
      %v5094 = vpop.permute.xlu0 %5093
      %v5096 = vadd.f32 %v5084, %v5094
      %v5097 = vrcp.pop %v5096
      %v5098 = vmul.f32 %v5096, %v5097
      %v5099 = vsub.f32 1.0, %v5098
      %v5100 = vmul.f32 %v5097, %v5099
      %v5101 = vadd.f32 %v5097, %v5100
      %vm5102 = vweird.f32 %v5096
      %vm5103 = vweird.f32 %v5097
      %vm5104 = vmor %vm5102, %vm5103
      %v5105 = vsel %vm5104, %v5097, %v5101
      %v5106 = vand.u32 2147483647, %v5096
      %vm5107 = vcmp.eq.f32.partialorder %v5106, 8.507059e+37
      %v5108 = vand.u32 %v5096, 2147483648
      %v5109 = vor.u32 1.1754944e-38, %v5108
      %v5110 = vsel %vm5107, %v5109, %v5105
      %v5111 = vmul.f32 %v5084, %v5110
      %5113 = vrot.lane.b32.xlu0 %v5096, 1
      %v5114 = vpop.permute.xlu0 %5113
      %v5116 = vrcp.pop %v5114
      %v5117 = vmul.f32 %v5114, %v5116
      %v5118 = vsub.f32 1.0, %v5117
      %v5119 = vmul.f32 %v5116, %v5118
      %v5120 = vadd.f32 %v5116, %v5119
      %vm5121 = vweird.f32 %v5114
      %vm5122 = vweird.f32 %v5116
      %vm5123 = vmor %vm5121, %vm5122
      %v5124 = vsel %vm5123, %v5116, %v5120
      %v5125 = vand.u32 2147483647, %v5114
      %vm5126 = vcmp.eq.f32.partialorder %v5125, 8.507059e+37
      %v5127 = vand.u32 %v5114, 2147483648
      %v5128 = vor.u32 1.1754944e-38, %v5127
      %v5129 = vsel %vm5126, %v5128, %v5124
      %v5130 = vmul.f32 %v5091, %v5129
      %v5131 = vmul.f32 %v5111, %v5033
      %v5132 = vmul.f32 %v5130, %v5071
      %5134 = vrot.lane.b32.xlu0 %v5132, 127
      %v5135 = vpop.permute.xlu0 %5134
      %v5137 = vadd.f32 %v5131, %v5135
      %5139 = vrot.lane.b32.xlu0 %v5072, 126
      %v5140 = vpop.permute.xlu0 %5139
      %v5142 = vadd.f32 %v5137, %v5140
      %vm5143 = vcmask 0
      %5144 = vst.msk [vmem:[%s561] sm:$0x1] %vm5143, %v5142
      %p5145 = scmp.lt.s32.totalorder %s28, 1
      %s5146 = scalar_select %p5145, %s28, 1
      %s5147 = scalar_lea.vmem %s17, %s5146
      // Predicated region
      $region89: #{gtn_forward.3} parent=87 // pred_check
        %p5148 = pneg %p413
      $region90: #{gtn_forward.3} parent=87 // pred_check_branch
        %5150 = sbr.rel (%p5148) target = $region92
      $region91: #{gtn_forward.3} parent=87 // pred_region
        _
      $region92: #{gtn_forward.3} parent=87 // pred_fallthru
        _
    $region88: #{gtn_forward.3} parent=5 // pred_fallthru
      _
    %p5151 = scmp.le.s32.totalorder 2, %s23
    // Predicated region
    $region93: #{gtn_forward.3} parent=5 // pred_check
      %p5152 = pneg %p5151
    $region94: #{gtn_forward.3} parent=5 // pred_check_branch
      %5154 = sbr.rel (%p5152) target = $region96
    $region95: #{gtn_forward.3} parent=5 // pred_region
      %s5155 = ssub.s32 %s23, 2
      // Predicated region
      $region97: #{gtn_forward.3} parent=95 // pred_check
        %p5156 = pneg %p419
      $region98: #{gtn_forward.3} parent=95 // pred_check_branch
        %5158 = sbr.rel (%p5156) target = $region100
      $region99: #{gtn_forward.3} parent=95 // pred_region
        %p5159 = scmp.lt.s32.totalorder %s29, 1
        %s5160 = scalar_select %p5159, %s29, 1
        %s5161 = scalar_lea.vmem %s17, %s5160
      $region100: #{gtn_forward.3} parent=95 // pred_fallthru
        _
    $region96: #{gtn_forward.3} parent=5 // pred_fallthru
      _
  $region6: #{gtn_forward.3} parent=0 // loop_footer
    %s27 = sadd.s32 1, %s23
  $region7: #{gtn_forward.3} parent=0 // loop_footer_branch
    %22 = sbr.rel target = $region3
  $region8: #{gtn_forward.3} parent=0 // loop_exit
    _

</llo_original>
